<compile_context>
chip_gen: v7x
topology: tpu7x:2x2x1
jax: 0.10.0
libtpu: 0.0.40
codegen_flags: <defaults>
</compile_context>

<pallas_src>
import functools

import jax
import jax.numpy as jnp
from jax.experimental import pallas as pl
from jax.experimental.pallas import tpu as pltpu


# ----------------------------------------------------------------------------
# strided tap-window extraction (contiguous slices + last-dim-preserving
# reshapes only — no strided lax.slice, no gather)
# ----------------------------------------------------------------------------
def _tap_window(act, kh, kw, ho, wo, stride):
    """act: (n, h, w, c) value.  Returns (n, ho, wo, c) window for conv tap
    (kh, kw) with the given stride."""
    n, h, w, c = act.shape
    s = stride
    if s == 1:
        return act[:, kh:kh + ho, kw:kw + wo, :]
    # TODO(synk): ragged stride tail (kh + s*ho > h) not handled; it cannot
    # occur for the shapes exercised here.
    assert kh + s * ho <= h and kw + s * wo <= w, "ragged stride tail"
    z = act[:, kh:kh + s * ho, kw:kw + s * wo, :]            # (n, s*ho, s*wo, c)
    z = z.reshape(n, ho, s, s * wo, c)[:, :, 0:1, :, :]      # keep row phase 0
    z = z.reshape(n, ho, wo, s, c)[:, :, :, 0:1, :]          # keep col phase 0
    return z.reshape(n, ho, wo, c)


# ----------------------------------------------------------------------------
# fully fused forward kernel (single pallas_call, no grid)
# ----------------------------------------------------------------------------
def _fused_forward_kernel(*refs, layer_shapes, strides, eps):
    """refs = [x, (w, gamma, beta) per layer, out, shared im2col scratch]"""
    n_layers = len(strides)
    it = iter(refs)
    x_ref = next(it)
    layer_refs = [(next(it), next(it), next(it)) for _ in range(n_layers)]
    o_ref = next(it)
    p_ref = next(it)                     # shared (max_rows, max_k) f32 scratch

    act2d = None
    for li in range(n_layers):
        w_ref, g_ref, b_ref = layer_refs[li]
        n, h, w, cin = layer_shapes[li]
        s = strides[li]
        ho, wo = (h - 3) // s + 1, (w - 3) // s + 1
        cout = w_ref.shape[-1]
        rows = n * ho * wo
        k = 9 * cin

        act = x_ref[...] if li == 0 else act2d.reshape(n, h, w, cin)

        # --- strided im2col straight into the shared 2-D VMEM scratch ---
        for kh in range(3):
            for kw in range(3):
                tap = kh * 3 + kw
                win = _tap_window(act, kh, kw, ho, wo, s)     # (n, ho, wo, cin)
                p_ref[0:rows, tap * cin:(tap + 1) * cin] = win.reshape(rows, cin)

        # --- one bf16 MXU matmul for the whole conv layer (f32 accumulate) ---
        patches = p_ref[0:rows, 0:k].astype(jnp.bfloat16)
        y = jnp.dot(patches, w_ref[...], preferred_element_type=jnp.float32)

        # --- ReLU + BatchNorm2d (training-mode batch stats, two-pass var) ---
        a = jnp.maximum(y, 0.0)                               # (rows, cout) f32
        inv_cnt = 1.0 / float(rows)
        mean = jnp.sum(a, axis=0, keepdims=True) * inv_cnt
        d = a - mean
        var = jnp.sum(d * d, axis=0, keepdims=True) * inv_cnt
        scale = jax.lax.rsqrt(var + eps) * g_ref[...]         # rsqrt -> EUP slot
        act2d = d * scale + b_ref[...]

    o_ref[...] = act2d.astype(o_ref.dtype)                    # (rows_last, cout)


# ----------------------------------------------------------------------------
# wrappers
# ----------------------------------------------------------------------------
def fused_forward_nhwc(x_nhwc, params, stride_type, eps=1e-5):
    n, h, w, c = x_nhwc.shape
    inputs = [x_nhwc.astype(jnp.float32)]
    layer_shapes = []
    cur_h, cur_w, cur_c = h, w, c
    max_rows, max_k = 0, 0
    for (wgt, gamma, beta), s in zip(params, stride_type):
        cin, cout = wgt.shape[2], wgt.shape[3]
        assert cin == cur_c
        layer_shapes.append((n, cur_h, cur_w, cur_c))
        ho, wo = (cur_h - 3) // s + 1, (cur_w - 3) // s + 1
        inputs += [
            wgt.reshape(9 * cin, cout).astype(jnp.bfloat16),   # (kh,kw,ci) x co
            gamma.reshape(1, cout).astype(jnp.float32),
            beta.reshape(1, cout).astype(jnp.float32),
        ]
        max_rows = max(max_rows, n * ho * wo)
        max_k = max(max_k, 9 * cin)
        cur_h, cur_w, cur_c = ho, wo, cout

    rows_out = n * cur_h * cur_w
    kernel = functools.partial(
        _fused_forward_kernel,
        layer_shapes=tuple(layer_shapes),
        strides=tuple(int(s) for s in stride_type),
        eps=eps,
    )
    out2d = pl.pallas_call(
        kernel,
        out_shape=jax.ShapeDtypeStruct((rows_out, cur_c), jnp.float32),
        scratch_shapes=[pltpu.VMEM((max_rows, max_k), jnp.float32)],
    )(*inputs)
    return out2d.reshape(n, cur_h, cur_w, cur_c)


def init_model_forward(x_nchw, params, stride_type):
    # PyTorch feeds NCHW; the kernel works channels-last internally.
    x = jnp.transpose(x_nchw, (0, 2, 3, 1))
    y = fused_forward_nhwc(x, params, stride_type)            # NHWC
    return jnp.transpose(y, (0, 3, 1, 2))                     # back to NCHW


def init_params(key, model_type):
    """Parameters matching the torch module shapes: conv weight in HWIO
    (3,3,Cin,Cout); BN gamma=1, beta=0 (fresh-module defaults)."""
    params = []
    for i in range(len(model_type) - 1):
        cin, cout = model_type[i], model_type[i + 1]
        key, k = jax.random.split(key)
        bound = (3.0 / (cin * 9)) ** 0.5
        wgt = jax.random.uniform(k, (3, 3, cin, cout), jnp.float32, -bound, bound)
        params.append((wgt,
                       jnp.ones((cout,), jnp.float32),
                       jnp.zeros((cout,), jnp.float32)))
    return params


# ----------------------------------------------------------------------------
# reference (mirrors the kernel's bf16 MXU inputs, f32 accumulation/BN)
# ----------------------------------------------------------------------------
def _reference_forward(x_nchw, params, stride_type, eps=1e-5):
    x = x_nchw
    for (wgt, gamma, beta), s in zip(params, stride_type):
        y = jax.lax.conv_general_dilated(
            x.astype(jnp.bfloat16), wgt.astype(jnp.bfloat16),
            window_strides=(s, s), padding="VALID",
            dimension_numbers=("NCHW", "HWIO", "NCHW"),
            preferred_element_type=jnp.float32)
        a = jnp.maximum(y, 0.0)
        mean = jnp.mean(a, axis=(0, 2, 3), keepdims=True)
        var = jnp.mean(jnp.square(a - mean), axis=(0, 2, 3), keepdims=True)
        x = ((a - mean) * jax.lax.rsqrt(var + eps)
             * gamma.reshape(1, -1, 1, 1) + beta.reshape(1, -1, 1, 1))
    return x


if __name__ == "__main__":
    model_type = [4, 8, 16]     # Conv 4->8 (stride 1), Conv 8->16 (stride 2)
    stride_type = [1, 2]

    key = jax.random.PRNGKey(0)
    kx, kp = jax.random.split(key)
    x = jax.random.normal(kx, (2, 4, 16, 16), jnp.float32)    # NCHW like PyTorch

    params = init_params(kp, model_type)

    fwd = jax.jit(functools.partial(init_model_forward,
                                    stride_type=tuple(stride_type)))
    out = jax.block_until_ready(fwd(x, params))

    # Layer 1: 16 -> 14 (stride 1); Layer 2: 14 -> 6 (stride 2)
    assert out.shape == (2, 16, 6, 6), out.shape

    ref = _reference_forward(x, params, stride_type)
    err = float(jnp.max(jnp.abs(out - ref)))
    assert err < 2e-2, f"max abs err vs reference = {err}"

    print("KERNEL_OK")
</pallas_src>

<mosaic_0001>
module attributes {stable_mosaic.version = 11 : i64} {
  func.func @_fused_forward_kernel(%arg0: memref<2x16x16x4xf32, #tpu.memory_space<vmem>>, %arg1: memref<36x8xbf16, #tpu.memory_space<vmem>>, %arg2: memref<1x8xf32, #tpu.memory_space<vmem>>, %arg3: memref<1x8xf32, #tpu.memory_space<vmem>>, %arg4: memref<72x16xbf16, #tpu.memory_space<vmem>>, %arg5: memref<1x16xf32, #tpu.memory_space<vmem>>, %arg6: memref<1x16xf32, #tpu.memory_space<vmem>>, %arg7: memref<72x16xf32, #tpu.memory_space<vmem>>, %arg8: memref<392x72xf32, #tpu.memory_space<vmem>>) attributes {dimension_semantics = [], scalar_prefetch = 0 : i64, scratch_operands = 1 : i64, tpu.core_type = #tpu.core_type<tc>} {
    %c0 = arith.constant 0 : index
    %c0_0 = arith.constant 0 : index
    %c0_1 = arith.constant 0 : index
    %c0_2 = arith.constant 0 : index
    %0 = vector.load %arg0[%c0, %c0_0, %c0_1, %c0_2] : memref<2x16x16x4xf32, #tpu.memory_space<vmem>>, vector<2x16x16x4xf32>
    %1 = vector.extract_strided_slice %0 {offsets = [0, 0, 0, 0], sizes = [2, 14, 14, 4], strides = [1, 1, 1, 1]} : vector<2x16x16x4xf32> to vector<2x14x14x4xf32>
    %2 = vector.shape_cast %1 : vector<2x14x14x4xf32> to vector<392x4xf32>
    %c0_3 = arith.constant 0 : index
    %c0_4 = arith.constant 0 : index
    %3 = vector.load %arg8[%c0_3, %c0_4] : memref<392x72xf32, #tpu.memory_space<vmem>>, vector<392x4xf32>
    tpu.vector_store %arg8[%c0_3, %c0_4], %2 {strides = array<i32>} : memref<392x72xf32, #tpu.memory_space<vmem>>, vector<392x4xf32>,
    %4 = vector.extract_strided_slice %0 {offsets = [0, 0, 1, 0], sizes = [2, 14, 14, 4], strides = [1, 1, 1, 1]} : vector<2x16x16x4xf32> to vector<2x14x14x4xf32>
    %5 = vector.shape_cast %4 : vector<2x14x14x4xf32> to vector<392x4xf32>
    %c0_5 = arith.constant 0 : index
    %c4 = arith.constant 4 : index
    %6 = vector.load %arg8[%c0_5, %c4] : memref<392x72xf32, #tpu.memory_space<vmem>>, vector<392x4xf32>
    tpu.vector_store %arg8[%c0_5, %c4], %5 {strides = array<i32>} : memref<392x72xf32, #tpu.memory_space<vmem>>, vector<392x4xf32>,
    %7 = vector.extract_strided_slice %0 {offsets = [0, 0, 2, 0], sizes = [2, 14, 14, 4], strides = [1, 1, 1, 1]} : vector<2x16x16x4xf32> to vector<2x14x14x4xf32>
    %8 = vector.shape_cast %7 : vector<2x14x14x4xf32> to vector<392x4xf32>
    %c0_6 = arith.constant 0 : index
    %c8 = arith.constant 8 : index
    %9 = vector.load %arg8[%c0_6, %c8] : memref<392x72xf32, #tpu.memory_space<vmem>>, vector<392x4xf32>
    tpu.vector_store %arg8[%c0_6, %c8], %8 {strides = array<i32>} : memref<392x72xf32, #tpu.memory_space<vmem>>, vector<392x4xf32>,
    %10 = vector.extract_strided_slice %0 {offsets = [0, 1, 0, 0], sizes = [2, 14, 14, 4], strides = [1, 1, 1, 1]} : vector<2x16x16x4xf32> to vector<2x14x14x4xf32>
    %11 = vector.shape_cast %10 : vector<2x14x14x4xf32> to vector<392x4xf32>
    %c0_7 = arith.constant 0 : index
    %c12 = arith.constant 12 : index
    %12 = vector.load %arg8[%c0_7, %c12] : memref<392x72xf32, #tpu.memory_space<vmem>>, vector<392x4xf32>
    tpu.vector_store %arg8[%c0_7, %c12], %11 {strides = array<i32>} : memref<392x72xf32, #tpu.memory_space<vmem>>, vector<392x4xf32>,
    %13 = vector.extract_strided_slice %0 {offsets = [0, 1, 1, 0], sizes = [2, 14, 14, 4], strides = [1, 1, 1, 1]} : vector<2x16x16x4xf32> to vector<2x14x14x4xf32>
    %14 = vector.shape_cast %13 : vector<2x14x14x4xf32> to vector<392x4xf32>
    %c0_8 = arith.constant 0 : index
    %c16 = arith.constant 16 : index
    %15 = vector.load %arg8[%c0_8, %c16] : memref<392x72xf32, #tpu.memory_space<vmem>>, vector<392x4xf32>
    tpu.vector_store %arg8[%c0_8, %c16], %14 {strides = array<i32>} : memref<392x72xf32, #tpu.memory_space<vmem>>, vector<392x4xf32>,
    %16 = vector.extract_strided_slice %0 {offsets = [0, 1, 2, 0], sizes = [2, 14, 14, 4], strides = [1, 1, 1, 1]} : vector<2x16x16x4xf32> to vector<2x14x14x4xf32>
    %17 = vector.shape_cast %16 : vector<2x14x14x4xf32> to vector<392x4xf32>
    %c0_9 = arith.constant 0 : index
    %c20 = arith.constant 20 : index
    %18 = vector.load %arg8[%c0_9, %c20] : memref<392x72xf32, #tpu.memory_space<vmem>>, vector<392x4xf32>
    tpu.vector_store %arg8[%c0_9, %c20], %17 {strides = array<i32>} : memref<392x72xf32, #tpu.memory_space<vmem>>, vector<392x4xf32>,
    %19 = vector.extract_strided_slice %0 {offsets = [0, 2, 0, 0], sizes = [2, 14, 14, 4], strides = [1, 1, 1, 1]} : vector<2x16x16x4xf32> to vector<2x14x14x4xf32>
    %20 = vector.shape_cast %19 : vector<2x14x14x4xf32> to vector<392x4xf32>
    %c0_10 = arith.constant 0 : index
    %c24 = arith.constant 24 : index
    %21 = vector.load %arg8[%c0_10, %c24] : memref<392x72xf32, #tpu.memory_space<vmem>>, vector<392x4xf32>
    tpu.vector_store %arg8[%c0_10, %c24], %20 {strides = array<i32>} : memref<392x72xf32, #tpu.memory_space<vmem>>, vector<392x4xf32>,
    %22 = vector.extract_strided_slice %0 {offsets = [0, 2, 1, 0], sizes = [2, 14, 14, 4], strides = [1, 1, 1, 1]} : vector<2x16x16x4xf32> to vector<2x14x14x4xf32>
    %23 = vector.shape_cast %22 : vector<2x14x14x4xf32> to vector<392x4xf32>
    %c0_11 = arith.constant 0 : index
    %c28 = arith.constant 28 : index
    %24 = vector.load %arg8[%c0_11, %c28] : memref<392x72xf32, #tpu.memory_space<vmem>>, vector<392x4xf32>
    tpu.vector_store %arg8[%c0_11, %c28], %23 {strides = array<i32>} : memref<392x72xf32, #tpu.memory_space<vmem>>, vector<392x4xf32>,
    %25 = vector.extract_strided_slice %0 {offsets = [0, 2, 2, 0], sizes = [2, 14, 14, 4], strides = [1, 1, 1, 1]} : vector<2x16x16x4xf32> to vector<2x14x14x4xf32>
    %26 = vector.shape_cast %25 : vector<2x14x14x4xf32> to vector<392x4xf32>
    %c0_12 = arith.constant 0 : index
    %c32 = arith.constant 32 : index
    %27 = vector.load %arg8[%c0_12, %c32] : memref<392x72xf32, #tpu.memory_space<vmem>>, vector<392x4xf32>
    tpu.vector_store %arg8[%c0_12, %c32], %26 {strides = array<i32>} : memref<392x72xf32, #tpu.memory_space<vmem>>, vector<392x4xf32>,
    %c0_13 = arith.constant 0 : index
    %c0_14 = arith.constant 0 : index
    %28 = vector.load %arg8[%c0_13, %c0_14] : memref<392x72xf32, #tpu.memory_space<vmem>>, vector<392x36xf32>
    %29 = arith.truncf %28 : vector<392x36xf32> to vector<392x36xbf16>
    %c0_15 = arith.constant 0 : index
    %c0_16 = arith.constant 0 : index
    %30 = vector.load %arg1[%c0_15, %c0_16] : memref<36x8xbf16, #tpu.memory_space<vmem>>, vector<36x8xbf16>
    %cst = arith.constant dense<0.000000e+00> : vector<392x8xf32>
    %31 = tpu.matmul %29, %30, %cst {dimension_numbers = #tpu.dot_dimension_numbers<[1], [0], [0], [1], [0, 0, 1, 1], [], []>} : vector<392x36xbf16>, vector<36x8xbf16>, vector<392x8xf32> -> vector<392x8xf32>
    %cst_17 = arith.constant 0.000000e+00 : f32
    %32 = vector.broadcast %cst_17 : f32 to vector<392x8xf32>
    %33 = arith.maximumf %31, %32 : vector<392x8xf32>
    %cst_18 = arith.constant dense<0.000000e+00> : vector<8xf32>
    %34 = vector.multi_reduction <add>, %33, %cst_18 [0] : vector<392x8xf32> to vector<8xf32>
    %35 = vector.shape_cast %34 : vector<8xf32> to vector<1x8xf32>
    %cst_19 = arith.constant 0.00255102036 : f32
    %36 = vector.broadcast %cst_19 : f32 to vector<1x8xf32>
    %37 = arith.mulf %35, %36 : vector<1x8xf32>
    %38 = vector.broadcast %37 : vector<1x8xf32> to vector<392x8xf32>
    %39 = arith.subf %33, %38 : vector<392x8xf32>
    %40 = arith.mulf %39, %39 : vector<392x8xf32>
    %cst_20 = arith.constant dense<0.000000e+00> : vector<8xf32>
    %41 = vector.multi_reduction <add>, %40, %cst_20 [0] : vector<392x8xf32> to vector<8xf32>
    %42 = vector.shape_cast %41 : vector<8xf32> to vector<1x8xf32>
    %cst_21 = arith.constant 0.00255102036 : f32
    %43 = vector.broadcast %cst_21 : f32 to vector<1x8xf32>
    %44 = arith.mulf %42, %43 : vector<1x8xf32>
    %cst_22 = arith.constant 9.99999974E-6 : f32
    %45 = vector.broadcast %cst_22 : f32 to vector<1x8xf32>
    %46 = arith.addf %44, %45 : vector<1x8xf32>
    %47 = math.rsqrt %46 : vector<1x8xf32>
    %c0_23 = arith.constant 0 : index
    %c0_24 = arith.constant 0 : index
    %48 = vector.load %arg2[%c0_23, %c0_24] : memref<1x8xf32, #tpu.memory_space<vmem>>, vector<1x8xf32>
    %49 = arith.mulf %47, %48 : vector<1x8xf32>
    %50 = vector.broadcast %49 : vector<1x8xf32> to vector<392x8xf32>
    %51 = arith.mulf %39, %50 : vector<392x8xf32>
    %c0_25 = arith.constant 0 : index
    %c0_26 = arith.constant 0 : index
    %52 = vector.load %arg3[%c0_25, %c0_26] : memref<1x8xf32, #tpu.memory_space<vmem>>, vector<1x8xf32>
    %53 = vector.broadcast %52 : vector<1x8xf32> to vector<392x8xf32>
    %54 = arith.addf %51, %53 : vector<392x8xf32>
    %55 = vector.shape_cast %54 : vector<392x8xf32> to vector<2x14x14x8xf32>
    %56 = vector.extract_strided_slice %55 {offsets = [0, 0, 0, 0], sizes = [2, 12, 12, 8], strides = [1, 1, 1, 1]} : vector<2x14x14x8xf32> to vector<2x12x12x8xf32>
    %57 = vector.shape_cast %56 : vector<2x12x12x8xf32> to vector<2x6x2x12x8xf32>
    %58 = vector.extract_strided_slice %57 {offsets = [0, 0, 0, 0, 0], sizes = [2, 6, 1, 12, 8], strides = [1, 1, 1, 1, 1]} : vector<2x6x2x12x8xf32> to vector<2x6x1x12x8xf32>
    %59 = vector.shape_cast %58 : vector<2x6x1x12x8xf32> to vector<2x6x6x2x8xf32>
    %60 = vector.extract_strided_slice %59 {offsets = [0, 0, 0, 0, 0], sizes = [2, 6, 6, 1, 8], strides = [1, 1, 1, 1, 1]} : vector<2x6x6x2x8xf32> to vector<2x6x6x1x8xf32>
    %61 = vector.shape_cast %60 : vector<2x6x6x1x8xf32> to vector<2x6x6x8xf32>
    %62 = vector.shape_cast %61 : vector<2x6x6x8xf32> to vector<72x8xf32>
    %c0_27 = arith.constant 0 : index
    %c0_28 = arith.constant 0 : index
    %63 = vector.load %arg8[%c0_27, %c0_28] : memref<392x72xf32, #tpu.memory_space<vmem>>, vector<72x8xf32>
    tpu.vector_store %arg8[%c0_27, %c0_28], %62 {strides = array<i32>} : memref<392x72xf32, #tpu.memory_space<vmem>>, vector<72x8xf32>,
    %64 = vector.extract_strided_slice %55 {offsets = [0, 0, 1, 0], sizes = [2, 12, 12, 8], strides = [1, 1, 1, 1]} : vector<2x14x14x8xf32> to vector<2x12x12x8xf32>
    %65 = vector.shape_cast %64 : vector<2x12x12x8xf32> to vector<2x6x2x12x8xf32>
    %66 = vector.extract_strided_slice %65 {offsets = [0, 0, 0, 0, 0], sizes = [2, 6, 1, 12, 8], strides = [1, 1, 1, 1, 1]} : vector<2x6x2x12x8xf32> to vector<2x6x1x12x8xf32>
    %67 = vector.shape_cast %66 : vector<2x6x1x12x8xf32> to vector<2x6x6x2x8xf32>
    %68 = vector.extract_strided_slice %67 {offsets = [0, 0, 0, 0, 0], sizes = [2, 6, 6, 1, 8], strides = [1, 1, 1, 1, 1]} : vector<2x6x6x2x8xf32> to vector<2x6x6x1x8xf32>
    %69 = vector.shape_cast %68 : vector<2x6x6x1x8xf32> to vector<2x6x6x8xf32>
    %70 = vector.shape_cast %69 : vector<2x6x6x8xf32> to vector<72x8xf32>
    %c0_29 = arith.constant 0 : index
    %c8_30 = arith.constant 8 : index
    %71 = vector.load %arg8[%c0_29, %c8_30] : memref<392x72xf32, #tpu.memory_space<vmem>>, vector<72x8xf32>
    tpu.vector_store %arg8[%c0_29, %c8_30], %70 {strides = array<i32>} : memref<392x72xf32, #tpu.memory_space<vmem>>, vector<72x8xf32>,
    %72 = vector.extract_strided_slice %55 {offsets = [0, 0, 2, 0], sizes = [2, 12, 12, 8], strides = [1, 1, 1, 1]} : vector<2x14x14x8xf32> to vector<2x12x12x8xf32>
    %73 = vector.shape_cast %72 : vector<2x12x12x8xf32> to vector<2x6x2x12x8xf32>
    %74 = vector.extract_strided_slice %73 {offsets = [0, 0, 0, 0, 0], sizes = [2, 6, 1, 12, 8], strides = [1, 1, 1, 1, 1]} : vector<2x6x2x12x8xf32> to vector<2x6x1x12x8xf32>
    %75 = vector.shape_cast %74 : vector<2x6x1x12x8xf32> to vector<2x6x6x2x8xf32>
    %76 = vector.extract_strided_slice %75 {offsets = [0, 0, 0, 0, 0], sizes = [2, 6, 6, 1, 8], strides = [1, 1, 1, 1, 1]} : vector<2x6x6x2x8xf32> to vector<2x6x6x1x8xf32>
    %77 = vector.shape_cast %76 : vector<2x6x6x1x8xf32> to vector<2x6x6x8xf32>
    %78 = vector.shape_cast %77 : vector<2x6x6x8xf32> to vector<72x8xf32>
    %c0_31 = arith.constant 0 : index
    %c16_32 = arith.constant 16 : index
    %79 = vector.load %arg8[%c0_31, %c16_32] : memref<392x72xf32, #tpu.memory_space<vmem>>, vector<72x8xf32>
    tpu.vector_store %arg8[%c0_31, %c16_32], %78 {strides = array<i32>} : memref<392x72xf32, #tpu.memory_space<vmem>>, vector<72x8xf32>,
    %80 = vector.extract_strided_slice %55 {offsets = [0, 1, 0, 0], sizes = [2, 12, 12, 8], strides = [1, 1, 1, 1]} : vector<2x14x14x8xf32> to vector<2x12x12x8xf32>
    %81 = vector.shape_cast %80 : vector<2x12x12x8xf32> to vector<2x6x2x12x8xf32>
    %82 = vector.extract_strided_slice %81 {offsets = [0, 0, 0, 0, 0], sizes = [2, 6, 1, 12, 8], strides = [1, 1, 1, 1, 1]} : vector<2x6x2x12x8xf32> to vector<2x6x1x12x8xf32>
    %83 = vector.shape_cast %82 : vector<2x6x1x12x8xf32> to vector<2x6x6x2x8xf32>
    %84 = vector.extract_strided_slice %83 {offsets = [0, 0, 0, 0, 0], sizes = [2, 6, 6, 1, 8], strides = [1, 1, 1, 1, 1]} : vector<2x6x6x2x8xf32> to vector<2x6x6x1x8xf32>
    %85 = vector.shape_cast %84 : vector<2x6x6x1x8xf32> to vector<2x6x6x8xf32>
    %86 = vector.shape_cast %85 : vector<2x6x6x8xf32> to vector<72x8xf32>
    %c0_33 = arith.constant 0 : index
    %c24_34 = arith.constant 24 : index
    %87 = vector.load %arg8[%c0_33, %c24_34] : memref<392x72xf32, #tpu.memory_space<vmem>>, vector<72x8xf32>
    tpu.vector_store %arg8[%c0_33, %c24_34], %86 {strides = array<i32>} : memref<392x72xf32, #tpu.memory_space<vmem>>, vector<72x8xf32>,
    %88 = vector.extract_strided_slice %55 {offsets = [0, 1, 1, 0], sizes = [2, 12, 12, 8], strides = [1, 1, 1, 1]} : vector<2x14x14x8xf32> to vector<2x12x12x8xf32>
    %89 = vector.shape_cast %88 : vector<2x12x12x8xf32> to vector<2x6x2x12x8xf32>
    %90 = vector.extract_strided_slice %89 {offsets = [0, 0, 0, 0, 0], sizes = [2, 6, 1, 12, 8], strides = [1, 1, 1, 1, 1]} : vector<2x6x2x12x8xf32> to vector<2x6x1x12x8xf32>
    %91 = vector.shape_cast %90 : vector<2x6x1x12x8xf32> to vector<2x6x6x2x8xf32>
    %92 = vector.extract_strided_slice %91 {offsets = [0, 0, 0, 0, 0], sizes = [2, 6, 6, 1, 8], strides = [1, 1, 1, 1, 1]} : vector<2x6x6x2x8xf32> to vector<2x6x6x1x8xf32>
    %93 = vector.shape_cast %92 : vector<2x6x6x1x8xf32> to vector<2x6x6x8xf32>
    %94 = vector.shape_cast %93 : vector<2x6x6x8xf32> to vector<72x8xf32>
    %c0_35 = arith.constant 0 : index
    %c32_36 = arith.constant 32 : index
    %95 = vector.load %arg8[%c0_35, %c32_36] : memref<392x72xf32, #tpu.memory_space<vmem>>, vector<72x8xf32>
    tpu.vector_store %arg8[%c0_35, %c32_36], %94 {strides = array<i32>} : memref<392x72xf32, #tpu.memory_space<vmem>>, vector<72x8xf32>,
    %96 = vector.extract_strided_slice %55 {offsets = [0, 1, 2, 0], sizes = [2, 12, 12, 8], strides = [1, 1, 1, 1]} : vector<2x14x14x8xf32> to vector<2x12x12x8xf32>
    %97 = vector.shape_cast %96 : vector<2x12x12x8xf32> to vector<2x6x2x12x8xf32>
    %98 = vector.extract_strided_slice %97 {offsets = [0, 0, 0, 0, 0], sizes = [2, 6, 1, 12, 8], strides = [1, 1, 1, 1, 1]} : vector<2x6x2x12x8xf32> to vector<2x6x1x12x8xf32>
    %99 = vector.shape_cast %98 : vector<2x6x1x12x8xf32> to vector<2x6x6x2x8xf32>
    %100 = vector.extract_strided_slice %99 {offsets = [0, 0, 0, 0, 0], sizes = [2, 6, 6, 1, 8], strides = [1, 1, 1, 1, 1]} : vector<2x6x6x2x8xf32> to vector<2x6x6x1x8xf32>
    %101 = vector.shape_cast %100 : vector<2x6x6x1x8xf32> to vector<2x6x6x8xf32>
    %102 = vector.shape_cast %101 : vector<2x6x6x8xf32> to vector<72x8xf32>
    %c0_37 = arith.constant 0 : index
    %c40 = arith.constant 40 : index
    %103 = vector.load %arg8[%c0_37, %c40] : memref<392x72xf32, #tpu.memory_space<vmem>>, vector<72x8xf32>
    tpu.vector_store %arg8[%c0_37, %c40], %102 {strides = array<i32>} : memref<392x72xf32, #tpu.memory_space<vmem>>, vector<72x8xf32>,
    %104 = vector.extract_strided_slice %55 {offsets = [0, 2, 0, 0], sizes = [2, 12, 12, 8], strides = [1, 1, 1, 1]} : vector<2x14x14x8xf32> to vector<2x12x12x8xf32>
    %105 = vector.shape_cast %104 : vector<2x12x12x8xf32> to vector<2x6x2x12x8xf32>
    %106 = vector.extract_strided_slice %105 {offsets = [0, 0, 0, 0, 0], sizes = [2, 6, 1, 12, 8], strides = [1, 1, 1, 1, 1]} : vector<2x6x2x12x8xf32> to vector<2x6x1x12x8xf32>
    %107 = vector.shape_cast %106 : vector<2x6x1x12x8xf32> to vector<2x6x6x2x8xf32>
    %108 = vector.extract_strided_slice %107 {offsets = [0, 0, 0, 0, 0], sizes = [2, 6, 6, 1, 8], strides = [1, 1, 1, 1, 1]} : vector<2x6x6x2x8xf32> to vector<2x6x6x1x8xf32>
    %109 = vector.shape_cast %108 : vector<2x6x6x1x8xf32> to vector<2x6x6x8xf32>
    %110 = vector.shape_cast %109 : vector<2x6x6x8xf32> to vector<72x8xf32>
    %c0_38 = arith.constant 0 : index
    %c48 = arith.constant 48 : index
    %111 = vector.load %arg8[%c0_38, %c48] : memref<392x72xf32, #tpu.memory_space<vmem>>, vector<72x8xf32>
    tpu.vector_store %arg8[%c0_38, %c48], %110 {strides = array<i32>} : memref<392x72xf32, #tpu.memory_space<vmem>>, vector<72x8xf32>,
    %112 = vector.extract_strided_slice %55 {offsets = [0, 2, 1, 0], sizes = [2, 12, 12, 8], strides = [1, 1, 1, 1]} : vector<2x14x14x8xf32> to vector<2x12x12x8xf32>
    %113 = vector.shape_cast %112 : vector<2x12x12x8xf32> to vector<2x6x2x12x8xf32>
    %114 = vector.extract_strided_slice %113 {offsets = [0, 0, 0, 0, 0], sizes = [2, 6, 1, 12, 8], strides = [1, 1, 1, 1, 1]} : vector<2x6x2x12x8xf32> to vector<2x6x1x12x8xf32>
    %115 = vector.shape_cast %114 : vector<2x6x1x12x8xf32> to vector<2x6x6x2x8xf32>
    %116 = vector.extract_strided_slice %115 {offsets = [0, 0, 0, 0, 0], sizes = [2, 6, 6, 1, 8], strides = [1, 1, 1, 1, 1]} : vector<2x6x6x2x8xf32> to vector<2x6x6x1x8xf32>
    %117 = vector.shape_cast %116 : vector<2x6x6x1x8xf32> to vector<2x6x6x8xf32>
    %118 = vector.shape_cast %117 : vector<2x6x6x8xf32> to vector<72x8xf32>
    %c0_39 = arith.constant 0 : index
    %c56 = arith.constant 56 : index
    %119 = vector.load %arg8[%c0_39, %c56] : memref<392x72xf32, #tpu.memory_space<vmem>>, vector<72x8xf32>
    tpu.vector_store %arg8[%c0_39, %c56], %118 {strides = array<i32>} : memref<392x72xf32, #tpu.memory_space<vmem>>, vector<72x8xf32>,
    %120 = vector.extract_strided_slice %55 {offsets = [0, 2, 2, 0], sizes = [2, 12, 12, 8], strides = [1, 1, 1, 1]} : vector<2x14x14x8xf32> to vector<2x12x12x8xf32>
    %121 = vector.shape_cast %120 : vector<2x12x12x8xf32> to vector<2x6x2x12x8xf32>
    %122 = vector.extract_strided_slice %121 {offsets = [0, 0, 0, 0, 0], sizes = [2, 6, 1, 12, 8], strides = [1, 1, 1, 1, 1]} : vector<2x6x2x12x8xf32> to vector<2x6x1x12x8xf32>
    %123 = vector.shape_cast %122 : vector<2x6x1x12x8xf32> to vector<2x6x6x2x8xf32>
    %124 = vector.extract_strided_slice %123 {offsets = [0, 0, 0, 0, 0], sizes = [2, 6, 6, 1, 8], strides = [1, 1, 1, 1, 1]} : vector<2x6x6x2x8xf32> to vector<2x6x6x1x8xf32>
    %125 = vector.shape_cast %124 : vector<2x6x6x1x8xf32> to vector<2x6x6x8xf32>
    %126 = vector.shape_cast %125 : vector<2x6x6x8xf32> to vector<72x8xf32>
    %c0_40 = arith.constant 0 : index
    %c64 = arith.constant 64 : index
    %127 = vector.load %arg8[%c0_40, %c64] : memref<392x72xf32, #tpu.memory_space<vmem>>, vector<72x8xf32>
    tpu.vector_store %arg8[%c0_40, %c64], %126 {strides = array<i32>} : memref<392x72xf32, #tpu.memory_space<vmem>>, vector<72x8xf32>,
    %c0_41 = arith.constant 0 : index
    %c0_42 = arith.constant 0 : index
    %128 = vector.load %arg8[%c0_41, %c0_42] : memref<392x72xf32, #tpu.memory_space<vmem>>, vector<72x72xf32>
    %129 = arith.truncf %128 : vector<72x72xf32> to vector<72x72xbf16>
    %c0_43 = arith.constant 0 : index
    %c0_44 = arith.constant 0 : index
    %130 = vector.load %arg4[%c0_43, %c0_44] : memref<72x16xbf16, #tpu.memory_space<vmem>>, vector<72x16xbf16>
    %cst_45 = arith.constant dense<0.000000e+00> : vector<72x16xf32>
    %131 = tpu.matmul %129, %130, %cst_45 {dimension_numbers = #tpu.dot_dimension_numbers<[1], [0], [0], [1], [0, 0, 1, 1], [], []>} : vector<72x72xbf16>, vector<72x16xbf16>, vector<72x16xf32> -> vector<72x16xf32>
    %cst_46 = arith.constant 0.000000e+00 : f32
    %132 = vector.broadcast %cst_46 : f32 to vector<72x16xf32>
    %133 = arith.maximumf %131, %132 : vector<72x16xf32>
    %cst_47 = arith.constant dense<0.000000e+00> : vector<16xf32>
    %134 = vector.multi_reduction <add>, %133, %cst_47 [0] : vector<72x16xf32> to vector<16xf32>
    %135 = vector.shape_cast %134 : vector<16xf32> to vector<1x16xf32>
    %cst_48 = arith.constant 0.013888889 : f32
    %136 = vector.broadcast %cst_48 : f32 to vector<1x16xf32>
    %137 = arith.mulf %135, %136 : vector<1x16xf32>
    %138 = vector.broadcast %137 : vector<1x16xf32> to vector<72x16xf32>
    %139 = arith.subf %133, %138 : vector<72x16xf32>
    %140 = arith.mulf %139, %139 : vector<72x16xf32>
    %cst_49 = arith.constant dense<0.000000e+00> : vector<16xf32>
    %141 = vector.multi_reduction <add>, %140, %cst_49 [0] : vector<72x16xf32> to vector<16xf32>
    %142 = vector.shape_cast %141 : vector<16xf32> to vector<1x16xf32>
    %cst_50 = arith.constant 0.013888889 : f32
    %143 = vector.broadcast %cst_50 : f32 to vector<1x16xf32>
    %144 = arith.mulf %142, %143 : vector<1x16xf32>
    %cst_51 = arith.constant 9.99999974E-6 : f32
    %145 = vector.broadcast %cst_51 : f32 to vector<1x16xf32>
    %146 = arith.addf %144, %145 : vector<1x16xf32>
    %147 = math.rsqrt %146 : vector<1x16xf32>
    %c0_52 = arith.constant 0 : index
    %c0_53 = arith.constant 0 : index
    %148 = vector.load %arg5[%c0_52, %c0_53] : memref<1x16xf32, #tpu.memory_space<vmem>>, vector<1x16xf32>
    %149 = arith.mulf %147, %148 : vector<1x16xf32>
    %150 = vector.broadcast %149 : vector<1x16xf32> to vector<72x16xf32>
    %151 = arith.mulf %139, %150 : vector<72x16xf32>
    %c0_54 = arith.constant 0 : index
    %c0_55 = arith.constant 0 : index
    %152 = vector.load %arg6[%c0_54, %c0_55] : memref<1x16xf32, #tpu.memory_space<vmem>>, vector<1x16xf32>
    %153 = vector.broadcast %152 : vector<1x16xf32> to vector<72x16xf32>
    %154 = arith.addf %151, %153 : vector<72x16xf32>
    %c0_56 = arith.constant 0 : index
    %c0_57 = arith.constant 0 : index
    %155 = vector.load %arg7[%c0_56, %c0_57] : memref<72x16xf32, #tpu.memory_space<vmem>>, vector<72x16xf32>
    tpu.vector_store %arg7[%c0_56, %c0_57], %154 {strides = array<i32>} : memref<72x16xf32, #tpu.memory_space<vmem>>, vector<72x16xf32>,
    return
  }
}

</mosaic_0001>

<llo_original>
// kernel: init_model_forward.1
$region0: #{init_model_forward.1}
  #allocation0 [shape = 'u32[]', space=smem, size = 0x4, offset = 0x4, fixed_abs, tag = 'smem constant byte address 0x4 - core index']
  #allocation1 [shape = 'u32[144,128]{1,0:T(1,128)}', space=vmem, size = 0x12000, scoped, tag = 'internal scratch']
  #allocation2 [shape = 'f32[392,72]{1,0:T(8,128)}', space=vmem, size = 0x31000, scoped, tag = 'scratch operand']
  %s0 = inlined_call_operand.vmem [shape: f32[2,16,16,4], index: 0, kind: input, shape index: {}]
  %s1 = inlined_call_operand.vmem [shape: bf16[36,8], index: 1, kind: input, shape index: {}]
  %s2 = inlined_call_operand.vmem [shape: f32[1,8], index: 2, kind: input, shape index: {}]
  %s3 = inlined_call_operand.vmem [shape: f32[1,8], index: 3, kind: input, shape index: {}]
  %s4 = inlined_call_operand.vmem [shape: bf16[72,16], index: 4, kind: input, shape index: {}]
  %s5 = inlined_call_operand.vmem [shape: f32[1,16], index: 5, kind: input, shape index: {}]
  %s6 = inlined_call_operand.vmem [shape: f32[1,16], index: 6, kind: input, shape index: {}]
  %s7 = inlined_call_operand.vmem [shape: f32[72,16], index: 7, kind: output, shape index: {}]
  %s8 = sld [smem:[#allocation0]]
  $region38: #{init_model_forward.1} parent=0
    _
  %s10 = ssub.s32 1, %s8
  %s11 = scalar_select 0, %s10, %s8
  // Predicated region
  $region2: #{init_model_forward.1} parent=0 // pred_check
    _
  $region3: #{init_model_forward.1} parent=0 // pred_check_branch
    %13 = sbr.rel (0) target = $region5
  $region4: #{init_model_forward.1} parent=0 // pred_region
    _
  $region5: #{init_model_forward.1} parent=0 // pred_fallthru
    _
  // Predicated region
  $region6: #{init_model_forward.1} parent=0 // pred_check
    _
  $region7: #{init_model_forward.1} parent=0 // pred_check_branch
    %15 = sbr.rel (0) target = $region9
  $region8: #{init_model_forward.1} parent=0 // pred_region
    _
  $region9: #{init_model_forward.1} parent=0 // pred_fallthru
    _
  // Predicated region
  $region10: #{init_model_forward.1} parent=0 // pred_check
    _
  $region11: #{init_model_forward.1} parent=0 // pred_check_branch
    %17 = sbr.rel (0) target = $region13
  $region12: #{init_model_forward.1} parent=0 // pred_region
    _
  $region13: #{init_model_forward.1} parent=0 // pred_fallthru
    _
  // Predicated region
  $region14: #{init_model_forward.1} parent=0 // pred_check
    _
  $region15: #{init_model_forward.1} parent=0 // pred_check_branch
    %19 = sbr.rel (0) target = $region17
  $region16: #{init_model_forward.1} parent=0 // pred_region
    _
  $region17: #{init_model_forward.1} parent=0 // pred_fallthru
    _
  // Predicated region
  $region18: #{init_model_forward.1} parent=0 // pred_check
    _
  $region19: #{init_model_forward.1} parent=0 // pred_check_branch
    %21 = sbr.rel (0) target = $region21
  $region20: #{init_model_forward.1} parent=0 // pred_region
    _
  $region21: #{init_model_forward.1} parent=0 // pred_fallthru
    _
  // Predicated region
  $region22: #{init_model_forward.1} parent=0 // pred_check
    _
  $region23: #{init_model_forward.1} parent=0 // pred_check_branch
    %23 = sbr.rel (0) target = $region25
  $region24: #{init_model_forward.1} parent=0 // pred_region
    _
  $region25: #{init_model_forward.1} parent=0 // pred_fallthru
    _
  // Predicated region
  $region26: #{init_model_forward.1} parent=0 // pred_check
    _
  $region27: #{init_model_forward.1} parent=0 // pred_check_branch
    %25 = sbr.rel (0) target = $region29
  $region28: #{init_model_forward.1} parent=0 // pred_region
    _
  $region29: #{init_model_forward.1} parent=0 // pred_fallthru
    _
  %v27 = vld [vmem:[%s0] sm:$0xff]
  %v28 = vld [vmem:[%s0 + $0x8] sm:$0xff]
  %v29 = vld [vmem:[%s0 + $0x10] sm:$0xff]
  %v30 = vld [vmem:[%s0 + $0x18] sm:$0xff]
  %v31 = vld [vmem:[%s0 + $0x20] sm:$0xff]
  %v32 = vld [vmem:[%s0 + $0x28] sm:$0xff]
  %v33 = vld [vmem:[%s0 + $0x30] sm:$0xff]
  %v34 = vld [vmem:[%s0 + $0x38] sm:$0xff]
  %v35 = vld [vmem:[%s0 + $0x40] sm:$0xff]
  %v36 = vld [vmem:[%s0 + $0x48] sm:$0xff]
  %v37 = vld [vmem:[%s0 + $0x50] sm:$0xff]
  %v38 = vld [vmem:[%s0 + $0x58] sm:$0xff]
  %v39 = vld [vmem:[%s0 + $0x60] sm:$0xff]
  %v40 = vld [vmem:[%s0 + $0x68] sm:$0xff]
  %v41 = vld [vmem:[%s0 + $0x70] sm:$0xff]
  %v42 = vld [vmem:[%s0 + $0x78] sm:$0xff]
  %v43 = vld [vmem:[%s0 + $0x80] sm:$0xff]
  %v44 = vld [vmem:[%s0 + $0x88] sm:$0xff]
  %v45 = vld [vmem:[%s0 + $0x90] sm:$0xff]
  %v46 = vld [vmem:[%s0 + $0x98] sm:$0xff]
  %v47 = vld [vmem:[%s0 + $0xa0] sm:$0xff]
  %v48 = vld [vmem:[%s0 + $0xa8] sm:$0xff]
  %v49 = vld [vmem:[%s0 + $0xb0] sm:$0xff]
  %v50 = vld [vmem:[%s0 + $0xb8] sm:$0xff]
  %v51 = vld [vmem:[%s0 + $0xc0] sm:$0xff]
  %v52 = vld [vmem:[%s0 + $0xc8] sm:$0xff]
  %v53 = vld [vmem:[%s0 + $0xd0] sm:$0xff]
  %v54 = vld [vmem:[%s0 + $0xd8] sm:$0xff]
  %v55 = vld [vmem:[%s0 + $0xe0] sm:$0xff]
  %v56 = vld [vmem:[%s0 + $0xe8] sm:$0xff]
  %v57 = vld [vmem:[%s0 + $0xf0] sm:$0xff]
  %v58 = vld [vmem:[%s0 + $0xf8] sm:$0xff]
  %v59 = vld [vmem:[%s0 + $0x100] sm:$0xff]
  %v60 = vld [vmem:[%s0 + $0x108] sm:$0xff]
  %v61 = vld [vmem:[%s0 + $0x110] sm:$0xff]
  %v62 = vld [vmem:[%s0 + $0x118] sm:$0xff]
  %v63 = vld [vmem:[%s0 + $0x120] sm:$0xff]
  %v64 = vld [vmem:[%s0 + $0x128] sm:$0xff]
  %v65 = vld [vmem:[%s0 + $0x130] sm:$0xff]
  %v66 = vld [vmem:[%s0 + $0x138] sm:$0xff]
  %v67 = vld [vmem:[%s0 + $0x140] sm:$0xff]
  %v68 = vld [vmem:[%s0 + $0x148] sm:$0xff]
  %v69 = vld [vmem:[%s0 + $0x150] sm:$0xff]
  %v70 = vld [vmem:[%s0 + $0x158] sm:$0xff]
  %v71 = vld [vmem:[%s0 + $0x160] sm:$0xff]
  %v72 = vld [vmem:[%s0 + $0x168] sm:$0xff]
  %v73 = vld [vmem:[%s0 + $0x170] sm:$0xff]
  %v74 = vld [vmem:[%s0 + $0x178] sm:$0xff]
  %v75 = vld [vmem:[%s0 + $0x180] sm:$0xff]
  %v76 = vld [vmem:[%s0 + $0x188] sm:$0xff]
  %v77 = vld [vmem:[%s0 + $0x190] sm:$0xff]
  %v78 = vld [vmem:[%s0 + $0x198] sm:$0xff]
  %v79 = vld [vmem:[%s0 + $0x1a0] sm:$0xff]
  %v80 = vld [vmem:[%s0 + $0x1a8] sm:$0xff]
  %v81 = vld [vmem:[%s0 + $0x1b0] sm:$0xff]
  %v82 = vld [vmem:[%s0 + $0x1b8] sm:$0xff]
  %v83 = vld [vmem:[%s0 + $0x1c0] sm:$0xff]
  %v84 = vld [vmem:[%s0 + $0x1c8] sm:$0xff]
  %v85 = vld [vmem:[%s0 + $0x1d0] sm:$0xff]
  %v86 = vld [vmem:[%s0 + $0x1d8] sm:$0xff]
  %v87 = vld [vmem:[%s0 + $0x1e0] sm:$0xff]
  %v88 = vld [vmem:[%s0 + $0x1e8] sm:$0xff]
  %v89 = vld [vmem:[%s0 + $0x1f0] sm:$0xff]
  %v90 = vld [vmem:[%s0 + $0x1f8] sm:$0xff]
  %v147 = vcombine.high %v27, %v27
  %v149 = vunpack.c.l.s4 1983009808
  %v150 = vunpack.c.0.s8 %v149
  %v151 = vlaneseq
  %v152 = vshrl.u32 %v151, 7
  %v153 = vsub.s32 %v150, %v152
  %v154 = vrot.slane %v27, %v153
  %v156 = vunpack.c.l.s4 1983009808
  %v157 = vunpack.c.0.s8 %v156
  %v158 = vlaneseq
  %v159 = vshrl.u32 %v158, 7
  %v160 = vsub.s32 %v157, %v159
  %v161 = vrot.slane %v147, %v160
  %v162 = vcombine.high %v154, %v154
  %v163 = vcombine.high %v161, %v161
  %v164 = vcombine.high %v28, %v28
  %v166 = vunpack.c.l.s4 1983009808
  %v167 = vunpack.c.0.s8 %v166
  %v168 = vlaneseq
  %v169 = vshrl.u32 %v168, 7
  %v170 = vsub.s32 %v167, %v169
  %v171 = vrot.slane %v28, %v170
  %v173 = vunpack.c.l.s4 1983009808
  %v174 = vunpack.c.0.s8 %v173
  %v175 = vlaneseq
  %v176 = vshrl.u32 %v175, 7
  %v177 = vsub.s32 %v174, %v176
  %v178 = vrot.slane %v164, %v177
  %v179 = vcombine.high %v171, %v171
  %v180 = vcombine.high %v29, %v29
  %v182 = vunpack.c.l.s4 1983009808
  %v183 = vunpack.c.0.s8 %v182
  %v184 = vlaneseq
  %v185 = vshrl.u32 %v184, 7
  %v186 = vsub.s32 %v183, %v185
  %v187 = vrot.slane %v29, %v186
  %v189 = vunpack.c.l.s4 1983009808
  %v190 = vunpack.c.0.s8 %v189
  %v191 = vlaneseq
  %v192 = vshrl.u32 %v191, 7
  %v193 = vsub.s32 %v190, %v192
  %v194 = vrot.slane %v180, %v193
  %v195 = vcombine.high %v187, %v187
  %v196 = vcombine.high %v194, %v194
  %v197 = vcombine.high %v30, %v30
  %v199 = vunpack.c.l.s4 1983009808
  %v200 = vunpack.c.0.s8 %v199
  %v201 = vlaneseq
  %v202 = vshrl.u32 %v201, 7
  %v203 = vsub.s32 %v200, %v202
  %v204 = vrot.slane %v30, %v203
  %v206 = vunpack.c.l.s4 1983009808
  %v207 = vunpack.c.0.s8 %v206
  %v208 = vlaneseq
  %v209 = vshrl.u32 %v208, 7
  %v210 = vsub.s32 %v207, %v209
  %v211 = vrot.slane %v197, %v210
  %v212 = vcombine.high %v204, %v204
  %v213 = vcombine.high %v31, %v31
  %v215 = vunpack.c.l.s4 1983009808
  %v216 = vunpack.c.0.s8 %v215
  %v217 = vlaneseq
  %v218 = vshrl.u32 %v217, 7
  %v219 = vsub.s32 %v216, %v218
  %v220 = vrot.slane %v31, %v219
  %v222 = vunpack.c.l.s4 1983009808
  %v223 = vunpack.c.0.s8 %v222
  %v224 = vlaneseq
  %v225 = vshrl.u32 %v224, 7
  %v226 = vsub.s32 %v223, %v225
  %v227 = vrot.slane %v213, %v226
  %v228 = vcombine.high %v220, %v220
  %v229 = vcombine.high %v227, %v227
  %v230 = vcombine.high %v32, %v32
  %v232 = vunpack.c.l.s4 1983009808
  %v233 = vunpack.c.0.s8 %v232
  %v234 = vlaneseq
  %v235 = vshrl.u32 %v234, 7
  %v236 = vsub.s32 %v233, %v235
  %v237 = vrot.slane %v32, %v236
  %v239 = vunpack.c.l.s4 1983009808
  %v240 = vunpack.c.0.s8 %v239
  %v241 = vlaneseq
  %v242 = vshrl.u32 %v241, 7
  %v243 = vsub.s32 %v240, %v242
  %v244 = vrot.slane %v230, %v243
  %v245 = vcombine.high %v237, %v237
  %v246 = vcombine.high %v33, %v33
  %v248 = vunpack.c.l.s4 1983009808
  %v249 = vunpack.c.0.s8 %v248
  %v250 = vlaneseq
  %v251 = vshrl.u32 %v250, 7
  %v252 = vsub.s32 %v249, %v251
  %v253 = vrot.slane %v33, %v252
  %v255 = vunpack.c.l.s4 1983009808
  %v256 = vunpack.c.0.s8 %v255
  %v257 = vlaneseq
  %v258 = vshrl.u32 %v257, 7
  %v259 = vsub.s32 %v256, %v258
  %v260 = vrot.slane %v246, %v259
  %v261 = vcombine.high %v253, %v253
  %v262 = vcombine.high %v260, %v260
  %v263 = vcombine.high %v34, %v34
  %v265 = vunpack.c.l.s4 1983009808
  %v266 = vunpack.c.0.s8 %v265
  %v267 = vlaneseq
  %v268 = vshrl.u32 %v267, 7
  %v269 = vsub.s32 %v266, %v268
  %v270 = vrot.slane %v34, %v269
  %v272 = vunpack.c.l.s4 1983009808
  %v273 = vunpack.c.0.s8 %v272
  %v274 = vlaneseq
  %v275 = vshrl.u32 %v274, 7
  %v276 = vsub.s32 %v273, %v275
  %v277 = vrot.slane %v263, %v276
  %v278 = vcombine.high %v270, %v270
  %v279 = vcombine.high %v35, %v35
  %v281 = vunpack.c.l.s4 1983009808
  %v282 = vunpack.c.0.s8 %v281
  %v283 = vlaneseq
  %v284 = vshrl.u32 %v283, 7
  %v285 = vsub.s32 %v282, %v284
  %v286 = vrot.slane %v35, %v285
  %v288 = vunpack.c.l.s4 1983009808
  %v289 = vunpack.c.0.s8 %v288
  %v290 = vlaneseq
  %v291 = vshrl.u32 %v290, 7
  %v292 = vsub.s32 %v289, %v291
  %v293 = vrot.slane %v279, %v292
  %v294 = vcombine.high %v286, %v286
  %v295 = vcombine.high %v293, %v293
  %v296 = vcombine.high %v36, %v36
  %v298 = vunpack.c.l.s4 1983009808
  %v299 = vunpack.c.0.s8 %v298
  %v300 = vlaneseq
  %v301 = vshrl.u32 %v300, 7
  %v302 = vsub.s32 %v299, %v301
  %v303 = vrot.slane %v36, %v302
  %v305 = vunpack.c.l.s4 1983009808
  %v306 = vunpack.c.0.s8 %v305
  %v307 = vlaneseq
  %v308 = vshrl.u32 %v307, 7
  %v309 = vsub.s32 %v306, %v308
  %v310 = vrot.slane %v296, %v309
  %v311 = vcombine.high %v303, %v303
  %v312 = vcombine.high %v37, %v37
  %v314 = vunpack.c.l.s4 1983009808
  %v315 = vunpack.c.0.s8 %v314
  %v316 = vlaneseq
  %v317 = vshrl.u32 %v316, 7
  %v318 = vsub.s32 %v315, %v317
  %v319 = vrot.slane %v37, %v318
  %v321 = vunpack.c.l.s4 1983009808
  %v322 = vunpack.c.0.s8 %v321
  %v323 = vlaneseq
  %v324 = vshrl.u32 %v323, 7
  %v325 = vsub.s32 %v322, %v324
  %v326 = vrot.slane %v312, %v325
  %v327 = vcombine.high %v319, %v319
  %v328 = vcombine.high %v326, %v326
  %v329 = vcombine.high %v38, %v38
  %v331 = vunpack.c.l.s4 1983009808
  %v332 = vunpack.c.0.s8 %v331
  %v333 = vlaneseq
  %v334 = vshrl.u32 %v333, 7
  %v335 = vsub.s32 %v332, %v334
  %v336 = vrot.slane %v38, %v335
  %v338 = vunpack.c.l.s4 1983009808
  %v339 = vunpack.c.0.s8 %v338
  %v340 = vlaneseq
  %v341 = vshrl.u32 %v340, 7
  %v342 = vsub.s32 %v339, %v341
  %v343 = vrot.slane %v329, %v342
  %v344 = vcombine.high %v336, %v336
  %v345 = vcombine.high %v39, %v39
  %v347 = vunpack.c.l.s4 1983009808
  %v348 = vunpack.c.0.s8 %v347
  %v349 = vlaneseq
  %v350 = vshrl.u32 %v349, 7
  %v351 = vsub.s32 %v348, %v350
  %v352 = vrot.slane %v39, %v351
  %v354 = vunpack.c.l.s4 1983009808
  %v355 = vunpack.c.0.s8 %v354
  %v356 = vlaneseq
  %v357 = vshrl.u32 %v356, 7
  %v358 = vsub.s32 %v355, %v357
  %v359 = vrot.slane %v345, %v358
  %v360 = vcombine.high %v352, %v352
  %v361 = vcombine.high %v359, %v359
  %v362 = vcombine.high %v40, %v40
  %v364 = vunpack.c.l.s4 1983009808
  %v365 = vunpack.c.0.s8 %v364
  %v366 = vlaneseq
  %v367 = vshrl.u32 %v366, 7
  %v368 = vsub.s32 %v365, %v367
  %v369 = vrot.slane %v40, %v368
  %v371 = vunpack.c.l.s4 1983009808
  %v372 = vunpack.c.0.s8 %v371
  %v373 = vlaneseq
  %v374 = vshrl.u32 %v373, 7
  %v375 = vsub.s32 %v372, %v374
  %v376 = vrot.slane %v362, %v375
  %v377 = vcombine.high %v369, %v369
  %v378 = vcombine.high %v41, %v41
  %v380 = vunpack.c.l.s4 1983009808
  %v381 = vunpack.c.0.s8 %v380
  %v382 = vlaneseq
  %v383 = vshrl.u32 %v382, 7
  %v384 = vsub.s32 %v381, %v383
  %v385 = vrot.slane %v41, %v384
  %v387 = vunpack.c.l.s4 1983009808
  %v388 = vunpack.c.0.s8 %v387
  %v389 = vlaneseq
  %v390 = vshrl.u32 %v389, 7
  %v391 = vsub.s32 %v388, %v390
  %v392 = vrot.slane %v378, %v391
  %v393 = vcombine.high %v385, %v385
  %v394 = vcombine.high %v392, %v392
  %v395 = vcombine.high %v42, %v42
  %v397 = vunpack.c.l.s4 1983009808
  %v398 = vunpack.c.0.s8 %v397
  %v399 = vlaneseq
  %v400 = vshrl.u32 %v399, 7
  %v401 = vsub.s32 %v398, %v400
  %v402 = vrot.slane %v42, %v401
  %v404 = vunpack.c.l.s4 1983009808
  %v405 = vunpack.c.0.s8 %v404
  %v406 = vlaneseq
  %v407 = vshrl.u32 %v406, 7
  %v408 = vsub.s32 %v405, %v407
  %v409 = vrot.slane %v395, %v408
  %v410 = vcombine.high %v402, %v402
  %v411 = vcombine.high %v43, %v43
  %v413 = vunpack.c.l.s4 1983009808
  %v414 = vunpack.c.0.s8 %v413
  %v415 = vlaneseq
  %v416 = vshrl.u32 %v415, 7
  %v417 = vsub.s32 %v414, %v416
  %v418 = vrot.slane %v43, %v417
  %v420 = vunpack.c.l.s4 1983009808
  %v421 = vunpack.c.0.s8 %v420
  %v422 = vlaneseq
  %v423 = vshrl.u32 %v422, 7
  %v424 = vsub.s32 %v421, %v423
  %v425 = vrot.slane %v411, %v424
  %v426 = vcombine.high %v418, %v418
  %v427 = vcombine.high %v425, %v425
  %v428 = vcombine.high %v44, %v44
  %v430 = vunpack.c.l.s4 1983009808
  %v431 = vunpack.c.0.s8 %v430
  %v432 = vlaneseq
  %v433 = vshrl.u32 %v432, 7
  %v434 = vsub.s32 %v431, %v433
  %v435 = vrot.slane %v44, %v434
  %v437 = vunpack.c.l.s4 1983009808
  %v438 = vunpack.c.0.s8 %v437
  %v439 = vlaneseq
  %v440 = vshrl.u32 %v439, 7
  %v441 = vsub.s32 %v438, %v440
  %v442 = vrot.slane %v428, %v441
  %v443 = vcombine.high %v435, %v435
  %v444 = vcombine.high %v45, %v45
  %v446 = vunpack.c.l.s4 1983009808
  %v447 = vunpack.c.0.s8 %v446
  %v448 = vlaneseq
  %v449 = vshrl.u32 %v448, 7
  %v450 = vsub.s32 %v447, %v449
  %v451 = vrot.slane %v45, %v450
  %v453 = vunpack.c.l.s4 1983009808
  %v454 = vunpack.c.0.s8 %v453
  %v455 = vlaneseq
  %v456 = vshrl.u32 %v455, 7
  %v457 = vsub.s32 %v454, %v456
  %v458 = vrot.slane %v444, %v457
  %v459 = vcombine.high %v451, %v451
  %v460 = vcombine.high %v458, %v458
  %v461 = vcombine.high %v46, %v46
  %v463 = vunpack.c.l.s4 1983009808
  %v464 = vunpack.c.0.s8 %v463
  %v465 = vlaneseq
  %v466 = vshrl.u32 %v465, 7
  %v467 = vsub.s32 %v464, %v466
  %v468 = vrot.slane %v46, %v467
  %v470 = vunpack.c.l.s4 1983009808
  %v471 = vunpack.c.0.s8 %v470
  %v472 = vlaneseq
  %v473 = vshrl.u32 %v472, 7
  %v474 = vsub.s32 %v471, %v473
  %v475 = vrot.slane %v461, %v474
  %v476 = vcombine.high %v468, %v468
  %v477 = vcombine.high %v47, %v47
  %v479 = vunpack.c.l.s4 1983009808
  %v480 = vunpack.c.0.s8 %v479
  %v481 = vlaneseq
  %v482 = vshrl.u32 %v481, 7
  %v483 = vsub.s32 %v480, %v482
  %v484 = vrot.slane %v47, %v483
  %v486 = vunpack.c.l.s4 1983009808
  %v487 = vunpack.c.0.s8 %v486
  %v488 = vlaneseq
  %v489 = vshrl.u32 %v488, 7
  %v490 = vsub.s32 %v487, %v489
  %v491 = vrot.slane %v477, %v490
  %v492 = vcombine.high %v484, %v484
  %v493 = vcombine.high %v491, %v491
  %v494 = vcombine.high %v48, %v48
  %v496 = vunpack.c.l.s4 1983009808
  %v497 = vunpack.c.0.s8 %v496
  %v498 = vlaneseq
  %v499 = vshrl.u32 %v498, 7
  %v500 = vsub.s32 %v497, %v499
  %v501 = vrot.slane %v48, %v500
  %v503 = vunpack.c.l.s4 1983009808
  %v504 = vunpack.c.0.s8 %v503
  %v505 = vlaneseq
  %v506 = vshrl.u32 %v505, 7
  %v507 = vsub.s32 %v504, %v506
  %v508 = vrot.slane %v494, %v507
  %v509 = vcombine.high %v501, %v501
  %v510 = vcombine.high %v49, %v49
  %v512 = vunpack.c.l.s4 1983009808
  %v513 = vunpack.c.0.s8 %v512
  %v514 = vlaneseq
  %v515 = vshrl.u32 %v514, 7
  %v516 = vsub.s32 %v513, %v515
  %v517 = vrot.slane %v49, %v516
  %v519 = vunpack.c.l.s4 1983009808
  %v520 = vunpack.c.0.s8 %v519
  %v521 = vlaneseq
  %v522 = vshrl.u32 %v521, 7
  %v523 = vsub.s32 %v520, %v522
  %v524 = vrot.slane %v510, %v523
  %v525 = vcombine.high %v517, %v517
  %v526 = vcombine.high %v524, %v524
  %v527 = vcombine.high %v50, %v50
  %v529 = vunpack.c.l.s4 1983009808
  %v530 = vunpack.c.0.s8 %v529
  %v531 = vlaneseq
  %v532 = vshrl.u32 %v531, 7
  %v533 = vsub.s32 %v530, %v532
  %v534 = vrot.slane %v50, %v533
  %v536 = vunpack.c.l.s4 1983009808
  %v537 = vunpack.c.0.s8 %v536
  %v538 = vlaneseq
  %v539 = vshrl.u32 %v538, 7
  %v540 = vsub.s32 %v537, %v539
  %v541 = vrot.slane %v527, %v540
  %v542 = vcombine.high %v534, %v534
  %v543 = vcombine.high %v51, %v51
  %v545 = vunpack.c.l.s4 1983009808
  %v546 = vunpack.c.0.s8 %v545
  %v547 = vlaneseq
  %v548 = vshrl.u32 %v547, 7
  %v549 = vsub.s32 %v546, %v548
  %v550 = vrot.slane %v51, %v549
  %v552 = vunpack.c.l.s4 1983009808
  %v553 = vunpack.c.0.s8 %v552
  %v554 = vlaneseq
  %v555 = vshrl.u32 %v554, 7
  %v556 = vsub.s32 %v553, %v555
  %v557 = vrot.slane %v543, %v556
  %v558 = vcombine.high %v550, %v550
  %v559 = vcombine.high %v557, %v557
  %v560 = vcombine.high %v52, %v52
  %v562 = vunpack.c.l.s4 1983009808
  %v563 = vunpack.c.0.s8 %v562
  %v564 = vlaneseq
  %v565 = vshrl.u32 %v564, 7
  %v566 = vsub.s32 %v563, %v565
  %v567 = vrot.slane %v52, %v566
  %v569 = vunpack.c.l.s4 1983009808
  %v570 = vunpack.c.0.s8 %v569
  %v571 = vlaneseq
  %v572 = vshrl.u32 %v571, 7
  %v573 = vsub.s32 %v570, %v572
  %v574 = vrot.slane %v560, %v573
  %v575 = vcombine.high %v567, %v567
  %v576 = vcombine.high %v53, %v53
  %v578 = vunpack.c.l.s4 1983009808
  %v579 = vunpack.c.0.s8 %v578
  %v580 = vlaneseq
  %v581 = vshrl.u32 %v580, 7
  %v582 = vsub.s32 %v579, %v581
  %v583 = vrot.slane %v53, %v582
  %v585 = vunpack.c.l.s4 1983009808
  %v586 = vunpack.c.0.s8 %v585
  %v587 = vlaneseq
  %v588 = vshrl.u32 %v587, 7
  %v589 = vsub.s32 %v586, %v588
  %v590 = vrot.slane %v576, %v589
  %v591 = vcombine.high %v583, %v583
  %v592 = vcombine.high %v590, %v590
  %v593 = vcombine.high %v54, %v54
  %v595 = vunpack.c.l.s4 1983009808
  %v596 = vunpack.c.0.s8 %v595
  %v597 = vlaneseq
  %v598 = vshrl.u32 %v597, 7
  %v599 = vsub.s32 %v596, %v598
  %v600 = vrot.slane %v54, %v599
  %v602 = vunpack.c.l.s4 1983009808
  %v603 = vunpack.c.0.s8 %v602
  %v604 = vlaneseq
  %v605 = vshrl.u32 %v604, 7
  %v606 = vsub.s32 %v603, %v605
  %v607 = vrot.slane %v593, %v606
  %v608 = vcombine.high %v600, %v600
  %v609 = vcombine.high %v59, %v59
  %v611 = vunpack.c.l.s4 1983009808
  %v612 = vunpack.c.0.s8 %v611
  %v613 = vlaneseq
  %v614 = vshrl.u32 %v613, 7
  %v615 = vsub.s32 %v612, %v614
  %v616 = vrot.slane %v59, %v615
  %v618 = vunpack.c.l.s4 1983009808
  %v619 = vunpack.c.0.s8 %v618
  %v620 = vlaneseq
  %v621 = vshrl.u32 %v620, 7
  %v622 = vsub.s32 %v619, %v621
  %v623 = vrot.slane %v609, %v622
  %v624 = vcombine.high %v616, %v616
  %v625 = vcombine.high %v623, %v623
  %v626 = vcombine.high %v60, %v60
  %v628 = vunpack.c.l.s4 1983009808
  %v629 = vunpack.c.0.s8 %v628
  %v630 = vlaneseq
  %v631 = vshrl.u32 %v630, 7
  %v632 = vsub.s32 %v629, %v631
  %v633 = vrot.slane %v60, %v632
  %v635 = vunpack.c.l.s4 1983009808
  %v636 = vunpack.c.0.s8 %v635
  %v637 = vlaneseq
  %v638 = vshrl.u32 %v637, 7
  %v639 = vsub.s32 %v636, %v638
  %v640 = vrot.slane %v626, %v639
  %v641 = vcombine.high %v633, %v633
  %v642 = vcombine.high %v61, %v61
  %v644 = vunpack.c.l.s4 1983009808
  %v645 = vunpack.c.0.s8 %v644
  %v646 = vlaneseq
  %v647 = vshrl.u32 %v646, 7
  %v648 = vsub.s32 %v645, %v647
  %v649 = vrot.slane %v61, %v648
  %v651 = vunpack.c.l.s4 1983009808
  %v652 = vunpack.c.0.s8 %v651
  %v653 = vlaneseq
  %v654 = vshrl.u32 %v653, 7
  %v655 = vsub.s32 %v652, %v654
  %v656 = vrot.slane %v642, %v655
  %v657 = vcombine.high %v649, %v649
  %v658 = vcombine.high %v656, %v656
  %v659 = vcombine.high %v62, %v62
  %v661 = vunpack.c.l.s4 1983009808
  %v662 = vunpack.c.0.s8 %v661
  %v663 = vlaneseq
  %v664 = vshrl.u32 %v663, 7
  %v665 = vsub.s32 %v662, %v664
  %v666 = vrot.slane %v62, %v665
  %v668 = vunpack.c.l.s4 1983009808
  %v669 = vunpack.c.0.s8 %v668
  %v670 = vlaneseq
  %v671 = vshrl.u32 %v670, 7
  %v672 = vsub.s32 %v669, %v671
  %v673 = vrot.slane %v659, %v672
  %v674 = vcombine.high %v666, %v666
  %v675 = vcombine.high %v63, %v63
  %v677 = vunpack.c.l.s4 1983009808
  %v678 = vunpack.c.0.s8 %v677
  %v679 = vlaneseq
  %v680 = vshrl.u32 %v679, 7
  %v681 = vsub.s32 %v678, %v680
  %v682 = vrot.slane %v63, %v681
  %v684 = vunpack.c.l.s4 1983009808
  %v685 = vunpack.c.0.s8 %v684
  %v686 = vlaneseq
  %v687 = vshrl.u32 %v686, 7
  %v688 = vsub.s32 %v685, %v687
  %v689 = vrot.slane %v675, %v688
  %v690 = vcombine.high %v682, %v682
  %v691 = vcombine.high %v689, %v689
  %v692 = vcombine.high %v64, %v64
  %v694 = vunpack.c.l.s4 1983009808
  %v695 = vunpack.c.0.s8 %v694
  %v696 = vlaneseq
  %v697 = vshrl.u32 %v696, 7
  %v698 = vsub.s32 %v695, %v697
  %v699 = vrot.slane %v64, %v698
  %v701 = vunpack.c.l.s4 1983009808
  %v702 = vunpack.c.0.s8 %v701
  %v703 = vlaneseq
  %v704 = vshrl.u32 %v703, 7
  %v705 = vsub.s32 %v702, %v704
  %v706 = vrot.slane %v692, %v705
  %v707 = vcombine.high %v699, %v699
  %v708 = vcombine.high %v65, %v65
  %v710 = vunpack.c.l.s4 1983009808
  %v711 = vunpack.c.0.s8 %v710
  %v712 = vlaneseq
  %v713 = vshrl.u32 %v712, 7
  %v714 = vsub.s32 %v711, %v713
  %v715 = vrot.slane %v65, %v714
  %v717 = vunpack.c.l.s4 1983009808
  %v718 = vunpack.c.0.s8 %v717
  %v719 = vlaneseq
  %v720 = vshrl.u32 %v719, 7
  %v721 = vsub.s32 %v718, %v720
  %v722 = vrot.slane %v708, %v721
  %v723 = vcombine.high %v715, %v715
  %v724 = vcombine.high %v722, %v722
  %v725 = vcombine.high %v66, %v66
  %v727 = vunpack.c.l.s4 1983009808
  %v728 = vunpack.c.0.s8 %v727
  %v729 = vlaneseq
  %v730 = vshrl.u32 %v729, 7
  %v731 = vsub.s32 %v728, %v730
  %v732 = vrot.slane %v66, %v731
  %v734 = vunpack.c.l.s4 1983009808
  %v735 = vunpack.c.0.s8 %v734
  %v736 = vlaneseq
  %v737 = vshrl.u32 %v736, 7
  %v738 = vsub.s32 %v735, %v737
  %v739 = vrot.slane %v725, %v738
  %v740 = vcombine.high %v732, %v732
  %v741 = vcombine.high %v67, %v67
  %v743 = vunpack.c.l.s4 1983009808
  %v744 = vunpack.c.0.s8 %v743
  %v745 = vlaneseq
  %v746 = vshrl.u32 %v745, 7
  %v747 = vsub.s32 %v744, %v746
  %v748 = vrot.slane %v67, %v747
  %v750 = vunpack.c.l.s4 1983009808
  %v751 = vunpack.c.0.s8 %v750
  %v752 = vlaneseq
  %v753 = vshrl.u32 %v752, 7
  %v754 = vsub.s32 %v751, %v753
  %v755 = vrot.slane %v741, %v754
  %v756 = vcombine.high %v748, %v748
  %v757 = vcombine.high %v755, %v755
  %v758 = vcombine.high %v68, %v68
  %v760 = vunpack.c.l.s4 1983009808
  %v761 = vunpack.c.0.s8 %v760
  %v762 = vlaneseq
  %v763 = vshrl.u32 %v762, 7
  %v764 = vsub.s32 %v761, %v763
  %v765 = vrot.slane %v68, %v764
  %v767 = vunpack.c.l.s4 1983009808
  %v768 = vunpack.c.0.s8 %v767
  %v769 = vlaneseq
  %v770 = vshrl.u32 %v769, 7
  %v771 = vsub.s32 %v768, %v770
  %v772 = vrot.slane %v758, %v771
  %v773 = vcombine.high %v765, %v765
  %v774 = vcombine.high %v69, %v69
  %v776 = vunpack.c.l.s4 1983009808
  %v777 = vunpack.c.0.s8 %v776
  %v778 = vlaneseq
  %v779 = vshrl.u32 %v778, 7
  %v780 = vsub.s32 %v777, %v779
  %v781 = vrot.slane %v69, %v780
  %v783 = vunpack.c.l.s4 1983009808
  %v784 = vunpack.c.0.s8 %v783
  %v785 = vlaneseq
  %v786 = vshrl.u32 %v785, 7
  %v787 = vsub.s32 %v784, %v786
  %v788 = vrot.slane %v774, %v787
  %v789 = vcombine.high %v781, %v781
  %v790 = vcombine.high %v788, %v788
  %v791 = vcombine.high %v70, %v70
  %v793 = vunpack.c.l.s4 1983009808
  %v794 = vunpack.c.0.s8 %v793
  %v795 = vlaneseq
  %v796 = vshrl.u32 %v795, 7
  %v797 = vsub.s32 %v794, %v796
  %v798 = vrot.slane %v70, %v797
  %v800 = vunpack.c.l.s4 1983009808
  %v801 = vunpack.c.0.s8 %v800
  %v802 = vlaneseq
  %v803 = vshrl.u32 %v802, 7
  %v804 = vsub.s32 %v801, %v803
  %v805 = vrot.slane %v791, %v804
  %v806 = vcombine.high %v798, %v798
  %v807 = vcombine.high %v71, %v71
  %v809 = vunpack.c.l.s4 1983009808
  %v810 = vunpack.c.0.s8 %v809
  %v811 = vlaneseq
  %v812 = vshrl.u32 %v811, 7
  %v813 = vsub.s32 %v810, %v812
  %v814 = vrot.slane %v71, %v813
  %v816 = vunpack.c.l.s4 1983009808
  %v817 = vunpack.c.0.s8 %v816
  %v818 = vlaneseq
  %v819 = vshrl.u32 %v818, 7
  %v820 = vsub.s32 %v817, %v819
  %v821 = vrot.slane %v807, %v820
  %v822 = vcombine.high %v814, %v814
  %v823 = vcombine.high %v821, %v821
  %v824 = vcombine.high %v72, %v72
  %v826 = vunpack.c.l.s4 1983009808
  %v827 = vunpack.c.0.s8 %v826
  %v828 = vlaneseq
  %v829 = vshrl.u32 %v828, 7
  %v830 = vsub.s32 %v827, %v829
  %v831 = vrot.slane %v72, %v830
  %v833 = vunpack.c.l.s4 1983009808
  %v834 = vunpack.c.0.s8 %v833
  %v835 = vlaneseq
  %v836 = vshrl.u32 %v835, 7
  %v837 = vsub.s32 %v834, %v836
  %v838 = vrot.slane %v824, %v837
  %v839 = vcombine.high %v831, %v831
  %v840 = vcombine.high %v73, %v73
  %v842 = vunpack.c.l.s4 1983009808
  %v843 = vunpack.c.0.s8 %v842
  %v844 = vlaneseq
  %v845 = vshrl.u32 %v844, 7
  %v846 = vsub.s32 %v843, %v845
  %v847 = vrot.slane %v73, %v846
  %v849 = vunpack.c.l.s4 1983009808
  %v850 = vunpack.c.0.s8 %v849
  %v851 = vlaneseq
  %v852 = vshrl.u32 %v851, 7
  %v853 = vsub.s32 %v850, %v852
  %v854 = vrot.slane %v840, %v853
  %v855 = vcombine.high %v847, %v847
  %v856 = vcombine.high %v854, %v854
  %v857 = vcombine.high %v74, %v74
  %v859 = vunpack.c.l.s4 1983009808
  %v860 = vunpack.c.0.s8 %v859
  %v861 = vlaneseq
  %v862 = vshrl.u32 %v861, 7
  %v863 = vsub.s32 %v860, %v862
  %v864 = vrot.slane %v74, %v863
  %v866 = vunpack.c.l.s4 1983009808
  %v867 = vunpack.c.0.s8 %v866
  %v868 = vlaneseq
  %v869 = vshrl.u32 %v868, 7
  %v870 = vsub.s32 %v867, %v869
  %v871 = vrot.slane %v857, %v870
  %v872 = vcombine.high %v864, %v864
  %v873 = vcombine.high %v75, %v75
  %v875 = vunpack.c.l.s4 1983009808
  %v876 = vunpack.c.0.s8 %v875
  %v877 = vlaneseq
  %v878 = vshrl.u32 %v877, 7
  %v879 = vsub.s32 %v876, %v878
  %v880 = vrot.slane %v75, %v879
  %v882 = vunpack.c.l.s4 1983009808
  %v883 = vunpack.c.0.s8 %v882
  %v884 = vlaneseq
  %v885 = vshrl.u32 %v884, 7
  %v886 = vsub.s32 %v883, %v885
  %v887 = vrot.slane %v873, %v886
  %v888 = vcombine.high %v880, %v880
  %v889 = vcombine.high %v887, %v887
  %v890 = vcombine.high %v76, %v76
  %v892 = vunpack.c.l.s4 1983009808
  %v893 = vunpack.c.0.s8 %v892
  %v894 = vlaneseq
  %v895 = vshrl.u32 %v894, 7
  %v896 = vsub.s32 %v893, %v895
  %v897 = vrot.slane %v76, %v896
  %v899 = vunpack.c.l.s4 1983009808
  %v900 = vunpack.c.0.s8 %v899
  %v901 = vlaneseq
  %v902 = vshrl.u32 %v901, 7
  %v903 = vsub.s32 %v900, %v902
  %v904 = vrot.slane %v890, %v903
  %v905 = vcombine.high %v897, %v897
  %v906 = vcombine.high %v77, %v77
  %v908 = vunpack.c.l.s4 1983009808
  %v909 = vunpack.c.0.s8 %v908
  %v910 = vlaneseq
  %v911 = vshrl.u32 %v910, 7
  %v912 = vsub.s32 %v909, %v911
  %v913 = vrot.slane %v77, %v912
  %v915 = vunpack.c.l.s4 1983009808
  %v916 = vunpack.c.0.s8 %v915
  %v917 = vlaneseq
  %v918 = vshrl.u32 %v917, 7
  %v919 = vsub.s32 %v916, %v918
  %v920 = vrot.slane %v906, %v919
  %v921 = vcombine.high %v913, %v913
  %v922 = vcombine.high %v920, %v920
  %v923 = vcombine.high %v78, %v78
  %v925 = vunpack.c.l.s4 1983009808
  %v926 = vunpack.c.0.s8 %v925
  %v927 = vlaneseq
  %v928 = vshrl.u32 %v927, 7
  %v929 = vsub.s32 %v926, %v928
  %v930 = vrot.slane %v78, %v929
  %v932 = vunpack.c.l.s4 1983009808
  %v933 = vunpack.c.0.s8 %v932
  %v934 = vlaneseq
  %v935 = vshrl.u32 %v934, 7
  %v936 = vsub.s32 %v933, %v935
  %v937 = vrot.slane %v923, %v936
  %v938 = vcombine.high %v930, %v930
  %v939 = vcombine.high %v79, %v79
  %v941 = vunpack.c.l.s4 1983009808
  %v942 = vunpack.c.0.s8 %v941
  %v943 = vlaneseq
  %v944 = vshrl.u32 %v943, 7
  %v945 = vsub.s32 %v942, %v944
  %v946 = vrot.slane %v79, %v945
  %v948 = vunpack.c.l.s4 1983009808
  %v949 = vunpack.c.0.s8 %v948
  %v950 = vlaneseq
  %v951 = vshrl.u32 %v950, 7
  %v952 = vsub.s32 %v949, %v951
  %v953 = vrot.slane %v939, %v952
  %v954 = vcombine.high %v946, %v946
  %v955 = vcombine.high %v953, %v953
  %v956 = vcombine.high %v80, %v80
  %v958 = vunpack.c.l.s4 1983009808
  %v959 = vunpack.c.0.s8 %v958
  %v960 = vlaneseq
  %v961 = vshrl.u32 %v960, 7
  %v962 = vsub.s32 %v959, %v961
  %v963 = vrot.slane %v80, %v962
  %v965 = vunpack.c.l.s4 1983009808
  %v966 = vunpack.c.0.s8 %v965
  %v967 = vlaneseq
  %v968 = vshrl.u32 %v967, 7
  %v969 = vsub.s32 %v966, %v968
  %v970 = vrot.slane %v956, %v969
  %v971 = vcombine.high %v963, %v963
  %v972 = vcombine.high %v81, %v81
  %v974 = vunpack.c.l.s4 1983009808
  %v975 = vunpack.c.0.s8 %v974
  %v976 = vlaneseq
  %v977 = vshrl.u32 %v976, 7
  %v978 = vsub.s32 %v975, %v977
  %v979 = vrot.slane %v81, %v978
  %v981 = vunpack.c.l.s4 1983009808
  %v982 = vunpack.c.0.s8 %v981
  %v983 = vlaneseq
  %v984 = vshrl.u32 %v983, 7
  %v985 = vsub.s32 %v982, %v984
  %v986 = vrot.slane %v972, %v985
  %v987 = vcombine.high %v979, %v979
  %v988 = vcombine.high %v986, %v986
  %v989 = vcombine.high %v82, %v82
  %v991 = vunpack.c.l.s4 1983009808
  %v992 = vunpack.c.0.s8 %v991
  %v993 = vlaneseq
  %v994 = vshrl.u32 %v993, 7
  %v995 = vsub.s32 %v992, %v994
  %v996 = vrot.slane %v82, %v995
  %v998 = vunpack.c.l.s4 1983009808
  %v999 = vunpack.c.0.s8 %v998
  %v1000 = vlaneseq
  %v1001 = vshrl.u32 %v1000, 7
  %v1002 = vsub.s32 %v999, %v1001
  %v1003 = vrot.slane %v989, %v1002
  %v1004 = vcombine.high %v996, %v996
  %v1005 = vcombine.high %v83, %v83
  %v1007 = vunpack.c.l.s4 1983009808
  %v1008 = vunpack.c.0.s8 %v1007
  %v1009 = vlaneseq
  %v1010 = vshrl.u32 %v1009, 7
  %v1011 = vsub.s32 %v1008, %v1010
  %v1012 = vrot.slane %v83, %v1011
  %v1014 = vunpack.c.l.s4 1983009808
  %v1015 = vunpack.c.0.s8 %v1014
  %v1016 = vlaneseq
  %v1017 = vshrl.u32 %v1016, 7
  %v1018 = vsub.s32 %v1015, %v1017
  %v1019 = vrot.slane %v1005, %v1018
  %v1020 = vcombine.high %v1012, %v1012
  %v1021 = vcombine.high %v1019, %v1019
  %v1022 = vcombine.high %v84, %v84
  %v1024 = vunpack.c.l.s4 1983009808
  %v1025 = vunpack.c.0.s8 %v1024
  %v1026 = vlaneseq
  %v1027 = vshrl.u32 %v1026, 7
  %v1028 = vsub.s32 %v1025, %v1027
  %v1029 = vrot.slane %v84, %v1028
  %v1031 = vunpack.c.l.s4 1983009808
  %v1032 = vunpack.c.0.s8 %v1031
  %v1033 = vlaneseq
  %v1034 = vshrl.u32 %v1033, 7
  %v1035 = vsub.s32 %v1032, %v1034
  %v1036 = vrot.slane %v1022, %v1035
  %v1037 = vcombine.high %v1029, %v1029
  %v1038 = vcombine.high %v85, %v85
  %v1040 = vunpack.c.l.s4 1983009808
  %v1041 = vunpack.c.0.s8 %v1040
  %v1042 = vlaneseq
  %v1043 = vshrl.u32 %v1042, 7
  %v1044 = vsub.s32 %v1041, %v1043
  %v1045 = vrot.slane %v85, %v1044
  %v1047 = vunpack.c.l.s4 1983009808
  %v1048 = vunpack.c.0.s8 %v1047
  %v1049 = vlaneseq
  %v1050 = vshrl.u32 %v1049, 7
  %v1051 = vsub.s32 %v1048, %v1050
  %v1052 = vrot.slane %v1038, %v1051
  %v1053 = vcombine.high %v1045, %v1045
  %v1054 = vcombine.high %v1052, %v1052
  %v1055 = vcombine.high %v86, %v86
  %v1057 = vunpack.c.l.s4 1983009808
  %v1058 = vunpack.c.0.s8 %v1057
  %v1059 = vlaneseq
  %v1060 = vshrl.u32 %v1059, 7
  %v1061 = vsub.s32 %v1058, %v1060
  %v1062 = vrot.slane %v86, %v1061
  %v1064 = vunpack.c.l.s4 1983009808
  %v1065 = vunpack.c.0.s8 %v1064
  %v1066 = vlaneseq
  %v1067 = vshrl.u32 %v1066, 7
  %v1068 = vsub.s32 %v1065, %v1067
  %v1069 = vrot.slane %v1055, %v1068
  %v1070 = vcombine.high %v1062, %v1062
  %v1071 = vcombine.low %v154, %v162
  %v1072 = vcombine.low %v161, %v163
  %v1074 = vunpack.c.l.s4 1983009808
  %v1075 = vunpack.c.0.s8 %v1074
  %v1076 = vlaneseq
  %v1077 = vshrl.u32 %v1076, 7
  %v1078 = vsub.s32 %v1075, %v1077
  %v1079 = vrot.slane %v1071, %v1078
  %v1081 = vunpack.c.l.s4 1983009808
  %v1082 = vunpack.c.0.s8 %v1081
  %v1083 = vlaneseq
  %v1084 = vshrl.u32 %v1083, 7
  %v1085 = vsub.s32 %v1082, %v1084
  %v1086 = vrot.slane %v1072, %v1085
  %v1087 = vcombine.low %v1079, %v1086
  %v1088 = vcombine.low %v171, %v179
  %v1089 = vcombine.low %v178, %v187
  %v1091 = vunpack.c.l.s4 1983009808
  %v1092 = vunpack.c.0.s8 %v1091
  %v1093 = vlaneseq
  %v1094 = vshrl.u32 %v1093, 7
  %v1095 = vsub.s32 %v1092, %v1094
  %v1096 = vrot.slane %v1088, %v1095
  %v1098 = vunpack.c.l.s4 1983009808
  %v1099 = vunpack.c.0.s8 %v1098
  %v1100 = vlaneseq
  %v1101 = vshrl.u32 %v1100, 7
  %v1102 = vsub.s32 %v1099, %v1101
  %v1103 = vrot.slane %v1089, %v1102
  %v1104 = vcombine.low %v1096, %v1103
  %v1105 = vcombine.low %v195, %v194
  %v1106 = vcombine.low %v196, %v204
  %v1108 = vunpack.c.l.s4 1983009808
  %v1109 = vunpack.c.0.s8 %v1108
  %v1110 = vlaneseq
  %v1111 = vshrl.u32 %v1110, 7
  %v1112 = vsub.s32 %v1109, %v1111
  %v1113 = vrot.slane %v1105, %v1112
  %v1115 = vunpack.c.l.s4 1983009808
  %v1116 = vunpack.c.0.s8 %v1115
  %v1117 = vlaneseq
  %v1118 = vshrl.u32 %v1117, 7
  %v1119 = vsub.s32 %v1116, %v1118
  %v1120 = vrot.slane %v1106, %v1119
  %v1121 = vcombine.low %v1113, %v1120
  %v1122 = vcombine.low %v212, %v211
  %v1123 = vcombine.low %v220, %v228
  %v1125 = vunpack.c.l.s4 1983009808
  %v1126 = vunpack.c.0.s8 %v1125
  %v1127 = vlaneseq
  %v1128 = vshrl.u32 %v1127, 7
  %v1129 = vsub.s32 %v1126, %v1128
  %v1130 = vrot.slane %v1122, %v1129
  %v1132 = vunpack.c.l.s4 1983009808
  %v1133 = vunpack.c.0.s8 %v1132
  %v1134 = vlaneseq
  %v1135 = vshrl.u32 %v1134, 7
  %v1136 = vsub.s32 %v1133, %v1135
  %v1137 = vrot.slane %v1123, %v1136
  %v1138 = vcombine.low %v1130, %v1137
  %v1139 = vcombine.low %v227, %v229
  %v1140 = vcombine.low %v237, %v245
  %v1142 = vunpack.c.l.s4 1983009808
  %v1143 = vunpack.c.0.s8 %v1142
  %v1144 = vlaneseq
  %v1145 = vshrl.u32 %v1144, 7
  %v1146 = vsub.s32 %v1143, %v1145
  %v1147 = vrot.slane %v1139, %v1146
  %v1149 = vunpack.c.l.s4 1983009808
  %v1150 = vunpack.c.0.s8 %v1149
  %v1151 = vlaneseq
  %v1152 = vshrl.u32 %v1151, 7
  %v1153 = vsub.s32 %v1150, %v1152
  %v1154 = vrot.slane %v1140, %v1153
  %v1155 = vcombine.low %v1147, %v1154
  %v1156 = vcombine.low %v244, %v253
  %v1157 = vcombine.low %v261, %v260
  %v1159 = vunpack.c.l.s4 1983009808
  %v1160 = vunpack.c.0.s8 %v1159
  %v1161 = vlaneseq
  %v1162 = vshrl.u32 %v1161, 7
  %v1163 = vsub.s32 %v1160, %v1162
  %v1164 = vrot.slane %v1156, %v1163
  %v1166 = vunpack.c.l.s4 1983009808
  %v1167 = vunpack.c.0.s8 %v1166
  %v1168 = vlaneseq
  %v1169 = vshrl.u32 %v1168, 7
  %v1170 = vsub.s32 %v1167, %v1169
  %v1171 = vrot.slane %v1157, %v1170
  %v1172 = vcombine.low %v1164, %v1171
  %v1173 = vcombine.low %v262, %v270
  %v1174 = vcombine.low %v278, %v277
  %v1176 = vunpack.c.l.s4 1983009808
  %v1177 = vunpack.c.0.s8 %v1176
  %v1178 = vlaneseq
  %v1179 = vshrl.u32 %v1178, 7
  %v1180 = vsub.s32 %v1177, %v1179
  %v1181 = vrot.slane %v1173, %v1180
  %v1183 = vunpack.c.l.s4 1983009808
  %v1184 = vunpack.c.0.s8 %v1183
  %v1185 = vlaneseq
  %v1186 = vshrl.u32 %v1185, 7
  %v1187 = vsub.s32 %v1184, %v1186
  %v1188 = vrot.slane %v1174, %v1187
  %v1189 = vcombine.low %v1181, %v1188
  %v1190 = vcombine.low %v286, %v294
  %v1191 = vcombine.low %v293, %v295
  %v1193 = vunpack.c.l.s4 1983009808
  %v1194 = vunpack.c.0.s8 %v1193
  %v1195 = vlaneseq
  %v1196 = vshrl.u32 %v1195, 7
  %v1197 = vsub.s32 %v1194, %v1196
  %v1198 = vrot.slane %v1190, %v1197
  %v1200 = vunpack.c.l.s4 1983009808
  %v1201 = vunpack.c.0.s8 %v1200
  %v1202 = vlaneseq
  %v1203 = vshrl.u32 %v1202, 7
  %v1204 = vsub.s32 %v1201, %v1203
  %v1205 = vrot.slane %v1191, %v1204
  %v1206 = vcombine.low %v1198, %v1205
  %v1207 = vcombine.low %v303, %v311
  %v1208 = vcombine.low %v310, %v319
  %v1210 = vunpack.c.l.s4 1983009808
  %v1211 = vunpack.c.0.s8 %v1210
  %v1212 = vlaneseq
  %v1213 = vshrl.u32 %v1212, 7
  %v1214 = vsub.s32 %v1211, %v1213
  %v1215 = vrot.slane %v1207, %v1214
  %v1217 = vunpack.c.l.s4 1983009808
  %v1218 = vunpack.c.0.s8 %v1217
  %v1219 = vlaneseq
  %v1220 = vshrl.u32 %v1219, 7
  %v1221 = vsub.s32 %v1218, %v1220
  %v1222 = vrot.slane %v1208, %v1221
  %v1223 = vcombine.low %v1215, %v1222
  %v1224 = vcombine.low %v327, %v326
  %v1225 = vcombine.low %v328, %v336
  %v1227 = vunpack.c.l.s4 1983009808
  %v1228 = vunpack.c.0.s8 %v1227
  %v1229 = vlaneseq
  %v1230 = vshrl.u32 %v1229, 7
  %v1231 = vsub.s32 %v1228, %v1230
  %v1232 = vrot.slane %v1224, %v1231
  %v1234 = vunpack.c.l.s4 1983009808
  %v1235 = vunpack.c.0.s8 %v1234
  %v1236 = vlaneseq
  %v1237 = vshrl.u32 %v1236, 7
  %v1238 = vsub.s32 %v1235, %v1237
  %v1239 = vrot.slane %v1225, %v1238
  %v1240 = vcombine.low %v1232, %v1239
  %v1241 = vcombine.low %v344, %v343
  %v1242 = vcombine.low %v352, %v360
  %v1244 = vunpack.c.l.s4 1983009808
  %v1245 = vunpack.c.0.s8 %v1244
  %v1246 = vlaneseq
  %v1247 = vshrl.u32 %v1246, 7
  %v1248 = vsub.s32 %v1245, %v1247
  %v1249 = vrot.slane %v1241, %v1248
  %v1251 = vunpack.c.l.s4 1983009808
  %v1252 = vunpack.c.0.s8 %v1251
  %v1253 = vlaneseq
  %v1254 = vshrl.u32 %v1253, 7
  %v1255 = vsub.s32 %v1252, %v1254
  %v1256 = vrot.slane %v1242, %v1255
  %v1257 = vcombine.low %v1249, %v1256
  %v1258 = vcombine.low %v359, %v361
  %v1259 = vcombine.low %v369, %v377
  %v1261 = vunpack.c.l.s4 1983009808
  %v1262 = vunpack.c.0.s8 %v1261
  %v1263 = vlaneseq
  %v1264 = vshrl.u32 %v1263, 7
  %v1265 = vsub.s32 %v1262, %v1264
  %v1266 = vrot.slane %v1258, %v1265
  %v1268 = vunpack.c.l.s4 1983009808
  %v1269 = vunpack.c.0.s8 %v1268
  %v1270 = vlaneseq
  %v1271 = vshrl.u32 %v1270, 7
  %v1272 = vsub.s32 %v1269, %v1271
  %v1273 = vrot.slane %v1259, %v1272
  %v1274 = vcombine.low %v1266, %v1273
  %v1275 = vcombine.low %v376, %v385
  %v1276 = vcombine.low %v393, %v392
  %v1278 = vunpack.c.l.s4 1983009808
  %v1279 = vunpack.c.0.s8 %v1278
  %v1280 = vlaneseq
  %v1281 = vshrl.u32 %v1280, 7
  %v1282 = vsub.s32 %v1279, %v1281
  %v1283 = vrot.slane %v1275, %v1282
  %v1285 = vunpack.c.l.s4 1983009808
  %v1286 = vunpack.c.0.s8 %v1285
  %v1287 = vlaneseq
  %v1288 = vshrl.u32 %v1287, 7
  %v1289 = vsub.s32 %v1286, %v1288
  %v1290 = vrot.slane %v1276, %v1289
  %v1291 = vcombine.low %v1283, %v1290
  %v1292 = vcombine.low %v394, %v402
  %v1293 = vcombine.low %v410, %v409
  %v1295 = vunpack.c.l.s4 1983009808
  %v1296 = vunpack.c.0.s8 %v1295
  %v1297 = vlaneseq
  %v1298 = vshrl.u32 %v1297, 7
  %v1299 = vsub.s32 %v1296, %v1298
  %v1300 = vrot.slane %v1292, %v1299
  %v1302 = vunpack.c.l.s4 1983009808
  %v1303 = vunpack.c.0.s8 %v1302
  %v1304 = vlaneseq
  %v1305 = vshrl.u32 %v1304, 7
  %v1306 = vsub.s32 %v1303, %v1305
  %v1307 = vrot.slane %v1293, %v1306
  %v1308 = vcombine.low %v1300, %v1307
  %v1309 = vcombine.low %v418, %v426
  %v1310 = vcombine.low %v425, %v427
  %v1312 = vunpack.c.l.s4 1983009808
  %v1313 = vunpack.c.0.s8 %v1312
  %v1314 = vlaneseq
  %v1315 = vshrl.u32 %v1314, 7
  %v1316 = vsub.s32 %v1313, %v1315
  %v1317 = vrot.slane %v1309, %v1316
  %v1319 = vunpack.c.l.s4 1983009808
  %v1320 = vunpack.c.0.s8 %v1319
  %v1321 = vlaneseq
  %v1322 = vshrl.u32 %v1321, 7
  %v1323 = vsub.s32 %v1320, %v1322
  %v1324 = vrot.slane %v1310, %v1323
  %v1325 = vcombine.low %v1317, %v1324
  %v1326 = vcombine.low %v435, %v443
  %v1327 = vcombine.low %v442, %v451
  %v1329 = vunpack.c.l.s4 1983009808
  %v1330 = vunpack.c.0.s8 %v1329
  %v1331 = vlaneseq
  %v1332 = vshrl.u32 %v1331, 7
  %v1333 = vsub.s32 %v1330, %v1332
  %v1334 = vrot.slane %v1326, %v1333
  %v1336 = vunpack.c.l.s4 1983009808
  %v1337 = vunpack.c.0.s8 %v1336
  %v1338 = vlaneseq
  %v1339 = vshrl.u32 %v1338, 7
  %v1340 = vsub.s32 %v1337, %v1339
  %v1341 = vrot.slane %v1327, %v1340
  %v1342 = vcombine.low %v1334, %v1341
  %v1343 = vcombine.low %v459, %v458
  %v1344 = vcombine.low %v460, %v468
  %v1346 = vunpack.c.l.s4 1983009808
  %v1347 = vunpack.c.0.s8 %v1346
  %v1348 = vlaneseq
  %v1349 = vshrl.u32 %v1348, 7
  %v1350 = vsub.s32 %v1347, %v1349
  %v1351 = vrot.slane %v1343, %v1350
  %v1353 = vunpack.c.l.s4 1983009808
  %v1354 = vunpack.c.0.s8 %v1353
  %v1355 = vlaneseq
  %v1356 = vshrl.u32 %v1355, 7
  %v1357 = vsub.s32 %v1354, %v1356
  %v1358 = vrot.slane %v1344, %v1357
  %v1359 = vcombine.low %v1351, %v1358
  %v1360 = vcombine.low %v476, %v475
  %v1361 = vcombine.low %v484, %v492
  %v1363 = vunpack.c.l.s4 1983009808
  %v1364 = vunpack.c.0.s8 %v1363
  %v1365 = vlaneseq
  %v1366 = vshrl.u32 %v1365, 7
  %v1367 = vsub.s32 %v1364, %v1366
  %v1368 = vrot.slane %v1360, %v1367
  %v1370 = vunpack.c.l.s4 1983009808
  %v1371 = vunpack.c.0.s8 %v1370
  %v1372 = vlaneseq
  %v1373 = vshrl.u32 %v1372, 7
  %v1374 = vsub.s32 %v1371, %v1373
  %v1375 = vrot.slane %v1361, %v1374
  %v1376 = vcombine.low %v1368, %v1375
  %v1377 = vcombine.low %v491, %v493
  %v1378 = vcombine.low %v501, %v509
  %v1380 = vunpack.c.l.s4 1983009808
  %v1381 = vunpack.c.0.s8 %v1380
  %v1382 = vlaneseq
  %v1383 = vshrl.u32 %v1382, 7
  %v1384 = vsub.s32 %v1381, %v1383
  %v1385 = vrot.slane %v1377, %v1384
  %v1387 = vunpack.c.l.s4 1983009808
  %v1388 = vunpack.c.0.s8 %v1387
  %v1389 = vlaneseq
  %v1390 = vshrl.u32 %v1389, 7
  %v1391 = vsub.s32 %v1388, %v1390
  %v1392 = vrot.slane %v1378, %v1391
  %v1393 = vcombine.low %v1385, %v1392
  %v1394 = vcombine.low %v508, %v517
  %v1395 = vcombine.low %v525, %v524
  %v1397 = vunpack.c.l.s4 1983009808
  %v1398 = vunpack.c.0.s8 %v1397
  %v1399 = vlaneseq
  %v1400 = vshrl.u32 %v1399, 7
  %v1401 = vsub.s32 %v1398, %v1400
  %v1402 = vrot.slane %v1394, %v1401
  %v1404 = vunpack.c.l.s4 1983009808
  %v1405 = vunpack.c.0.s8 %v1404
  %v1406 = vlaneseq
  %v1407 = vshrl.u32 %v1406, 7
  %v1408 = vsub.s32 %v1405, %v1407
  %v1409 = vrot.slane %v1395, %v1408
  %v1410 = vcombine.low %v1402, %v1409
  %v1411 = vcombine.low %v526, %v534
  %v1412 = vcombine.low %v542, %v541
  %v1414 = vunpack.c.l.s4 1983009808
  %v1415 = vunpack.c.0.s8 %v1414
  %v1416 = vlaneseq
  %v1417 = vshrl.u32 %v1416, 7
  %v1418 = vsub.s32 %v1415, %v1417
  %v1419 = vrot.slane %v1411, %v1418
  %v1421 = vunpack.c.l.s4 1983009808
  %v1422 = vunpack.c.0.s8 %v1421
  %v1423 = vlaneseq
  %v1424 = vshrl.u32 %v1423, 7
  %v1425 = vsub.s32 %v1422, %v1424
  %v1426 = vrot.slane %v1412, %v1425
  %v1427 = vcombine.low %v1419, %v1426
  %v1428 = vcombine.low %v550, %v558
  %v1429 = vcombine.low %v557, %v559
  %v1431 = vunpack.c.l.s4 1983009808
  %v1432 = vunpack.c.0.s8 %v1431
  %v1433 = vlaneseq
  %v1434 = vshrl.u32 %v1433, 7
  %v1435 = vsub.s32 %v1432, %v1434
  %v1436 = vrot.slane %v1428, %v1435
  %v1438 = vunpack.c.l.s4 1983009808
  %v1439 = vunpack.c.0.s8 %v1438
  %v1440 = vlaneseq
  %v1441 = vshrl.u32 %v1440, 7
  %v1442 = vsub.s32 %v1439, %v1441
  %v1443 = vrot.slane %v1429, %v1442
  %v1444 = vcombine.low %v1436, %v1443
  %v1445 = vcombine.low %v567, %v575
  %v1446 = vcombine.low %v574, %v583
  %v1448 = vunpack.c.l.s4 1983009808
  %v1449 = vunpack.c.0.s8 %v1448
  %v1450 = vlaneseq
  %v1451 = vshrl.u32 %v1450, 7
  %v1452 = vsub.s32 %v1449, %v1451
  %v1453 = vrot.slane %v1445, %v1452
  %v1455 = vunpack.c.l.s4 1983009808
  %v1456 = vunpack.c.0.s8 %v1455
  %v1457 = vlaneseq
  %v1458 = vshrl.u32 %v1457, 7
  %v1459 = vsub.s32 %v1456, %v1458
  %v1460 = vrot.slane %v1446, %v1459
  %v1461 = vcombine.low %v1453, %v1460
  %v1462 = vcombine.low %v591, %v590
  %v1463 = vcombine.low %v592, %v600
  %v1465 = vunpack.c.l.s4 1983009808
  %v1466 = vunpack.c.0.s8 %v1465
  %v1467 = vlaneseq
  %v1468 = vshrl.u32 %v1467, 7
  %v1469 = vsub.s32 %v1466, %v1468
  %v1470 = vrot.slane %v1462, %v1469
  %v1472 = vunpack.c.l.s4 1983009808
  %v1473 = vunpack.c.0.s8 %v1472
  %v1474 = vlaneseq
  %v1475 = vshrl.u32 %v1474, 7
  %v1476 = vsub.s32 %v1473, %v1475
  %v1477 = vrot.slane %v1463, %v1476
  %v1478 = vcombine.low %v1470, %v1477
  %v1479 = vcombine.low %v608, %v607
  %v1480 = vcombine.low %v616, %v624
  %v1482 = vunpack.c.l.s4 1983009808
  %v1483 = vunpack.c.0.s8 %v1482
  %v1484 = vlaneseq
  %v1485 = vshrl.u32 %v1484, 7
  %v1486 = vsub.s32 %v1483, %v1485
  %v1487 = vrot.slane %v1479, %v1486
  %v1489 = vunpack.c.l.s4 1983009808
  %v1490 = vunpack.c.0.s8 %v1489
  %v1491 = vlaneseq
  %v1492 = vshrl.u32 %v1491, 7
  %v1493 = vsub.s32 %v1490, %v1492
  %v1494 = vrot.slane %v1480, %v1493
  %v1495 = vcombine.low %v1487, %v1494
  %v1496 = vcombine.low %v623, %v625
  %v1497 = vcombine.low %v633, %v641
  %v1499 = vunpack.c.l.s4 1983009808
  %v1500 = vunpack.c.0.s8 %v1499
  %v1501 = vlaneseq
  %v1502 = vshrl.u32 %v1501, 7
  %v1503 = vsub.s32 %v1500, %v1502
  %v1504 = vrot.slane %v1496, %v1503
  %v1506 = vunpack.c.l.s4 1983009808
  %v1507 = vunpack.c.0.s8 %v1506
  %v1508 = vlaneseq
  %v1509 = vshrl.u32 %v1508, 7
  %v1510 = vsub.s32 %v1507, %v1509
  %v1511 = vrot.slane %v1497, %v1510
  %v1512 = vcombine.low %v1504, %v1511
  %v1513 = vcombine.low %v640, %v649
  %v1514 = vcombine.low %v657, %v656
  %v1516 = vunpack.c.l.s4 1983009808
  %v1517 = vunpack.c.0.s8 %v1516
  %v1518 = vlaneseq
  %v1519 = vshrl.u32 %v1518, 7
  %v1520 = vsub.s32 %v1517, %v1519
  %v1521 = vrot.slane %v1513, %v1520
  %v1523 = vunpack.c.l.s4 1983009808
  %v1524 = vunpack.c.0.s8 %v1523
  %v1525 = vlaneseq
  %v1526 = vshrl.u32 %v1525, 7
  %v1527 = vsub.s32 %v1524, %v1526
  %v1528 = vrot.slane %v1514, %v1527
  %v1529 = vcombine.low %v1521, %v1528
  %v1530 = vcombine.low %v658, %v666
  %v1531 = vcombine.low %v674, %v673
  %v1533 = vunpack.c.l.s4 1983009808
  %v1534 = vunpack.c.0.s8 %v1533
  %v1535 = vlaneseq
  %v1536 = vshrl.u32 %v1535, 7
  %v1537 = vsub.s32 %v1534, %v1536
  %v1538 = vrot.slane %v1530, %v1537
  %v1540 = vunpack.c.l.s4 1983009808
  %v1541 = vunpack.c.0.s8 %v1540
  %v1542 = vlaneseq
  %v1543 = vshrl.u32 %v1542, 7
  %v1544 = vsub.s32 %v1541, %v1543
  %v1545 = vrot.slane %v1531, %v1544
  %v1546 = vcombine.low %v1538, %v1545
  %v1547 = vcombine.low %v682, %v690
  %v1548 = vcombine.low %v689, %v691
  %v1550 = vunpack.c.l.s4 1983009808
  %v1551 = vunpack.c.0.s8 %v1550
  %v1552 = vlaneseq
  %v1553 = vshrl.u32 %v1552, 7
  %v1554 = vsub.s32 %v1551, %v1553
  %v1555 = vrot.slane %v1547, %v1554
  %v1557 = vunpack.c.l.s4 1983009808
  %v1558 = vunpack.c.0.s8 %v1557
  %v1559 = vlaneseq
  %v1560 = vshrl.u32 %v1559, 7
  %v1561 = vsub.s32 %v1558, %v1560
  %v1562 = vrot.slane %v1548, %v1561
  %v1563 = vcombine.low %v1555, %v1562
  %v1564 = vcombine.low %v699, %v707
  %v1565 = vcombine.low %v706, %v715
  %v1567 = vunpack.c.l.s4 1983009808
  %v1568 = vunpack.c.0.s8 %v1567
  %v1569 = vlaneseq
  %v1570 = vshrl.u32 %v1569, 7
  %v1571 = vsub.s32 %v1568, %v1570
  %v1572 = vrot.slane %v1564, %v1571
  %v1574 = vunpack.c.l.s4 1983009808
  %v1575 = vunpack.c.0.s8 %v1574
  %v1576 = vlaneseq
  %v1577 = vshrl.u32 %v1576, 7
  %v1578 = vsub.s32 %v1575, %v1577
  %v1579 = vrot.slane %v1565, %v1578
  %v1580 = vcombine.low %v1572, %v1579
  %v1581 = vcombine.low %v723, %v722
  %v1582 = vcombine.low %v724, %v732
  %v1584 = vunpack.c.l.s4 1983009808
  %v1585 = vunpack.c.0.s8 %v1584
  %v1586 = vlaneseq
  %v1587 = vshrl.u32 %v1586, 7
  %v1588 = vsub.s32 %v1585, %v1587
  %v1589 = vrot.slane %v1581, %v1588
  %v1591 = vunpack.c.l.s4 1983009808
  %v1592 = vunpack.c.0.s8 %v1591
  %v1593 = vlaneseq
  %v1594 = vshrl.u32 %v1593, 7
  %v1595 = vsub.s32 %v1592, %v1594
  %v1596 = vrot.slane %v1582, %v1595
  %v1597 = vcombine.low %v1589, %v1596
  %v1598 = vcombine.low %v740, %v739
  %v1599 = vcombine.low %v748, %v756
  %v1601 = vunpack.c.l.s4 1983009808
  %v1602 = vunpack.c.0.s8 %v1601
  %v1603 = vlaneseq
  %v1604 = vshrl.u32 %v1603, 7
  %v1605 = vsub.s32 %v1602, %v1604
  %v1606 = vrot.slane %v1598, %v1605
  %v1608 = vunpack.c.l.s4 1983009808
  %v1609 = vunpack.c.0.s8 %v1608
  %v1610 = vlaneseq
  %v1611 = vshrl.u32 %v1610, 7
  %v1612 = vsub.s32 %v1609, %v1611
  %v1613 = vrot.slane %v1599, %v1612
  %v1614 = vcombine.low %v1606, %v1613
  %v1615 = vcombine.low %v755, %v757
  %v1616 = vcombine.low %v765, %v773
  %v1618 = vunpack.c.l.s4 1983009808
  %v1619 = vunpack.c.0.s8 %v1618
  %v1620 = vlaneseq
  %v1621 = vshrl.u32 %v1620, 7
  %v1622 = vsub.s32 %v1619, %v1621
  %v1623 = vrot.slane %v1615, %v1622
  %v1625 = vunpack.c.l.s4 1983009808
  %v1626 = vunpack.c.0.s8 %v1625
  %v1627 = vlaneseq
  %v1628 = vshrl.u32 %v1627, 7
  %v1629 = vsub.s32 %v1626, %v1628
  %v1630 = vrot.slane %v1616, %v1629
  %v1631 = vcombine.low %v1623, %v1630
  %v1632 = vcombine.low %v772, %v781
  %v1633 = vcombine.low %v789, %v788
  %v1635 = vunpack.c.l.s4 1983009808
  %v1636 = vunpack.c.0.s8 %v1635
  %v1637 = vlaneseq
  %v1638 = vshrl.u32 %v1637, 7
  %v1639 = vsub.s32 %v1636, %v1638
  %v1640 = vrot.slane %v1632, %v1639
  %v1642 = vunpack.c.l.s4 1983009808
  %v1643 = vunpack.c.0.s8 %v1642
  %v1644 = vlaneseq
  %v1645 = vshrl.u32 %v1644, 7
  %v1646 = vsub.s32 %v1643, %v1645
  %v1647 = vrot.slane %v1633, %v1646
  %v1648 = vcombine.low %v1640, %v1647
  %v1649 = vcombine.low %v790, %v798
  %v1650 = vcombine.low %v806, %v805
  %v1652 = vunpack.c.l.s4 1983009808
  %v1653 = vunpack.c.0.s8 %v1652
  %v1654 = vlaneseq
  %v1655 = vshrl.u32 %v1654, 7
  %v1656 = vsub.s32 %v1653, %v1655
  %v1657 = vrot.slane %v1649, %v1656
  %v1659 = vunpack.c.l.s4 1983009808
  %v1660 = vunpack.c.0.s8 %v1659
  %v1661 = vlaneseq
  %v1662 = vshrl.u32 %v1661, 7
  %v1663 = vsub.s32 %v1660, %v1662
  %v1664 = vrot.slane %v1650, %v1663
  %v1665 = vcombine.low %v1657, %v1664
  %v1666 = vcombine.low %v814, %v822
  %v1667 = vcombine.low %v821, %v823
  %v1669 = vunpack.c.l.s4 1983009808
  %v1670 = vunpack.c.0.s8 %v1669
  %v1671 = vlaneseq
  %v1672 = vshrl.u32 %v1671, 7
  %v1673 = vsub.s32 %v1670, %v1672
  %v1674 = vrot.slane %v1666, %v1673
  %v1676 = vunpack.c.l.s4 1983009808
  %v1677 = vunpack.c.0.s8 %v1676
  %v1678 = vlaneseq
  %v1679 = vshrl.u32 %v1678, 7
  %v1680 = vsub.s32 %v1677, %v1679
  %v1681 = vrot.slane %v1667, %v1680
  %v1682 = vcombine.low %v1674, %v1681
  %v1683 = vcombine.low %v831, %v839
  %v1684 = vcombine.low %v838, %v847
  %v1686 = vunpack.c.l.s4 1983009808
  %v1687 = vunpack.c.0.s8 %v1686
  %v1688 = vlaneseq
  %v1689 = vshrl.u32 %v1688, 7
  %v1690 = vsub.s32 %v1687, %v1689
  %v1691 = vrot.slane %v1683, %v1690
  %v1693 = vunpack.c.l.s4 1983009808
  %v1694 = vunpack.c.0.s8 %v1693
  %v1695 = vlaneseq
  %v1696 = vshrl.u32 %v1695, 7
  %v1697 = vsub.s32 %v1694, %v1696
  %v1698 = vrot.slane %v1684, %v1697
  %v1699 = vcombine.low %v1691, %v1698
  %v1700 = vcombine.low %v855, %v854
  %v1701 = vcombine.low %v856, %v864
  %v1703 = vunpack.c.l.s4 1983009808
  %v1704 = vunpack.c.0.s8 %v1703
  %v1705 = vlaneseq
  %v1706 = vshrl.u32 %v1705, 7
  %v1707 = vsub.s32 %v1704, %v1706
  %v1708 = vrot.slane %v1700, %v1707
  %v1710 = vunpack.c.l.s4 1983009808
  %v1711 = vunpack.c.0.s8 %v1710
  %v1712 = vlaneseq
  %v1713 = vshrl.u32 %v1712, 7
  %v1714 = vsub.s32 %v1711, %v1713
  %v1715 = vrot.slane %v1701, %v1714
  %v1716 = vcombine.low %v1708, %v1715
  %v1717 = vcombine.low %v872, %v871
  %v1718 = vcombine.low %v880, %v888
  %v1720 = vunpack.c.l.s4 1983009808
  %v1721 = vunpack.c.0.s8 %v1720
  %v1722 = vlaneseq
  %v1723 = vshrl.u32 %v1722, 7
  %v1724 = vsub.s32 %v1721, %v1723
  %v1725 = vrot.slane %v1717, %v1724
  %v1727 = vunpack.c.l.s4 1983009808
  %v1728 = vunpack.c.0.s8 %v1727
  %v1729 = vlaneseq
  %v1730 = vshrl.u32 %v1729, 7
  %v1731 = vsub.s32 %v1728, %v1730
  %v1732 = vrot.slane %v1718, %v1731
  %v1733 = vcombine.low %v1725, %v1732
  %v1734 = vcombine.low %v887, %v889
  %v1735 = vcombine.low %v897, %v905
  %v1737 = vunpack.c.l.s4 1983009808
  %v1738 = vunpack.c.0.s8 %v1737
  %v1739 = vlaneseq
  %v1740 = vshrl.u32 %v1739, 7
  %v1741 = vsub.s32 %v1738, %v1740
  %v1742 = vrot.slane %v1734, %v1741
  %v1744 = vunpack.c.l.s4 1983009808
  %v1745 = vunpack.c.0.s8 %v1744
  %v1746 = vlaneseq
  %v1747 = vshrl.u32 %v1746, 7
  %v1748 = vsub.s32 %v1745, %v1747
  %v1749 = vrot.slane %v1735, %v1748
  %v1750 = vcombine.low %v1742, %v1749
  %v1751 = vcombine.low %v904, %v913
  %v1752 = vcombine.low %v921, %v920
  %v1754 = vunpack.c.l.s4 1983009808
  %v1755 = vunpack.c.0.s8 %v1754
  %v1756 = vlaneseq
  %v1757 = vshrl.u32 %v1756, 7
  %v1758 = vsub.s32 %v1755, %v1757
  %v1759 = vrot.slane %v1751, %v1758
  %v1761 = vunpack.c.l.s4 1983009808
  %v1762 = vunpack.c.0.s8 %v1761
  %v1763 = vlaneseq
  %v1764 = vshrl.u32 %v1763, 7
  %v1765 = vsub.s32 %v1762, %v1764
  %v1766 = vrot.slane %v1752, %v1765
  %v1767 = vcombine.low %v1759, %v1766
  %v1768 = vcombine.low %v922, %v930
  %v1769 = vcombine.low %v938, %v937
  %v1771 = vunpack.c.l.s4 1983009808
  %v1772 = vunpack.c.0.s8 %v1771
  %v1773 = vlaneseq
  %v1774 = vshrl.u32 %v1773, 7
  %v1775 = vsub.s32 %v1772, %v1774
  %v1776 = vrot.slane %v1768, %v1775
  %v1778 = vunpack.c.l.s4 1983009808
  %v1779 = vunpack.c.0.s8 %v1778
  %v1780 = vlaneseq
  %v1781 = vshrl.u32 %v1780, 7
  %v1782 = vsub.s32 %v1779, %v1781
  %v1783 = vrot.slane %v1769, %v1782
  %v1784 = vcombine.low %v1776, %v1783
  %v1785 = vcombine.low %v946, %v954
  %v1786 = vcombine.low %v953, %v955
  %v1788 = vunpack.c.l.s4 1983009808
  %v1789 = vunpack.c.0.s8 %v1788
  %v1790 = vlaneseq
  %v1791 = vshrl.u32 %v1790, 7
  %v1792 = vsub.s32 %v1789, %v1791
  %v1793 = vrot.slane %v1785, %v1792
  %v1795 = vunpack.c.l.s4 1983009808
  %v1796 = vunpack.c.0.s8 %v1795
  %v1797 = vlaneseq
  %v1798 = vshrl.u32 %v1797, 7
  %v1799 = vsub.s32 %v1796, %v1798
  %v1800 = vrot.slane %v1786, %v1799
  %v1801 = vcombine.low %v1793, %v1800
  %v1802 = vcombine.low %v963, %v971
  %v1803 = vcombine.low %v970, %v979
  %v1805 = vunpack.c.l.s4 1983009808
  %v1806 = vunpack.c.0.s8 %v1805
  %v1807 = vlaneseq
  %v1808 = vshrl.u32 %v1807, 7
  %v1809 = vsub.s32 %v1806, %v1808
  %v1810 = vrot.slane %v1802, %v1809
  %v1812 = vunpack.c.l.s4 1983009808
  %v1813 = vunpack.c.0.s8 %v1812
  %v1814 = vlaneseq
  %v1815 = vshrl.u32 %v1814, 7
  %v1816 = vsub.s32 %v1813, %v1815
  %v1817 = vrot.slane %v1803, %v1816
  %v1818 = vcombine.low %v1810, %v1817
  %v1819 = vcombine.low %v987, %v986
  %v1820 = vcombine.low %v988, %v996
  %v1822 = vunpack.c.l.s4 1983009808
  %v1823 = vunpack.c.0.s8 %v1822
  %v1824 = vlaneseq
  %v1825 = vshrl.u32 %v1824, 7
  %v1826 = vsub.s32 %v1823, %v1825
  %v1827 = vrot.slane %v1819, %v1826
  %v1829 = vunpack.c.l.s4 1983009808
  %v1830 = vunpack.c.0.s8 %v1829
  %v1831 = vlaneseq
  %v1832 = vshrl.u32 %v1831, 7
  %v1833 = vsub.s32 %v1830, %v1832
  %v1834 = vrot.slane %v1820, %v1833
  %v1835 = vcombine.low %v1827, %v1834
  %v1836 = vcombine.low %v1004, %v1003
  %v1837 = vcombine.low %v1012, %v1020
  %v1839 = vunpack.c.l.s4 1983009808
  %v1840 = vunpack.c.0.s8 %v1839
  %v1841 = vlaneseq
  %v1842 = vshrl.u32 %v1841, 7
  %v1843 = vsub.s32 %v1840, %v1842
  %v1844 = vrot.slane %v1836, %v1843
  %v1846 = vunpack.c.l.s4 1983009808
  %v1847 = vunpack.c.0.s8 %v1846
  %v1848 = vlaneseq
  %v1849 = vshrl.u32 %v1848, 7
  %v1850 = vsub.s32 %v1847, %v1849
  %v1851 = vrot.slane %v1837, %v1850
  %v1852 = vcombine.low %v1844, %v1851
  %v1853 = vcombine.low %v1019, %v1021
  %v1854 = vcombine.low %v1029, %v1037
  %v1856 = vunpack.c.l.s4 1983009808
  %v1857 = vunpack.c.0.s8 %v1856
  %v1858 = vlaneseq
  %v1859 = vshrl.u32 %v1858, 7
  %v1860 = vsub.s32 %v1857, %v1859
  %v1861 = vrot.slane %v1853, %v1860
  %v1863 = vunpack.c.l.s4 1983009808
  %v1864 = vunpack.c.0.s8 %v1863
  %v1865 = vlaneseq
  %v1866 = vshrl.u32 %v1865, 7
  %v1867 = vsub.s32 %v1864, %v1866
  %v1868 = vrot.slane %v1854, %v1867
  %v1869 = vcombine.low %v1861, %v1868
  %v1870 = vcombine.low %v1036, %v1045
  %v1871 = vcombine.low %v1053, %v1052
  %v1873 = vunpack.c.l.s4 1983009808
  %v1874 = vunpack.c.0.s8 %v1873
  %v1875 = vlaneseq
  %v1876 = vshrl.u32 %v1875, 7
  %v1877 = vsub.s32 %v1874, %v1876
  %v1878 = vrot.slane %v1870, %v1877
  %v1880 = vunpack.c.l.s4 1983009808
  %v1881 = vunpack.c.0.s8 %v1880
  %v1882 = vlaneseq
  %v1883 = vshrl.u32 %v1882, 7
  %v1884 = vsub.s32 %v1881, %v1883
  %v1885 = vrot.slane %v1871, %v1884
  %v1886 = vcombine.low %v1878, %v1885
  %v1887 = vcombine.low %v1054, %v1062
  %v1888 = vcombine.low %v1070, %v1069
  %v1890 = vunpack.c.l.s4 1983009808
  %v1891 = vunpack.c.0.s8 %v1890
  %v1892 = vlaneseq
  %v1893 = vshrl.u32 %v1892, 7
  %v1894 = vsub.s32 %v1891, %v1893
  %v1895 = vrot.slane %v1887, %v1894
  %v1897 = vunpack.c.l.s4 1983009808
  %v1898 = vunpack.c.0.s8 %v1897
  %v1899 = vlaneseq
  %v1900 = vshrl.u32 %v1899, 7
  %v1901 = vsub.s32 %v1898, %v1900
  %v1902 = vrot.slane %v1888, %v1901
  %v1903 = vcombine.low %v1895, %v1902
  %vm1953 = vcmask 31744
  %1954 = vst.msk [vmem:[#allocation2] sm:$0xff] %vm1953, %v1087
  %1955 = vst.msk [vmem:[#allocation2 + $0x8] sm:$0xff] %vm1953, %v1104
  %1956 = vst.msk [vmem:[#allocation2 + $0x10] sm:$0xff] %vm1953, %v1121
  %1957 = vst.msk [vmem:[#allocation2 + $0x18] sm:$0xff] %vm1953, %v1138
  %1958 = vst.msk [vmem:[#allocation2 + $0x20] sm:$0xff] %vm1953, %v1155
  %1959 = vst.msk [vmem:[#allocation2 + $0x28] sm:$0xff] %vm1953, %v1172
  %1960 = vst.msk [vmem:[#allocation2 + $0x30] sm:$0xff] %vm1953, %v1189
  %1961 = vst.msk [vmem:[#allocation2 + $0x38] sm:$0xff] %vm1953, %v1206
  %1962 = vst.msk [vmem:[#allocation2 + $0x40] sm:$0xff] %vm1953, %v1223
  %1963 = vst.msk [vmem:[#allocation2 + $0x48] sm:$0xff] %vm1953, %v1240
  %1964 = vst.msk [vmem:[#allocation2 + $0x50] sm:$0xff] %vm1953, %v1257
  %1965 = vst.msk [vmem:[#allocation2 + $0x58] sm:$0xff] %vm1953, %v1274
  %1966 = vst.msk [vmem:[#allocation2 + $0x60] sm:$0xff] %vm1953, %v1291
  %1967 = vst.msk [vmem:[#allocation2 + $0x68] sm:$0xff] %vm1953, %v1308
  %1968 = vst.msk [vmem:[#allocation2 + $0x70] sm:$0xff] %vm1953, %v1325
  %1969 = vst.msk [vmem:[#allocation2 + $0x78] sm:$0xff] %vm1953, %v1342
  %1970 = vst.msk [vmem:[#allocation2 + $0x80] sm:$0xff] %vm1953, %v1359
  %1971 = vst.msk [vmem:[#allocation2 + $0x88] sm:$0xff] %vm1953, %v1376
  %1972 = vst.msk [vmem:[#allocation2 + $0x90] sm:$0xff] %vm1953, %v1393
  %1973 = vst.msk [vmem:[#allocation2 + $0x98] sm:$0xff] %vm1953, %v1410
  %1974 = vst.msk [vmem:[#allocation2 + $0xa0] sm:$0xff] %vm1953, %v1427
  %1975 = vst.msk [vmem:[#allocation2 + $0xa8] sm:$0xff] %vm1953, %v1444
  %1976 = vst.msk [vmem:[#allocation2 + $0xb0] sm:$0xff] %vm1953, %v1461
  %1977 = vst.msk [vmem:[#allocation2 + $0xb8] sm:$0xff] %vm1953, %v1478
  %1978 = vst.msk [vmem:[#allocation2 + $0xc0] sm:$0xff] %vm1953, %v1495
  %1979 = vst.msk [vmem:[#allocation2 + $0xc8] sm:$0xff] %vm1953, %v1512
  %1980 = vst.msk [vmem:[#allocation2 + $0xd0] sm:$0xff] %vm1953, %v1529
  %1981 = vst.msk [vmem:[#allocation2 + $0xd8] sm:$0xff] %vm1953, %v1546
  %1982 = vst.msk [vmem:[#allocation2 + $0xe0] sm:$0xff] %vm1953, %v1563
  %1983 = vst.msk [vmem:[#allocation2 + $0xe8] sm:$0xff] %vm1953, %v1580
  %1984 = vst.msk [vmem:[#allocation2 + $0xf0] sm:$0xff] %vm1953, %v1597
  %1985 = vst.msk [vmem:[#allocation2 + $0xf8] sm:$0xff] %vm1953, %v1614
  %1986 = vst.msk [vmem:[#allocation2 + $0x100] sm:$0xff] %vm1953, %v1631
  %1987 = vst.msk [vmem:[#allocation2 + $0x108] sm:$0xff] %vm1953, %v1648
  %1988 = vst.msk [vmem:[#allocation2 + $0x110] sm:$0xff] %vm1953, %v1665
  %1989 = vst.msk [vmem:[#allocation2 + $0x118] sm:$0xff] %vm1953, %v1682
  %1990 = vst.msk [vmem:[#allocation2 + $0x120] sm:$0xff] %vm1953, %v1699
  %1991 = vst.msk [vmem:[#allocation2 + $0x128] sm:$0xff] %vm1953, %v1716
  %1992 = vst.msk [vmem:[#allocation2 + $0x130] sm:$0xff] %vm1953, %v1733
  %1993 = vst.msk [vmem:[#allocation2 + $0x138] sm:$0xff] %vm1953, %v1750
  %1994 = vst.msk [vmem:[#allocation2 + $0x140] sm:$0xff] %vm1953, %v1767
  %1995 = vst.msk [vmem:[#allocation2 + $0x148] sm:$0xff] %vm1953, %v1784
  %1996 = vst.msk [vmem:[#allocation2 + $0x150] sm:$0xff] %vm1953, %v1801
  %1997 = vst.msk [vmem:[#allocation2 + $0x158] sm:$0xff] %vm1953, %v1818
  %1998 = vst.msk [vmem:[#allocation2 + $0x160] sm:$0xff] %vm1953, %v1835
  %1999 = vst.msk [vmem:[#allocation2 + $0x168] sm:$0xff] %vm1953, %v1852
  %2000 = vst.msk [vmem:[#allocation2 + $0x170] sm:$0xff] %vm1953, %v1869
  %2001 = vst.msk [vmem:[#allocation2 + $0x178] sm:$0xff] %vm1953, %v1886
  %2002 = vst.msk [vmem:[#allocation2 + $0x180] sm:$0xff] %vm1953, %v1903
  %v2003 = vcombine.high %v178, %v178
  %v2004 = vcombine.high %v211, %v211
  %v2005 = vcombine.high %v244, %v244
  %v2006 = vcombine.high %v277, %v277
  %v2007 = vcombine.high %v310, %v310
  %v2008 = vcombine.high %v343, %v343
  %v2009 = vcombine.high %v376, %v376
  %v2010 = vcombine.high %v409, %v409
  %v2011 = vcombine.high %v442, %v442
  %v2012 = vcombine.high %v475, %v475
  %v2013 = vcombine.high %v508, %v508
  %v2014 = vcombine.high %v541, %v541
  %v2015 = vcombine.high %v574, %v574
  %v2016 = vcombine.high %v607, %v607
  %v2017 = vcombine.high %v640, %v640
  %v2018 = vcombine.high %v673, %v673
  %v2019 = vcombine.high %v706, %v706
  %v2020 = vcombine.high %v739, %v739
  %v2021 = vcombine.high %v772, %v772
  %v2022 = vcombine.high %v805, %v805
  %v2023 = vcombine.high %v838, %v838
  %v2024 = vcombine.high %v871, %v871
  %v2025 = vcombine.high %v904, %v904
  %v2026 = vcombine.high %v937, %v937
  %v2027 = vcombine.high %v970, %v970
  %v2028 = vcombine.high %v1003, %v1003
  %v2029 = vcombine.high %v1036, %v1036
  %v2030 = vcombine.high %v1069, %v1069
  %vm2031 = vcmask 1040384
  %vm2032 = vcmask 1042434
  %vm2033 = vmor %vm2031, %vm2032
  %vm2034 = vcmask 1044484
  %vm2035 = vmor %vm2033, %vm2034
  %vm2036 = vcmask 1046534
  %vm2037 = vmor %vm2035, %vm2036
  %v2038 = vrot.slane %v154, 7
  %v2039 = vrot.slane %v2038, 2
  %v2040 = vrot.slane %v162, 7
  %v2041 = vsel %vm2037, %v2039, %v2040
  %v2042 = vrot.slane %v2040, 2
  %v2043 = vrot.slane %v161, 7
  %v2044 = vsel %vm2037, %v2042, %v2043
  %v2045 = vrot.slane %v2043, 2
  %v2046 = vrot.slane %v163, 7
  %v2047 = vsel %vm2037, %v2045, %v2046
  %v2048 = vrot.slane %v2046, 2
  %v2049 = vrot.slane %v171, 7
  %v2050 = vsel %vm2037, %v2048, %v2049
  %v2051 = vrot.slane %v2049, 2
  %v2052 = vrot.slane %v179, 7
  %v2053 = vsel %vm2037, %v2051, %v2052
  %v2054 = vrot.slane %v2052, 2
  %v2055 = vrot.slane %v178, 7
  %v2056 = vsel %vm2037, %v2054, %v2055
  %v2057 = vrot.slane %v2055, 2
  %v2058 = vrot.slane %v2003, 7
  %v2059 = vsel %vm2037, %v2057, %v2058
  %v2060 = vrot.slane %v187, 7
  %v2061 = vrot.slane %v2060, 2
  %v2062 = vrot.slane %v195, 7
  %v2063 = vsel %vm2037, %v2061, %v2062
  %v2064 = vrot.slane %v2062, 2
  %v2065 = vrot.slane %v194, 7
  %v2066 = vsel %vm2037, %v2064, %v2065
  %v2067 = vrot.slane %v2065, 2
  %v2068 = vrot.slane %v196, 7
  %v2069 = vsel %vm2037, %v2067, %v2068
  %v2070 = vrot.slane %v2068, 2
  %v2071 = vrot.slane %v204, 7
  %v2072 = vsel %vm2037, %v2070, %v2071
  %v2073 = vrot.slane %v2071, 2
  %v2074 = vrot.slane %v212, 7
  %v2075 = vsel %vm2037, %v2073, %v2074
  %v2076 = vrot.slane %v2074, 2
  %v2077 = vrot.slane %v211, 7
  %v2078 = vsel %vm2037, %v2076, %v2077
  %v2079 = vrot.slane %v2077, 2
  %v2080 = vrot.slane %v2004, 7
  %v2081 = vsel %vm2037, %v2079, %v2080
  %v2082 = vrot.slane %v220, 7
  %v2083 = vrot.slane %v2082, 2
  %v2084 = vrot.slane %v228, 7
  %v2085 = vsel %vm2037, %v2083, %v2084
  %v2086 = vrot.slane %v2084, 2
  %v2087 = vrot.slane %v227, 7
  %v2088 = vsel %vm2037, %v2086, %v2087
  %v2089 = vrot.slane %v2087, 2
  %v2090 = vrot.slane %v229, 7
  %v2091 = vsel %vm2037, %v2089, %v2090
  %v2092 = vrot.slane %v2090, 2
  %v2093 = vrot.slane %v237, 7
  %v2094 = vsel %vm2037, %v2092, %v2093
  %v2095 = vrot.slane %v2093, 2
  %v2096 = vrot.slane %v245, 7
  %v2097 = vsel %vm2037, %v2095, %v2096
  %v2098 = vrot.slane %v2096, 2
  %v2099 = vrot.slane %v244, 7
  %v2100 = vsel %vm2037, %v2098, %v2099
  %v2101 = vrot.slane %v2099, 2
  %v2102 = vrot.slane %v2005, 7
  %v2103 = vsel %vm2037, %v2101, %v2102
  %v2104 = vrot.slane %v253, 7
  %v2105 = vrot.slane %v2104, 2
  %v2106 = vrot.slane %v261, 7
  %v2107 = vsel %vm2037, %v2105, %v2106
  %v2108 = vrot.slane %v2106, 2
  %v2109 = vrot.slane %v260, 7
  %v2110 = vsel %vm2037, %v2108, %v2109
  %v2111 = vrot.slane %v2109, 2
  %v2112 = vrot.slane %v262, 7
  %v2113 = vsel %vm2037, %v2111, %v2112
  %v2114 = vrot.slane %v2112, 2
  %v2115 = vrot.slane %v270, 7
  %v2116 = vsel %vm2037, %v2114, %v2115
  %v2117 = vrot.slane %v2115, 2
  %v2118 = vrot.slane %v278, 7
  %v2119 = vsel %vm2037, %v2117, %v2118
  %v2120 = vrot.slane %v2118, 2
  %v2121 = vrot.slane %v277, 7
  %v2122 = vsel %vm2037, %v2120, %v2121
  %v2123 = vrot.slane %v2121, 2
  %v2124 = vrot.slane %v2006, 7
  %v2125 = vsel %vm2037, %v2123, %v2124
  %v2126 = vrot.slane %v286, 7
  %v2127 = vrot.slane %v2126, 2
  %v2128 = vrot.slane %v294, 7
  %v2129 = vsel %vm2037, %v2127, %v2128
  %v2130 = vrot.slane %v2128, 2
  %v2131 = vrot.slane %v293, 7
  %v2132 = vsel %vm2037, %v2130, %v2131
  %v2133 = vrot.slane %v2131, 2
  %v2134 = vrot.slane %v295, 7
  %v2135 = vsel %vm2037, %v2133, %v2134
  %v2136 = vrot.slane %v2134, 2
  %v2137 = vrot.slane %v303, 7
  %v2138 = vsel %vm2037, %v2136, %v2137
  %v2139 = vrot.slane %v2137, 2
  %v2140 = vrot.slane %v311, 7
  %v2141 = vsel %vm2037, %v2139, %v2140
  %v2142 = vrot.slane %v2140, 2
  %v2143 = vrot.slane %v310, 7
  %v2144 = vsel %vm2037, %v2142, %v2143
  %v2145 = vrot.slane %v2143, 2
  %v2146 = vrot.slane %v2007, 7
  %v2147 = vsel %vm2037, %v2145, %v2146
  %v2148 = vrot.slane %v319, 7
  %v2149 = vrot.slane %v2148, 2
  %v2150 = vrot.slane %v327, 7
  %v2151 = vsel %vm2037, %v2149, %v2150
  %v2152 = vrot.slane %v2150, 2
  %v2153 = vrot.slane %v326, 7
  %v2154 = vsel %vm2037, %v2152, %v2153
  %v2155 = vrot.slane %v2153, 2
  %v2156 = vrot.slane %v328, 7
  %v2157 = vsel %vm2037, %v2155, %v2156
  %v2158 = vrot.slane %v2156, 2
  %v2159 = vrot.slane %v336, 7
  %v2160 = vsel %vm2037, %v2158, %v2159
  %v2161 = vrot.slane %v2159, 2
  %v2162 = vrot.slane %v344, 7
  %v2163 = vsel %vm2037, %v2161, %v2162
  %v2164 = vrot.slane %v2162, 2
  %v2165 = vrot.slane %v343, 7
  %v2166 = vsel %vm2037, %v2164, %v2165
  %v2167 = vrot.slane %v2165, 2
  %v2168 = vrot.slane %v2008, 7
  %v2169 = vsel %vm2037, %v2167, %v2168
  %v2170 = vrot.slane %v352, 7
  %v2171 = vrot.slane %v2170, 2
  %v2172 = vrot.slane %v360, 7
  %v2173 = vsel %vm2037, %v2171, %v2172
  %v2174 = vrot.slane %v2172, 2
  %v2175 = vrot.slane %v359, 7
  %v2176 = vsel %vm2037, %v2174, %v2175
  %v2177 = vrot.slane %v2175, 2
  %v2178 = vrot.slane %v361, 7
  %v2179 = vsel %vm2037, %v2177, %v2178
  %v2180 = vrot.slane %v2178, 2
  %v2181 = vrot.slane %v369, 7
  %v2182 = vsel %vm2037, %v2180, %v2181
  %v2183 = vrot.slane %v2181, 2
  %v2184 = vrot.slane %v377, 7
  %v2185 = vsel %vm2037, %v2183, %v2184
  %v2186 = vrot.slane %v2184, 2
  %v2187 = vrot.slane %v376, 7
  %v2188 = vsel %vm2037, %v2186, %v2187
  %v2189 = vrot.slane %v2187, 2
  %v2190 = vrot.slane %v2009, 7
  %v2191 = vsel %vm2037, %v2189, %v2190
  %v2192 = vrot.slane %v385, 7
  %v2193 = vrot.slane %v2192, 2
  %v2194 = vrot.slane %v393, 7
  %v2195 = vsel %vm2037, %v2193, %v2194
  %v2196 = vrot.slane %v2194, 2
  %v2197 = vrot.slane %v392, 7
  %v2198 = vsel %vm2037, %v2196, %v2197
  %v2199 = vrot.slane %v2197, 2
  %v2200 = vrot.slane %v394, 7
  %v2201 = vsel %vm2037, %v2199, %v2200
  %v2202 = vrot.slane %v2200, 2
  %v2203 = vrot.slane %v402, 7
  %v2204 = vsel %vm2037, %v2202, %v2203
  %v2205 = vrot.slane %v2203, 2
  %v2206 = vrot.slane %v410, 7
  %v2207 = vsel %vm2037, %v2205, %v2206
  %v2208 = vrot.slane %v2206, 2
  %v2209 = vrot.slane %v409, 7
  %v2210 = vsel %vm2037, %v2208, %v2209
  %v2211 = vrot.slane %v2209, 2
  %v2212 = vrot.slane %v2010, 7
  %v2213 = vsel %vm2037, %v2211, %v2212
  %v2214 = vrot.slane %v418, 7
  %v2215 = vrot.slane %v2214, 2
  %v2216 = vrot.slane %v426, 7
  %v2217 = vsel %vm2037, %v2215, %v2216
  %v2218 = vrot.slane %v2216, 2
  %v2219 = vrot.slane %v425, 7
  %v2220 = vsel %vm2037, %v2218, %v2219
  %v2221 = vrot.slane %v2219, 2
  %v2222 = vrot.slane %v427, 7
  %v2223 = vsel %vm2037, %v2221, %v2222
  %v2224 = vrot.slane %v2222, 2
  %v2225 = vrot.slane %v435, 7
  %v2226 = vsel %vm2037, %v2224, %v2225
  %v2227 = vrot.slane %v2225, 2
  %v2228 = vrot.slane %v443, 7
  %v2229 = vsel %vm2037, %v2227, %v2228
  %v2230 = vrot.slane %v2228, 2
  %v2231 = vrot.slane %v442, 7
  %v2232 = vsel %vm2037, %v2230, %v2231
  %v2233 = vrot.slane %v2231, 2
  %v2234 = vrot.slane %v2011, 7
  %v2235 = vsel %vm2037, %v2233, %v2234
  %v2236 = vrot.slane %v451, 7
  %v2237 = vrot.slane %v2236, 2
  %v2238 = vrot.slane %v459, 7
  %v2239 = vsel %vm2037, %v2237, %v2238
  %v2240 = vrot.slane %v2238, 2
  %v2241 = vrot.slane %v458, 7
  %v2242 = vsel %vm2037, %v2240, %v2241
  %v2243 = vrot.slane %v2241, 2
  %v2244 = vrot.slane %v460, 7
  %v2245 = vsel %vm2037, %v2243, %v2244
  %v2246 = vrot.slane %v2244, 2
  %v2247 = vrot.slane %v468, 7
  %v2248 = vsel %vm2037, %v2246, %v2247
  %v2249 = vrot.slane %v2247, 2
  %v2250 = vrot.slane %v476, 7
  %v2251 = vsel %vm2037, %v2249, %v2250
  %v2252 = vrot.slane %v2250, 2
  %v2253 = vrot.slane %v475, 7
  %v2254 = vsel %vm2037, %v2252, %v2253
  %v2255 = vrot.slane %v2253, 2
  %v2256 = vrot.slane %v2012, 7
  %v2257 = vsel %vm2037, %v2255, %v2256
  %v2258 = vrot.slane %v484, 7
  %v2259 = vrot.slane %v2258, 2
  %v2260 = vrot.slane %v492, 7
  %v2261 = vsel %vm2037, %v2259, %v2260
  %v2262 = vrot.slane %v2260, 2
  %v2263 = vrot.slane %v491, 7
  %v2264 = vsel %vm2037, %v2262, %v2263
  %v2265 = vrot.slane %v2263, 2
  %v2266 = vrot.slane %v493, 7
  %v2267 = vsel %vm2037, %v2265, %v2266
  %v2268 = vrot.slane %v2266, 2
  %v2269 = vrot.slane %v501, 7
  %v2270 = vsel %vm2037, %v2268, %v2269
  %v2271 = vrot.slane %v2269, 2
  %v2272 = vrot.slane %v509, 7
  %v2273 = vsel %vm2037, %v2271, %v2272
  %v2274 = vrot.slane %v2272, 2
  %v2275 = vrot.slane %v508, 7
  %v2276 = vsel %vm2037, %v2274, %v2275
  %v2277 = vrot.slane %v2275, 2
  %v2278 = vrot.slane %v2013, 7
  %v2279 = vsel %vm2037, %v2277, %v2278
  %v2280 = vrot.slane %v517, 7
  %v2281 = vrot.slane %v2280, 2
  %v2282 = vrot.slane %v525, 7
  %v2283 = vsel %vm2037, %v2281, %v2282
  %v2284 = vrot.slane %v2282, 2
  %v2285 = vrot.slane %v524, 7
  %v2286 = vsel %vm2037, %v2284, %v2285
  %v2287 = vrot.slane %v2285, 2
  %v2288 = vrot.slane %v526, 7
  %v2289 = vsel %vm2037, %v2287, %v2288
  %v2290 = vrot.slane %v2288, 2
  %v2291 = vrot.slane %v534, 7
  %v2292 = vsel %vm2037, %v2290, %v2291
  %v2293 = vrot.slane %v2291, 2
  %v2294 = vrot.slane %v542, 7
  %v2295 = vsel %vm2037, %v2293, %v2294
  %v2296 = vrot.slane %v2294, 2
  %v2297 = vrot.slane %v541, 7
  %v2298 = vsel %vm2037, %v2296, %v2297
  %v2299 = vrot.slane %v2297, 2
  %v2300 = vrot.slane %v2014, 7
  %v2301 = vsel %vm2037, %v2299, %v2300
  %v2302 = vrot.slane %v550, 7
  %v2303 = vrot.slane %v2302, 2
  %v2304 = vrot.slane %v558, 7
  %v2305 = vsel %vm2037, %v2303, %v2304
  %v2306 = vrot.slane %v2304, 2
  %v2307 = vrot.slane %v557, 7
  %v2308 = vsel %vm2037, %v2306, %v2307
  %v2309 = vrot.slane %v2307, 2
  %v2310 = vrot.slane %v559, 7
  %v2311 = vsel %vm2037, %v2309, %v2310
  %v2312 = vrot.slane %v2310, 2
  %v2313 = vrot.slane %v567, 7
  %v2314 = vsel %vm2037, %v2312, %v2313
  %v2315 = vrot.slane %v2313, 2
  %v2316 = vrot.slane %v575, 7
  %v2317 = vsel %vm2037, %v2315, %v2316
  %v2318 = vrot.slane %v2316, 2
  %v2319 = vrot.slane %v574, 7
  %v2320 = vsel %vm2037, %v2318, %v2319
  %v2321 = vrot.slane %v2319, 2
  %v2322 = vrot.slane %v2015, 7
  %v2323 = vsel %vm2037, %v2321, %v2322
  %v2324 = vrot.slane %v583, 7
  %v2325 = vrot.slane %v2324, 2
  %v2326 = vrot.slane %v591, 7
  %v2327 = vsel %vm2037, %v2325, %v2326
  %v2328 = vrot.slane %v2326, 2
  %v2329 = vrot.slane %v590, 7
  %v2330 = vsel %vm2037, %v2328, %v2329
  %v2331 = vrot.slane %v2329, 2
  %v2332 = vrot.slane %v592, 7
  %v2333 = vsel %vm2037, %v2331, %v2332
  %v2334 = vrot.slane %v2332, 2
  %v2335 = vrot.slane %v600, 7
  %v2336 = vsel %vm2037, %v2334, %v2335
  %v2337 = vrot.slane %v2335, 2
  %v2338 = vrot.slane %v608, 7
  %v2339 = vsel %vm2037, %v2337, %v2338
  %v2340 = vrot.slane %v2338, 2
  %v2341 = vrot.slane %v607, 7
  %v2342 = vsel %vm2037, %v2340, %v2341
  %v2343 = vrot.slane %v2341, 2
  %v2344 = vrot.slane %v2016, 7
  %v2345 = vsel %vm2037, %v2343, %v2344
  %v2346 = vrot.slane %v616, 7
  %v2347 = vrot.slane %v2346, 2
  %v2348 = vrot.slane %v624, 7
  %v2349 = vsel %vm2037, %v2347, %v2348
  %v2350 = vrot.slane %v2348, 2
  %v2351 = vrot.slane %v623, 7
  %v2352 = vsel %vm2037, %v2350, %v2351
  %v2353 = vrot.slane %v2351, 2
  %v2354 = vrot.slane %v625, 7
  %v2355 = vsel %vm2037, %v2353, %v2354
  %v2356 = vrot.slane %v2354, 2
  %v2357 = vrot.slane %v633, 7
  %v2358 = vsel %vm2037, %v2356, %v2357
  %v2359 = vrot.slane %v2357, 2
  %v2360 = vrot.slane %v641, 7
  %v2361 = vsel %vm2037, %v2359, %v2360
  %v2362 = vrot.slane %v2360, 2
  %v2363 = vrot.slane %v640, 7
  %v2364 = vsel %vm2037, %v2362, %v2363
  %v2365 = vrot.slane %v2363, 2
  %v2366 = vrot.slane %v2017, 7
  %v2367 = vsel %vm2037, %v2365, %v2366
  %v2368 = vrot.slane %v649, 7
  %v2369 = vrot.slane %v2368, 2
  %v2370 = vrot.slane %v657, 7
  %v2371 = vsel %vm2037, %v2369, %v2370
  %v2372 = vrot.slane %v2370, 2
  %v2373 = vrot.slane %v656, 7
  %v2374 = vsel %vm2037, %v2372, %v2373
  %v2375 = vrot.slane %v2373, 2
  %v2376 = vrot.slane %v658, 7
  %v2377 = vsel %vm2037, %v2375, %v2376
  %v2378 = vrot.slane %v2376, 2
  %v2379 = vrot.slane %v666, 7
  %v2380 = vsel %vm2037, %v2378, %v2379
  %v2381 = vrot.slane %v2379, 2
  %v2382 = vrot.slane %v674, 7
  %v2383 = vsel %vm2037, %v2381, %v2382
  %v2384 = vrot.slane %v2382, 2
  %v2385 = vrot.slane %v673, 7
  %v2386 = vsel %vm2037, %v2384, %v2385
  %v2387 = vrot.slane %v2385, 2
  %v2388 = vrot.slane %v2018, 7
  %v2389 = vsel %vm2037, %v2387, %v2388
  %v2390 = vrot.slane %v682, 7
  %v2391 = vrot.slane %v2390, 2
  %v2392 = vrot.slane %v690, 7
  %v2393 = vsel %vm2037, %v2391, %v2392
  %v2394 = vrot.slane %v2392, 2
  %v2395 = vrot.slane %v689, 7
  %v2396 = vsel %vm2037, %v2394, %v2395
  %v2397 = vrot.slane %v2395, 2
  %v2398 = vrot.slane %v691, 7
  %v2399 = vsel %vm2037, %v2397, %v2398
  %v2400 = vrot.slane %v2398, 2
  %v2401 = vrot.slane %v699, 7
  %v2402 = vsel %vm2037, %v2400, %v2401
  %v2403 = vrot.slane %v2401, 2
  %v2404 = vrot.slane %v707, 7
  %v2405 = vsel %vm2037, %v2403, %v2404
  %v2406 = vrot.slane %v2404, 2
  %v2407 = vrot.slane %v706, 7
  %v2408 = vsel %vm2037, %v2406, %v2407
  %v2409 = vrot.slane %v2407, 2
  %v2410 = vrot.slane %v2019, 7
  %v2411 = vsel %vm2037, %v2409, %v2410
  %v2412 = vrot.slane %v715, 7
  %v2413 = vrot.slane %v2412, 2
  %v2414 = vrot.slane %v723, 7
  %v2415 = vsel %vm2037, %v2413, %v2414
  %v2416 = vrot.slane %v2414, 2
  %v2417 = vrot.slane %v722, 7
  %v2418 = vsel %vm2037, %v2416, %v2417
  %v2419 = vrot.slane %v2417, 2
  %v2420 = vrot.slane %v724, 7
  %v2421 = vsel %vm2037, %v2419, %v2420
  %v2422 = vrot.slane %v2420, 2
  %v2423 = vrot.slane %v732, 7
  %v2424 = vsel %vm2037, %v2422, %v2423
  %v2425 = vrot.slane %v2423, 2
  %v2426 = vrot.slane %v740, 7
  %v2427 = vsel %vm2037, %v2425, %v2426
  %v2428 = vrot.slane %v2426, 2
  %v2429 = vrot.slane %v739, 7
  %v2430 = vsel %vm2037, %v2428, %v2429
  %v2431 = vrot.slane %v2429, 2
  %v2432 = vrot.slane %v2020, 7
  %v2433 = vsel %vm2037, %v2431, %v2432
  %v2434 = vrot.slane %v748, 7
  %v2435 = vrot.slane %v2434, 2
  %v2436 = vrot.slane %v756, 7
  %v2437 = vsel %vm2037, %v2435, %v2436
  %v2438 = vrot.slane %v2436, 2
  %v2439 = vrot.slane %v755, 7
  %v2440 = vsel %vm2037, %v2438, %v2439
  %v2441 = vrot.slane %v2439, 2
  %v2442 = vrot.slane %v757, 7
  %v2443 = vsel %vm2037, %v2441, %v2442
  %v2444 = vrot.slane %v2442, 2
  %v2445 = vrot.slane %v765, 7
  %v2446 = vsel %vm2037, %v2444, %v2445
  %v2447 = vrot.slane %v2445, 2
  %v2448 = vrot.slane %v773, 7
  %v2449 = vsel %vm2037, %v2447, %v2448
  %v2450 = vrot.slane %v2448, 2
  %v2451 = vrot.slane %v772, 7
  %v2452 = vsel %vm2037, %v2450, %v2451
  %v2453 = vrot.slane %v2451, 2
  %v2454 = vrot.slane %v2021, 7
  %v2455 = vsel %vm2037, %v2453, %v2454
  %v2456 = vrot.slane %v781, 7
  %v2457 = vrot.slane %v2456, 2
  %v2458 = vrot.slane %v789, 7
  %v2459 = vsel %vm2037, %v2457, %v2458
  %v2460 = vrot.slane %v2458, 2
  %v2461 = vrot.slane %v788, 7
  %v2462 = vsel %vm2037, %v2460, %v2461
  %v2463 = vrot.slane %v2461, 2
  %v2464 = vrot.slane %v790, 7
  %v2465 = vsel %vm2037, %v2463, %v2464
  %v2466 = vrot.slane %v2464, 2
  %v2467 = vrot.slane %v798, 7
  %v2468 = vsel %vm2037, %v2466, %v2467
  %v2469 = vrot.slane %v2467, 2
  %v2470 = vrot.slane %v806, 7
  %v2471 = vsel %vm2037, %v2469, %v2470
  %v2472 = vrot.slane %v2470, 2
  %v2473 = vrot.slane %v805, 7
  %v2474 = vsel %vm2037, %v2472, %v2473
  %v2475 = vrot.slane %v2473, 2
  %v2476 = vrot.slane %v2022, 7
  %v2477 = vsel %vm2037, %v2475, %v2476
  %v2478 = vrot.slane %v814, 7
  %v2479 = vrot.slane %v2478, 2
  %v2480 = vrot.slane %v822, 7
  %v2481 = vsel %vm2037, %v2479, %v2480
  %v2482 = vrot.slane %v2480, 2
  %v2483 = vrot.slane %v821, 7
  %v2484 = vsel %vm2037, %v2482, %v2483
  %v2485 = vrot.slane %v2483, 2
  %v2486 = vrot.slane %v823, 7
  %v2487 = vsel %vm2037, %v2485, %v2486
  %v2488 = vrot.slane %v2486, 2
  %v2489 = vrot.slane %v831, 7
  %v2490 = vsel %vm2037, %v2488, %v2489
  %v2491 = vrot.slane %v2489, 2
  %v2492 = vrot.slane %v839, 7
  %v2493 = vsel %vm2037, %v2491, %v2492
  %v2494 = vrot.slane %v2492, 2
  %v2495 = vrot.slane %v838, 7
  %v2496 = vsel %vm2037, %v2494, %v2495
  %v2497 = vrot.slane %v2495, 2
  %v2498 = vrot.slane %v2023, 7
  %v2499 = vsel %vm2037, %v2497, %v2498
  %v2500 = vrot.slane %v847, 7
  %v2501 = vrot.slane %v2500, 2
  %v2502 = vrot.slane %v855, 7
  %v2503 = vsel %vm2037, %v2501, %v2502
  %v2504 = vrot.slane %v2502, 2
  %v2505 = vrot.slane %v854, 7
  %v2506 = vsel %vm2037, %v2504, %v2505
  %v2507 = vrot.slane %v2505, 2
  %v2508 = vrot.slane %v856, 7
  %v2509 = vsel %vm2037, %v2507, %v2508
  %v2510 = vrot.slane %v2508, 2
  %v2511 = vrot.slane %v864, 7
  %v2512 = vsel %vm2037, %v2510, %v2511
  %v2513 = vrot.slane %v2511, 2
  %v2514 = vrot.slane %v872, 7
  %v2515 = vsel %vm2037, %v2513, %v2514
  %v2516 = vrot.slane %v2514, 2
  %v2517 = vrot.slane %v871, 7
  %v2518 = vsel %vm2037, %v2516, %v2517
  %v2519 = vrot.slane %v2517, 2
  %v2520 = vrot.slane %v2024, 7
  %v2521 = vsel %vm2037, %v2519, %v2520
  %v2522 = vrot.slane %v880, 7
  %v2523 = vrot.slane %v2522, 2
  %v2524 = vrot.slane %v888, 7
  %v2525 = vsel %vm2037, %v2523, %v2524
  %v2526 = vrot.slane %v2524, 2
  %v2527 = vrot.slane %v887, 7
  %v2528 = vsel %vm2037, %v2526, %v2527
  %v2529 = vrot.slane %v2527, 2
  %v2530 = vrot.slane %v889, 7
  %v2531 = vsel %vm2037, %v2529, %v2530
  %v2532 = vrot.slane %v2530, 2
  %v2533 = vrot.slane %v897, 7
  %v2534 = vsel %vm2037, %v2532, %v2533
  %v2535 = vrot.slane %v2533, 2
  %v2536 = vrot.slane %v905, 7
  %v2537 = vsel %vm2037, %v2535, %v2536
  %v2538 = vrot.slane %v2536, 2
  %v2539 = vrot.slane %v904, 7
  %v2540 = vsel %vm2037, %v2538, %v2539
  %v2541 = vrot.slane %v2539, 2
  %v2542 = vrot.slane %v2025, 7
  %v2543 = vsel %vm2037, %v2541, %v2542
  %v2544 = vrot.slane %v913, 7
  %v2545 = vrot.slane %v2544, 2
  %v2546 = vrot.slane %v921, 7
  %v2547 = vsel %vm2037, %v2545, %v2546
  %v2548 = vrot.slane %v2546, 2
  %v2549 = vrot.slane %v920, 7
  %v2550 = vsel %vm2037, %v2548, %v2549
  %v2551 = vrot.slane %v2549, 2
  %v2552 = vrot.slane %v922, 7
  %v2553 = vsel %vm2037, %v2551, %v2552
  %v2554 = vrot.slane %v2552, 2
  %v2555 = vrot.slane %v930, 7
  %v2556 = vsel %vm2037, %v2554, %v2555
  %v2557 = vrot.slane %v2555, 2
  %v2558 = vrot.slane %v938, 7
  %v2559 = vsel %vm2037, %v2557, %v2558
  %v2560 = vrot.slane %v2558, 2
  %v2561 = vrot.slane %v937, 7
  %v2562 = vsel %vm2037, %v2560, %v2561
  %v2563 = vrot.slane %v2561, 2
  %v2564 = vrot.slane %v2026, 7
  %v2565 = vsel %vm2037, %v2563, %v2564
  %v2566 = vrot.slane %v946, 7
  %v2567 = vrot.slane %v2566, 2
  %v2568 = vrot.slane %v954, 7
  %v2569 = vsel %vm2037, %v2567, %v2568
  %v2570 = vrot.slane %v2568, 2
  %v2571 = vrot.slane %v953, 7
  %v2572 = vsel %vm2037, %v2570, %v2571
  %v2573 = vrot.slane %v2571, 2
  %v2574 = vrot.slane %v955, 7
  %v2575 = vsel %vm2037, %v2573, %v2574
  %v2576 = vrot.slane %v2574, 2
  %v2577 = vrot.slane %v963, 7
  %v2578 = vsel %vm2037, %v2576, %v2577
  %v2579 = vrot.slane %v2577, 2
  %v2580 = vrot.slane %v971, 7
  %v2581 = vsel %vm2037, %v2579, %v2580
  %v2582 = vrot.slane %v2580, 2
  %v2583 = vrot.slane %v970, 7
  %v2584 = vsel %vm2037, %v2582, %v2583
  %v2585 = vrot.slane %v2583, 2
  %v2586 = vrot.slane %v2027, 7
  %v2587 = vsel %vm2037, %v2585, %v2586
  %v2588 = vrot.slane %v979, 7
  %v2589 = vrot.slane %v2588, 2
  %v2590 = vrot.slane %v987, 7
  %v2591 = vsel %vm2037, %v2589, %v2590
  %v2592 = vrot.slane %v2590, 2
  %v2593 = vrot.slane %v986, 7
  %v2594 = vsel %vm2037, %v2592, %v2593
  %v2595 = vrot.slane %v2593, 2
  %v2596 = vrot.slane %v988, 7
  %v2597 = vsel %vm2037, %v2595, %v2596
  %v2598 = vrot.slane %v2596, 2
  %v2599 = vrot.slane %v996, 7
  %v2600 = vsel %vm2037, %v2598, %v2599
  %v2601 = vrot.slane %v2599, 2
  %v2602 = vrot.slane %v1004, 7
  %v2603 = vsel %vm2037, %v2601, %v2602
  %v2604 = vrot.slane %v2602, 2
  %v2605 = vrot.slane %v1003, 7
  %v2606 = vsel %vm2037, %v2604, %v2605
  %v2607 = vrot.slane %v2605, 2
  %v2608 = vrot.slane %v2028, 7
  %v2609 = vsel %vm2037, %v2607, %v2608
  %v2610 = vrot.slane %v1012, 7
  %v2611 = vrot.slane %v2610, 2
  %v2612 = vrot.slane %v1020, 7
  %v2613 = vsel %vm2037, %v2611, %v2612
  %v2614 = vrot.slane %v2612, 2
  %v2615 = vrot.slane %v1019, 7
  %v2616 = vsel %vm2037, %v2614, %v2615
  %v2617 = vrot.slane %v2615, 2
  %v2618 = vrot.slane %v1021, 7
  %v2619 = vsel %vm2037, %v2617, %v2618
  %v2620 = vrot.slane %v2618, 2
  %v2621 = vrot.slane %v1029, 7
  %v2622 = vsel %vm2037, %v2620, %v2621
  %v2623 = vrot.slane %v2621, 2
  %v2624 = vrot.slane %v1037, 7
  %v2625 = vsel %vm2037, %v2623, %v2624
  %v2626 = vrot.slane %v2624, 2
  %v2627 = vrot.slane %v1036, 7
  %v2628 = vsel %vm2037, %v2626, %v2627
  %v2629 = vrot.slane %v2627, 2
  %v2630 = vrot.slane %v2029, 7
  %v2631 = vsel %vm2037, %v2629, %v2630
  %v2632 = vrot.slane %v1045, 7
  %v2633 = vrot.slane %v2632, 2
  %v2634 = vrot.slane %v1053, 7
  %v2635 = vsel %vm2037, %v2633, %v2634
  %v2636 = vrot.slane %v2634, 2
  %v2637 = vrot.slane %v1052, 7
  %v2638 = vsel %vm2037, %v2636, %v2637
  %v2639 = vrot.slane %v2637, 2
  %v2640 = vrot.slane %v1054, 7
  %v2641 = vsel %vm2037, %v2639, %v2640
  %v2642 = vrot.slane %v2640, 2
  %v2643 = vrot.slane %v1062, 7
  %v2644 = vsel %vm2037, %v2642, %v2643
  %v2645 = vrot.slane %v2643, 2
  %v2646 = vrot.slane %v1070, 7
  %v2647 = vsel %vm2037, %v2645, %v2646
  %v2648 = vrot.slane %v2646, 2
  %v2649 = vrot.slane %v1069, 7
  %v2650 = vsel %vm2037, %v2648, %v2649
  %v2651 = vrot.slane %v2649, 2
  %v2652 = vrot.slane %v2030, 7
  %v2653 = vsel %vm2037, %v2651, %v2652
  %v2654 = vcombine.low %v2041, %v2044
  %v2655 = vcombine.low %v2047, %v2050
  %v2657 = vunpack.c.l.s4 1983009808
  %v2658 = vunpack.c.0.s8 %v2657
  %v2659 = vlaneseq
  %v2660 = vshrl.u32 %v2659, 7
  %v2661 = vsub.s32 %v2658, %v2660
  %v2662 = vrot.slane %v2654, %v2661
  %v2664 = vunpack.c.l.s4 1983009808
  %v2665 = vunpack.c.0.s8 %v2664
  %v2666 = vlaneseq
  %v2667 = vshrl.u32 %v2666, 7
  %v2668 = vsub.s32 %v2665, %v2667
  %v2669 = vrot.slane %v2655, %v2668
  %v2670 = vcombine.low %v2662, %v2669
  %v2671 = vcombine.low %v2053, %v2056
  %v2672 = vcombine.low %v2059, %v2063
  %v2674 = vunpack.c.l.s4 1983009808
  %v2675 = vunpack.c.0.s8 %v2674
  %v2676 = vlaneseq
  %v2677 = vshrl.u32 %v2676, 7
  %v2678 = vsub.s32 %v2675, %v2677
  %v2679 = vrot.slane %v2671, %v2678
  %v2681 = vunpack.c.l.s4 1983009808
  %v2682 = vunpack.c.0.s8 %v2681
  %v2683 = vlaneseq
  %v2684 = vshrl.u32 %v2683, 7
  %v2685 = vsub.s32 %v2682, %v2684
  %v2686 = vrot.slane %v2672, %v2685
  %v2687 = vcombine.low %v2679, %v2686
  %v2688 = vcombine.low %v2066, %v2069
  %v2689 = vcombine.low %v2072, %v2075
  %v2691 = vunpack.c.l.s4 1983009808
  %v2692 = vunpack.c.0.s8 %v2691
  %v2693 = vlaneseq
  %v2694 = vshrl.u32 %v2693, 7
  %v2695 = vsub.s32 %v2692, %v2694
  %v2696 = vrot.slane %v2688, %v2695
  %v2698 = vunpack.c.l.s4 1983009808
  %v2699 = vunpack.c.0.s8 %v2698
  %v2700 = vlaneseq
  %v2701 = vshrl.u32 %v2700, 7
  %v2702 = vsub.s32 %v2699, %v2701
  %v2703 = vrot.slane %v2689, %v2702
  %v2704 = vcombine.low %v2696, %v2703
  %v2705 = vcombine.low %v2078, %v2081
  %v2706 = vcombine.low %v2085, %v2088
  %v2708 = vunpack.c.l.s4 1983009808
  %v2709 = vunpack.c.0.s8 %v2708
  %v2710 = vlaneseq
  %v2711 = vshrl.u32 %v2710, 7
  %v2712 = vsub.s32 %v2709, %v2711
  %v2713 = vrot.slane %v2705, %v2712
  %v2715 = vunpack.c.l.s4 1983009808
  %v2716 = vunpack.c.0.s8 %v2715
  %v2717 = vlaneseq
  %v2718 = vshrl.u32 %v2717, 7
  %v2719 = vsub.s32 %v2716, %v2718
  %v2720 = vrot.slane %v2706, %v2719
  %v2721 = vcombine.low %v2713, %v2720
  %v2722 = vcombine.low %v2091, %v2094
  %v2723 = vcombine.low %v2097, %v2100
  %v2725 = vunpack.c.l.s4 1983009808
  %v2726 = vunpack.c.0.s8 %v2725
  %v2727 = vlaneseq
  %v2728 = vshrl.u32 %v2727, 7
  %v2729 = vsub.s32 %v2726, %v2728
  %v2730 = vrot.slane %v2722, %v2729
  %v2732 = vunpack.c.l.s4 1983009808
  %v2733 = vunpack.c.0.s8 %v2732
  %v2734 = vlaneseq
  %v2735 = vshrl.u32 %v2734, 7
  %v2736 = vsub.s32 %v2733, %v2735
  %v2737 = vrot.slane %v2723, %v2736
  %v2738 = vcombine.low %v2730, %v2737
  %v2739 = vcombine.low %v2103, %v2107
  %v2740 = vcombine.low %v2110, %v2113
  %v2742 = vunpack.c.l.s4 1983009808
  %v2743 = vunpack.c.0.s8 %v2742
  %v2744 = vlaneseq
  %v2745 = vshrl.u32 %v2744, 7
  %v2746 = vsub.s32 %v2743, %v2745
  %v2747 = vrot.slane %v2739, %v2746
  %v2749 = vunpack.c.l.s4 1983009808
  %v2750 = vunpack.c.0.s8 %v2749
  %v2751 = vlaneseq
  %v2752 = vshrl.u32 %v2751, 7
  %v2753 = vsub.s32 %v2750, %v2752
  %v2754 = vrot.slane %v2740, %v2753
  %v2755 = vcombine.low %v2747, %v2754
  %v2756 = vcombine.low %v2116, %v2119
  %v2757 = vcombine.low %v2122, %v2125
  %v2759 = vunpack.c.l.s4 1983009808
  %v2760 = vunpack.c.0.s8 %v2759
  %v2761 = vlaneseq
  %v2762 = vshrl.u32 %v2761, 7
  %v2763 = vsub.s32 %v2760, %v2762
  %v2764 = vrot.slane %v2756, %v2763
  %v2766 = vunpack.c.l.s4 1983009808
  %v2767 = vunpack.c.0.s8 %v2766
  %v2768 = vlaneseq
  %v2769 = vshrl.u32 %v2768, 7
  %v2770 = vsub.s32 %v2767, %v2769
  %v2771 = vrot.slane %v2757, %v2770
  %v2772 = vcombine.low %v2764, %v2771
  %v2773 = vcombine.low %v2129, %v2132
  %v2774 = vcombine.low %v2135, %v2138
  %v2776 = vunpack.c.l.s4 1983009808
  %v2777 = vunpack.c.0.s8 %v2776
  %v2778 = vlaneseq
  %v2779 = vshrl.u32 %v2778, 7
  %v2780 = vsub.s32 %v2777, %v2779
  %v2781 = vrot.slane %v2773, %v2780
  %v2783 = vunpack.c.l.s4 1983009808
  %v2784 = vunpack.c.0.s8 %v2783
  %v2785 = vlaneseq
  %v2786 = vshrl.u32 %v2785, 7
  %v2787 = vsub.s32 %v2784, %v2786
  %v2788 = vrot.slane %v2774, %v2787
  %v2789 = vcombine.low %v2781, %v2788
  %v2790 = vcombine.low %v2141, %v2144
  %v2791 = vcombine.low %v2147, %v2151
  %v2793 = vunpack.c.l.s4 1983009808
  %v2794 = vunpack.c.0.s8 %v2793
  %v2795 = vlaneseq
  %v2796 = vshrl.u32 %v2795, 7
  %v2797 = vsub.s32 %v2794, %v2796
  %v2798 = vrot.slane %v2790, %v2797
  %v2800 = vunpack.c.l.s4 1983009808
  %v2801 = vunpack.c.0.s8 %v2800
  %v2802 = vlaneseq
  %v2803 = vshrl.u32 %v2802, 7
  %v2804 = vsub.s32 %v2801, %v2803
  %v2805 = vrot.slane %v2791, %v2804
  %v2806 = vcombine.low %v2798, %v2805
  %v2807 = vcombine.low %v2154, %v2157
  %v2808 = vcombine.low %v2160, %v2163
  %v2810 = vunpack.c.l.s4 1983009808
  %v2811 = vunpack.c.0.s8 %v2810
  %v2812 = vlaneseq
  %v2813 = vshrl.u32 %v2812, 7
  %v2814 = vsub.s32 %v2811, %v2813
  %v2815 = vrot.slane %v2807, %v2814
  %v2817 = vunpack.c.l.s4 1983009808
  %v2818 = vunpack.c.0.s8 %v2817
  %v2819 = vlaneseq
  %v2820 = vshrl.u32 %v2819, 7
  %v2821 = vsub.s32 %v2818, %v2820
  %v2822 = vrot.slane %v2808, %v2821
  %v2823 = vcombine.low %v2815, %v2822
  %v2824 = vcombine.low %v2166, %v2169
  %v2825 = vcombine.low %v2173, %v2176
  %v2827 = vunpack.c.l.s4 1983009808
  %v2828 = vunpack.c.0.s8 %v2827
  %v2829 = vlaneseq
  %v2830 = vshrl.u32 %v2829, 7
  %v2831 = vsub.s32 %v2828, %v2830
  %v2832 = vrot.slane %v2824, %v2831
  %v2834 = vunpack.c.l.s4 1983009808
  %v2835 = vunpack.c.0.s8 %v2834
  %v2836 = vlaneseq
  %v2837 = vshrl.u32 %v2836, 7
  %v2838 = vsub.s32 %v2835, %v2837
  %v2839 = vrot.slane %v2825, %v2838
  %v2840 = vcombine.low %v2832, %v2839
  %v2841 = vcombine.low %v2179, %v2182
  %v2842 = vcombine.low %v2185, %v2188
  %v2844 = vunpack.c.l.s4 1983009808
  %v2845 = vunpack.c.0.s8 %v2844
  %v2846 = vlaneseq
  %v2847 = vshrl.u32 %v2846, 7
  %v2848 = vsub.s32 %v2845, %v2847
  %v2849 = vrot.slane %v2841, %v2848
  %v2851 = vunpack.c.l.s4 1983009808
  %v2852 = vunpack.c.0.s8 %v2851
  %v2853 = vlaneseq
  %v2854 = vshrl.u32 %v2853, 7
  %v2855 = vsub.s32 %v2852, %v2854
  %v2856 = vrot.slane %v2842, %v2855
  %v2857 = vcombine.low %v2849, %v2856
  %v2858 = vcombine.low %v2191, %v2195
  %v2859 = vcombine.low %v2198, %v2201
  %v2861 = vunpack.c.l.s4 1983009808
  %v2862 = vunpack.c.0.s8 %v2861
  %v2863 = vlaneseq
  %v2864 = vshrl.u32 %v2863, 7
  %v2865 = vsub.s32 %v2862, %v2864
  %v2866 = vrot.slane %v2858, %v2865
  %v2868 = vunpack.c.l.s4 1983009808
  %v2869 = vunpack.c.0.s8 %v2868
  %v2870 = vlaneseq
  %v2871 = vshrl.u32 %v2870, 7
  %v2872 = vsub.s32 %v2869, %v2871
  %v2873 = vrot.slane %v2859, %v2872
  %v2874 = vcombine.low %v2866, %v2873
  %v2875 = vcombine.low %v2204, %v2207
  %v2876 = vcombine.low %v2210, %v2213
  %v2878 = vunpack.c.l.s4 1983009808
  %v2879 = vunpack.c.0.s8 %v2878
  %v2880 = vlaneseq
  %v2881 = vshrl.u32 %v2880, 7
  %v2882 = vsub.s32 %v2879, %v2881
  %v2883 = vrot.slane %v2875, %v2882
  %v2885 = vunpack.c.l.s4 1983009808
  %v2886 = vunpack.c.0.s8 %v2885
  %v2887 = vlaneseq
  %v2888 = vshrl.u32 %v2887, 7
  %v2889 = vsub.s32 %v2886, %v2888
  %v2890 = vrot.slane %v2876, %v2889
  %v2891 = vcombine.low %v2883, %v2890
  %v2892 = vcombine.low %v2217, %v2220
  %v2893 = vcombine.low %v2223, %v2226
  %v2895 = vunpack.c.l.s4 1983009808
  %v2896 = vunpack.c.0.s8 %v2895
  %v2897 = vlaneseq
  %v2898 = vshrl.u32 %v2897, 7
  %v2899 = vsub.s32 %v2896, %v2898
  %v2900 = vrot.slane %v2892, %v2899
  %v2902 = vunpack.c.l.s4 1983009808
  %v2903 = vunpack.c.0.s8 %v2902
  %v2904 = vlaneseq
  %v2905 = vshrl.u32 %v2904, 7
  %v2906 = vsub.s32 %v2903, %v2905
  %v2907 = vrot.slane %v2893, %v2906
  %v2908 = vcombine.low %v2900, %v2907
  %v2909 = vcombine.low %v2229, %v2232
  %v2910 = vcombine.low %v2235, %v2239
  %v2912 = vunpack.c.l.s4 1983009808
  %v2913 = vunpack.c.0.s8 %v2912
  %v2914 = vlaneseq
  %v2915 = vshrl.u32 %v2914, 7
  %v2916 = vsub.s32 %v2913, %v2915
  %v2917 = vrot.slane %v2909, %v2916
  %v2919 = vunpack.c.l.s4 1983009808
  %v2920 = vunpack.c.0.s8 %v2919
  %v2921 = vlaneseq
  %v2922 = vshrl.u32 %v2921, 7
  %v2923 = vsub.s32 %v2920, %v2922
  %v2924 = vrot.slane %v2910, %v2923
  %v2925 = vcombine.low %v2917, %v2924
  %v2926 = vcombine.low %v2242, %v2245
  %v2927 = vcombine.low %v2248, %v2251
  %v2929 = vunpack.c.l.s4 1983009808
  %v2930 = vunpack.c.0.s8 %v2929
  %v2931 = vlaneseq
  %v2932 = vshrl.u32 %v2931, 7
  %v2933 = vsub.s32 %v2930, %v2932
  %v2934 = vrot.slane %v2926, %v2933
  %v2936 = vunpack.c.l.s4 1983009808
  %v2937 = vunpack.c.0.s8 %v2936
  %v2938 = vlaneseq
  %v2939 = vshrl.u32 %v2938, 7
  %v2940 = vsub.s32 %v2937, %v2939
  %v2941 = vrot.slane %v2927, %v2940
  %v2942 = vcombine.low %v2934, %v2941
  %v2943 = vcombine.low %v2254, %v2257
  %v2944 = vcombine.low %v2261, %v2264
  %v2946 = vunpack.c.l.s4 1983009808
  %v2947 = vunpack.c.0.s8 %v2946
  %v2948 = vlaneseq
  %v2949 = vshrl.u32 %v2948, 7
  %v2950 = vsub.s32 %v2947, %v2949
  %v2951 = vrot.slane %v2943, %v2950
  %v2953 = vunpack.c.l.s4 1983009808
  %v2954 = vunpack.c.0.s8 %v2953
  %v2955 = vlaneseq
  %v2956 = vshrl.u32 %v2955, 7
  %v2957 = vsub.s32 %v2954, %v2956
  %v2958 = vrot.slane %v2944, %v2957
  %v2959 = vcombine.low %v2951, %v2958
  %v2960 = vcombine.low %v2267, %v2270
  %v2961 = vcombine.low %v2273, %v2276
  %v2963 = vunpack.c.l.s4 1983009808
  %v2964 = vunpack.c.0.s8 %v2963
  %v2965 = vlaneseq
  %v2966 = vshrl.u32 %v2965, 7
  %v2967 = vsub.s32 %v2964, %v2966
  %v2968 = vrot.slane %v2960, %v2967
  %v2970 = vunpack.c.l.s4 1983009808
  %v2971 = vunpack.c.0.s8 %v2970
  %v2972 = vlaneseq
  %v2973 = vshrl.u32 %v2972, 7
  %v2974 = vsub.s32 %v2971, %v2973
  %v2975 = vrot.slane %v2961, %v2974
  %v2976 = vcombine.low %v2968, %v2975
  %v2977 = vcombine.low %v2279, %v2283
  %v2978 = vcombine.low %v2286, %v2289
  %v2980 = vunpack.c.l.s4 1983009808
  %v2981 = vunpack.c.0.s8 %v2980
  %v2982 = vlaneseq
  %v2983 = vshrl.u32 %v2982, 7
  %v2984 = vsub.s32 %v2981, %v2983
  %v2985 = vrot.slane %v2977, %v2984
  %v2987 = vunpack.c.l.s4 1983009808
  %v2988 = vunpack.c.0.s8 %v2987
  %v2989 = vlaneseq
  %v2990 = vshrl.u32 %v2989, 7
  %v2991 = vsub.s32 %v2988, %v2990
  %v2992 = vrot.slane %v2978, %v2991
  %v2993 = vcombine.low %v2985, %v2992
  %v2994 = vcombine.low %v2292, %v2295
  %v2995 = vcombine.low %v2298, %v2301
  %v2997 = vunpack.c.l.s4 1983009808
  %v2998 = vunpack.c.0.s8 %v2997
  %v2999 = vlaneseq
  %v3000 = vshrl.u32 %v2999, 7
  %v3001 = vsub.s32 %v2998, %v3000
  %v3002 = vrot.slane %v2994, %v3001
  %v3004 = vunpack.c.l.s4 1983009808
  %v3005 = vunpack.c.0.s8 %v3004
  %v3006 = vlaneseq
  %v3007 = vshrl.u32 %v3006, 7
  %v3008 = vsub.s32 %v3005, %v3007
  %v3009 = vrot.slane %v2995, %v3008
  %v3010 = vcombine.low %v3002, %v3009
  %v3011 = vcombine.low %v2305, %v2308
  %v3012 = vcombine.low %v2311, %v2314
  %v3014 = vunpack.c.l.s4 1983009808
  %v3015 = vunpack.c.0.s8 %v3014
  %v3016 = vlaneseq
  %v3017 = vshrl.u32 %v3016, 7
  %v3018 = vsub.s32 %v3015, %v3017
  %v3019 = vrot.slane %v3011, %v3018
  %v3021 = vunpack.c.l.s4 1983009808
  %v3022 = vunpack.c.0.s8 %v3021
  %v3023 = vlaneseq
  %v3024 = vshrl.u32 %v3023, 7
  %v3025 = vsub.s32 %v3022, %v3024
  %v3026 = vrot.slane %v3012, %v3025
  %v3027 = vcombine.low %v3019, %v3026
  %v3028 = vcombine.low %v2317, %v2320
  %v3029 = vcombine.low %v2323, %v2327
  %v3031 = vunpack.c.l.s4 1983009808
  %v3032 = vunpack.c.0.s8 %v3031
  %v3033 = vlaneseq
  %v3034 = vshrl.u32 %v3033, 7
  %v3035 = vsub.s32 %v3032, %v3034
  %v3036 = vrot.slane %v3028, %v3035
  %v3038 = vunpack.c.l.s4 1983009808
  %v3039 = vunpack.c.0.s8 %v3038
  %v3040 = vlaneseq
  %v3041 = vshrl.u32 %v3040, 7
  %v3042 = vsub.s32 %v3039, %v3041
  %v3043 = vrot.slane %v3029, %v3042
  %v3044 = vcombine.low %v3036, %v3043
  %v3045 = vcombine.low %v2330, %v2333
  %v3046 = vcombine.low %v2336, %v2339
  %v3048 = vunpack.c.l.s4 1983009808
  %v3049 = vunpack.c.0.s8 %v3048
  %v3050 = vlaneseq
  %v3051 = vshrl.u32 %v3050, 7
  %v3052 = vsub.s32 %v3049, %v3051
  %v3053 = vrot.slane %v3045, %v3052
  %v3055 = vunpack.c.l.s4 1983009808
  %v3056 = vunpack.c.0.s8 %v3055
  %v3057 = vlaneseq
  %v3058 = vshrl.u32 %v3057, 7
  %v3059 = vsub.s32 %v3056, %v3058
  %v3060 = vrot.slane %v3046, %v3059
  %v3061 = vcombine.low %v3053, %v3060
  %v3062 = vcombine.low %v2342, %v2345
  %v3063 = vcombine.low %v2349, %v2352
  %v3065 = vunpack.c.l.s4 1983009808
  %v3066 = vunpack.c.0.s8 %v3065
  %v3067 = vlaneseq
  %v3068 = vshrl.u32 %v3067, 7
  %v3069 = vsub.s32 %v3066, %v3068
  %v3070 = vrot.slane %v3062, %v3069
  %v3072 = vunpack.c.l.s4 1983009808
  %v3073 = vunpack.c.0.s8 %v3072
  %v3074 = vlaneseq
  %v3075 = vshrl.u32 %v3074, 7
  %v3076 = vsub.s32 %v3073, %v3075
  %v3077 = vrot.slane %v3063, %v3076
  %v3078 = vcombine.low %v3070, %v3077
  %v3079 = vcombine.low %v2355, %v2358
  %v3080 = vcombine.low %v2361, %v2364
  %v3082 = vunpack.c.l.s4 1983009808
  %v3083 = vunpack.c.0.s8 %v3082
  %v3084 = vlaneseq
  %v3085 = vshrl.u32 %v3084, 7
  %v3086 = vsub.s32 %v3083, %v3085
  %v3087 = vrot.slane %v3079, %v3086
  %v3089 = vunpack.c.l.s4 1983009808
  %v3090 = vunpack.c.0.s8 %v3089
  %v3091 = vlaneseq
  %v3092 = vshrl.u32 %v3091, 7
  %v3093 = vsub.s32 %v3090, %v3092
  %v3094 = vrot.slane %v3080, %v3093
  %v3095 = vcombine.low %v3087, %v3094
  %v3096 = vcombine.low %v2367, %v2371
  %v3097 = vcombine.low %v2374, %v2377
  %v3099 = vunpack.c.l.s4 1983009808
  %v3100 = vunpack.c.0.s8 %v3099
  %v3101 = vlaneseq
  %v3102 = vshrl.u32 %v3101, 7
  %v3103 = vsub.s32 %v3100, %v3102
  %v3104 = vrot.slane %v3096, %v3103
  %v3106 = vunpack.c.l.s4 1983009808
  %v3107 = vunpack.c.0.s8 %v3106
  %v3108 = vlaneseq
  %v3109 = vshrl.u32 %v3108, 7
  %v3110 = vsub.s32 %v3107, %v3109
  %v3111 = vrot.slane %v3097, %v3110
  %v3112 = vcombine.low %v3104, %v3111
  %v3113 = vcombine.low %v2380, %v2383
  %v3114 = vcombine.low %v2386, %v2389
  %v3116 = vunpack.c.l.s4 1983009808
  %v3117 = vunpack.c.0.s8 %v3116
  %v3118 = vlaneseq
  %v3119 = vshrl.u32 %v3118, 7
  %v3120 = vsub.s32 %v3117, %v3119
  %v3121 = vrot.slane %v3113, %v3120
  %v3123 = vunpack.c.l.s4 1983009808
  %v3124 = vunpack.c.0.s8 %v3123
  %v3125 = vlaneseq
  %v3126 = vshrl.u32 %v3125, 7
  %v3127 = vsub.s32 %v3124, %v3126
  %v3128 = vrot.slane %v3114, %v3127
  %v3129 = vcombine.low %v3121, %v3128
  %v3130 = vcombine.low %v2393, %v2396
  %v3131 = vcombine.low %v2399, %v2402
  %v3133 = vunpack.c.l.s4 1983009808
  %v3134 = vunpack.c.0.s8 %v3133
  %v3135 = vlaneseq
  %v3136 = vshrl.u32 %v3135, 7
  %v3137 = vsub.s32 %v3134, %v3136
  %v3138 = vrot.slane %v3130, %v3137
  %v3140 = vunpack.c.l.s4 1983009808
  %v3141 = vunpack.c.0.s8 %v3140
  %v3142 = vlaneseq
  %v3143 = vshrl.u32 %v3142, 7
  %v3144 = vsub.s32 %v3141, %v3143
  %v3145 = vrot.slane %v3131, %v3144
  %v3146 = vcombine.low %v3138, %v3145
  %v3147 = vcombine.low %v2405, %v2408
  %v3148 = vcombine.low %v2411, %v2415
  %v3150 = vunpack.c.l.s4 1983009808
  %v3151 = vunpack.c.0.s8 %v3150
  %v3152 = vlaneseq
  %v3153 = vshrl.u32 %v3152, 7
  %v3154 = vsub.s32 %v3151, %v3153
  %v3155 = vrot.slane %v3147, %v3154
  %v3157 = vunpack.c.l.s4 1983009808
  %v3158 = vunpack.c.0.s8 %v3157
  %v3159 = vlaneseq
  %v3160 = vshrl.u32 %v3159, 7
  %v3161 = vsub.s32 %v3158, %v3160
  %v3162 = vrot.slane %v3148, %v3161
  %v3163 = vcombine.low %v3155, %v3162
  %v3164 = vcombine.low %v2418, %v2421
  %v3165 = vcombine.low %v2424, %v2427
  %v3167 = vunpack.c.l.s4 1983009808
  %v3168 = vunpack.c.0.s8 %v3167
  %v3169 = vlaneseq
  %v3170 = vshrl.u32 %v3169, 7
  %v3171 = vsub.s32 %v3168, %v3170
  %v3172 = vrot.slane %v3164, %v3171
  %v3174 = vunpack.c.l.s4 1983009808
  %v3175 = vunpack.c.0.s8 %v3174
  %v3176 = vlaneseq
  %v3177 = vshrl.u32 %v3176, 7
  %v3178 = vsub.s32 %v3175, %v3177
  %v3179 = vrot.slane %v3165, %v3178
  %v3180 = vcombine.low %v3172, %v3179
  %v3181 = vcombine.low %v2430, %v2433
  %v3182 = vcombine.low %v2437, %v2440
  %v3184 = vunpack.c.l.s4 1983009808
  %v3185 = vunpack.c.0.s8 %v3184
  %v3186 = vlaneseq
  %v3187 = vshrl.u32 %v3186, 7
  %v3188 = vsub.s32 %v3185, %v3187
  %v3189 = vrot.slane %v3181, %v3188
  %v3191 = vunpack.c.l.s4 1983009808
  %v3192 = vunpack.c.0.s8 %v3191
  %v3193 = vlaneseq
  %v3194 = vshrl.u32 %v3193, 7
  %v3195 = vsub.s32 %v3192, %v3194
  %v3196 = vrot.slane %v3182, %v3195
  %v3197 = vcombine.low %v3189, %v3196
  %v3198 = vcombine.low %v2443, %v2446
  %v3199 = vcombine.low %v2449, %v2452
  %v3201 = vunpack.c.l.s4 1983009808
  %v3202 = vunpack.c.0.s8 %v3201
  %v3203 = vlaneseq
  %v3204 = vshrl.u32 %v3203, 7
  %v3205 = vsub.s32 %v3202, %v3204
  %v3206 = vrot.slane %v3198, %v3205
  %v3208 = vunpack.c.l.s4 1983009808
  %v3209 = vunpack.c.0.s8 %v3208
  %v3210 = vlaneseq
  %v3211 = vshrl.u32 %v3210, 7
  %v3212 = vsub.s32 %v3209, %v3211
  %v3213 = vrot.slane %v3199, %v3212
  %v3214 = vcombine.low %v3206, %v3213
  %v3215 = vcombine.low %v2455, %v2459
  %v3216 = vcombine.low %v2462, %v2465
  %v3218 = vunpack.c.l.s4 1983009808
  %v3219 = vunpack.c.0.s8 %v3218
  %v3220 = vlaneseq
  %v3221 = vshrl.u32 %v3220, 7
  %v3222 = vsub.s32 %v3219, %v3221
  %v3223 = vrot.slane %v3215, %v3222
  %v3225 = vunpack.c.l.s4 1983009808
  %v3226 = vunpack.c.0.s8 %v3225
  %v3227 = vlaneseq
  %v3228 = vshrl.u32 %v3227, 7
  %v3229 = vsub.s32 %v3226, %v3228
  %v3230 = vrot.slane %v3216, %v3229
  %v3231 = vcombine.low %v3223, %v3230
  %v3232 = vcombine.low %v2468, %v2471
  %v3233 = vcombine.low %v2474, %v2477
  %v3235 = vunpack.c.l.s4 1983009808
  %v3236 = vunpack.c.0.s8 %v3235
  %v3237 = vlaneseq
  %v3238 = vshrl.u32 %v3237, 7
  %v3239 = vsub.s32 %v3236, %v3238
  %v3240 = vrot.slane %v3232, %v3239
  %v3242 = vunpack.c.l.s4 1983009808
  %v3243 = vunpack.c.0.s8 %v3242
  %v3244 = vlaneseq
  %v3245 = vshrl.u32 %v3244, 7
  %v3246 = vsub.s32 %v3243, %v3245
  %v3247 = vrot.slane %v3233, %v3246
  %v3248 = vcombine.low %v3240, %v3247
  %v3249 = vcombine.low %v2481, %v2484
  %v3250 = vcombine.low %v2487, %v2490
  %v3252 = vunpack.c.l.s4 1983009808
  %v3253 = vunpack.c.0.s8 %v3252
  %v3254 = vlaneseq
  %v3255 = vshrl.u32 %v3254, 7
  %v3256 = vsub.s32 %v3253, %v3255
  %v3257 = vrot.slane %v3249, %v3256
  %v3259 = vunpack.c.l.s4 1983009808
  %v3260 = vunpack.c.0.s8 %v3259
  %v3261 = vlaneseq
  %v3262 = vshrl.u32 %v3261, 7
  %v3263 = vsub.s32 %v3260, %v3262
  %v3264 = vrot.slane %v3250, %v3263
  %v3265 = vcombine.low %v3257, %v3264
  %v3266 = vcombine.low %v2493, %v2496
  %v3267 = vcombine.low %v2499, %v2503
  %v3269 = vunpack.c.l.s4 1983009808
  %v3270 = vunpack.c.0.s8 %v3269
  %v3271 = vlaneseq
  %v3272 = vshrl.u32 %v3271, 7
  %v3273 = vsub.s32 %v3270, %v3272
  %v3274 = vrot.slane %v3266, %v3273
  %v3276 = vunpack.c.l.s4 1983009808
  %v3277 = vunpack.c.0.s8 %v3276
  %v3278 = vlaneseq
  %v3279 = vshrl.u32 %v3278, 7
  %v3280 = vsub.s32 %v3277, %v3279
  %v3281 = vrot.slane %v3267, %v3280
  %v3282 = vcombine.low %v3274, %v3281
  %v3283 = vcombine.low %v2506, %v2509
  %v3284 = vcombine.low %v2512, %v2515
  %v3286 = vunpack.c.l.s4 1983009808
  %v3287 = vunpack.c.0.s8 %v3286
  %v3288 = vlaneseq
  %v3289 = vshrl.u32 %v3288, 7
  %v3290 = vsub.s32 %v3287, %v3289
  %v3291 = vrot.slane %v3283, %v3290
  %v3293 = vunpack.c.l.s4 1983009808
  %v3294 = vunpack.c.0.s8 %v3293
  %v3295 = vlaneseq
  %v3296 = vshrl.u32 %v3295, 7
  %v3297 = vsub.s32 %v3294, %v3296
  %v3298 = vrot.slane %v3284, %v3297
  %v3299 = vcombine.low %v3291, %v3298
  %v3300 = vcombine.low %v2518, %v2521
  %v3301 = vcombine.low %v2525, %v2528
  %v3303 = vunpack.c.l.s4 1983009808
  %v3304 = vunpack.c.0.s8 %v3303
  %v3305 = vlaneseq
  %v3306 = vshrl.u32 %v3305, 7
  %v3307 = vsub.s32 %v3304, %v3306
  %v3308 = vrot.slane %v3300, %v3307
  %v3310 = vunpack.c.l.s4 1983009808
  %v3311 = vunpack.c.0.s8 %v3310
  %v3312 = vlaneseq
  %v3313 = vshrl.u32 %v3312, 7
  %v3314 = vsub.s32 %v3311, %v3313
  %v3315 = vrot.slane %v3301, %v3314
  %v3316 = vcombine.low %v3308, %v3315
  %v3317 = vcombine.low %v2531, %v2534
  %v3318 = vcombine.low %v2537, %v2540
  %v3320 = vunpack.c.l.s4 1983009808
  %v3321 = vunpack.c.0.s8 %v3320
  %v3322 = vlaneseq
  %v3323 = vshrl.u32 %v3322, 7
  %v3324 = vsub.s32 %v3321, %v3323
  %v3325 = vrot.slane %v3317, %v3324
  %v3327 = vunpack.c.l.s4 1983009808
  %v3328 = vunpack.c.0.s8 %v3327
  %v3329 = vlaneseq
  %v3330 = vshrl.u32 %v3329, 7
  %v3331 = vsub.s32 %v3328, %v3330
  %v3332 = vrot.slane %v3318, %v3331
  %v3333 = vcombine.low %v3325, %v3332
  %v3334 = vcombine.low %v2543, %v2547
  %v3335 = vcombine.low %v2550, %v2553
  %v3337 = vunpack.c.l.s4 1983009808
  %v3338 = vunpack.c.0.s8 %v3337
  %v3339 = vlaneseq
  %v3340 = vshrl.u32 %v3339, 7
  %v3341 = vsub.s32 %v3338, %v3340
  %v3342 = vrot.slane %v3334, %v3341
  %v3344 = vunpack.c.l.s4 1983009808
  %v3345 = vunpack.c.0.s8 %v3344
  %v3346 = vlaneseq
  %v3347 = vshrl.u32 %v3346, 7
  %v3348 = vsub.s32 %v3345, %v3347
  %v3349 = vrot.slane %v3335, %v3348
  %v3350 = vcombine.low %v3342, %v3349
  %v3351 = vcombine.low %v2556, %v2559
  %v3352 = vcombine.low %v2562, %v2565
  %v3354 = vunpack.c.l.s4 1983009808
  %v3355 = vunpack.c.0.s8 %v3354
  %v3356 = vlaneseq
  %v3357 = vshrl.u32 %v3356, 7
  %v3358 = vsub.s32 %v3355, %v3357
  %v3359 = vrot.slane %v3351, %v3358
  %v3361 = vunpack.c.l.s4 1983009808
  %v3362 = vunpack.c.0.s8 %v3361
  %v3363 = vlaneseq
  %v3364 = vshrl.u32 %v3363, 7
  %v3365 = vsub.s32 %v3362, %v3364
  %v3366 = vrot.slane %v3352, %v3365
  %v3367 = vcombine.low %v3359, %v3366
  %v3368 = vcombine.low %v2569, %v2572
  %v3369 = vcombine.low %v2575, %v2578
  %v3371 = vunpack.c.l.s4 1983009808
  %v3372 = vunpack.c.0.s8 %v3371
  %v3373 = vlaneseq
  %v3374 = vshrl.u32 %v3373, 7
  %v3375 = vsub.s32 %v3372, %v3374
  %v3376 = vrot.slane %v3368, %v3375
  %v3378 = vunpack.c.l.s4 1983009808
  %v3379 = vunpack.c.0.s8 %v3378
  %v3380 = vlaneseq
  %v3381 = vshrl.u32 %v3380, 7
  %v3382 = vsub.s32 %v3379, %v3381
  %v3383 = vrot.slane %v3369, %v3382
  %v3384 = vcombine.low %v3376, %v3383
  %v3385 = vcombine.low %v2581, %v2584
  %v3386 = vcombine.low %v2587, %v2591
  %v3388 = vunpack.c.l.s4 1983009808
  %v3389 = vunpack.c.0.s8 %v3388
  %v3390 = vlaneseq
  %v3391 = vshrl.u32 %v3390, 7
  %v3392 = vsub.s32 %v3389, %v3391
  %v3393 = vrot.slane %v3385, %v3392
  %v3395 = vunpack.c.l.s4 1983009808
  %v3396 = vunpack.c.0.s8 %v3395
  %v3397 = vlaneseq
  %v3398 = vshrl.u32 %v3397, 7
  %v3399 = vsub.s32 %v3396, %v3398
  %v3400 = vrot.slane %v3386, %v3399
  %v3401 = vcombine.low %v3393, %v3400
  %v3402 = vcombine.low %v2594, %v2597
  %v3403 = vcombine.low %v2600, %v2603
  %v3405 = vunpack.c.l.s4 1983009808
  %v3406 = vunpack.c.0.s8 %v3405
  %v3407 = vlaneseq
  %v3408 = vshrl.u32 %v3407, 7
  %v3409 = vsub.s32 %v3406, %v3408
  %v3410 = vrot.slane %v3402, %v3409
  %v3412 = vunpack.c.l.s4 1983009808
  %v3413 = vunpack.c.0.s8 %v3412
  %v3414 = vlaneseq
  %v3415 = vshrl.u32 %v3414, 7
  %v3416 = vsub.s32 %v3413, %v3415
  %v3417 = vrot.slane %v3403, %v3416
  %v3418 = vcombine.low %v3410, %v3417
  %v3419 = vcombine.low %v2606, %v2609
  %v3420 = vcombine.low %v2613, %v2616
  %v3422 = vunpack.c.l.s4 1983009808
  %v3423 = vunpack.c.0.s8 %v3422
  %v3424 = vlaneseq
  %v3425 = vshrl.u32 %v3424, 7
  %v3426 = vsub.s32 %v3423, %v3425
  %v3427 = vrot.slane %v3419, %v3426
  %v3429 = vunpack.c.l.s4 1983009808
  %v3430 = vunpack.c.0.s8 %v3429
  %v3431 = vlaneseq
  %v3432 = vshrl.u32 %v3431, 7
  %v3433 = vsub.s32 %v3430, %v3432
  %v3434 = vrot.slane %v3420, %v3433
  %v3435 = vcombine.low %v3427, %v3434
  %v3436 = vcombine.low %v2619, %v2622
  %v3437 = vcombine.low %v2625, %v2628
  %v3439 = vunpack.c.l.s4 1983009808
  %v3440 = vunpack.c.0.s8 %v3439
  %v3441 = vlaneseq
  %v3442 = vshrl.u32 %v3441, 7
  %v3443 = vsub.s32 %v3440, %v3442
  %v3444 = vrot.slane %v3436, %v3443
  %v3446 = vunpack.c.l.s4 1983009808
  %v3447 = vunpack.c.0.s8 %v3446
  %v3448 = vlaneseq
  %v3449 = vshrl.u32 %v3448, 7
  %v3450 = vsub.s32 %v3447, %v3449
  %v3451 = vrot.slane %v3437, %v3450
  %v3452 = vcombine.low %v3444, %v3451
  %v3453 = vcombine.low %v2631, %v2635
  %v3454 = vcombine.low %v2638, %v2641
  %v3456 = vunpack.c.l.s4 1983009808
  %v3457 = vunpack.c.0.s8 %v3456
  %v3458 = vlaneseq
  %v3459 = vshrl.u32 %v3458, 7
  %v3460 = vsub.s32 %v3457, %v3459
  %v3461 = vrot.slane %v3453, %v3460
  %v3463 = vunpack.c.l.s4 1983009808
  %v3464 = vunpack.c.0.s8 %v3463
  %v3465 = vlaneseq
  %v3466 = vshrl.u32 %v3465, 7
  %v3467 = vsub.s32 %v3464, %v3466
  %v3468 = vrot.slane %v3454, %v3467
  %v3469 = vcombine.low %v3461, %v3468
  %v3470 = vcombine.low %v2644, %v2647
  %v3471 = vcombine.low %v2650, %v2653
  %v3473 = vunpack.c.l.s4 1983009808
  %v3474 = vunpack.c.0.s8 %v3473
  %v3475 = vlaneseq
  %v3476 = vshrl.u32 %v3475, 7
  %v3477 = vsub.s32 %v3474, %v3476
  %v3478 = vrot.slane %v3470, %v3477
  %v3480 = vunpack.c.l.s4 1983009808
  %v3481 = vunpack.c.0.s8 %v3480
  %v3482 = vlaneseq
  %v3483 = vshrl.u32 %v3482, 7
  %v3484 = vsub.s32 %v3481, %v3483
  %v3485 = vrot.slane %v3471, %v3484
  %v3486 = vcombine.low %v3478, %v3485
  %3487 = vrot.lane.b32.xlu0 %v2670, 4
  %v3488 = vpop.permute.xlu0 %3487
  %3489 = vrot.lane.b32.xlu0 %v2687, 4
  %v3490 = vpop.permute.xlu0 %3489
  %3491 = vrot.lane.b32.xlu0 %v2704, 4
  %v3492 = vpop.permute.xlu0 %3491
  %3493 = vrot.lane.b32.xlu0 %v2721, 4
  %v3494 = vpop.permute.xlu0 %3493
  %3495 = vrot.lane.b32.xlu0 %v2738, 4
  %v3496 = vpop.permute.xlu0 %3495
  %3497 = vrot.lane.b32.xlu0 %v2755, 4
  %v3498 = vpop.permute.xlu0 %3497
  %3499 = vrot.lane.b32.xlu0 %v2772, 4
  %v3500 = vpop.permute.xlu0 %3499
  %3501 = vrot.lane.b32.xlu0 %v2789, 4
  %v3502 = vpop.permute.xlu0 %3501
  %3503 = vrot.lane.b32.xlu0 %v2806, 4
  %v3504 = vpop.permute.xlu0 %3503
  %3505 = vrot.lane.b32.xlu0 %v2823, 4
  %v3506 = vpop.permute.xlu0 %3505
  %3507 = vrot.lane.b32.xlu0 %v2840, 4
  %v3508 = vpop.permute.xlu0 %3507
  %3509 = vrot.lane.b32.xlu0 %v2857, 4
  %v3510 = vpop.permute.xlu0 %3509
  %3511 = vrot.lane.b32.xlu0 %v2874, 4
  %v3512 = vpop.permute.xlu0 %3511
  %3513 = vrot.lane.b32.xlu0 %v2891, 4
  %v3514 = vpop.permute.xlu0 %3513
  %3515 = vrot.lane.b32.xlu0 %v2908, 4
  %v3516 = vpop.permute.xlu0 %3515
  %3517 = vrot.lane.b32.xlu0 %v2925, 4
  %v3518 = vpop.permute.xlu0 %3517
  %3519 = vrot.lane.b32.xlu0 %v2942, 4
  %v3520 = vpop.permute.xlu0 %3519
  %3521 = vrot.lane.b32.xlu0 %v2959, 4
  %v3522 = vpop.permute.xlu0 %3521
  %3523 = vrot.lane.b32.xlu0 %v2976, 4
  %v3524 = vpop.permute.xlu0 %3523
  %3525 = vrot.lane.b32.xlu0 %v2993, 4
  %v3526 = vpop.permute.xlu0 %3525
  %3527 = vrot.lane.b32.xlu0 %v3010, 4
  %v3528 = vpop.permute.xlu0 %3527
  %3529 = vrot.lane.b32.xlu0 %v3027, 4
  %v3530 = vpop.permute.xlu0 %3529
  %3531 = vrot.lane.b32.xlu0 %v3044, 4
  %v3532 = vpop.permute.xlu0 %3531
  %3533 = vrot.lane.b32.xlu0 %v3061, 4
  %v3534 = vpop.permute.xlu0 %3533
  %3535 = vrot.lane.b32.xlu0 %v3078, 4
  %v3536 = vpop.permute.xlu0 %3535
  %3537 = vrot.lane.b32.xlu0 %v3095, 4
  %v3538 = vpop.permute.xlu0 %3537
  %3539 = vrot.lane.b32.xlu0 %v3112, 4
  %v3540 = vpop.permute.xlu0 %3539
  %3541 = vrot.lane.b32.xlu0 %v3129, 4
  %v3542 = vpop.permute.xlu0 %3541
  %3543 = vrot.lane.b32.xlu0 %v3146, 4
  %v3544 = vpop.permute.xlu0 %3543
  %3545 = vrot.lane.b32.xlu0 %v3163, 4
  %v3546 = vpop.permute.xlu0 %3545
  %3547 = vrot.lane.b32.xlu0 %v3180, 4
  %v3548 = vpop.permute.xlu0 %3547
  %3549 = vrot.lane.b32.xlu0 %v3197, 4
  %v3550 = vpop.permute.xlu0 %3549
  %3551 = vrot.lane.b32.xlu0 %v3214, 4
  %v3552 = vpop.permute.xlu0 %3551
  %3553 = vrot.lane.b32.xlu0 %v3231, 4
  %v3554 = vpop.permute.xlu0 %3553
  %3555 = vrot.lane.b32.xlu0 %v3248, 4
  %v3556 = vpop.permute.xlu0 %3555
  %3557 = vrot.lane.b32.xlu0 %v3265, 4
  %v3558 = vpop.permute.xlu0 %3557
  %3559 = vrot.lane.b32.xlu0 %v3282, 4
  %v3560 = vpop.permute.xlu0 %3559
  %3561 = vrot.lane.b32.xlu0 %v3299, 4
  %v3562 = vpop.permute.xlu0 %3561
  %3563 = vrot.lane.b32.xlu0 %v3316, 4
  %v3564 = vpop.permute.xlu0 %3563
  %3565 = vrot.lane.b32.xlu0 %v3333, 4
  %v3566 = vpop.permute.xlu0 %3565
  %3567 = vrot.lane.b32.xlu0 %v3350, 4
  %v3568 = vpop.permute.xlu0 %3567
  %3569 = vrot.lane.b32.xlu0 %v3367, 4
  %v3570 = vpop.permute.xlu0 %3569
  %3571 = vrot.lane.b32.xlu0 %v3384, 4
  %v3572 = vpop.permute.xlu0 %3571
  %3573 = vrot.lane.b32.xlu0 %v3401, 4
  %v3574 = vpop.permute.xlu0 %3573
  %3575 = vrot.lane.b32.xlu0 %v3418, 4
  %v3576 = vpop.permute.xlu0 %3575
  %3577 = vrot.lane.b32.xlu0 %v3435, 4
  %v3578 = vpop.permute.xlu0 %3577
  %3579 = vrot.lane.b32.xlu0 %v3452, 4
  %v3580 = vpop.permute.xlu0 %3579
  %3581 = vrot.lane.b32.xlu0 %v3469, 4
  %v3582 = vpop.permute.xlu0 %3581
  %3583 = vrot.lane.b32.xlu0 %v3486, 4
  %v3584 = vpop.permute.xlu0 %3583
  %vm3634 = vcmask 64544
  %3635 = vst.msk [vmem:[#allocation2] sm:$0xff] %vm3634, %v3488
  %3636 = vst.msk [vmem:[#allocation2 + $0x8] sm:$0xff] %vm3634, %v3490
  %3637 = vst.msk [vmem:[#allocation2 + $0x10] sm:$0xff] %vm3634, %v3492
  %3638 = vst.msk [vmem:[#allocation2 + $0x18] sm:$0xff] %vm3634, %v3494
  %3639 = vst.msk [vmem:[#allocation2 + $0x20] sm:$0xff] %vm3634, %v3496
  %3640 = vst.msk [vmem:[#allocation2 + $0x28] sm:$0xff] %vm3634, %v3498
  %3641 = vst.msk [vmem:[#allocation2 + $0x30] sm:$0xff] %vm3634, %v3500
  %3642 = vst.msk [vmem:[#allocation2 + $0x38] sm:$0xff] %vm3634, %v3502
  %3643 = vst.msk [vmem:[#allocation2 + $0x40] sm:$0xff] %vm3634, %v3504
  %3644 = vst.msk [vmem:[#allocation2 + $0x48] sm:$0xff] %vm3634, %v3506
  %3645 = vst.msk [vmem:[#allocation2 + $0x50] sm:$0xff] %vm3634, %v3508
  %3646 = vst.msk [vmem:[#allocation2 + $0x58] sm:$0xff] %vm3634, %v3510
  %3647 = vst.msk [vmem:[#allocation2 + $0x60] sm:$0xff] %vm3634, %v3512
  %3648 = vst.msk [vmem:[#allocation2 + $0x68] sm:$0xff] %vm3634, %v3514
  %3649 = vst.msk [vmem:[#allocation2 + $0x70] sm:$0xff] %vm3634, %v3516
  %3650 = vst.msk [vmem:[#allocation2 + $0x78] sm:$0xff] %vm3634, %v3518
  %3651 = vst.msk [vmem:[#allocation2 + $0x80] sm:$0xff] %vm3634, %v3520
  %3652 = vst.msk [vmem:[#allocation2 + $0x88] sm:$0xff] %vm3634, %v3522
  %3653 = vst.msk [vmem:[#allocation2 + $0x90] sm:$0xff] %vm3634, %v3524
  %3654 = vst.msk [vmem:[#allocation2 + $0x98] sm:$0xff] %vm3634, %v3526
  %3655 = vst.msk [vmem:[#allocation2 + $0xa0] sm:$0xff] %vm3634, %v3528
  %3656 = vst.msk [vmem:[#allocation2 + $0xa8] sm:$0xff] %vm3634, %v3530
  %3657 = vst.msk [vmem:[#allocation2 + $0xb0] sm:$0xff] %vm3634, %v3532
  %3658 = vst.msk [vmem:[#allocation2 + $0xb8] sm:$0xff] %vm3634, %v3534
  %3659 = vst.msk [vmem:[#allocation2 + $0xc0] sm:$0xff] %vm3634, %v3536
  %3660 = vst.msk [vmem:[#allocation2 + $0xc8] sm:$0xff] %vm3634, %v3538
  %3661 = vst.msk [vmem:[#allocation2 + $0xd0] sm:$0xff] %vm3634, %v3540
  %3662 = vst.msk [vmem:[#allocation2 + $0xd8] sm:$0xff] %vm3634, %v3542
  %3663 = vst.msk [vmem:[#allocation2 + $0xe0] sm:$0xff] %vm3634, %v3544
  %3664 = vst.msk [vmem:[#allocation2 + $0xe8] sm:$0xff] %vm3634, %v3546
  %3665 = vst.msk [vmem:[#allocation2 + $0xf0] sm:$0xff] %vm3634, %v3548
  %3666 = vst.msk [vmem:[#allocation2 + $0xf8] sm:$0xff] %vm3634, %v3550
  %3667 = vst.msk [vmem:[#allocation2 + $0x100] sm:$0xff] %vm3634, %v3552
  %3668 = vst.msk [vmem:[#allocation2 + $0x108] sm:$0xff] %vm3634, %v3554
  %3669 = vst.msk [vmem:[#allocation2 + $0x110] sm:$0xff] %vm3634, %v3556
  %3670 = vst.msk [vmem:[#allocation2 + $0x118] sm:$0xff] %vm3634, %v3558
  %3671 = vst.msk [vmem:[#allocation2 + $0x120] sm:$0xff] %vm3634, %v3560
  %3672 = vst.msk [vmem:[#allocation2 + $0x128] sm:$0xff] %vm3634, %v3562
  %3673 = vst.msk [vmem:[#allocation2 + $0x130] sm:$0xff] %vm3634, %v3564
  %3674 = vst.msk [vmem:[#allocation2 + $0x138] sm:$0xff] %vm3634, %v3566
  %3675 = vst.msk [vmem:[#allocation2 + $0x140] sm:$0xff] %vm3634, %v3568
  %3676 = vst.msk [vmem:[#allocation2 + $0x148] sm:$0xff] %vm3634, %v3570
  %3677 = vst.msk [vmem:[#allocation2 + $0x150] sm:$0xff] %vm3634, %v3572
  %3678 = vst.msk [vmem:[#allocation2 + $0x158] sm:$0xff] %vm3634, %v3574
  %3679 = vst.msk [vmem:[#allocation2 + $0x160] sm:$0xff] %vm3634, %v3576
  %3680 = vst.msk [vmem:[#allocation2 + $0x168] sm:$0xff] %vm3634, %v3578
  %3681 = vst.msk [vmem:[#allocation2 + $0x170] sm:$0xff] %vm3634, %v3580
  %3682 = vst.msk [vmem:[#allocation2 + $0x178] sm:$0xff] %vm3634, %v3582
  %3683 = vst.msk [vmem:[#allocation2 + $0x180] sm:$0xff] %vm3634, %v3584
  %v3684 = vcombine.low %v162, %v161
  %v3685 = vcombine.low %v163, %v171
  %v3687 = vunpack.c.l.s4 1983009808
  %v3688 = vunpack.c.0.s8 %v3687
  %v3689 = vlaneseq
  %v3690 = vshrl.u32 %v3689, 7
  %v3691 = vsub.s32 %v3688, %v3690
  %v3692 = vrot.slane %v3684, %v3691
  %v3694 = vunpack.c.l.s4 1983009808
  %v3695 = vunpack.c.0.s8 %v3694
  %v3696 = vlaneseq
  %v3697 = vshrl.u32 %v3696, 7
  %v3698 = vsub.s32 %v3695, %v3697
  %v3699 = vrot.slane %v3685, %v3698
  %v3700 = vcombine.low %v3692, %v3699
  %v3701 = vcombine.low %v179, %v178
  %v3702 = vcombine.low %v2003, %v195
  %v3704 = vunpack.c.l.s4 1983009808
  %v3705 = vunpack.c.0.s8 %v3704
  %v3706 = vlaneseq
  %v3707 = vshrl.u32 %v3706, 7
  %v3708 = vsub.s32 %v3705, %v3707
  %v3709 = vrot.slane %v3701, %v3708
  %v3711 = vunpack.c.l.s4 1983009808
  %v3712 = vunpack.c.0.s8 %v3711
  %v3713 = vlaneseq
  %v3714 = vshrl.u32 %v3713, 7
  %v3715 = vsub.s32 %v3712, %v3714
  %v3716 = vrot.slane %v3702, %v3715
  %v3717 = vcombine.low %v3709, %v3716
  %v3718 = vcombine.low %v194, %v196
  %v3719 = vcombine.low %v204, %v212
  %v3721 = vunpack.c.l.s4 1983009808
  %v3722 = vunpack.c.0.s8 %v3721
  %v3723 = vlaneseq
  %v3724 = vshrl.u32 %v3723, 7
  %v3725 = vsub.s32 %v3722, %v3724
  %v3726 = vrot.slane %v3718, %v3725
  %v3728 = vunpack.c.l.s4 1983009808
  %v3729 = vunpack.c.0.s8 %v3728
  %v3730 = vlaneseq
  %v3731 = vshrl.u32 %v3730, 7
  %v3732 = vsub.s32 %v3729, %v3731
  %v3733 = vrot.slane %v3719, %v3732
  %v3734 = vcombine.low %v3726, %v3733
  %v3735 = vcombine.low %v211, %v2004
  %v3736 = vcombine.low %v228, %v227
  %v3738 = vunpack.c.l.s4 1983009808
  %v3739 = vunpack.c.0.s8 %v3738
  %v3740 = vlaneseq
  %v3741 = vshrl.u32 %v3740, 7
  %v3742 = vsub.s32 %v3739, %v3741
  %v3743 = vrot.slane %v3735, %v3742
  %v3745 = vunpack.c.l.s4 1983009808
  %v3746 = vunpack.c.0.s8 %v3745
  %v3747 = vlaneseq
  %v3748 = vshrl.u32 %v3747, 7
  %v3749 = vsub.s32 %v3746, %v3748
  %v3750 = vrot.slane %v3736, %v3749
  %v3751 = vcombine.low %v3743, %v3750
  %v3752 = vcombine.low %v229, %v237
  %v3753 = vcombine.low %v245, %v244
  %v3755 = vunpack.c.l.s4 1983009808
  %v3756 = vunpack.c.0.s8 %v3755
  %v3757 = vlaneseq
  %v3758 = vshrl.u32 %v3757, 7
  %v3759 = vsub.s32 %v3756, %v3758
  %v3760 = vrot.slane %v3752, %v3759
  %v3762 = vunpack.c.l.s4 1983009808
  %v3763 = vunpack.c.0.s8 %v3762
  %v3764 = vlaneseq
  %v3765 = vshrl.u32 %v3764, 7
  %v3766 = vsub.s32 %v3763, %v3765
  %v3767 = vrot.slane %v3753, %v3766
  %v3768 = vcombine.low %v3760, %v3767
  %v3769 = vcombine.low %v2005, %v261
  %v3770 = vcombine.low %v260, %v262
  %v3772 = vunpack.c.l.s4 1983009808
  %v3773 = vunpack.c.0.s8 %v3772
  %v3774 = vlaneseq
  %v3775 = vshrl.u32 %v3774, 7
  %v3776 = vsub.s32 %v3773, %v3775
  %v3777 = vrot.slane %v3769, %v3776
  %v3779 = vunpack.c.l.s4 1983009808
  %v3780 = vunpack.c.0.s8 %v3779
  %v3781 = vlaneseq
  %v3782 = vshrl.u32 %v3781, 7
  %v3783 = vsub.s32 %v3780, %v3782
  %v3784 = vrot.slane %v3770, %v3783
  %v3785 = vcombine.low %v3777, %v3784
  %v3786 = vcombine.low %v270, %v278
  %v3787 = vcombine.low %v277, %v2006
  %v3789 = vunpack.c.l.s4 1983009808
  %v3790 = vunpack.c.0.s8 %v3789
  %v3791 = vlaneseq
  %v3792 = vshrl.u32 %v3791, 7
  %v3793 = vsub.s32 %v3790, %v3792
  %v3794 = vrot.slane %v3786, %v3793
  %v3796 = vunpack.c.l.s4 1983009808
  %v3797 = vunpack.c.0.s8 %v3796
  %v3798 = vlaneseq
  %v3799 = vshrl.u32 %v3798, 7
  %v3800 = vsub.s32 %v3797, %v3799
  %v3801 = vrot.slane %v3787, %v3800
  %v3802 = vcombine.low %v3794, %v3801
  %v3803 = vcombine.low %v294, %v293
  %v3804 = vcombine.low %v295, %v303
  %v3806 = vunpack.c.l.s4 1983009808
  %v3807 = vunpack.c.0.s8 %v3806
  %v3808 = vlaneseq
  %v3809 = vshrl.u32 %v3808, 7
  %v3810 = vsub.s32 %v3807, %v3809
  %v3811 = vrot.slane %v3803, %v3810
  %v3813 = vunpack.c.l.s4 1983009808
  %v3814 = vunpack.c.0.s8 %v3813
  %v3815 = vlaneseq
  %v3816 = vshrl.u32 %v3815, 7
  %v3817 = vsub.s32 %v3814, %v3816
  %v3818 = vrot.slane %v3804, %v3817
  %v3819 = vcombine.low %v3811, %v3818
  %v3820 = vcombine.low %v311, %v310
  %v3821 = vcombine.low %v2007, %v327
  %v3823 = vunpack.c.l.s4 1983009808
  %v3824 = vunpack.c.0.s8 %v3823
  %v3825 = vlaneseq
  %v3826 = vshrl.u32 %v3825, 7
  %v3827 = vsub.s32 %v3824, %v3826
  %v3828 = vrot.slane %v3820, %v3827
  %v3830 = vunpack.c.l.s4 1983009808
  %v3831 = vunpack.c.0.s8 %v3830
  %v3832 = vlaneseq
  %v3833 = vshrl.u32 %v3832, 7
  %v3834 = vsub.s32 %v3831, %v3833
  %v3835 = vrot.slane %v3821, %v3834
  %v3836 = vcombine.low %v3828, %v3835
  %v3837 = vcombine.low %v326, %v328
  %v3838 = vcombine.low %v336, %v344
  %v3840 = vunpack.c.l.s4 1983009808
  %v3841 = vunpack.c.0.s8 %v3840
  %v3842 = vlaneseq
  %v3843 = vshrl.u32 %v3842, 7
  %v3844 = vsub.s32 %v3841, %v3843
  %v3845 = vrot.slane %v3837, %v3844
  %v3847 = vunpack.c.l.s4 1983009808
  %v3848 = vunpack.c.0.s8 %v3847
  %v3849 = vlaneseq
  %v3850 = vshrl.u32 %v3849, 7
  %v3851 = vsub.s32 %v3848, %v3850
  %v3852 = vrot.slane %v3838, %v3851
  %v3853 = vcombine.low %v3845, %v3852
  %v3854 = vcombine.low %v343, %v2008
  %v3855 = vcombine.low %v360, %v359
  %v3857 = vunpack.c.l.s4 1983009808
  %v3858 = vunpack.c.0.s8 %v3857
  %v3859 = vlaneseq
  %v3860 = vshrl.u32 %v3859, 7
  %v3861 = vsub.s32 %v3858, %v3860
  %v3862 = vrot.slane %v3854, %v3861
  %v3864 = vunpack.c.l.s4 1983009808
  %v3865 = vunpack.c.0.s8 %v3864
  %v3866 = vlaneseq
  %v3867 = vshrl.u32 %v3866, 7
  %v3868 = vsub.s32 %v3865, %v3867
  %v3869 = vrot.slane %v3855, %v3868
  %v3870 = vcombine.low %v3862, %v3869
  %v3871 = vcombine.low %v361, %v369
  %v3872 = vcombine.low %v377, %v376
  %v3874 = vunpack.c.l.s4 1983009808
  %v3875 = vunpack.c.0.s8 %v3874
  %v3876 = vlaneseq
  %v3877 = vshrl.u32 %v3876, 7
  %v3878 = vsub.s32 %v3875, %v3877
  %v3879 = vrot.slane %v3871, %v3878
  %v3881 = vunpack.c.l.s4 1983009808
  %v3882 = vunpack.c.0.s8 %v3881
  %v3883 = vlaneseq
  %v3884 = vshrl.u32 %v3883, 7
  %v3885 = vsub.s32 %v3882, %v3884
  %v3886 = vrot.slane %v3872, %v3885
  %v3887 = vcombine.low %v3879, %v3886
  %v3888 = vcombine.low %v2009, %v393
  %v3889 = vcombine.low %v392, %v394
  %v3891 = vunpack.c.l.s4 1983009808
  %v3892 = vunpack.c.0.s8 %v3891
  %v3893 = vlaneseq
  %v3894 = vshrl.u32 %v3893, 7
  %v3895 = vsub.s32 %v3892, %v3894
  %v3896 = vrot.slane %v3888, %v3895
  %v3898 = vunpack.c.l.s4 1983009808
  %v3899 = vunpack.c.0.s8 %v3898
  %v3900 = vlaneseq
  %v3901 = vshrl.u32 %v3900, 7
  %v3902 = vsub.s32 %v3899, %v3901
  %v3903 = vrot.slane %v3889, %v3902
  %v3904 = vcombine.low %v3896, %v3903
  %v3905 = vcombine.low %v402, %v410
  %v3906 = vcombine.low %v409, %v2010
  %v3908 = vunpack.c.l.s4 1983009808
  %v3909 = vunpack.c.0.s8 %v3908
  %v3910 = vlaneseq
  %v3911 = vshrl.u32 %v3910, 7
  %v3912 = vsub.s32 %v3909, %v3911
  %v3913 = vrot.slane %v3905, %v3912
  %v3915 = vunpack.c.l.s4 1983009808
  %v3916 = vunpack.c.0.s8 %v3915
  %v3917 = vlaneseq
  %v3918 = vshrl.u32 %v3917, 7
  %v3919 = vsub.s32 %v3916, %v3918
  %v3920 = vrot.slane %v3906, %v3919
  %v3921 = vcombine.low %v3913, %v3920
  %v3922 = vcombine.low %v426, %v425
  %v3923 = vcombine.low %v427, %v435
  %v3925 = vunpack.c.l.s4 1983009808
  %v3926 = vunpack.c.0.s8 %v3925
  %v3927 = vlaneseq
  %v3928 = vshrl.u32 %v3927, 7
  %v3929 = vsub.s32 %v3926, %v3928
  %v3930 = vrot.slane %v3922, %v3929
  %v3932 = vunpack.c.l.s4 1983009808
  %v3933 = vunpack.c.0.s8 %v3932
  %v3934 = vlaneseq
  %v3935 = vshrl.u32 %v3934, 7
  %v3936 = vsub.s32 %v3933, %v3935
  %v3937 = vrot.slane %v3923, %v3936
  %v3938 = vcombine.low %v3930, %v3937
  %v3939 = vcombine.low %v443, %v442
  %v3940 = vcombine.low %v2011, %v459
  %v3942 = vunpack.c.l.s4 1983009808
  %v3943 = vunpack.c.0.s8 %v3942
  %v3944 = vlaneseq
  %v3945 = vshrl.u32 %v3944, 7
  %v3946 = vsub.s32 %v3943, %v3945
  %v3947 = vrot.slane %v3939, %v3946
  %v3949 = vunpack.c.l.s4 1983009808
  %v3950 = vunpack.c.0.s8 %v3949
  %v3951 = vlaneseq
  %v3952 = vshrl.u32 %v3951, 7
  %v3953 = vsub.s32 %v3950, %v3952
  %v3954 = vrot.slane %v3940, %v3953
  %v3955 = vcombine.low %v3947, %v3954
  %v3956 = vcombine.low %v458, %v460
  %v3957 = vcombine.low %v468, %v476
  %v3959 = vunpack.c.l.s4 1983009808
  %v3960 = vunpack.c.0.s8 %v3959
  %v3961 = vlaneseq
  %v3962 = vshrl.u32 %v3961, 7
  %v3963 = vsub.s32 %v3960, %v3962
  %v3964 = vrot.slane %v3956, %v3963
  %v3966 = vunpack.c.l.s4 1983009808
  %v3967 = vunpack.c.0.s8 %v3966
  %v3968 = vlaneseq
  %v3969 = vshrl.u32 %v3968, 7
  %v3970 = vsub.s32 %v3967, %v3969
  %v3971 = vrot.slane %v3957, %v3970
  %v3972 = vcombine.low %v3964, %v3971
  %v3973 = vcombine.low %v475, %v2012
  %v3974 = vcombine.low %v492, %v491
  %v3976 = vunpack.c.l.s4 1983009808
  %v3977 = vunpack.c.0.s8 %v3976
  %v3978 = vlaneseq
  %v3979 = vshrl.u32 %v3978, 7
  %v3980 = vsub.s32 %v3977, %v3979
  %v3981 = vrot.slane %v3973, %v3980
  %v3983 = vunpack.c.l.s4 1983009808
  %v3984 = vunpack.c.0.s8 %v3983
  %v3985 = vlaneseq
  %v3986 = vshrl.u32 %v3985, 7
  %v3987 = vsub.s32 %v3984, %v3986
  %v3988 = vrot.slane %v3974, %v3987
  %v3989 = vcombine.low %v3981, %v3988
  %v3990 = vcombine.low %v493, %v501
  %v3991 = vcombine.low %v509, %v508
  %v3993 = vunpack.c.l.s4 1983009808
  %v3994 = vunpack.c.0.s8 %v3993
  %v3995 = vlaneseq
  %v3996 = vshrl.u32 %v3995, 7
  %v3997 = vsub.s32 %v3994, %v3996
  %v3998 = vrot.slane %v3990, %v3997
  %v4000 = vunpack.c.l.s4 1983009808
  %v4001 = vunpack.c.0.s8 %v4000
  %v4002 = vlaneseq
  %v4003 = vshrl.u32 %v4002, 7
  %v4004 = vsub.s32 %v4001, %v4003
  %v4005 = vrot.slane %v3991, %v4004
  %v4006 = vcombine.low %v3998, %v4005
  %v4007 = vcombine.low %v2013, %v525
  %v4008 = vcombine.low %v524, %v526
  %v4010 = vunpack.c.l.s4 1983009808
  %v4011 = vunpack.c.0.s8 %v4010
  %v4012 = vlaneseq
  %v4013 = vshrl.u32 %v4012, 7
  %v4014 = vsub.s32 %v4011, %v4013
  %v4015 = vrot.slane %v4007, %v4014
  %v4017 = vunpack.c.l.s4 1983009808
  %v4018 = vunpack.c.0.s8 %v4017
  %v4019 = vlaneseq
  %v4020 = vshrl.u32 %v4019, 7
  %v4021 = vsub.s32 %v4018, %v4020
  %v4022 = vrot.slane %v4008, %v4021
  %v4023 = vcombine.low %v4015, %v4022
  %v4024 = vcombine.low %v534, %v542
  %v4025 = vcombine.low %v541, %v2014
  %v4027 = vunpack.c.l.s4 1983009808
  %v4028 = vunpack.c.0.s8 %v4027
  %v4029 = vlaneseq
  %v4030 = vshrl.u32 %v4029, 7
  %v4031 = vsub.s32 %v4028, %v4030
  %v4032 = vrot.slane %v4024, %v4031
  %v4034 = vunpack.c.l.s4 1983009808
  %v4035 = vunpack.c.0.s8 %v4034
  %v4036 = vlaneseq
  %v4037 = vshrl.u32 %v4036, 7
  %v4038 = vsub.s32 %v4035, %v4037
  %v4039 = vrot.slane %v4025, %v4038
  %v4040 = vcombine.low %v4032, %v4039
  %v4041 = vcombine.low %v558, %v557
  %v4042 = vcombine.low %v559, %v567
  %v4044 = vunpack.c.l.s4 1983009808
  %v4045 = vunpack.c.0.s8 %v4044
  %v4046 = vlaneseq
  %v4047 = vshrl.u32 %v4046, 7
  %v4048 = vsub.s32 %v4045, %v4047
  %v4049 = vrot.slane %v4041, %v4048
  %v4051 = vunpack.c.l.s4 1983009808
  %v4052 = vunpack.c.0.s8 %v4051
  %v4053 = vlaneseq
  %v4054 = vshrl.u32 %v4053, 7
  %v4055 = vsub.s32 %v4052, %v4054
  %v4056 = vrot.slane %v4042, %v4055
  %v4057 = vcombine.low %v4049, %v4056
  %v4058 = vcombine.low %v575, %v574
  %v4059 = vcombine.low %v2015, %v591
  %v4061 = vunpack.c.l.s4 1983009808
  %v4062 = vunpack.c.0.s8 %v4061
  %v4063 = vlaneseq
  %v4064 = vshrl.u32 %v4063, 7
  %v4065 = vsub.s32 %v4062, %v4064
  %v4066 = vrot.slane %v4058, %v4065
  %v4068 = vunpack.c.l.s4 1983009808
  %v4069 = vunpack.c.0.s8 %v4068
  %v4070 = vlaneseq
  %v4071 = vshrl.u32 %v4070, 7
  %v4072 = vsub.s32 %v4069, %v4071
  %v4073 = vrot.slane %v4059, %v4072
  %v4074 = vcombine.low %v4066, %v4073
  %v4075 = vcombine.low %v590, %v592
  %v4076 = vcombine.low %v600, %v608
  %v4078 = vunpack.c.l.s4 1983009808
  %v4079 = vunpack.c.0.s8 %v4078
  %v4080 = vlaneseq
  %v4081 = vshrl.u32 %v4080, 7
  %v4082 = vsub.s32 %v4079, %v4081
  %v4083 = vrot.slane %v4075, %v4082
  %v4085 = vunpack.c.l.s4 1983009808
  %v4086 = vunpack.c.0.s8 %v4085
  %v4087 = vlaneseq
  %v4088 = vshrl.u32 %v4087, 7
  %v4089 = vsub.s32 %v4086, %v4088
  %v4090 = vrot.slane %v4076, %v4089
  %v4091 = vcombine.low %v4083, %v4090
  %v4092 = vcombine.low %v607, %v2016
  %v4093 = vcombine.low %v624, %v623
  %v4095 = vunpack.c.l.s4 1983009808
  %v4096 = vunpack.c.0.s8 %v4095
  %v4097 = vlaneseq
  %v4098 = vshrl.u32 %v4097, 7
  %v4099 = vsub.s32 %v4096, %v4098
  %v4100 = vrot.slane %v4092, %v4099
  %v4102 = vunpack.c.l.s4 1983009808
  %v4103 = vunpack.c.0.s8 %v4102
  %v4104 = vlaneseq
  %v4105 = vshrl.u32 %v4104, 7
  %v4106 = vsub.s32 %v4103, %v4105
  %v4107 = vrot.slane %v4093, %v4106
  %v4108 = vcombine.low %v4100, %v4107
  %v4109 = vcombine.low %v625, %v633
  %v4110 = vcombine.low %v641, %v640
  %v4112 = vunpack.c.l.s4 1983009808
  %v4113 = vunpack.c.0.s8 %v4112
  %v4114 = vlaneseq
  %v4115 = vshrl.u32 %v4114, 7
  %v4116 = vsub.s32 %v4113, %v4115
  %v4117 = vrot.slane %v4109, %v4116
  %v4119 = vunpack.c.l.s4 1983009808
  %v4120 = vunpack.c.0.s8 %v4119
  %v4121 = vlaneseq
  %v4122 = vshrl.u32 %v4121, 7
  %v4123 = vsub.s32 %v4120, %v4122
  %v4124 = vrot.slane %v4110, %v4123
  %v4125 = vcombine.low %v4117, %v4124
  %v4126 = vcombine.low %v2017, %v657
  %v4127 = vcombine.low %v656, %v658
  %v4129 = vunpack.c.l.s4 1983009808
  %v4130 = vunpack.c.0.s8 %v4129
  %v4131 = vlaneseq
  %v4132 = vshrl.u32 %v4131, 7
  %v4133 = vsub.s32 %v4130, %v4132
  %v4134 = vrot.slane %v4126, %v4133
  %v4136 = vunpack.c.l.s4 1983009808
  %v4137 = vunpack.c.0.s8 %v4136
  %v4138 = vlaneseq
  %v4139 = vshrl.u32 %v4138, 7
  %v4140 = vsub.s32 %v4137, %v4139
  %v4141 = vrot.slane %v4127, %v4140
  %v4142 = vcombine.low %v4134, %v4141
  %v4143 = vcombine.low %v666, %v674
  %v4144 = vcombine.low %v673, %v2018
  %v4146 = vunpack.c.l.s4 1983009808
  %v4147 = vunpack.c.0.s8 %v4146
  %v4148 = vlaneseq
  %v4149 = vshrl.u32 %v4148, 7
  %v4150 = vsub.s32 %v4147, %v4149
  %v4151 = vrot.slane %v4143, %v4150
  %v4153 = vunpack.c.l.s4 1983009808
  %v4154 = vunpack.c.0.s8 %v4153
  %v4155 = vlaneseq
  %v4156 = vshrl.u32 %v4155, 7
  %v4157 = vsub.s32 %v4154, %v4156
  %v4158 = vrot.slane %v4144, %v4157
  %v4159 = vcombine.low %v4151, %v4158
  %v4160 = vcombine.low %v690, %v689
  %v4161 = vcombine.low %v691, %v699
  %v4163 = vunpack.c.l.s4 1983009808
  %v4164 = vunpack.c.0.s8 %v4163
  %v4165 = vlaneseq
  %v4166 = vshrl.u32 %v4165, 7
  %v4167 = vsub.s32 %v4164, %v4166
  %v4168 = vrot.slane %v4160, %v4167
  %v4170 = vunpack.c.l.s4 1983009808
  %v4171 = vunpack.c.0.s8 %v4170
  %v4172 = vlaneseq
  %v4173 = vshrl.u32 %v4172, 7
  %v4174 = vsub.s32 %v4171, %v4173
  %v4175 = vrot.slane %v4161, %v4174
  %v4176 = vcombine.low %v4168, %v4175
  %v4177 = vcombine.low %v707, %v706
  %v4178 = vcombine.low %v2019, %v723
  %v4180 = vunpack.c.l.s4 1983009808
  %v4181 = vunpack.c.0.s8 %v4180
  %v4182 = vlaneseq
  %v4183 = vshrl.u32 %v4182, 7
  %v4184 = vsub.s32 %v4181, %v4183
  %v4185 = vrot.slane %v4177, %v4184
  %v4187 = vunpack.c.l.s4 1983009808
  %v4188 = vunpack.c.0.s8 %v4187
  %v4189 = vlaneseq
  %v4190 = vshrl.u32 %v4189, 7
  %v4191 = vsub.s32 %v4188, %v4190
  %v4192 = vrot.slane %v4178, %v4191
  %v4193 = vcombine.low %v4185, %v4192
  %v4194 = vcombine.low %v722, %v724
  %v4195 = vcombine.low %v732, %v740
  %v4197 = vunpack.c.l.s4 1983009808
  %v4198 = vunpack.c.0.s8 %v4197
  %v4199 = vlaneseq
  %v4200 = vshrl.u32 %v4199, 7
  %v4201 = vsub.s32 %v4198, %v4200
  %v4202 = vrot.slane %v4194, %v4201
  %v4204 = vunpack.c.l.s4 1983009808
  %v4205 = vunpack.c.0.s8 %v4204
  %v4206 = vlaneseq
  %v4207 = vshrl.u32 %v4206, 7
  %v4208 = vsub.s32 %v4205, %v4207
  %v4209 = vrot.slane %v4195, %v4208
  %v4210 = vcombine.low %v4202, %v4209
  %v4211 = vcombine.low %v739, %v2020
  %v4212 = vcombine.low %v756, %v755
  %v4214 = vunpack.c.l.s4 1983009808
  %v4215 = vunpack.c.0.s8 %v4214
  %v4216 = vlaneseq
  %v4217 = vshrl.u32 %v4216, 7
  %v4218 = vsub.s32 %v4215, %v4217
  %v4219 = vrot.slane %v4211, %v4218
  %v4221 = vunpack.c.l.s4 1983009808
  %v4222 = vunpack.c.0.s8 %v4221
  %v4223 = vlaneseq
  %v4224 = vshrl.u32 %v4223, 7
  %v4225 = vsub.s32 %v4222, %v4224
  %v4226 = vrot.slane %v4212, %v4225
  %v4227 = vcombine.low %v4219, %v4226
  %v4228 = vcombine.low %v757, %v765
  %v4229 = vcombine.low %v773, %v772
  %v4231 = vunpack.c.l.s4 1983009808
  %v4232 = vunpack.c.0.s8 %v4231
  %v4233 = vlaneseq
  %v4234 = vshrl.u32 %v4233, 7
  %v4235 = vsub.s32 %v4232, %v4234
  %v4236 = vrot.slane %v4228, %v4235
  %v4238 = vunpack.c.l.s4 1983009808
  %v4239 = vunpack.c.0.s8 %v4238
  %v4240 = vlaneseq
  %v4241 = vshrl.u32 %v4240, 7
  %v4242 = vsub.s32 %v4239, %v4241
  %v4243 = vrot.slane %v4229, %v4242
  %v4244 = vcombine.low %v4236, %v4243
  %v4245 = vcombine.low %v2021, %v789
  %v4246 = vcombine.low %v788, %v790
  %v4248 = vunpack.c.l.s4 1983009808
  %v4249 = vunpack.c.0.s8 %v4248
  %v4250 = vlaneseq
  %v4251 = vshrl.u32 %v4250, 7
  %v4252 = vsub.s32 %v4249, %v4251
  %v4253 = vrot.slane %v4245, %v4252
  %v4255 = vunpack.c.l.s4 1983009808
  %v4256 = vunpack.c.0.s8 %v4255
  %v4257 = vlaneseq
  %v4258 = vshrl.u32 %v4257, 7
  %v4259 = vsub.s32 %v4256, %v4258
  %v4260 = vrot.slane %v4246, %v4259
  %v4261 = vcombine.low %v4253, %v4260
  %v4262 = vcombine.low %v798, %v806
  %v4263 = vcombine.low %v805, %v2022
  %v4265 = vunpack.c.l.s4 1983009808
  %v4266 = vunpack.c.0.s8 %v4265
  %v4267 = vlaneseq
  %v4268 = vshrl.u32 %v4267, 7
  %v4269 = vsub.s32 %v4266, %v4268
  %v4270 = vrot.slane %v4262, %v4269
  %v4272 = vunpack.c.l.s4 1983009808
  %v4273 = vunpack.c.0.s8 %v4272
  %v4274 = vlaneseq
  %v4275 = vshrl.u32 %v4274, 7
  %v4276 = vsub.s32 %v4273, %v4275
  %v4277 = vrot.slane %v4263, %v4276
  %v4278 = vcombine.low %v4270, %v4277
  %v4279 = vcombine.low %v822, %v821
  %v4280 = vcombine.low %v823, %v831
  %v4282 = vunpack.c.l.s4 1983009808
  %v4283 = vunpack.c.0.s8 %v4282
  %v4284 = vlaneseq
  %v4285 = vshrl.u32 %v4284, 7
  %v4286 = vsub.s32 %v4283, %v4285
  %v4287 = vrot.slane %v4279, %v4286
  %v4289 = vunpack.c.l.s4 1983009808
  %v4290 = vunpack.c.0.s8 %v4289
  %v4291 = vlaneseq
  %v4292 = vshrl.u32 %v4291, 7
  %v4293 = vsub.s32 %v4290, %v4292
  %v4294 = vrot.slane %v4280, %v4293
  %v4295 = vcombine.low %v4287, %v4294
  %v4296 = vcombine.low %v839, %v838
  %v4297 = vcombine.low %v2023, %v855
  %v4299 = vunpack.c.l.s4 1983009808
  %v4300 = vunpack.c.0.s8 %v4299
  %v4301 = vlaneseq
  %v4302 = vshrl.u32 %v4301, 7
  %v4303 = vsub.s32 %v4300, %v4302
  %v4304 = vrot.slane %v4296, %v4303
  %v4306 = vunpack.c.l.s4 1983009808
  %v4307 = vunpack.c.0.s8 %v4306
  %v4308 = vlaneseq
  %v4309 = vshrl.u32 %v4308, 7
  %v4310 = vsub.s32 %v4307, %v4309
  %v4311 = vrot.slane %v4297, %v4310
  %v4312 = vcombine.low %v4304, %v4311
  %v4313 = vcombine.low %v854, %v856
  %v4314 = vcombine.low %v864, %v872
  %v4316 = vunpack.c.l.s4 1983009808
  %v4317 = vunpack.c.0.s8 %v4316
  %v4318 = vlaneseq
  %v4319 = vshrl.u32 %v4318, 7
  %v4320 = vsub.s32 %v4317, %v4319
  %v4321 = vrot.slane %v4313, %v4320
  %v4323 = vunpack.c.l.s4 1983009808
  %v4324 = vunpack.c.0.s8 %v4323
  %v4325 = vlaneseq
  %v4326 = vshrl.u32 %v4325, 7
  %v4327 = vsub.s32 %v4324, %v4326
  %v4328 = vrot.slane %v4314, %v4327
  %v4329 = vcombine.low %v4321, %v4328
  %v4330 = vcombine.low %v871, %v2024
  %v4331 = vcombine.low %v888, %v887
  %v4333 = vunpack.c.l.s4 1983009808
  %v4334 = vunpack.c.0.s8 %v4333
  %v4335 = vlaneseq
  %v4336 = vshrl.u32 %v4335, 7
  %v4337 = vsub.s32 %v4334, %v4336
  %v4338 = vrot.slane %v4330, %v4337
  %v4340 = vunpack.c.l.s4 1983009808
  %v4341 = vunpack.c.0.s8 %v4340
  %v4342 = vlaneseq
  %v4343 = vshrl.u32 %v4342, 7
  %v4344 = vsub.s32 %v4341, %v4343
  %v4345 = vrot.slane %v4331, %v4344
  %v4346 = vcombine.low %v4338, %v4345
  %v4347 = vcombine.low %v889, %v897
  %v4348 = vcombine.low %v905, %v904
  %v4350 = vunpack.c.l.s4 1983009808
  %v4351 = vunpack.c.0.s8 %v4350
  %v4352 = vlaneseq
  %v4353 = vshrl.u32 %v4352, 7
  %v4354 = vsub.s32 %v4351, %v4353
  %v4355 = vrot.slane %v4347, %v4354
  %v4357 = vunpack.c.l.s4 1983009808
  %v4358 = vunpack.c.0.s8 %v4357
  %v4359 = vlaneseq
  %v4360 = vshrl.u32 %v4359, 7
  %v4361 = vsub.s32 %v4358, %v4360
  %v4362 = vrot.slane %v4348, %v4361
  %v4363 = vcombine.low %v4355, %v4362
  %v4364 = vcombine.low %v2025, %v921
  %v4365 = vcombine.low %v920, %v922
  %v4367 = vunpack.c.l.s4 1983009808
  %v4368 = vunpack.c.0.s8 %v4367
  %v4369 = vlaneseq
  %v4370 = vshrl.u32 %v4369, 7
  %v4371 = vsub.s32 %v4368, %v4370
  %v4372 = vrot.slane %v4364, %v4371
  %v4374 = vunpack.c.l.s4 1983009808
  %v4375 = vunpack.c.0.s8 %v4374
  %v4376 = vlaneseq
  %v4377 = vshrl.u32 %v4376, 7
  %v4378 = vsub.s32 %v4375, %v4377
  %v4379 = vrot.slane %v4365, %v4378
  %v4380 = vcombine.low %v4372, %v4379
  %v4381 = vcombine.low %v930, %v938
  %v4382 = vcombine.low %v937, %v2026
  %v4384 = vunpack.c.l.s4 1983009808
  %v4385 = vunpack.c.0.s8 %v4384
  %v4386 = vlaneseq
  %v4387 = vshrl.u32 %v4386, 7
  %v4388 = vsub.s32 %v4385, %v4387
  %v4389 = vrot.slane %v4381, %v4388
  %v4391 = vunpack.c.l.s4 1983009808
  %v4392 = vunpack.c.0.s8 %v4391
  %v4393 = vlaneseq
  %v4394 = vshrl.u32 %v4393, 7
  %v4395 = vsub.s32 %v4392, %v4394
  %v4396 = vrot.slane %v4382, %v4395
  %v4397 = vcombine.low %v4389, %v4396
  %v4398 = vcombine.low %v954, %v953
  %v4399 = vcombine.low %v955, %v963
  %v4401 = vunpack.c.l.s4 1983009808
  %v4402 = vunpack.c.0.s8 %v4401
  %v4403 = vlaneseq
  %v4404 = vshrl.u32 %v4403, 7
  %v4405 = vsub.s32 %v4402, %v4404
  %v4406 = vrot.slane %v4398, %v4405
  %v4408 = vunpack.c.l.s4 1983009808
  %v4409 = vunpack.c.0.s8 %v4408
  %v4410 = vlaneseq
  %v4411 = vshrl.u32 %v4410, 7
  %v4412 = vsub.s32 %v4409, %v4411
  %v4413 = vrot.slane %v4399, %v4412
  %v4414 = vcombine.low %v4406, %v4413
  %v4415 = vcombine.low %v971, %v970
  %v4416 = vcombine.low %v2027, %v987
  %v4418 = vunpack.c.l.s4 1983009808
  %v4419 = vunpack.c.0.s8 %v4418
  %v4420 = vlaneseq
  %v4421 = vshrl.u32 %v4420, 7
  %v4422 = vsub.s32 %v4419, %v4421
  %v4423 = vrot.slane %v4415, %v4422
  %v4425 = vunpack.c.l.s4 1983009808
  %v4426 = vunpack.c.0.s8 %v4425
  %v4427 = vlaneseq
  %v4428 = vshrl.u32 %v4427, 7
  %v4429 = vsub.s32 %v4426, %v4428
  %v4430 = vrot.slane %v4416, %v4429
  %v4431 = vcombine.low %v4423, %v4430
  %v4432 = vcombine.low %v986, %v988
  %v4433 = vcombine.low %v996, %v1004
  %v4435 = vunpack.c.l.s4 1983009808
  %v4436 = vunpack.c.0.s8 %v4435
  %v4437 = vlaneseq
  %v4438 = vshrl.u32 %v4437, 7
  %v4439 = vsub.s32 %v4436, %v4438
  %v4440 = vrot.slane %v4432, %v4439
  %v4442 = vunpack.c.l.s4 1983009808
  %v4443 = vunpack.c.0.s8 %v4442
  %v4444 = vlaneseq
  %v4445 = vshrl.u32 %v4444, 7
  %v4446 = vsub.s32 %v4443, %v4445
  %v4447 = vrot.slane %v4433, %v4446
  %v4448 = vcombine.low %v4440, %v4447
  %v4449 = vcombine.low %v1003, %v2028
  %v4450 = vcombine.low %v1020, %v1019
  %v4452 = vunpack.c.l.s4 1983009808
  %v4453 = vunpack.c.0.s8 %v4452
  %v4454 = vlaneseq
  %v4455 = vshrl.u32 %v4454, 7
  %v4456 = vsub.s32 %v4453, %v4455
  %v4457 = vrot.slane %v4449, %v4456
  %v4459 = vunpack.c.l.s4 1983009808
  %v4460 = vunpack.c.0.s8 %v4459
  %v4461 = vlaneseq
  %v4462 = vshrl.u32 %v4461, 7
  %v4463 = vsub.s32 %v4460, %v4462
  %v4464 = vrot.slane %v4450, %v4463
  %v4465 = vcombine.low %v4457, %v4464
  %v4466 = vcombine.low %v1021, %v1029
  %v4467 = vcombine.low %v1037, %v1036
  %v4469 = vunpack.c.l.s4 1983009808
  %v4470 = vunpack.c.0.s8 %v4469
  %v4471 = vlaneseq
  %v4472 = vshrl.u32 %v4471, 7
  %v4473 = vsub.s32 %v4470, %v4472
  %v4474 = vrot.slane %v4466, %v4473
  %v4476 = vunpack.c.l.s4 1983009808
  %v4477 = vunpack.c.0.s8 %v4476
  %v4478 = vlaneseq
  %v4479 = vshrl.u32 %v4478, 7
  %v4480 = vsub.s32 %v4477, %v4479
  %v4481 = vrot.slane %v4467, %v4480
  %v4482 = vcombine.low %v4474, %v4481
  %v4483 = vcombine.low %v2029, %v1053
  %v4484 = vcombine.low %v1052, %v1054
  %v4486 = vunpack.c.l.s4 1983009808
  %v4487 = vunpack.c.0.s8 %v4486
  %v4488 = vlaneseq
  %v4489 = vshrl.u32 %v4488, 7
  %v4490 = vsub.s32 %v4487, %v4489
  %v4491 = vrot.slane %v4483, %v4490
  %v4493 = vunpack.c.l.s4 1983009808
  %v4494 = vunpack.c.0.s8 %v4493
  %v4495 = vlaneseq
  %v4496 = vshrl.u32 %v4495, 7
  %v4497 = vsub.s32 %v4494, %v4496
  %v4498 = vrot.slane %v4484, %v4497
  %v4499 = vcombine.low %v4491, %v4498
  %v4500 = vcombine.low %v1062, %v1070
  %v4501 = vcombine.low %v1069, %v2030
  %v4503 = vunpack.c.l.s4 1983009808
  %v4504 = vunpack.c.0.s8 %v4503
  %v4505 = vlaneseq
  %v4506 = vshrl.u32 %v4505, 7
  %v4507 = vsub.s32 %v4504, %v4506
  %v4508 = vrot.slane %v4500, %v4507
  %v4510 = vunpack.c.l.s4 1983009808
  %v4511 = vunpack.c.0.s8 %v4510
  %v4512 = vlaneseq
  %v4513 = vshrl.u32 %v4512, 7
  %v4514 = vsub.s32 %v4511, %v4513
  %v4515 = vrot.slane %v4501, %v4514
  %v4516 = vcombine.low %v4508, %v4515
  %4517 = vrot.lane.b32.xlu0 %v3700, 8
  %v4518 = vpop.permute.xlu0 %4517
  %4519 = vrot.lane.b32.xlu0 %v3717, 8
  %v4520 = vpop.permute.xlu0 %4519
  %4521 = vrot.lane.b32.xlu0 %v3734, 8
  %v4522 = vpop.permute.xlu0 %4521
  %4523 = vrot.lane.b32.xlu0 %v3751, 8
  %v4524 = vpop.permute.xlu0 %4523
  %4525 = vrot.lane.b32.xlu0 %v3768, 8
  %v4526 = vpop.permute.xlu0 %4525
  %4527 = vrot.lane.b32.xlu0 %v3785, 8
  %v4528 = vpop.permute.xlu0 %4527
  %4529 = vrot.lane.b32.xlu0 %v3802, 8
  %v4530 = vpop.permute.xlu0 %4529
  %4531 = vrot.lane.b32.xlu0 %v3819, 8
  %v4532 = vpop.permute.xlu0 %4531
  %4533 = vrot.lane.b32.xlu0 %v3836, 8
  %v4534 = vpop.permute.xlu0 %4533
  %4535 = vrot.lane.b32.xlu0 %v3853, 8
  %v4536 = vpop.permute.xlu0 %4535
  %4537 = vrot.lane.b32.xlu0 %v3870, 8
  %v4538 = vpop.permute.xlu0 %4537
  %4539 = vrot.lane.b32.xlu0 %v3887, 8
  %v4540 = vpop.permute.xlu0 %4539
  %4541 = vrot.lane.b32.xlu0 %v3904, 8
  %v4542 = vpop.permute.xlu0 %4541
  %4543 = vrot.lane.b32.xlu0 %v3921, 8
  %v4544 = vpop.permute.xlu0 %4543
  %4545 = vrot.lane.b32.xlu0 %v3938, 8
  %v4546 = vpop.permute.xlu0 %4545
  %4547 = vrot.lane.b32.xlu0 %v3955, 8
  %v4548 = vpop.permute.xlu0 %4547
  %4549 = vrot.lane.b32.xlu0 %v3972, 8
  %v4550 = vpop.permute.xlu0 %4549
  %4551 = vrot.lane.b32.xlu0 %v3989, 8
  %v4552 = vpop.permute.xlu0 %4551
  %4553 = vrot.lane.b32.xlu0 %v4006, 8
  %v4554 = vpop.permute.xlu0 %4553
  %4555 = vrot.lane.b32.xlu0 %v4023, 8
  %v4556 = vpop.permute.xlu0 %4555
  %4557 = vrot.lane.b32.xlu0 %v4040, 8
  %v4558 = vpop.permute.xlu0 %4557
  %4559 = vrot.lane.b32.xlu0 %v4057, 8
  %v4560 = vpop.permute.xlu0 %4559
  %4561 = vrot.lane.b32.xlu0 %v4074, 8
  %v4562 = vpop.permute.xlu0 %4561
  %4563 = vrot.lane.b32.xlu0 %v4091, 8
  %v4564 = vpop.permute.xlu0 %4563
  %4565 = vrot.lane.b32.xlu0 %v4108, 8
  %v4566 = vpop.permute.xlu0 %4565
  %4567 = vrot.lane.b32.xlu0 %v4125, 8
  %v4568 = vpop.permute.xlu0 %4567
  %4569 = vrot.lane.b32.xlu0 %v4142, 8
  %v4570 = vpop.permute.xlu0 %4569
  %4571 = vrot.lane.b32.xlu0 %v4159, 8
  %v4572 = vpop.permute.xlu0 %4571
  %4573 = vrot.lane.b32.xlu0 %v4176, 8
  %v4574 = vpop.permute.xlu0 %4573
  %4575 = vrot.lane.b32.xlu0 %v4193, 8
  %v4576 = vpop.permute.xlu0 %4575
  %4577 = vrot.lane.b32.xlu0 %v4210, 8
  %v4578 = vpop.permute.xlu0 %4577
  %4579 = vrot.lane.b32.xlu0 %v4227, 8
  %v4580 = vpop.permute.xlu0 %4579
  %4581 = vrot.lane.b32.xlu0 %v4244, 8
  %v4582 = vpop.permute.xlu0 %4581
  %4583 = vrot.lane.b32.xlu0 %v4261, 8
  %v4584 = vpop.permute.xlu0 %4583
  %4585 = vrot.lane.b32.xlu0 %v4278, 8
  %v4586 = vpop.permute.xlu0 %4585
  %4587 = vrot.lane.b32.xlu0 %v4295, 8
  %v4588 = vpop.permute.xlu0 %4587
  %4589 = vrot.lane.b32.xlu0 %v4312, 8
  %v4590 = vpop.permute.xlu0 %4589
  %4591 = vrot.lane.b32.xlu0 %v4329, 8
  %v4592 = vpop.permute.xlu0 %4591
  %4593 = vrot.lane.b32.xlu0 %v4346, 8
  %v4594 = vpop.permute.xlu0 %4593
  %4595 = vrot.lane.b32.xlu0 %v4363, 8
  %v4596 = vpop.permute.xlu0 %4595
  %4597 = vrot.lane.b32.xlu0 %v4380, 8
  %v4598 = vpop.permute.xlu0 %4597
  %4599 = vrot.lane.b32.xlu0 %v4397, 8
  %v4600 = vpop.permute.xlu0 %4599
  %4601 = vrot.lane.b32.xlu0 %v4414, 8
  %v4602 = vpop.permute.xlu0 %4601
  %4603 = vrot.lane.b32.xlu0 %v4431, 8
  %v4604 = vpop.permute.xlu0 %4603
  %4605 = vrot.lane.b32.xlu0 %v4448, 8
  %v4606 = vpop.permute.xlu0 %4605
  %4607 = vrot.lane.b32.xlu0 %v4465, 8
  %v4608 = vpop.permute.xlu0 %4607
  %4609 = vrot.lane.b32.xlu0 %v4482, 8
  %v4610 = vpop.permute.xlu0 %4609
  %4611 = vrot.lane.b32.xlu0 %v4499, 8
  %v4612 = vpop.permute.xlu0 %4611
  %4613 = vrot.lane.b32.xlu0 %v4516, 8
  %v4614 = vpop.permute.xlu0 %4613
  %vm4664 = vcmask 97344
  %4665 = vst.msk [vmem:[#allocation2] sm:$0xff] %vm4664, %v4518
  %4666 = vst.msk [vmem:[#allocation2 + $0x8] sm:$0xff] %vm4664, %v4520
  %4667 = vst.msk [vmem:[#allocation2 + $0x10] sm:$0xff] %vm4664, %v4522
  %4668 = vst.msk [vmem:[#allocation2 + $0x18] sm:$0xff] %vm4664, %v4524
  %4669 = vst.msk [vmem:[#allocation2 + $0x20] sm:$0xff] %vm4664, %v4526
  %4670 = vst.msk [vmem:[#allocation2 + $0x28] sm:$0xff] %vm4664, %v4528
  %4671 = vst.msk [vmem:[#allocation2 + $0x30] sm:$0xff] %vm4664, %v4530
  %4672 = vst.msk [vmem:[#allocation2 + $0x38] sm:$0xff] %vm4664, %v4532
  %4673 = vst.msk [vmem:[#allocation2 + $0x40] sm:$0xff] %vm4664, %v4534
  %4674 = vst.msk [vmem:[#allocation2 + $0x48] sm:$0xff] %vm4664, %v4536
  %4675 = vst.msk [vmem:[#allocation2 + $0x50] sm:$0xff] %vm4664, %v4538
  %4676 = vst.msk [vmem:[#allocation2 + $0x58] sm:$0xff] %vm4664, %v4540
  %4677 = vst.msk [vmem:[#allocation2 + $0x60] sm:$0xff] %vm4664, %v4542
  %4678 = vst.msk [vmem:[#allocation2 + $0x68] sm:$0xff] %vm4664, %v4544
  %4679 = vst.msk [vmem:[#allocation2 + $0x70] sm:$0xff] %vm4664, %v4546
  %4680 = vst.msk [vmem:[#allocation2 + $0x78] sm:$0xff] %vm4664, %v4548
  %4681 = vst.msk [vmem:[#allocation2 + $0x80] sm:$0xff] %vm4664, %v4550
  %4682 = vst.msk [vmem:[#allocation2 + $0x88] sm:$0xff] %vm4664, %v4552
  %4683 = vst.msk [vmem:[#allocation2 + $0x90] sm:$0xff] %vm4664, %v4554
  %4684 = vst.msk [vmem:[#allocation2 + $0x98] sm:$0xff] %vm4664, %v4556
  %4685 = vst.msk [vmem:[#allocation2 + $0xa0] sm:$0xff] %vm4664, %v4558
  %4686 = vst.msk [vmem:[#allocation2 + $0xa8] sm:$0xff] %vm4664, %v4560
  %4687 = vst.msk [vmem:[#allocation2 + $0xb0] sm:$0xff] %vm4664, %v4562
  %4688 = vst.msk [vmem:[#allocation2 + $0xb8] sm:$0xff] %vm4664, %v4564
  %4689 = vst.msk [vmem:[#allocation2 + $0xc0] sm:$0xff] %vm4664, %v4566
  %4690 = vst.msk [vmem:[#allocation2 + $0xc8] sm:$0xff] %vm4664, %v4568
  %4691 = vst.msk [vmem:[#allocation2 + $0xd0] sm:$0xff] %vm4664, %v4570
  %4692 = vst.msk [vmem:[#allocation2 + $0xd8] sm:$0xff] %vm4664, %v4572
  %4693 = vst.msk [vmem:[#allocation2 + $0xe0] sm:$0xff] %vm4664, %v4574
  %4694 = vst.msk [vmem:[#allocation2 + $0xe8] sm:$0xff] %vm4664, %v4576
  %4695 = vst.msk [vmem:[#allocation2 + $0xf0] sm:$0xff] %vm4664, %v4578
  %4696 = vst.msk [vmem:[#allocation2 + $0xf8] sm:$0xff] %vm4664, %v4580
  %4697 = vst.msk [vmem:[#allocation2 + $0x100] sm:$0xff] %vm4664, %v4582
  %4698 = vst.msk [vmem:[#allocation2 + $0x108] sm:$0xff] %vm4664, %v4584
  %4699 = vst.msk [vmem:[#allocation2 + $0x110] sm:$0xff] %vm4664, %v4586
  %4700 = vst.msk [vmem:[#allocation2 + $0x118] sm:$0xff] %vm4664, %v4588
  %4701 = vst.msk [vmem:[#allocation2 + $0x120] sm:$0xff] %vm4664, %v4590
  %4702 = vst.msk [vmem:[#allocation2 + $0x128] sm:$0xff] %vm4664, %v4592
  %4703 = vst.msk [vmem:[#allocation2 + $0x130] sm:$0xff] %vm4664, %v4594
  %4704 = vst.msk [vmem:[#allocation2 + $0x138] sm:$0xff] %vm4664, %v4596
  %4705 = vst.msk [vmem:[#allocation2 + $0x140] sm:$0xff] %vm4664, %v4598
  %4706 = vst.msk [vmem:[#allocation2 + $0x148] sm:$0xff] %vm4664, %v4600
  %4707 = vst.msk [vmem:[#allocation2 + $0x150] sm:$0xff] %vm4664, %v4602
  %4708 = vst.msk [vmem:[#allocation2 + $0x158] sm:$0xff] %vm4664, %v4604
  %4709 = vst.msk [vmem:[#allocation2 + $0x160] sm:$0xff] %vm4664, %v4606
  %4710 = vst.msk [vmem:[#allocation2 + $0x168] sm:$0xff] %vm4664, %v4608
  %4711 = vst.msk [vmem:[#allocation2 + $0x170] sm:$0xff] %vm4664, %v4610
  %4712 = vst.msk [vmem:[#allocation2 + $0x178] sm:$0xff] %vm4664, %v4612
  %4713 = vst.msk [vmem:[#allocation2 + $0x180] sm:$0xff] %vm4664, %v4614
  %v4718 = vcombine.high %v55, %v55
  %v4720 = vunpack.c.l.s4 1983009808
  %v4721 = vunpack.c.0.s8 %v4720
  %v4722 = vlaneseq
  %v4723 = vshrl.u32 %v4722, 7
  %v4724 = vsub.s32 %v4721, %v4723
  %v4725 = vrot.slane %v55, %v4724
  %v4727 = vunpack.c.l.s4 1983009808
  %v4728 = vunpack.c.0.s8 %v4727
  %v4729 = vlaneseq
  %v4730 = vshrl.u32 %v4729, 7
  %v4731 = vsub.s32 %v4728, %v4730
  %v4732 = vrot.slane %v4718, %v4731
  %v4733 = vcombine.high %v4725, %v4725
  %v4734 = vcombine.high %v4732, %v4732
  %v4735 = vcombine.high %v56, %v56
  %v4737 = vunpack.c.l.s4 1983009808
  %v4738 = vunpack.c.0.s8 %v4737
  %v4739 = vlaneseq
  %v4740 = vshrl.u32 %v4739, 7
  %v4741 = vsub.s32 %v4738, %v4740
  %v4742 = vrot.slane %v56, %v4741
  %v4744 = vunpack.c.l.s4 1983009808
  %v4745 = vunpack.c.0.s8 %v4744
  %v4746 = vlaneseq
  %v4747 = vshrl.u32 %v4746, 7
  %v4748 = vsub.s32 %v4745, %v4747
  %v4749 = vrot.slane %v4735, %v4748
  %v4750 = vcombine.high %v4742, %v4742
  %v4751 = vcombine.high %v87, %v87
  %v4753 = vunpack.c.l.s4 1983009808
  %v4754 = vunpack.c.0.s8 %v4753
  %v4755 = vlaneseq
  %v4756 = vshrl.u32 %v4755, 7
  %v4757 = vsub.s32 %v4754, %v4756
  %v4758 = vrot.slane %v87, %v4757
  %v4760 = vunpack.c.l.s4 1983009808
  %v4761 = vunpack.c.0.s8 %v4760
  %v4762 = vlaneseq
  %v4763 = vshrl.u32 %v4762, 7
  %v4764 = vsub.s32 %v4761, %v4763
  %v4765 = vrot.slane %v4751, %v4764
  %v4766 = vcombine.high %v4758, %v4758
  %v4767 = vcombine.high %v4765, %v4765
  %v4768 = vcombine.high %v88, %v88
  %v4770 = vunpack.c.l.s4 1983009808
  %v4771 = vunpack.c.0.s8 %v4770
  %v4772 = vlaneseq
  %v4773 = vshrl.u32 %v4772, 7
  %v4774 = vsub.s32 %v4771, %v4773
  %v4775 = vrot.slane %v88, %v4774
  %v4777 = vunpack.c.l.s4 1983009808
  %v4778 = vunpack.c.0.s8 %v4777
  %v4779 = vlaneseq
  %v4780 = vshrl.u32 %v4779, 7
  %v4781 = vsub.s32 %v4778, %v4780
  %v4782 = vrot.slane %v4768, %v4781
  %v4783 = vcombine.high %v4775, %v4775
  %v4784 = vcombine.low %v187, %v195
  %v4786 = vunpack.c.l.s4 1983009808
  %v4787 = vunpack.c.0.s8 %v4786
  %v4788 = vlaneseq
  %v4789 = vshrl.u32 %v4788, 7
  %v4790 = vsub.s32 %v4787, %v4789
  %v4791 = vrot.slane %v4784, %v4790
  %v4792 = vcombine.low %v4791, %v3726
  %v4793 = vcombine.low %v211, %v220
  %v4795 = vunpack.c.l.s4 1983009808
  %v4796 = vunpack.c.0.s8 %v4795
  %v4797 = vlaneseq
  %v4798 = vshrl.u32 %v4797, 7
  %v4799 = vsub.s32 %v4796, %v4798
  %v4800 = vrot.slane %v4793, %v4799
  %v4801 = vcombine.low %v3733, %v4800
  %v4802 = vcombine.low %v3750, %v3760
  %v4803 = vcombine.low %v253, %v261
  %v4805 = vunpack.c.l.s4 1983009808
  %v4806 = vunpack.c.0.s8 %v4805
  %v4807 = vlaneseq
  %v4808 = vshrl.u32 %v4807, 7
  %v4809 = vsub.s32 %v4806, %v4808
  %v4810 = vrot.slane %v4803, %v4809
  %v4811 = vcombine.low %v3767, %v4810
  %v4812 = vcombine.low %v3784, %v3794
  %v4813 = vcombine.low %v277, %v286
  %v4815 = vunpack.c.l.s4 1983009808
  %v4816 = vunpack.c.0.s8 %v4815
  %v4817 = vlaneseq
  %v4818 = vshrl.u32 %v4817, 7
  %v4819 = vsub.s32 %v4816, %v4818
  %v4820 = vrot.slane %v4813, %v4819
  %v4821 = vcombine.low %v4820, %v3811
  %v4822 = vcombine.low %v3818, %v3828
  %v4823 = vcombine.low %v319, %v327
  %v4825 = vunpack.c.l.s4 1983009808
  %v4826 = vunpack.c.0.s8 %v4825
  %v4827 = vlaneseq
  %v4828 = vshrl.u32 %v4827, 7
  %v4829 = vsub.s32 %v4826, %v4828
  %v4830 = vrot.slane %v4823, %v4829
  %v4831 = vcombine.low %v4830, %v3845
  %v4832 = vcombine.low %v343, %v352
  %v4834 = vunpack.c.l.s4 1983009808
  %v4835 = vunpack.c.0.s8 %v4834
  %v4836 = vlaneseq
  %v4837 = vshrl.u32 %v4836, 7
  %v4838 = vsub.s32 %v4835, %v4837
  %v4839 = vrot.slane %v4832, %v4838
  %v4840 = vcombine.low %v3852, %v4839
  %v4841 = vcombine.low %v3869, %v3879
  %v4842 = vcombine.low %v385, %v393
  %v4844 = vunpack.c.l.s4 1983009808
  %v4845 = vunpack.c.0.s8 %v4844
  %v4846 = vlaneseq
  %v4847 = vshrl.u32 %v4846, 7
  %v4848 = vsub.s32 %v4845, %v4847
  %v4849 = vrot.slane %v4842, %v4848
  %v4850 = vcombine.low %v3886, %v4849
  %v4851 = vcombine.low %v3903, %v3913
  %v4852 = vcombine.low %v409, %v418
  %v4854 = vunpack.c.l.s4 1983009808
  %v4855 = vunpack.c.0.s8 %v4854
  %v4856 = vlaneseq
  %v4857 = vshrl.u32 %v4856, 7
  %v4858 = vsub.s32 %v4855, %v4857
  %v4859 = vrot.slane %v4852, %v4858
  %v4860 = vcombine.low %v4859, %v3930
  %v4861 = vcombine.low %v3937, %v3947
  %v4862 = vcombine.low %v451, %v459
  %v4864 = vunpack.c.l.s4 1983009808
  %v4865 = vunpack.c.0.s8 %v4864
  %v4866 = vlaneseq
  %v4867 = vshrl.u32 %v4866, 7
  %v4868 = vsub.s32 %v4865, %v4867
  %v4869 = vrot.slane %v4862, %v4868
  %v4870 = vcombine.low %v4869, %v3964
  %v4871 = vcombine.low %v475, %v484
  %v4873 = vunpack.c.l.s4 1983009808
  %v4874 = vunpack.c.0.s8 %v4873
  %v4875 = vlaneseq
  %v4876 = vshrl.u32 %v4875, 7
  %v4877 = vsub.s32 %v4874, %v4876
  %v4878 = vrot.slane %v4871, %v4877
  %v4879 = vcombine.low %v3971, %v4878
  %v4880 = vcombine.low %v3988, %v3998
  %v4881 = vcombine.low %v517, %v525
  %v4883 = vunpack.c.l.s4 1983009808
  %v4884 = vunpack.c.0.s8 %v4883
  %v4885 = vlaneseq
  %v4886 = vshrl.u32 %v4885, 7
  %v4887 = vsub.s32 %v4884, %v4886
  %v4888 = vrot.slane %v4881, %v4887
  %v4889 = vcombine.low %v4005, %v4888
  %v4890 = vcombine.low %v4022, %v4032
  %v4891 = vcombine.low %v541, %v550
  %v4893 = vunpack.c.l.s4 1983009808
  %v4894 = vunpack.c.0.s8 %v4893
  %v4895 = vlaneseq
  %v4896 = vshrl.u32 %v4895, 7
  %v4897 = vsub.s32 %v4894, %v4896
  %v4898 = vrot.slane %v4891, %v4897
  %v4899 = vcombine.low %v4898, %v4049
  %v4900 = vcombine.low %v4056, %v4066
  %v4901 = vcombine.low %v583, %v591
  %v4903 = vunpack.c.l.s4 1983009808
  %v4904 = vunpack.c.0.s8 %v4903
  %v4905 = vlaneseq
  %v4906 = vshrl.u32 %v4905, 7
  %v4907 = vsub.s32 %v4904, %v4906
  %v4908 = vrot.slane %v4901, %v4907
  %v4909 = vcombine.low %v4908, %v4083
  %v4910 = vcombine.low %v607, %v4725
  %v4912 = vunpack.c.l.s4 1983009808
  %v4913 = vunpack.c.0.s8 %v4912
  %v4914 = vlaneseq
  %v4915 = vshrl.u32 %v4914, 7
  %v4916 = vsub.s32 %v4913, %v4915
  %v4917 = vrot.slane %v4910, %v4916
  %v4918 = vcombine.low %v4090, %v4917
  %v4919 = vcombine.low %v4733, %v4732
  %v4920 = vcombine.low %v4734, %v4742
  %v4922 = vunpack.c.l.s4 1983009808
  %v4923 = vunpack.c.0.s8 %v4922
  %v4924 = vlaneseq
  %v4925 = vshrl.u32 %v4924, 7
  %v4926 = vsub.s32 %v4923, %v4925
  %v4927 = vrot.slane %v4919, %v4926
  %v4929 = vunpack.c.l.s4 1983009808
  %v4930 = vunpack.c.0.s8 %v4929
  %v4931 = vlaneseq
  %v4932 = vshrl.u32 %v4931, 7
  %v4933 = vsub.s32 %v4930, %v4932
  %v4934 = vrot.slane %v4920, %v4933
  %v4935 = vcombine.low %v4927, %v4934
  %v4936 = vcombine.low %v4750, %v4749
  %v4937 = vcombine.low %v649, %v657
  %v4939 = vunpack.c.l.s4 1983009808
  %v4940 = vunpack.c.0.s8 %v4939
  %v4941 = vlaneseq
  %v4942 = vshrl.u32 %v4941, 7
  %v4943 = vsub.s32 %v4940, %v4942
  %v4944 = vrot.slane %v4936, %v4943
  %v4946 = vunpack.c.l.s4 1983009808
  %v4947 = vunpack.c.0.s8 %v4946
  %v4948 = vlaneseq
  %v4949 = vshrl.u32 %v4948, 7
  %v4950 = vsub.s32 %v4947, %v4949
  %v4951 = vrot.slane %v4937, %v4950
  %v4952 = vcombine.low %v4944, %v4951
  %v4953 = vcombine.low %v4141, %v4151
  %v4954 = vcombine.low %v673, %v682
  %v4956 = vunpack.c.l.s4 1983009808
  %v4957 = vunpack.c.0.s8 %v4956
  %v4958 = vlaneseq
  %v4959 = vshrl.u32 %v4958, 7
  %v4960 = vsub.s32 %v4957, %v4959
  %v4961 = vrot.slane %v4954, %v4960
  %v4962 = vcombine.low %v4961, %v4168
  %v4963 = vcombine.low %v4175, %v4185
  %v4964 = vcombine.low %v715, %v723
  %v4966 = vunpack.c.l.s4 1983009808
  %v4967 = vunpack.c.0.s8 %v4966
  %v4968 = vlaneseq
  %v4969 = vshrl.u32 %v4968, 7
  %v4970 = vsub.s32 %v4967, %v4969
  %v4971 = vrot.slane %v4964, %v4970
  %v4972 = vcombine.low %v4971, %v4202
  %v4973 = vcombine.low %v739, %v748
  %v4975 = vunpack.c.l.s4 1983009808
  %v4976 = vunpack.c.0.s8 %v4975
  %v4977 = vlaneseq
  %v4978 = vshrl.u32 %v4977, 7
  %v4979 = vsub.s32 %v4976, %v4978
  %v4980 = vrot.slane %v4973, %v4979
  %v4981 = vcombine.low %v4209, %v4980
  %v4982 = vcombine.low %v4226, %v4236
  %v4983 = vcombine.low %v781, %v789
  %v4985 = vunpack.c.l.s4 1983009808
  %v4986 = vunpack.c.0.s8 %v4985
  %v4987 = vlaneseq
  %v4988 = vshrl.u32 %v4987, 7
  %v4989 = vsub.s32 %v4986, %v4988
  %v4990 = vrot.slane %v4983, %v4989
  %v4991 = vcombine.low %v4243, %v4990
  %v4992 = vcombine.low %v4260, %v4270
  %v4993 = vcombine.low %v805, %v814
  %v4995 = vunpack.c.l.s4 1983009808
  %v4996 = vunpack.c.0.s8 %v4995
  %v4997 = vlaneseq
  %v4998 = vshrl.u32 %v4997, 7
  %v4999 = vsub.s32 %v4996, %v4998
  %v5000 = vrot.slane %v4993, %v4999
  %v5001 = vcombine.low %v5000, %v4287
  %v5002 = vcombine.low %v4294, %v4304
  %v5003 = vcombine.low %v847, %v855
  %v5005 = vunpack.c.l.s4 1983009808
  %v5006 = vunpack.c.0.s8 %v5005
  %v5007 = vlaneseq
  %v5008 = vshrl.u32 %v5007, 7
  %v5009 = vsub.s32 %v5006, %v5008
  %v5010 = vrot.slane %v5003, %v5009
  %v5011 = vcombine.low %v5010, %v4321
  %v5012 = vcombine.low %v871, %v880
  %v5014 = vunpack.c.l.s4 1983009808
  %v5015 = vunpack.c.0.s8 %v5014
  %v5016 = vlaneseq
  %v5017 = vshrl.u32 %v5016, 7
  %v5018 = vsub.s32 %v5015, %v5017
  %v5019 = vrot.slane %v5012, %v5018
  %v5020 = vcombine.low %v4328, %v5019
  %v5021 = vcombine.low %v4345, %v4355
  %v5022 = vcombine.low %v913, %v921
  %v5024 = vunpack.c.l.s4 1983009808
  %v5025 = vunpack.c.0.s8 %v5024
  %v5026 = vlaneseq
  %v5027 = vshrl.u32 %v5026, 7
  %v5028 = vsub.s32 %v5025, %v5027
  %v5029 = vrot.slane %v5022, %v5028
  %v5030 = vcombine.low %v4362, %v5029
  %v5031 = vcombine.low %v4379, %v4389
  %v5032 = vcombine.low %v937, %v946
  %v5034 = vunpack.c.l.s4 1983009808
  %v5035 = vunpack.c.0.s8 %v5034
  %v5036 = vlaneseq
  %v5037 = vshrl.u32 %v5036, 7
  %v5038 = vsub.s32 %v5035, %v5037
  %v5039 = vrot.slane %v5032, %v5038
  %v5040 = vcombine.low %v5039, %v4406
  %v5041 = vcombine.low %v4413, %v4423
  %v5042 = vcombine.low %v979, %v987
  %v5044 = vunpack.c.l.s4 1983009808
  %v5045 = vunpack.c.0.s8 %v5044
  %v5046 = vlaneseq
  %v5047 = vshrl.u32 %v5046, 7
  %v5048 = vsub.s32 %v5045, %v5047
  %v5049 = vrot.slane %v5042, %v5048
  %v5050 = vcombine.low %v5049, %v4440
  %v5051 = vcombine.low %v1003, %v1012
  %v5053 = vunpack.c.l.s4 1983009808
  %v5054 = vunpack.c.0.s8 %v5053
  %v5055 = vlaneseq
  %v5056 = vshrl.u32 %v5055, 7
  %v5057 = vsub.s32 %v5054, %v5056
  %v5058 = vrot.slane %v5051, %v5057
  %v5059 = vcombine.low %v4447, %v5058
  %v5060 = vcombine.low %v4464, %v4474
  %v5061 = vcombine.low %v1045, %v1053
  %v5063 = vunpack.c.l.s4 1983009808
  %v5064 = vunpack.c.0.s8 %v5063
  %v5065 = vlaneseq
  %v5066 = vshrl.u32 %v5065, 7
  %v5067 = vsub.s32 %v5064, %v5066
  %v5068 = vrot.slane %v5061, %v5067
  %v5069 = vcombine.low %v4481, %v5068
  %v5070 = vcombine.low %v4498, %v4508
  %v5071 = vcombine.low %v1069, %v4758
  %v5072 = vcombine.low %v4766, %v4765
  %v5074 = vunpack.c.l.s4 1983009808
  %v5075 = vunpack.c.0.s8 %v5074
  %v5076 = vlaneseq
  %v5077 = vshrl.u32 %v5076, 7
  %v5078 = vsub.s32 %v5075, %v5077
  %v5079 = vrot.slane %v5071, %v5078
  %v5081 = vunpack.c.l.s4 1983009808
  %v5082 = vunpack.c.0.s8 %v5081
  %v5083 = vlaneseq
  %v5084 = vshrl.u32 %v5083, 7
  %v5085 = vsub.s32 %v5082, %v5084
  %v5086 = vrot.slane %v5072, %v5085
  %v5087 = vcombine.low %v5079, %v5086
  %v5088 = vcombine.low %v4767, %v4775
  %v5089 = vcombine.low %v4783, %v4782
  %v5091 = vunpack.c.l.s4 1983009808
  %v5092 = vunpack.c.0.s8 %v5091
  %v5093 = vlaneseq
  %v5094 = vshrl.u32 %v5093, 7
  %v5095 = vsub.s32 %v5092, %v5094
  %v5096 = vrot.slane %v5088, %v5095
  %v5098 = vunpack.c.l.s4 1983009808
  %v5099 = vunpack.c.0.s8 %v5098
  %v5100 = vlaneseq
  %v5101 = vshrl.u32 %v5100, 7
  %v5102 = vsub.s32 %v5099, %v5101
  %v5103 = vrot.slane %v5089, %v5102
  %v5104 = vcombine.low %v5096, %v5103
  %5105 = vrot.lane.b32.xlu0 %v4792, 12
  %v5106 = vpop.permute.xlu0 %5105
  %5107 = vrot.lane.b32.xlu0 %v4801, 12
  %v5108 = vpop.permute.xlu0 %5107
  %5109 = vrot.lane.b32.xlu0 %v4802, 12
  %v5110 = vpop.permute.xlu0 %5109
  %5111 = vrot.lane.b32.xlu0 %v4811, 12
  %v5112 = vpop.permute.xlu0 %5111
  %5113 = vrot.lane.b32.xlu0 %v4812, 12
  %v5114 = vpop.permute.xlu0 %5113
  %5115 = vrot.lane.b32.xlu0 %v4821, 12
  %v5116 = vpop.permute.xlu0 %5115
  %5117 = vrot.lane.b32.xlu0 %v4822, 12
  %v5118 = vpop.permute.xlu0 %5117
  %5119 = vrot.lane.b32.xlu0 %v4831, 12
  %v5120 = vpop.permute.xlu0 %5119
  %5121 = vrot.lane.b32.xlu0 %v4840, 12
  %v5122 = vpop.permute.xlu0 %5121
  %5123 = vrot.lane.b32.xlu0 %v4841, 12
  %v5124 = vpop.permute.xlu0 %5123
  %5125 = vrot.lane.b32.xlu0 %v4850, 12
  %v5126 = vpop.permute.xlu0 %5125
  %5127 = vrot.lane.b32.xlu0 %v4851, 12
  %v5128 = vpop.permute.xlu0 %5127
  %5129 = vrot.lane.b32.xlu0 %v4860, 12
  %v5130 = vpop.permute.xlu0 %5129
  %5131 = vrot.lane.b32.xlu0 %v4861, 12
  %v5132 = vpop.permute.xlu0 %5131
  %5133 = vrot.lane.b32.xlu0 %v4870, 12
  %v5134 = vpop.permute.xlu0 %5133
  %5135 = vrot.lane.b32.xlu0 %v4879, 12
  %v5136 = vpop.permute.xlu0 %5135
  %5137 = vrot.lane.b32.xlu0 %v4880, 12
  %v5138 = vpop.permute.xlu0 %5137
  %5139 = vrot.lane.b32.xlu0 %v4889, 12
  %v5140 = vpop.permute.xlu0 %5139
  %5141 = vrot.lane.b32.xlu0 %v4890, 12
  %v5142 = vpop.permute.xlu0 %5141
  %5143 = vrot.lane.b32.xlu0 %v4899, 12
  %v5144 = vpop.permute.xlu0 %5143
  %5145 = vrot.lane.b32.xlu0 %v4900, 12
  %v5146 = vpop.permute.xlu0 %5145
  %5147 = vrot.lane.b32.xlu0 %v4909, 12
  %v5148 = vpop.permute.xlu0 %5147
  %5149 = vrot.lane.b32.xlu0 %v4918, 12
  %v5150 = vpop.permute.xlu0 %5149
  %5151 = vrot.lane.b32.xlu0 %v4935, 12
  %v5152 = vpop.permute.xlu0 %5151
  %5153 = vrot.lane.b32.xlu0 %v4952, 12
  %v5154 = vpop.permute.xlu0 %5153
  %5155 = vrot.lane.b32.xlu0 %v4953, 12
  %v5156 = vpop.permute.xlu0 %5155
  %5157 = vrot.lane.b32.xlu0 %v4962, 12
  %v5158 = vpop.permute.xlu0 %5157
  %5159 = vrot.lane.b32.xlu0 %v4963, 12
  %v5160 = vpop.permute.xlu0 %5159
  %5161 = vrot.lane.b32.xlu0 %v4972, 12
  %v5162 = vpop.permute.xlu0 %5161
  %5163 = vrot.lane.b32.xlu0 %v4981, 12
  %v5164 = vpop.permute.xlu0 %5163
  %5165 = vrot.lane.b32.xlu0 %v4982, 12
  %v5166 = vpop.permute.xlu0 %5165
  %5167 = vrot.lane.b32.xlu0 %v4991, 12
  %v5168 = vpop.permute.xlu0 %5167
  %5169 = vrot.lane.b32.xlu0 %v4992, 12
  %v5170 = vpop.permute.xlu0 %5169
  %5171 = vrot.lane.b32.xlu0 %v5001, 12
  %v5172 = vpop.permute.xlu0 %5171
  %5173 = vrot.lane.b32.xlu0 %v5002, 12
  %v5174 = vpop.permute.xlu0 %5173
  %5175 = vrot.lane.b32.xlu0 %v5011, 12
  %v5176 = vpop.permute.xlu0 %5175
  %5177 = vrot.lane.b32.xlu0 %v5020, 12
  %v5178 = vpop.permute.xlu0 %5177
  %5179 = vrot.lane.b32.xlu0 %v5021, 12
  %v5180 = vpop.permute.xlu0 %5179
  %5181 = vrot.lane.b32.xlu0 %v5030, 12
  %v5182 = vpop.permute.xlu0 %5181
  %5183 = vrot.lane.b32.xlu0 %v5031, 12
  %v5184 = vpop.permute.xlu0 %5183
  %5185 = vrot.lane.b32.xlu0 %v5040, 12
  %v5186 = vpop.permute.xlu0 %5185
  %5187 = vrot.lane.b32.xlu0 %v5041, 12
  %v5188 = vpop.permute.xlu0 %5187
  %5189 = vrot.lane.b32.xlu0 %v5050, 12
  %v5190 = vpop.permute.xlu0 %5189
  %5191 = vrot.lane.b32.xlu0 %v5059, 12
  %v5192 = vpop.permute.xlu0 %5191
  %5193 = vrot.lane.b32.xlu0 %v5060, 12
  %v5194 = vpop.permute.xlu0 %5193
  %5195 = vrot.lane.b32.xlu0 %v5069, 12
  %v5196 = vpop.permute.xlu0 %5195
  %5197 = vrot.lane.b32.xlu0 %v5070, 12
  %v5198 = vpop.permute.xlu0 %5197
  %5199 = vrot.lane.b32.xlu0 %v5087, 12
  %v5200 = vpop.permute.xlu0 %5199
  %5201 = vrot.lane.b32.xlu0 %v5104, 12
  %v5202 = vpop.permute.xlu0 %5201
  %vm5252 = vcmask 130144
  %5253 = vst.msk [vmem:[#allocation2] sm:$0xff] %vm5252, %v5106
  %5254 = vst.msk [vmem:[#allocation2 + $0x8] sm:$0xff] %vm5252, %v5108
  %5255 = vst.msk [vmem:[#allocation2 + $0x10] sm:$0xff] %vm5252, %v5110
  %5256 = vst.msk [vmem:[#allocation2 + $0x18] sm:$0xff] %vm5252, %v5112
  %5257 = vst.msk [vmem:[#allocation2 + $0x20] sm:$0xff] %vm5252, %v5114
  %5258 = vst.msk [vmem:[#allocation2 + $0x28] sm:$0xff] %vm5252, %v5116
  %5259 = vst.msk [vmem:[#allocation2 + $0x30] sm:$0xff] %vm5252, %v5118
  %5260 = vst.msk [vmem:[#allocation2 + $0x38] sm:$0xff] %vm5252, %v5120
  %5261 = vst.msk [vmem:[#allocation2 + $0x40] sm:$0xff] %vm5252, %v5122
  %5262 = vst.msk [vmem:[#allocation2 + $0x48] sm:$0xff] %vm5252, %v5124
  %5263 = vst.msk [vmem:[#allocation2 + $0x50] sm:$0xff] %vm5252, %v5126
  %5264 = vst.msk [vmem:[#allocation2 + $0x58] sm:$0xff] %vm5252, %v5128
  %5265 = vst.msk [vmem:[#allocation2 + $0x60] sm:$0xff] %vm5252, %v5130
  %5266 = vst.msk [vmem:[#allocation2 + $0x68] sm:$0xff] %vm5252, %v5132
  %5267 = vst.msk [vmem:[#allocation2 + $0x70] sm:$0xff] %vm5252, %v5134
  %5268 = vst.msk [vmem:[#allocation2 + $0x78] sm:$0xff] %vm5252, %v5136
  %5269 = vst.msk [vmem:[#allocation2 + $0x80] sm:$0xff] %vm5252, %v5138
  %5270 = vst.msk [vmem:[#allocation2 + $0x88] sm:$0xff] %vm5252, %v5140
  %5271 = vst.msk [vmem:[#allocation2 + $0x90] sm:$0xff] %vm5252, %v5142
  %5272 = vst.msk [vmem:[#allocation2 + $0x98] sm:$0xff] %vm5252, %v5144
  %5273 = vst.msk [vmem:[#allocation2 + $0xa0] sm:$0xff] %vm5252, %v5146
  %5274 = vst.msk [vmem:[#allocation2 + $0xa8] sm:$0xff] %vm5252, %v5148
  %5275 = vst.msk [vmem:[#allocation2 + $0xb0] sm:$0xff] %vm5252, %v5150
  %5276 = vst.msk [vmem:[#allocation2 + $0xb8] sm:$0xff] %vm5252, %v5152
  %5277 = vst.msk [vmem:[#allocation2 + $0xc0] sm:$0xff] %vm5252, %v5154
  %5278 = vst.msk [vmem:[#allocation2 + $0xc8] sm:$0xff] %vm5252, %v5156
  %5279 = vst.msk [vmem:[#allocation2 + $0xd0] sm:$0xff] %vm5252, %v5158
  %5280 = vst.msk [vmem:[#allocation2 + $0xd8] sm:$0xff] %vm5252, %v5160
  %5281 = vst.msk [vmem:[#allocation2 + $0xe0] sm:$0xff] %vm5252, %v5162
  %5282 = vst.msk [vmem:[#allocation2 + $0xe8] sm:$0xff] %vm5252, %v5164
  %5283 = vst.msk [vmem:[#allocation2 + $0xf0] sm:$0xff] %vm5252, %v5166
  %5284 = vst.msk [vmem:[#allocation2 + $0xf8] sm:$0xff] %vm5252, %v5168
  %5285 = vst.msk [vmem:[#allocation2 + $0x100] sm:$0xff] %vm5252, %v5170
  %5286 = vst.msk [vmem:[#allocation2 + $0x108] sm:$0xff] %vm5252, %v5172
  %5287 = vst.msk [vmem:[#allocation2 + $0x110] sm:$0xff] %vm5252, %v5174
  %5288 = vst.msk [vmem:[#allocation2 + $0x118] sm:$0xff] %vm5252, %v5176
  %5289 = vst.msk [vmem:[#allocation2 + $0x120] sm:$0xff] %vm5252, %v5178
  %5290 = vst.msk [vmem:[#allocation2 + $0x128] sm:$0xff] %vm5252, %v5180
  %5291 = vst.msk [vmem:[#allocation2 + $0x130] sm:$0xff] %vm5252, %v5182
  %5292 = vst.msk [vmem:[#allocation2 + $0x138] sm:$0xff] %vm5252, %v5184
  %5293 = vst.msk [vmem:[#allocation2 + $0x140] sm:$0xff] %vm5252, %v5186
  %5294 = vst.msk [vmem:[#allocation2 + $0x148] sm:$0xff] %vm5252, %v5188
  %5295 = vst.msk [vmem:[#allocation2 + $0x150] sm:$0xff] %vm5252, %v5190
  %5296 = vst.msk [vmem:[#allocation2 + $0x158] sm:$0xff] %vm5252, %v5192
  %5297 = vst.msk [vmem:[#allocation2 + $0x160] sm:$0xff] %vm5252, %v5194
  %5298 = vst.msk [vmem:[#allocation2 + $0x168] sm:$0xff] %vm5252, %v5196
  %5299 = vst.msk [vmem:[#allocation2 + $0x170] sm:$0xff] %vm5252, %v5198
  %5300 = vst.msk [vmem:[#allocation2 + $0x178] sm:$0xff] %vm5252, %v5200
  %5301 = vst.msk [vmem:[#allocation2 + $0x180] sm:$0xff] %vm5252, %v5202
  %v5302 = vcombine.high %v4749, %v4749
  %v5303 = vcombine.high %v4782, %v4782
  %v5304 = vrot.slane %v4725, 7
  %v5305 = vrot.slane %v5304, 2
  %v5306 = vrot.slane %v4733, 7
  %v5307 = vsel %vm2037, %v5305, %v5306
  %v5308 = vrot.slane %v5306, 2
  %v5309 = vrot.slane %v4732, 7
  %v5310 = vsel %vm2037, %v5308, %v5309
  %v5311 = vrot.slane %v5309, 2
  %v5312 = vrot.slane %v4734, 7
  %v5313 = vsel %vm2037, %v5311, %v5312
  %v5314 = vrot.slane %v5312, 2
  %v5315 = vrot.slane %v4742, 7
  %v5316 = vsel %vm2037, %v5314, %v5315
  %v5317 = vrot.slane %v5315, 2
  %v5318 = vrot.slane %v4750, 7
  %v5319 = vsel %vm2037, %v5317, %v5318
  %v5320 = vrot.slane %v5318, 2
  %v5321 = vrot.slane %v4749, 7
  %v5322 = vsel %vm2037, %v5320, %v5321
  %v5323 = vrot.slane %v5321, 2
  %v5324 = vrot.slane %v5302, 7
  %v5325 = vsel %vm2037, %v5323, %v5324
  %v5326 = vrot.slane %v4758, 7
  %v5327 = vrot.slane %v5326, 2
  %v5328 = vrot.slane %v4766, 7
  %v5329 = vsel %vm2037, %v5327, %v5328
  %v5330 = vrot.slane %v5328, 2
  %v5331 = vrot.slane %v4765, 7
  %v5332 = vsel %vm2037, %v5330, %v5331
  %v5333 = vrot.slane %v5331, 2
  %v5334 = vrot.slane %v4767, 7
  %v5335 = vsel %vm2037, %v5333, %v5334
  %v5336 = vrot.slane %v5334, 2
  %v5337 = vrot.slane %v4775, 7
  %v5338 = vsel %vm2037, %v5336, %v5337
  %v5339 = vrot.slane %v5337, 2
  %v5340 = vrot.slane %v4783, 7
  %v5341 = vsel %vm2037, %v5339, %v5340
  %v5342 = vrot.slane %v5340, 2
  %v5343 = vrot.slane %v4782, 7
  %v5344 = vsel %vm2037, %v5342, %v5343
  %v5345 = vrot.slane %v5343, 2
  %v5346 = vrot.slane %v5303, 7
  %v5347 = vsel %vm2037, %v5345, %v5346
  %v5348 = vcombine.low %v2063, %v2066
  %v5349 = vcombine.low %v2069, %v2072
  %v5351 = vunpack.c.l.s4 1983009808
  %v5352 = vunpack.c.0.s8 %v5351
  %v5353 = vlaneseq
  %v5354 = vshrl.u32 %v5353, 7
  %v5355 = vsub.s32 %v5352, %v5354
  %v5356 = vrot.slane %v5348, %v5355
  %v5358 = vunpack.c.l.s4 1983009808
  %v5359 = vunpack.c.0.s8 %v5358
  %v5360 = vlaneseq
  %v5361 = vshrl.u32 %v5360, 7
  %v5362 = vsub.s32 %v5359, %v5361
  %v5363 = vrot.slane %v5349, %v5362
  %v5364 = vcombine.low %v5356, %v5363
  %v5365 = vcombine.low %v2075, %v2078
  %v5366 = vcombine.low %v2081, %v2085
  %v5368 = vunpack.c.l.s4 1983009808
  %v5369 = vunpack.c.0.s8 %v5368
  %v5370 = vlaneseq
  %v5371 = vshrl.u32 %v5370, 7
  %v5372 = vsub.s32 %v5369, %v5371
  %v5373 = vrot.slane %v5365, %v5372
  %v5375 = vunpack.c.l.s4 1983009808
  %v5376 = vunpack.c.0.s8 %v5375
  %v5377 = vlaneseq
  %v5378 = vshrl.u32 %v5377, 7
  %v5379 = vsub.s32 %v5376, %v5378
  %v5380 = vrot.slane %v5366, %v5379
  %v5381 = vcombine.low %v5373, %v5380
  %v5382 = vcombine.low %v2088, %v2091
  %v5383 = vcombine.low %v2094, %v2097
  %v5385 = vunpack.c.l.s4 1983009808
  %v5386 = vunpack.c.0.s8 %v5385
  %v5387 = vlaneseq
  %v5388 = vshrl.u32 %v5387, 7
  %v5389 = vsub.s32 %v5386, %v5388
  %v5390 = vrot.slane %v5382, %v5389
  %v5392 = vunpack.c.l.s4 1983009808
  %v5393 = vunpack.c.0.s8 %v5392
  %v5394 = vlaneseq
  %v5395 = vshrl.u32 %v5394, 7
  %v5396 = vsub.s32 %v5393, %v5395
  %v5397 = vrot.slane %v5383, %v5396
  %v5398 = vcombine.low %v5390, %v5397
  %v5399 = vcombine.low %v2100, %v2103
  %v5400 = vcombine.low %v2107, %v2110
  %v5402 = vunpack.c.l.s4 1983009808
  %v5403 = vunpack.c.0.s8 %v5402
  %v5404 = vlaneseq
  %v5405 = vshrl.u32 %v5404, 7
  %v5406 = vsub.s32 %v5403, %v5405
  %v5407 = vrot.slane %v5399, %v5406
  %v5409 = vunpack.c.l.s4 1983009808
  %v5410 = vunpack.c.0.s8 %v5409
  %v5411 = vlaneseq
  %v5412 = vshrl.u32 %v5411, 7
  %v5413 = vsub.s32 %v5410, %v5412
  %v5414 = vrot.slane %v5400, %v5413
  %v5415 = vcombine.low %v5407, %v5414
  %v5416 = vcombine.low %v2113, %v2116
  %v5417 = vcombine.low %v2119, %v2122
  %v5419 = vunpack.c.l.s4 1983009808
  %v5420 = vunpack.c.0.s8 %v5419
  %v5421 = vlaneseq
  %v5422 = vshrl.u32 %v5421, 7
  %v5423 = vsub.s32 %v5420, %v5422
  %v5424 = vrot.slane %v5416, %v5423
  %v5426 = vunpack.c.l.s4 1983009808
  %v5427 = vunpack.c.0.s8 %v5426
  %v5428 = vlaneseq
  %v5429 = vshrl.u32 %v5428, 7
  %v5430 = vsub.s32 %v5427, %v5429
  %v5431 = vrot.slane %v5417, %v5430
  %v5432 = vcombine.low %v5424, %v5431
  %v5433 = vcombine.low %v2125, %v2129
  %v5434 = vcombine.low %v2132, %v2135
  %v5436 = vunpack.c.l.s4 1983009808
  %v5437 = vunpack.c.0.s8 %v5436
  %v5438 = vlaneseq
  %v5439 = vshrl.u32 %v5438, 7
  %v5440 = vsub.s32 %v5437, %v5439
  %v5441 = vrot.slane %v5433, %v5440
  %v5443 = vunpack.c.l.s4 1983009808
  %v5444 = vunpack.c.0.s8 %v5443
  %v5445 = vlaneseq
  %v5446 = vshrl.u32 %v5445, 7
  %v5447 = vsub.s32 %v5444, %v5446
  %v5448 = vrot.slane %v5434, %v5447
  %v5449 = vcombine.low %v5441, %v5448
  %v5450 = vcombine.low %v2138, %v2141
  %v5451 = vcombine.low %v2144, %v2147
  %v5453 = vunpack.c.l.s4 1983009808
  %v5454 = vunpack.c.0.s8 %v5453
  %v5455 = vlaneseq
  %v5456 = vshrl.u32 %v5455, 7
  %v5457 = vsub.s32 %v5454, %v5456
  %v5458 = vrot.slane %v5450, %v5457
  %v5460 = vunpack.c.l.s4 1983009808
  %v5461 = vunpack.c.0.s8 %v5460
  %v5462 = vlaneseq
  %v5463 = vshrl.u32 %v5462, 7
  %v5464 = vsub.s32 %v5461, %v5463
  %v5465 = vrot.slane %v5451, %v5464
  %v5466 = vcombine.low %v5458, %v5465
  %v5467 = vcombine.low %v2151, %v2154
  %v5468 = vcombine.low %v2157, %v2160
  %v5470 = vunpack.c.l.s4 1983009808
  %v5471 = vunpack.c.0.s8 %v5470
  %v5472 = vlaneseq
  %v5473 = vshrl.u32 %v5472, 7
  %v5474 = vsub.s32 %v5471, %v5473
  %v5475 = vrot.slane %v5467, %v5474
  %v5477 = vunpack.c.l.s4 1983009808
  %v5478 = vunpack.c.0.s8 %v5477
  %v5479 = vlaneseq
  %v5480 = vshrl.u32 %v5479, 7
  %v5481 = vsub.s32 %v5478, %v5480
  %v5482 = vrot.slane %v5468, %v5481
  %v5483 = vcombine.low %v5475, %v5482
  %v5484 = vcombine.low %v2163, %v2166
  %v5485 = vcombine.low %v2169, %v2173
  %v5487 = vunpack.c.l.s4 1983009808
  %v5488 = vunpack.c.0.s8 %v5487
  %v5489 = vlaneseq
  %v5490 = vshrl.u32 %v5489, 7
  %v5491 = vsub.s32 %v5488, %v5490
  %v5492 = vrot.slane %v5484, %v5491
  %v5494 = vunpack.c.l.s4 1983009808
  %v5495 = vunpack.c.0.s8 %v5494
  %v5496 = vlaneseq
  %v5497 = vshrl.u32 %v5496, 7
  %v5498 = vsub.s32 %v5495, %v5497
  %v5499 = vrot.slane %v5485, %v5498
  %v5500 = vcombine.low %v5492, %v5499
  %v5501 = vcombine.low %v2176, %v2179
  %v5502 = vcombine.low %v2182, %v2185
  %v5504 = vunpack.c.l.s4 1983009808
  %v5505 = vunpack.c.0.s8 %v5504
  %v5506 = vlaneseq
  %v5507 = vshrl.u32 %v5506, 7
  %v5508 = vsub.s32 %v5505, %v5507
  %v5509 = vrot.slane %v5501, %v5508
  %v5511 = vunpack.c.l.s4 1983009808
  %v5512 = vunpack.c.0.s8 %v5511
  %v5513 = vlaneseq
  %v5514 = vshrl.u32 %v5513, 7
  %v5515 = vsub.s32 %v5512, %v5514
  %v5516 = vrot.slane %v5502, %v5515
  %v5517 = vcombine.low %v5509, %v5516
  %v5518 = vcombine.low %v2188, %v2191
  %v5519 = vcombine.low %v2195, %v2198
  %v5521 = vunpack.c.l.s4 1983009808
  %v5522 = vunpack.c.0.s8 %v5521
  %v5523 = vlaneseq
  %v5524 = vshrl.u32 %v5523, 7
  %v5525 = vsub.s32 %v5522, %v5524
  %v5526 = vrot.slane %v5518, %v5525
  %v5528 = vunpack.c.l.s4 1983009808
  %v5529 = vunpack.c.0.s8 %v5528
  %v5530 = vlaneseq
  %v5531 = vshrl.u32 %v5530, 7
  %v5532 = vsub.s32 %v5529, %v5531
  %v5533 = vrot.slane %v5519, %v5532
  %v5534 = vcombine.low %v5526, %v5533
  %v5535 = vcombine.low %v2201, %v2204
  %v5536 = vcombine.low %v2207, %v2210
  %v5538 = vunpack.c.l.s4 1983009808
  %v5539 = vunpack.c.0.s8 %v5538
  %v5540 = vlaneseq
  %v5541 = vshrl.u32 %v5540, 7
  %v5542 = vsub.s32 %v5539, %v5541
  %v5543 = vrot.slane %v5535, %v5542
  %v5545 = vunpack.c.l.s4 1983009808
  %v5546 = vunpack.c.0.s8 %v5545
  %v5547 = vlaneseq
  %v5548 = vshrl.u32 %v5547, 7
  %v5549 = vsub.s32 %v5546, %v5548
  %v5550 = vrot.slane %v5536, %v5549
  %v5551 = vcombine.low %v5543, %v5550
  %v5552 = vcombine.low %v2213, %v2217
  %v5553 = vcombine.low %v2220, %v2223
  %v5555 = vunpack.c.l.s4 1983009808
  %v5556 = vunpack.c.0.s8 %v5555
  %v5557 = vlaneseq
  %v5558 = vshrl.u32 %v5557, 7
  %v5559 = vsub.s32 %v5556, %v5558
  %v5560 = vrot.slane %v5552, %v5559
  %v5562 = vunpack.c.l.s4 1983009808
  %v5563 = vunpack.c.0.s8 %v5562
  %v5564 = vlaneseq
  %v5565 = vshrl.u32 %v5564, 7
  %v5566 = vsub.s32 %v5563, %v5565
  %v5567 = vrot.slane %v5553, %v5566
  %v5568 = vcombine.low %v5560, %v5567
  %v5569 = vcombine.low %v2226, %v2229
  %v5570 = vcombine.low %v2232, %v2235
  %v5572 = vunpack.c.l.s4 1983009808
  %v5573 = vunpack.c.0.s8 %v5572
  %v5574 = vlaneseq
  %v5575 = vshrl.u32 %v5574, 7
  %v5576 = vsub.s32 %v5573, %v5575
  %v5577 = vrot.slane %v5569, %v5576
  %v5579 = vunpack.c.l.s4 1983009808
  %v5580 = vunpack.c.0.s8 %v5579
  %v5581 = vlaneseq
  %v5582 = vshrl.u32 %v5581, 7
  %v5583 = vsub.s32 %v5580, %v5582
  %v5584 = vrot.slane %v5570, %v5583
  %v5585 = vcombine.low %v5577, %v5584
  %v5586 = vcombine.low %v2239, %v2242
  %v5587 = vcombine.low %v2245, %v2248
  %v5589 = vunpack.c.l.s4 1983009808
  %v5590 = vunpack.c.0.s8 %v5589
  %v5591 = vlaneseq
  %v5592 = vshrl.u32 %v5591, 7
  %v5593 = vsub.s32 %v5590, %v5592
  %v5594 = vrot.slane %v5586, %v5593
  %v5596 = vunpack.c.l.s4 1983009808
  %v5597 = vunpack.c.0.s8 %v5596
  %v5598 = vlaneseq
  %v5599 = vshrl.u32 %v5598, 7
  %v5600 = vsub.s32 %v5597, %v5599
  %v5601 = vrot.slane %v5587, %v5600
  %v5602 = vcombine.low %v5594, %v5601
  %v5603 = vcombine.low %v2251, %v2254
  %v5604 = vcombine.low %v2257, %v2261
  %v5606 = vunpack.c.l.s4 1983009808
  %v5607 = vunpack.c.0.s8 %v5606
  %v5608 = vlaneseq
  %v5609 = vshrl.u32 %v5608, 7
  %v5610 = vsub.s32 %v5607, %v5609
  %v5611 = vrot.slane %v5603, %v5610
  %v5613 = vunpack.c.l.s4 1983009808
  %v5614 = vunpack.c.0.s8 %v5613
  %v5615 = vlaneseq
  %v5616 = vshrl.u32 %v5615, 7
  %v5617 = vsub.s32 %v5614, %v5616
  %v5618 = vrot.slane %v5604, %v5617
  %v5619 = vcombine.low %v5611, %v5618
  %v5620 = vcombine.low %v2264, %v2267
  %v5621 = vcombine.low %v2270, %v2273
  %v5623 = vunpack.c.l.s4 1983009808
  %v5624 = vunpack.c.0.s8 %v5623
  %v5625 = vlaneseq
  %v5626 = vshrl.u32 %v5625, 7
  %v5627 = vsub.s32 %v5624, %v5626
  %v5628 = vrot.slane %v5620, %v5627
  %v5630 = vunpack.c.l.s4 1983009808
  %v5631 = vunpack.c.0.s8 %v5630
  %v5632 = vlaneseq
  %v5633 = vshrl.u32 %v5632, 7
  %v5634 = vsub.s32 %v5631, %v5633
  %v5635 = vrot.slane %v5621, %v5634
  %v5636 = vcombine.low %v5628, %v5635
  %v5637 = vcombine.low %v2276, %v2279
  %v5638 = vcombine.low %v2283, %v2286
  %v5640 = vunpack.c.l.s4 1983009808
  %v5641 = vunpack.c.0.s8 %v5640
  %v5642 = vlaneseq
  %v5643 = vshrl.u32 %v5642, 7
  %v5644 = vsub.s32 %v5641, %v5643
  %v5645 = vrot.slane %v5637, %v5644
  %v5647 = vunpack.c.l.s4 1983009808
  %v5648 = vunpack.c.0.s8 %v5647
  %v5649 = vlaneseq
  %v5650 = vshrl.u32 %v5649, 7
  %v5651 = vsub.s32 %v5648, %v5650
  %v5652 = vrot.slane %v5638, %v5651
  %v5653 = vcombine.low %v5645, %v5652
  %v5654 = vcombine.low %v2289, %v2292
  %v5655 = vcombine.low %v2295, %v2298
  %v5657 = vunpack.c.l.s4 1983009808
  %v5658 = vunpack.c.0.s8 %v5657
  %v5659 = vlaneseq
  %v5660 = vshrl.u32 %v5659, 7
  %v5661 = vsub.s32 %v5658, %v5660
  %v5662 = vrot.slane %v5654, %v5661
  %v5664 = vunpack.c.l.s4 1983009808
  %v5665 = vunpack.c.0.s8 %v5664
  %v5666 = vlaneseq
  %v5667 = vshrl.u32 %v5666, 7
  %v5668 = vsub.s32 %v5665, %v5667
  %v5669 = vrot.slane %v5655, %v5668
  %v5670 = vcombine.low %v5662, %v5669
  %v5671 = vcombine.low %v2301, %v2305
  %v5672 = vcombine.low %v2308, %v2311
  %v5674 = vunpack.c.l.s4 1983009808
  %v5675 = vunpack.c.0.s8 %v5674
  %v5676 = vlaneseq
  %v5677 = vshrl.u32 %v5676, 7
  %v5678 = vsub.s32 %v5675, %v5677
  %v5679 = vrot.slane %v5671, %v5678
  %v5681 = vunpack.c.l.s4 1983009808
  %v5682 = vunpack.c.0.s8 %v5681
  %v5683 = vlaneseq
  %v5684 = vshrl.u32 %v5683, 7
  %v5685 = vsub.s32 %v5682, %v5684
  %v5686 = vrot.slane %v5672, %v5685
  %v5687 = vcombine.low %v5679, %v5686
  %v5688 = vcombine.low %v2314, %v2317
  %v5689 = vcombine.low %v2320, %v2323
  %v5691 = vunpack.c.l.s4 1983009808
  %v5692 = vunpack.c.0.s8 %v5691
  %v5693 = vlaneseq
  %v5694 = vshrl.u32 %v5693, 7
  %v5695 = vsub.s32 %v5692, %v5694
  %v5696 = vrot.slane %v5688, %v5695
  %v5698 = vunpack.c.l.s4 1983009808
  %v5699 = vunpack.c.0.s8 %v5698
  %v5700 = vlaneseq
  %v5701 = vshrl.u32 %v5700, 7
  %v5702 = vsub.s32 %v5699, %v5701
  %v5703 = vrot.slane %v5689, %v5702
  %v5704 = vcombine.low %v5696, %v5703
  %v5705 = vcombine.low %v2327, %v2330
  %v5706 = vcombine.low %v2333, %v2336
  %v5708 = vunpack.c.l.s4 1983009808
  %v5709 = vunpack.c.0.s8 %v5708
  %v5710 = vlaneseq
  %v5711 = vshrl.u32 %v5710, 7
  %v5712 = vsub.s32 %v5709, %v5711
  %v5713 = vrot.slane %v5705, %v5712
  %v5715 = vunpack.c.l.s4 1983009808
  %v5716 = vunpack.c.0.s8 %v5715
  %v5717 = vlaneseq
  %v5718 = vshrl.u32 %v5717, 7
  %v5719 = vsub.s32 %v5716, %v5718
  %v5720 = vrot.slane %v5706, %v5719
  %v5721 = vcombine.low %v5713, %v5720
  %v5722 = vcombine.low %v2339, %v2342
  %v5723 = vcombine.low %v2345, %v5307
  %v5725 = vunpack.c.l.s4 1983009808
  %v5726 = vunpack.c.0.s8 %v5725
  %v5727 = vlaneseq
  %v5728 = vshrl.u32 %v5727, 7
  %v5729 = vsub.s32 %v5726, %v5728
  %v5730 = vrot.slane %v5722, %v5729
  %v5732 = vunpack.c.l.s4 1983009808
  %v5733 = vunpack.c.0.s8 %v5732
  %v5734 = vlaneseq
  %v5735 = vshrl.u32 %v5734, 7
  %v5736 = vsub.s32 %v5733, %v5735
  %v5737 = vrot.slane %v5723, %v5736
  %v5738 = vcombine.low %v5730, %v5737
  %v5739 = vcombine.low %v5310, %v5313
  %v5740 = vcombine.low %v5316, %v5319
  %v5742 = vunpack.c.l.s4 1983009808
  %v5743 = vunpack.c.0.s8 %v5742
  %v5744 = vlaneseq
  %v5745 = vshrl.u32 %v5744, 7
  %v5746 = vsub.s32 %v5743, %v5745
  %v5747 = vrot.slane %v5739, %v5746
  %v5749 = vunpack.c.l.s4 1983009808
  %v5750 = vunpack.c.0.s8 %v5749
  %v5751 = vlaneseq
  %v5752 = vshrl.u32 %v5751, 7
  %v5753 = vsub.s32 %v5750, %v5752
  %v5754 = vrot.slane %v5740, %v5753
  %v5755 = vcombine.low %v5747, %v5754
  %v5756 = vcombine.low %v5322, %v5325
  %v5757 = vcombine.low %v2371, %v2374
  %v5759 = vunpack.c.l.s4 1983009808
  %v5760 = vunpack.c.0.s8 %v5759
  %v5761 = vlaneseq
  %v5762 = vshrl.u32 %v5761, 7
  %v5763 = vsub.s32 %v5760, %v5762
  %v5764 = vrot.slane %v5756, %v5763
  %v5766 = vunpack.c.l.s4 1983009808
  %v5767 = vunpack.c.0.s8 %v5766
  %v5768 = vlaneseq
  %v5769 = vshrl.u32 %v5768, 7
  %v5770 = vsub.s32 %v5767, %v5769
  %v5771 = vrot.slane %v5757, %v5770
  %v5772 = vcombine.low %v5764, %v5771
  %v5773 = vcombine.low %v2377, %v2380
  %v5774 = vcombine.low %v2383, %v2386
  %v5776 = vunpack.c.l.s4 1983009808
  %v5777 = vunpack.c.0.s8 %v5776
  %v5778 = vlaneseq
  %v5779 = vshrl.u32 %v5778, 7
  %v5780 = vsub.s32 %v5777, %v5779
  %v5781 = vrot.slane %v5773, %v5780
  %v5783 = vunpack.c.l.s4 1983009808
  %v5784 = vunpack.c.0.s8 %v5783
  %v5785 = vlaneseq
  %v5786 = vshrl.u32 %v5785, 7
  %v5787 = vsub.s32 %v5784, %v5786
  %v5788 = vrot.slane %v5774, %v5787
  %v5789 = vcombine.low %v5781, %v5788
  %v5790 = vcombine.low %v2389, %v2393
  %v5791 = vcombine.low %v2396, %v2399
  %v5793 = vunpack.c.l.s4 1983009808
  %v5794 = vunpack.c.0.s8 %v5793
  %v5795 = vlaneseq
  %v5796 = vshrl.u32 %v5795, 7
  %v5797 = vsub.s32 %v5794, %v5796
  %v5798 = vrot.slane %v5790, %v5797
  %v5800 = vunpack.c.l.s4 1983009808
  %v5801 = vunpack.c.0.s8 %v5800
  %v5802 = vlaneseq
  %v5803 = vshrl.u32 %v5802, 7
  %v5804 = vsub.s32 %v5801, %v5803
  %v5805 = vrot.slane %v5791, %v5804
  %v5806 = vcombine.low %v5798, %v5805
  %v5807 = vcombine.low %v2402, %v2405
  %v5808 = vcombine.low %v2408, %v2411
  %v5810 = vunpack.c.l.s4 1983009808
  %v5811 = vunpack.c.0.s8 %v5810
  %v5812 = vlaneseq
  %v5813 = vshrl.u32 %v5812, 7
  %v5814 = vsub.s32 %v5811, %v5813
  %v5815 = vrot.slane %v5807, %v5814
  %v5817 = vunpack.c.l.s4 1983009808
  %v5818 = vunpack.c.0.s8 %v5817
  %v5819 = vlaneseq
  %v5820 = vshrl.u32 %v5819, 7
  %v5821 = vsub.s32 %v5818, %v5820
  %v5822 = vrot.slane %v5808, %v5821
  %v5823 = vcombine.low %v5815, %v5822
  %v5824 = vcombine.low %v2415, %v2418
  %v5825 = vcombine.low %v2421, %v2424
  %v5827 = vunpack.c.l.s4 1983009808
  %v5828 = vunpack.c.0.s8 %v5827
  %v5829 = vlaneseq
  %v5830 = vshrl.u32 %v5829, 7
  %v5831 = vsub.s32 %v5828, %v5830
  %v5832 = vrot.slane %v5824, %v5831
  %v5834 = vunpack.c.l.s4 1983009808
  %v5835 = vunpack.c.0.s8 %v5834
  %v5836 = vlaneseq
  %v5837 = vshrl.u32 %v5836, 7
  %v5838 = vsub.s32 %v5835, %v5837
  %v5839 = vrot.slane %v5825, %v5838
  %v5840 = vcombine.low %v5832, %v5839
  %v5841 = vcombine.low %v2427, %v2430
  %v5842 = vcombine.low %v2433, %v2437
  %v5844 = vunpack.c.l.s4 1983009808
  %v5845 = vunpack.c.0.s8 %v5844
  %v5846 = vlaneseq
  %v5847 = vshrl.u32 %v5846, 7
  %v5848 = vsub.s32 %v5845, %v5847
  %v5849 = vrot.slane %v5841, %v5848
  %v5851 = vunpack.c.l.s4 1983009808
  %v5852 = vunpack.c.0.s8 %v5851
  %v5853 = vlaneseq
  %v5854 = vshrl.u32 %v5853, 7
  %v5855 = vsub.s32 %v5852, %v5854
  %v5856 = vrot.slane %v5842, %v5855
  %v5857 = vcombine.low %v5849, %v5856
  %v5858 = vcombine.low %v2440, %v2443
  %v5859 = vcombine.low %v2446, %v2449
  %v5861 = vunpack.c.l.s4 1983009808
  %v5862 = vunpack.c.0.s8 %v5861
  %v5863 = vlaneseq
  %v5864 = vshrl.u32 %v5863, 7
  %v5865 = vsub.s32 %v5862, %v5864
  %v5866 = vrot.slane %v5858, %v5865
  %v5868 = vunpack.c.l.s4 1983009808
  %v5869 = vunpack.c.0.s8 %v5868
  %v5870 = vlaneseq
  %v5871 = vshrl.u32 %v5870, 7
  %v5872 = vsub.s32 %v5869, %v5871
  %v5873 = vrot.slane %v5859, %v5872
  %v5874 = vcombine.low %v5866, %v5873
  %v5875 = vcombine.low %v2452, %v2455
  %v5876 = vcombine.low %v2459, %v2462
  %v5878 = vunpack.c.l.s4 1983009808
  %v5879 = vunpack.c.0.s8 %v5878
  %v5880 = vlaneseq
  %v5881 = vshrl.u32 %v5880, 7
  %v5882 = vsub.s32 %v5879, %v5881
  %v5883 = vrot.slane %v5875, %v5882
  %v5885 = vunpack.c.l.s4 1983009808
  %v5886 = vunpack.c.0.s8 %v5885
  %v5887 = vlaneseq
  %v5888 = vshrl.u32 %v5887, 7
  %v5889 = vsub.s32 %v5886, %v5888
  %v5890 = vrot.slane %v5876, %v5889
  %v5891 = vcombine.low %v5883, %v5890
  %v5892 = vcombine.low %v2465, %v2468
  %v5893 = vcombine.low %v2471, %v2474
  %v5895 = vunpack.c.l.s4 1983009808
  %v5896 = vunpack.c.0.s8 %v5895
  %v5897 = vlaneseq
  %v5898 = vshrl.u32 %v5897, 7
  %v5899 = vsub.s32 %v5896, %v5898
  %v5900 = vrot.slane %v5892, %v5899
  %v5902 = vunpack.c.l.s4 1983009808
  %v5903 = vunpack.c.0.s8 %v5902
  %v5904 = vlaneseq
  %v5905 = vshrl.u32 %v5904, 7
  %v5906 = vsub.s32 %v5903, %v5905
  %v5907 = vrot.slane %v5893, %v5906
  %v5908 = vcombine.low %v5900, %v5907
  %v5909 = vcombine.low %v2477, %v2481
  %v5910 = vcombine.low %v2484, %v2487
  %v5912 = vunpack.c.l.s4 1983009808
  %v5913 = vunpack.c.0.s8 %v5912
  %v5914 = vlaneseq
  %v5915 = vshrl.u32 %v5914, 7
  %v5916 = vsub.s32 %v5913, %v5915
  %v5917 = vrot.slane %v5909, %v5916
  %v5919 = vunpack.c.l.s4 1983009808
  %v5920 = vunpack.c.0.s8 %v5919
  %v5921 = vlaneseq
  %v5922 = vshrl.u32 %v5921, 7
  %v5923 = vsub.s32 %v5920, %v5922
  %v5924 = vrot.slane %v5910, %v5923
  %v5925 = vcombine.low %v5917, %v5924
  %v5926 = vcombine.low %v2490, %v2493
  %v5927 = vcombine.low %v2496, %v2499
  %v5929 = vunpack.c.l.s4 1983009808
  %v5930 = vunpack.c.0.s8 %v5929
  %v5931 = vlaneseq
  %v5932 = vshrl.u32 %v5931, 7
  %v5933 = vsub.s32 %v5930, %v5932
  %v5934 = vrot.slane %v5926, %v5933
  %v5936 = vunpack.c.l.s4 1983009808
  %v5937 = vunpack.c.0.s8 %v5936
  %v5938 = vlaneseq
  %v5939 = vshrl.u32 %v5938, 7
  %v5940 = vsub.s32 %v5937, %v5939
  %v5941 = vrot.slane %v5927, %v5940
  %v5942 = vcombine.low %v5934, %v5941
  %v5943 = vcombine.low %v2503, %v2506
  %v5944 = vcombine.low %v2509, %v2512
  %v5946 = vunpack.c.l.s4 1983009808
  %v5947 = vunpack.c.0.s8 %v5946
  %v5948 = vlaneseq
  %v5949 = vshrl.u32 %v5948, 7
  %v5950 = vsub.s32 %v5947, %v5949
  %v5951 = vrot.slane %v5943, %v5950
  %v5953 = vunpack.c.l.s4 1983009808
  %v5954 = vunpack.c.0.s8 %v5953
  %v5955 = vlaneseq
  %v5956 = vshrl.u32 %v5955, 7
  %v5957 = vsub.s32 %v5954, %v5956
  %v5958 = vrot.slane %v5944, %v5957
  %v5959 = vcombine.low %v5951, %v5958
  %v5960 = vcombine.low %v2515, %v2518
  %v5961 = vcombine.low %v2521, %v2525
  %v5963 = vunpack.c.l.s4 1983009808
  %v5964 = vunpack.c.0.s8 %v5963
  %v5965 = vlaneseq
  %v5966 = vshrl.u32 %v5965, 7
  %v5967 = vsub.s32 %v5964, %v5966
  %v5968 = vrot.slane %v5960, %v5967
  %v5970 = vunpack.c.l.s4 1983009808
  %v5971 = vunpack.c.0.s8 %v5970
  %v5972 = vlaneseq
  %v5973 = vshrl.u32 %v5972, 7
  %v5974 = vsub.s32 %v5971, %v5973
  %v5975 = vrot.slane %v5961, %v5974
  %v5976 = vcombine.low %v5968, %v5975
  %v5977 = vcombine.low %v2528, %v2531
  %v5978 = vcombine.low %v2534, %v2537
  %v5980 = vunpack.c.l.s4 1983009808
  %v5981 = vunpack.c.0.s8 %v5980
  %v5982 = vlaneseq
  %v5983 = vshrl.u32 %v5982, 7
  %v5984 = vsub.s32 %v5981, %v5983
  %v5985 = vrot.slane %v5977, %v5984
  %v5987 = vunpack.c.l.s4 1983009808
  %v5988 = vunpack.c.0.s8 %v5987
  %v5989 = vlaneseq
  %v5990 = vshrl.u32 %v5989, 7
  %v5991 = vsub.s32 %v5988, %v5990
  %v5992 = vrot.slane %v5978, %v5991
  %v5993 = vcombine.low %v5985, %v5992
  %v5994 = vcombine.low %v2540, %v2543
  %v5995 = vcombine.low %v2547, %v2550
  %v5997 = vunpack.c.l.s4 1983009808
  %v5998 = vunpack.c.0.s8 %v5997
  %v5999 = vlaneseq
  %v6000 = vshrl.u32 %v5999, 7
  %v6001 = vsub.s32 %v5998, %v6000
  %v6002 = vrot.slane %v5994, %v6001
  %v6004 = vunpack.c.l.s4 1983009808
  %v6005 = vunpack.c.0.s8 %v6004
  %v6006 = vlaneseq
  %v6007 = vshrl.u32 %v6006, 7
  %v6008 = vsub.s32 %v6005, %v6007
  %v6009 = vrot.slane %v5995, %v6008
  %v6010 = vcombine.low %v6002, %v6009
  %v6011 = vcombine.low %v2553, %v2556
  %v6012 = vcombine.low %v2559, %v2562
  %v6014 = vunpack.c.l.s4 1983009808
  %v6015 = vunpack.c.0.s8 %v6014
  %v6016 = vlaneseq
  %v6017 = vshrl.u32 %v6016, 7
  %v6018 = vsub.s32 %v6015, %v6017
  %v6019 = vrot.slane %v6011, %v6018
  %v6021 = vunpack.c.l.s4 1983009808
  %v6022 = vunpack.c.0.s8 %v6021
  %v6023 = vlaneseq
  %v6024 = vshrl.u32 %v6023, 7
  %v6025 = vsub.s32 %v6022, %v6024
  %v6026 = vrot.slane %v6012, %v6025
  %v6027 = vcombine.low %v6019, %v6026
  %v6028 = vcombine.low %v2565, %v2569
  %v6029 = vcombine.low %v2572, %v2575
  %v6031 = vunpack.c.l.s4 1983009808
  %v6032 = vunpack.c.0.s8 %v6031
  %v6033 = vlaneseq
  %v6034 = vshrl.u32 %v6033, 7
  %v6035 = vsub.s32 %v6032, %v6034
  %v6036 = vrot.slane %v6028, %v6035
  %v6038 = vunpack.c.l.s4 1983009808
  %v6039 = vunpack.c.0.s8 %v6038
  %v6040 = vlaneseq
  %v6041 = vshrl.u32 %v6040, 7
  %v6042 = vsub.s32 %v6039, %v6041
  %v6043 = vrot.slane %v6029, %v6042
  %v6044 = vcombine.low %v6036, %v6043
  %v6045 = vcombine.low %v2578, %v2581
  %v6046 = vcombine.low %v2584, %v2587
  %v6048 = vunpack.c.l.s4 1983009808
  %v6049 = vunpack.c.0.s8 %v6048
  %v6050 = vlaneseq
  %v6051 = vshrl.u32 %v6050, 7
  %v6052 = vsub.s32 %v6049, %v6051
  %v6053 = vrot.slane %v6045, %v6052
  %v6055 = vunpack.c.l.s4 1983009808
  %v6056 = vunpack.c.0.s8 %v6055
  %v6057 = vlaneseq
  %v6058 = vshrl.u32 %v6057, 7
  %v6059 = vsub.s32 %v6056, %v6058
  %v6060 = vrot.slane %v6046, %v6059
  %v6061 = vcombine.low %v6053, %v6060
  %v6062 = vcombine.low %v2591, %v2594
  %v6063 = vcombine.low %v2597, %v2600
  %v6065 = vunpack.c.l.s4 1983009808
  %v6066 = vunpack.c.0.s8 %v6065
  %v6067 = vlaneseq
  %v6068 = vshrl.u32 %v6067, 7
  %v6069 = vsub.s32 %v6066, %v6068
  %v6070 = vrot.slane %v6062, %v6069
  %v6072 = vunpack.c.l.s4 1983009808
  %v6073 = vunpack.c.0.s8 %v6072
  %v6074 = vlaneseq
  %v6075 = vshrl.u32 %v6074, 7
  %v6076 = vsub.s32 %v6073, %v6075
  %v6077 = vrot.slane %v6063, %v6076
  %v6078 = vcombine.low %v6070, %v6077
  %v6079 = vcombine.low %v2603, %v2606
  %v6080 = vcombine.low %v2609, %v2613
  %v6082 = vunpack.c.l.s4 1983009808
  %v6083 = vunpack.c.0.s8 %v6082
  %v6084 = vlaneseq
  %v6085 = vshrl.u32 %v6084, 7
  %v6086 = vsub.s32 %v6083, %v6085
  %v6087 = vrot.slane %v6079, %v6086
  %v6089 = vunpack.c.l.s4 1983009808
  %v6090 = vunpack.c.0.s8 %v6089
  %v6091 = vlaneseq
  %v6092 = vshrl.u32 %v6091, 7
  %v6093 = vsub.s32 %v6090, %v6092
  %v6094 = vrot.slane %v6080, %v6093
  %v6095 = vcombine.low %v6087, %v6094
  %v6096 = vcombine.low %v2616, %v2619
  %v6097 = vcombine.low %v2622, %v2625
  %v6099 = vunpack.c.l.s4 1983009808
  %v6100 = vunpack.c.0.s8 %v6099
  %v6101 = vlaneseq
  %v6102 = vshrl.u32 %v6101, 7
  %v6103 = vsub.s32 %v6100, %v6102
  %v6104 = vrot.slane %v6096, %v6103
  %v6106 = vunpack.c.l.s4 1983009808
  %v6107 = vunpack.c.0.s8 %v6106
  %v6108 = vlaneseq
  %v6109 = vshrl.u32 %v6108, 7
  %v6110 = vsub.s32 %v6107, %v6109
  %v6111 = vrot.slane %v6097, %v6110
  %v6112 = vcombine.low %v6104, %v6111
  %v6113 = vcombine.low %v2628, %v2631
  %v6114 = vcombine.low %v2635, %v2638
  %v6116 = vunpack.c.l.s4 1983009808
  %v6117 = vunpack.c.0.s8 %v6116
  %v6118 = vlaneseq
  %v6119 = vshrl.u32 %v6118, 7
  %v6120 = vsub.s32 %v6117, %v6119
  %v6121 = vrot.slane %v6113, %v6120
  %v6123 = vunpack.c.l.s4 1983009808
  %v6124 = vunpack.c.0.s8 %v6123
  %v6125 = vlaneseq
  %v6126 = vshrl.u32 %v6125, 7
  %v6127 = vsub.s32 %v6124, %v6126
  %v6128 = vrot.slane %v6114, %v6127
  %v6129 = vcombine.low %v6121, %v6128
  %v6130 = vcombine.low %v2641, %v2644
  %v6131 = vcombine.low %v2647, %v2650
  %v6133 = vunpack.c.l.s4 1983009808
  %v6134 = vunpack.c.0.s8 %v6133
  %v6135 = vlaneseq
  %v6136 = vshrl.u32 %v6135, 7
  %v6137 = vsub.s32 %v6134, %v6136
  %v6138 = vrot.slane %v6130, %v6137
  %v6140 = vunpack.c.l.s4 1983009808
  %v6141 = vunpack.c.0.s8 %v6140
  %v6142 = vlaneseq
  %v6143 = vshrl.u32 %v6142, 7
  %v6144 = vsub.s32 %v6141, %v6143
  %v6145 = vrot.slane %v6131, %v6144
  %v6146 = vcombine.low %v6138, %v6145
  %v6147 = vcombine.low %v2653, %v5329
  %v6148 = vcombine.low %v5332, %v5335
  %v6150 = vunpack.c.l.s4 1983009808
  %v6151 = vunpack.c.0.s8 %v6150
  %v6152 = vlaneseq
  %v6153 = vshrl.u32 %v6152, 7
  %v6154 = vsub.s32 %v6151, %v6153
  %v6155 = vrot.slane %v6147, %v6154
  %v6157 = vunpack.c.l.s4 1983009808
  %v6158 = vunpack.c.0.s8 %v6157
  %v6159 = vlaneseq
  %v6160 = vshrl.u32 %v6159, 7
  %v6161 = vsub.s32 %v6158, %v6160
  %v6162 = vrot.slane %v6148, %v6161
  %v6163 = vcombine.low %v6155, %v6162
  %v6164 = vcombine.low %v5338, %v5341
  %v6165 = vcombine.low %v5344, %v5347
  %v6167 = vunpack.c.l.s4 1983009808
  %v6168 = vunpack.c.0.s8 %v6167
  %v6169 = vlaneseq
  %v6170 = vshrl.u32 %v6169, 7
  %v6171 = vsub.s32 %v6168, %v6170
  %v6172 = vrot.slane %v6164, %v6171
  %v6174 = vunpack.c.l.s4 1983009808
  %v6175 = vunpack.c.0.s8 %v6174
  %v6176 = vlaneseq
  %v6177 = vshrl.u32 %v6176, 7
  %v6178 = vsub.s32 %v6175, %v6177
  %v6179 = vrot.slane %v6165, %v6178
  %v6180 = vcombine.low %v6172, %v6179
  %6181 = vrot.lane.b32.xlu0 %v5364, 16
  %v6182 = vpop.permute.xlu0 %6181
  %6183 = vrot.lane.b32.xlu0 %v5381, 16
  %v6184 = vpop.permute.xlu0 %6183
  %6185 = vrot.lane.b32.xlu0 %v5398, 16
  %v6186 = vpop.permute.xlu0 %6185
  %6187 = vrot.lane.b32.xlu0 %v5415, 16
  %v6188 = vpop.permute.xlu0 %6187
  %6189 = vrot.lane.b32.xlu0 %v5432, 16
  %v6190 = vpop.permute.xlu0 %6189
  %6191 = vrot.lane.b32.xlu0 %v5449, 16
  %v6192 = vpop.permute.xlu0 %6191
  %6193 = vrot.lane.b32.xlu0 %v5466, 16
  %v6194 = vpop.permute.xlu0 %6193
  %6195 = vrot.lane.b32.xlu0 %v5483, 16
  %v6196 = vpop.permute.xlu0 %6195
  %6197 = vrot.lane.b32.xlu0 %v5500, 16
  %v6198 = vpop.permute.xlu0 %6197
  %6199 = vrot.lane.b32.xlu0 %v5517, 16
  %v6200 = vpop.permute.xlu0 %6199
  %6201 = vrot.lane.b32.xlu0 %v5534, 16
  %v6202 = vpop.permute.xlu0 %6201
  %6203 = vrot.lane.b32.xlu0 %v5551, 16
  %v6204 = vpop.permute.xlu0 %6203
  %6205 = vrot.lane.b32.xlu0 %v5568, 16
  %v6206 = vpop.permute.xlu0 %6205
  %6207 = vrot.lane.b32.xlu0 %v5585, 16
  %v6208 = vpop.permute.xlu0 %6207
  %6209 = vrot.lane.b32.xlu0 %v5602, 16
  %v6210 = vpop.permute.xlu0 %6209
  %6211 = vrot.lane.b32.xlu0 %v5619, 16
  %v6212 = vpop.permute.xlu0 %6211
  %6213 = vrot.lane.b32.xlu0 %v5636, 16
  %v6214 = vpop.permute.xlu0 %6213
  %6215 = vrot.lane.b32.xlu0 %v5653, 16
  %v6216 = vpop.permute.xlu0 %6215
  %6217 = vrot.lane.b32.xlu0 %v5670, 16
  %v6218 = vpop.permute.xlu0 %6217
  %6219 = vrot.lane.b32.xlu0 %v5687, 16
  %v6220 = vpop.permute.xlu0 %6219
  %6221 = vrot.lane.b32.xlu0 %v5704, 16
  %v6222 = vpop.permute.xlu0 %6221
  %6223 = vrot.lane.b32.xlu0 %v5721, 16
  %v6224 = vpop.permute.xlu0 %6223
  %6225 = vrot.lane.b32.xlu0 %v5738, 16
  %v6226 = vpop.permute.xlu0 %6225
  %6227 = vrot.lane.b32.xlu0 %v5755, 16
  %v6228 = vpop.permute.xlu0 %6227
  %6229 = vrot.lane.b32.xlu0 %v5772, 16
  %v6230 = vpop.permute.xlu0 %6229
  %6231 = vrot.lane.b32.xlu0 %v5789, 16
  %v6232 = vpop.permute.xlu0 %6231
  %6233 = vrot.lane.b32.xlu0 %v5806, 16
  %v6234 = vpop.permute.xlu0 %6233
  %6235 = vrot.lane.b32.xlu0 %v5823, 16
  %v6236 = vpop.permute.xlu0 %6235
  %6237 = vrot.lane.b32.xlu0 %v5840, 16
  %v6238 = vpop.permute.xlu0 %6237
  %6239 = vrot.lane.b32.xlu0 %v5857, 16
  %v6240 = vpop.permute.xlu0 %6239
  %6241 = vrot.lane.b32.xlu0 %v5874, 16
  %v6242 = vpop.permute.xlu0 %6241
  %6243 = vrot.lane.b32.xlu0 %v5891, 16
  %v6244 = vpop.permute.xlu0 %6243
  %6245 = vrot.lane.b32.xlu0 %v5908, 16
  %v6246 = vpop.permute.xlu0 %6245
  %6247 = vrot.lane.b32.xlu0 %v5925, 16
  %v6248 = vpop.permute.xlu0 %6247
  %6249 = vrot.lane.b32.xlu0 %v5942, 16
  %v6250 = vpop.permute.xlu0 %6249
  %6251 = vrot.lane.b32.xlu0 %v5959, 16
  %v6252 = vpop.permute.xlu0 %6251
  %6253 = vrot.lane.b32.xlu0 %v5976, 16
  %v6254 = vpop.permute.xlu0 %6253
  %6255 = vrot.lane.b32.xlu0 %v5993, 16
  %v6256 = vpop.permute.xlu0 %6255
  %6257 = vrot.lane.b32.xlu0 %v6010, 16
  %v6258 = vpop.permute.xlu0 %6257
  %6259 = vrot.lane.b32.xlu0 %v6027, 16
  %v6260 = vpop.permute.xlu0 %6259
  %6261 = vrot.lane.b32.xlu0 %v6044, 16
  %v6262 = vpop.permute.xlu0 %6261
  %6263 = vrot.lane.b32.xlu0 %v6061, 16
  %v6264 = vpop.permute.xlu0 %6263
  %6265 = vrot.lane.b32.xlu0 %v6078, 16
  %v6266 = vpop.permute.xlu0 %6265
  %6267 = vrot.lane.b32.xlu0 %v6095, 16
  %v6268 = vpop.permute.xlu0 %6267
  %6269 = vrot.lane.b32.xlu0 %v6112, 16
  %v6270 = vpop.permute.xlu0 %6269
  %6271 = vrot.lane.b32.xlu0 %v6129, 16
  %v6272 = vpop.permute.xlu0 %6271
  %6273 = vrot.lane.b32.xlu0 %v6146, 16
  %v6274 = vpop.permute.xlu0 %6273
  %6275 = vrot.lane.b32.xlu0 %v6163, 16
  %v6276 = vpop.permute.xlu0 %6275
  %6277 = vrot.lane.b32.xlu0 %v6180, 16
  %v6278 = vpop.permute.xlu0 %6277
  %vm6328 = vcmask 162944
  %6329 = vst.msk [vmem:[#allocation2] sm:$0xff] %vm6328, %v6182
  %6330 = vst.msk [vmem:[#allocation2 + $0x8] sm:$0xff] %vm6328, %v6184
  %6331 = vst.msk [vmem:[#allocation2 + $0x10] sm:$0xff] %vm6328, %v6186
  %6332 = vst.msk [vmem:[#allocation2 + $0x18] sm:$0xff] %vm6328, %v6188
  %6333 = vst.msk [vmem:[#allocation2 + $0x20] sm:$0xff] %vm6328, %v6190
  %6334 = vst.msk [vmem:[#allocation2 + $0x28] sm:$0xff] %vm6328, %v6192
  %6335 = vst.msk [vmem:[#allocation2 + $0x30] sm:$0xff] %vm6328, %v6194
  %6336 = vst.msk [vmem:[#allocation2 + $0x38] sm:$0xff] %vm6328, %v6196
  %6337 = vst.msk [vmem:[#allocation2 + $0x40] sm:$0xff] %vm6328, %v6198
  %6338 = vst.msk [vmem:[#allocation2 + $0x48] sm:$0xff] %vm6328, %v6200
  %6339 = vst.msk [vmem:[#allocation2 + $0x50] sm:$0xff] %vm6328, %v6202
  %6340 = vst.msk [vmem:[#allocation2 + $0x58] sm:$0xff] %vm6328, %v6204
  %6341 = vst.msk [vmem:[#allocation2 + $0x60] sm:$0xff] %vm6328, %v6206
  %6342 = vst.msk [vmem:[#allocation2 + $0x68] sm:$0xff] %vm6328, %v6208
  %6343 = vst.msk [vmem:[#allocation2 + $0x70] sm:$0xff] %vm6328, %v6210
  %6344 = vst.msk [vmem:[#allocation2 + $0x78] sm:$0xff] %vm6328, %v6212
  %6345 = vst.msk [vmem:[#allocation2 + $0x80] sm:$0xff] %vm6328, %v6214
  %6346 = vst.msk [vmem:[#allocation2 + $0x88] sm:$0xff] %vm6328, %v6216
  %6347 = vst.msk [vmem:[#allocation2 + $0x90] sm:$0xff] %vm6328, %v6218
  %6348 = vst.msk [vmem:[#allocation2 + $0x98] sm:$0xff] %vm6328, %v6220
  %6349 = vst.msk [vmem:[#allocation2 + $0xa0] sm:$0xff] %vm6328, %v6222
  %6350 = vst.msk [vmem:[#allocation2 + $0xa8] sm:$0xff] %vm6328, %v6224
  %6351 = vst.msk [vmem:[#allocation2 + $0xb0] sm:$0xff] %vm6328, %v6226
  %6352 = vst.msk [vmem:[#allocation2 + $0xb8] sm:$0xff] %vm6328, %v6228
  %6353 = vst.msk [vmem:[#allocation2 + $0xc0] sm:$0xff] %vm6328, %v6230
  %6354 = vst.msk [vmem:[#allocation2 + $0xc8] sm:$0xff] %vm6328, %v6232
  %6355 = vst.msk [vmem:[#allocation2 + $0xd0] sm:$0xff] %vm6328, %v6234
  %6356 = vst.msk [vmem:[#allocation2 + $0xd8] sm:$0xff] %vm6328, %v6236
  %6357 = vst.msk [vmem:[#allocation2 + $0xe0] sm:$0xff] %vm6328, %v6238
  %6358 = vst.msk [vmem:[#allocation2 + $0xe8] sm:$0xff] %vm6328, %v6240
  %6359 = vst.msk [vmem:[#allocation2 + $0xf0] sm:$0xff] %vm6328, %v6242
  %6360 = vst.msk [vmem:[#allocation2 + $0xf8] sm:$0xff] %vm6328, %v6244
  %6361 = vst.msk [vmem:[#allocation2 + $0x100] sm:$0xff] %vm6328, %v6246
  %6362 = vst.msk [vmem:[#allocation2 + $0x108] sm:$0xff] %vm6328, %v6248
  %6363 = vst.msk [vmem:[#allocation2 + $0x110] sm:$0xff] %vm6328, %v6250
  %6364 = vst.msk [vmem:[#allocation2 + $0x118] sm:$0xff] %vm6328, %v6252
  %6365 = vst.msk [vmem:[#allocation2 + $0x120] sm:$0xff] %vm6328, %v6254
  %6366 = vst.msk [vmem:[#allocation2 + $0x128] sm:$0xff] %vm6328, %v6256
  %6367 = vst.msk [vmem:[#allocation2 + $0x130] sm:$0xff] %vm6328, %v6258
  %6368 = vst.msk [vmem:[#allocation2 + $0x138] sm:$0xff] %vm6328, %v6260
  %6369 = vst.msk [vmem:[#allocation2 + $0x140] sm:$0xff] %vm6328, %v6262
  %6370 = vst.msk [vmem:[#allocation2 + $0x148] sm:$0xff] %vm6328, %v6264
  %6371 = vst.msk [vmem:[#allocation2 + $0x150] sm:$0xff] %vm6328, %v6266
  %6372 = vst.msk [vmem:[#allocation2 + $0x158] sm:$0xff] %vm6328, %v6268
  %6373 = vst.msk [vmem:[#allocation2 + $0x160] sm:$0xff] %vm6328, %v6270
  %6374 = vst.msk [vmem:[#allocation2 + $0x168] sm:$0xff] %vm6328, %v6272
  %6375 = vst.msk [vmem:[#allocation2 + $0x170] sm:$0xff] %vm6328, %v6274
  %6376 = vst.msk [vmem:[#allocation2 + $0x178] sm:$0xff] %vm6328, %v6276
  %6377 = vst.msk [vmem:[#allocation2 + $0x180] sm:$0xff] %vm6328, %v6278
  %v6378 = vcombine.low %v2004, %v228
  %v6380 = vunpack.c.l.s4 1983009808
  %v6381 = vunpack.c.0.s8 %v6380
  %v6382 = vlaneseq
  %v6383 = vshrl.u32 %v6382, 7
  %v6384 = vsub.s32 %v6381, %v6383
  %v6385 = vrot.slane %v6378, %v6384
  %v6386 = vcombine.low %v1130, %v6385
  %v6387 = vcombine.low %v244, %v2005
  %v6389 = vunpack.c.l.s4 1983009808
  %v6390 = vunpack.c.0.s8 %v6389
  %v6391 = vlaneseq
  %v6392 = vshrl.u32 %v6391, 7
  %v6393 = vsub.s32 %v6390, %v6392
  %v6394 = vrot.slane %v6387, %v6393
  %v6395 = vcombine.low %v6394, %v1171
  %v6396 = vcombine.low %v2006, %v294
  %v6398 = vunpack.c.l.s4 1983009808
  %v6399 = vunpack.c.0.s8 %v6398
  %v6400 = vlaneseq
  %v6401 = vshrl.u32 %v6400, 7
  %v6402 = vsub.s32 %v6399, %v6401
  %v6403 = vrot.slane %v6396, %v6402
  %v6404 = vcombine.low %v6403, %v1205
  %v6405 = vcombine.low %v310, %v2007
  %v6407 = vunpack.c.l.s4 1983009808
  %v6408 = vunpack.c.0.s8 %v6407
  %v6409 = vlaneseq
  %v6410 = vshrl.u32 %v6409, 7
  %v6411 = vsub.s32 %v6408, %v6410
  %v6412 = vrot.slane %v6405, %v6411
  %v6413 = vcombine.low %v1215, %v6412
  %v6414 = vcombine.low %v2008, %v360
  %v6416 = vunpack.c.l.s4 1983009808
  %v6417 = vunpack.c.0.s8 %v6416
  %v6418 = vlaneseq
  %v6419 = vshrl.u32 %v6418, 7
  %v6420 = vsub.s32 %v6417, %v6419
  %v6421 = vrot.slane %v6414, %v6420
  %v6422 = vcombine.low %v1249, %v6421
  %v6423 = vcombine.low %v376, %v2009
  %v6425 = vunpack.c.l.s4 1983009808
  %v6426 = vunpack.c.0.s8 %v6425
  %v6427 = vlaneseq
  %v6428 = vshrl.u32 %v6427, 7
  %v6429 = vsub.s32 %v6426, %v6428
  %v6430 = vrot.slane %v6423, %v6429
  %v6431 = vcombine.low %v6430, %v1290
  %v6432 = vcombine.low %v2010, %v426
  %v6434 = vunpack.c.l.s4 1983009808
  %v6435 = vunpack.c.0.s8 %v6434
  %v6436 = vlaneseq
  %v6437 = vshrl.u32 %v6436, 7
  %v6438 = vsub.s32 %v6435, %v6437
  %v6439 = vrot.slane %v6432, %v6438
  %v6440 = vcombine.low %v6439, %v1324
  %v6441 = vcombine.low %v442, %v2011
  %v6443 = vunpack.c.l.s4 1983009808
  %v6444 = vunpack.c.0.s8 %v6443
  %v6445 = vlaneseq
  %v6446 = vshrl.u32 %v6445, 7
  %v6447 = vsub.s32 %v6444, %v6446
  %v6448 = vrot.slane %v6441, %v6447
  %v6449 = vcombine.low %v1334, %v6448
  %v6450 = vcombine.low %v2012, %v492
  %v6452 = vunpack.c.l.s4 1983009808
  %v6453 = vunpack.c.0.s8 %v6452
  %v6454 = vlaneseq
  %v6455 = vshrl.u32 %v6454, 7
  %v6456 = vsub.s32 %v6453, %v6455
  %v6457 = vrot.slane %v6450, %v6456
  %v6458 = vcombine.low %v1368, %v6457
  %v6459 = vcombine.low %v508, %v2013
  %v6461 = vunpack.c.l.s4 1983009808
  %v6462 = vunpack.c.0.s8 %v6461
  %v6463 = vlaneseq
  %v6464 = vshrl.u32 %v6463, 7
  %v6465 = vsub.s32 %v6462, %v6464
  %v6466 = vrot.slane %v6459, %v6465
  %v6467 = vcombine.low %v6466, %v1409
  %v6468 = vcombine.low %v2014, %v558
  %v6470 = vunpack.c.l.s4 1983009808
  %v6471 = vunpack.c.0.s8 %v6470
  %v6472 = vlaneseq
  %v6473 = vshrl.u32 %v6472, 7
  %v6474 = vsub.s32 %v6471, %v6473
  %v6475 = vrot.slane %v6468, %v6474
  %v6476 = vcombine.low %v6475, %v1443
  %v6477 = vcombine.low %v574, %v2015
  %v6479 = vunpack.c.l.s4 1983009808
  %v6480 = vunpack.c.0.s8 %v6479
  %v6481 = vlaneseq
  %v6482 = vshrl.u32 %v6481, 7
  %v6483 = vsub.s32 %v6480, %v6482
  %v6484 = vrot.slane %v6477, %v6483
  %v6485 = vcombine.low %v1453, %v6484
  %v6486 = vcombine.low %v2016, %v4733
  %v6488 = vunpack.c.l.s4 1983009808
  %v6489 = vunpack.c.0.s8 %v6488
  %v6490 = vlaneseq
  %v6491 = vshrl.u32 %v6490, 7
  %v6492 = vsub.s32 %v6489, %v6491
  %v6493 = vrot.slane %v6486, %v6492
  %v6494 = vcombine.low %v1487, %v6493
  %v6495 = vcombine.low %v4732, %v4734
  %v6496 = vcombine.low %v4742, %v4750
  %v6498 = vunpack.c.l.s4 1983009808
  %v6499 = vunpack.c.0.s8 %v6498
  %v6500 = vlaneseq
  %v6501 = vshrl.u32 %v6500, 7
  %v6502 = vsub.s32 %v6499, %v6501
  %v6503 = vrot.slane %v6495, %v6502
  %v6505 = vunpack.c.l.s4 1983009808
  %v6506 = vunpack.c.0.s8 %v6505
  %v6507 = vlaneseq
  %v6508 = vshrl.u32 %v6507, 7
  %v6509 = vsub.s32 %v6506, %v6508
  %v6510 = vrot.slane %v6496, %v6509
  %v6511 = vcombine.low %v6503, %v6510
  %v6512 = vcombine.low %v4749, %v5302
  %v6514 = vunpack.c.l.s4 1983009808
  %v6515 = vunpack.c.0.s8 %v6514
  %v6516 = vlaneseq
  %v6517 = vshrl.u32 %v6516, 7
  %v6518 = vsub.s32 %v6515, %v6517
  %v6519 = vrot.slane %v6512, %v6518
  %v6520 = vcombine.low %v6519, %v1528
  %v6521 = vcombine.low %v2018, %v690
  %v6523 = vunpack.c.l.s4 1983009808
  %v6524 = vunpack.c.0.s8 %v6523
  %v6525 = vlaneseq
  %v6526 = vshrl.u32 %v6525, 7
  %v6527 = vsub.s32 %v6524, %v6526
  %v6528 = vrot.slane %v6521, %v6527
  %v6529 = vcombine.low %v6528, %v1562
  %v6530 = vcombine.low %v706, %v2019
  %v6532 = vunpack.c.l.s4 1983009808
  %v6533 = vunpack.c.0.s8 %v6532
  %v6534 = vlaneseq
  %v6535 = vshrl.u32 %v6534, 7
  %v6536 = vsub.s32 %v6533, %v6535
  %v6537 = vrot.slane %v6530, %v6536
  %v6538 = vcombine.low %v1572, %v6537
  %v6539 = vcombine.low %v2020, %v756
  %v6541 = vunpack.c.l.s4 1983009808
  %v6542 = vunpack.c.0.s8 %v6541
  %v6543 = vlaneseq
  %v6544 = vshrl.u32 %v6543, 7
  %v6545 = vsub.s32 %v6542, %v6544
  %v6546 = vrot.slane %v6539, %v6545
  %v6547 = vcombine.low %v1606, %v6546
  %v6548 = vcombine.low %v772, %v2021
  %v6550 = vunpack.c.l.s4 1983009808
  %v6551 = vunpack.c.0.s8 %v6550
  %v6552 = vlaneseq
  %v6553 = vshrl.u32 %v6552, 7
  %v6554 = vsub.s32 %v6551, %v6553
  %v6555 = vrot.slane %v6548, %v6554
  %v6556 = vcombine.low %v6555, %v1647
  %v6557 = vcombine.low %v2022, %v822
  %v6559 = vunpack.c.l.s4 1983009808
  %v6560 = vunpack.c.0.s8 %v6559
  %v6561 = vlaneseq
  %v6562 = vshrl.u32 %v6561, 7
  %v6563 = vsub.s32 %v6560, %v6562
  %v6564 = vrot.slane %v6557, %v6563
  %v6565 = vcombine.low %v6564, %v1681
  %v6566 = vcombine.low %v838, %v2023
  %v6568 = vunpack.c.l.s4 1983009808
  %v6569 = vunpack.c.0.s8 %v6568
  %v6570 = vlaneseq
  %v6571 = vshrl.u32 %v6570, 7
  %v6572 = vsub.s32 %v6569, %v6571
  %v6573 = vrot.slane %v6566, %v6572
  %v6574 = vcombine.low %v1691, %v6573
  %v6575 = vcombine.low %v2024, %v888
  %v6577 = vunpack.c.l.s4 1983009808
  %v6578 = vunpack.c.0.s8 %v6577
  %v6579 = vlaneseq
  %v6580 = vshrl.u32 %v6579, 7
  %v6581 = vsub.s32 %v6578, %v6580
  %v6582 = vrot.slane %v6575, %v6581
  %v6583 = vcombine.low %v1725, %v6582
  %v6584 = vcombine.low %v904, %v2025
  %v6586 = vunpack.c.l.s4 1983009808
  %v6587 = vunpack.c.0.s8 %v6586
  %v6588 = vlaneseq
  %v6589 = vshrl.u32 %v6588, 7
  %v6590 = vsub.s32 %v6587, %v6589
  %v6591 = vrot.slane %v6584, %v6590
  %v6592 = vcombine.low %v6591, %v1766
  %v6593 = vcombine.low %v2026, %v954
  %v6595 = vunpack.c.l.s4 1983009808
  %v6596 = vunpack.c.0.s8 %v6595
  %v6597 = vlaneseq
  %v6598 = vshrl.u32 %v6597, 7
  %v6599 = vsub.s32 %v6596, %v6598
  %v6600 = vrot.slane %v6593, %v6599
  %v6601 = vcombine.low %v6600, %v1800
  %v6602 = vcombine.low %v970, %v2027
  %v6604 = vunpack.c.l.s4 1983009808
  %v6605 = vunpack.c.0.s8 %v6604
  %v6606 = vlaneseq
  %v6607 = vshrl.u32 %v6606, 7
  %v6608 = vsub.s32 %v6605, %v6607
  %v6609 = vrot.slane %v6602, %v6608
  %v6610 = vcombine.low %v1810, %v6609
  %v6611 = vcombine.low %v2028, %v1020
  %v6613 = vunpack.c.l.s4 1983009808
  %v6614 = vunpack.c.0.s8 %v6613
  %v6615 = vlaneseq
  %v6616 = vshrl.u32 %v6615, 7
  %v6617 = vsub.s32 %v6614, %v6616
  %v6618 = vrot.slane %v6611, %v6617
  %v6619 = vcombine.low %v1844, %v6618
  %v6620 = vcombine.low %v1036, %v2029
  %v6622 = vunpack.c.l.s4 1983009808
  %v6623 = vunpack.c.0.s8 %v6622
  %v6624 = vlaneseq
  %v6625 = vshrl.u32 %v6624, 7
  %v6626 = vsub.s32 %v6623, %v6625
  %v6627 = vrot.slane %v6620, %v6626
  %v6628 = vcombine.low %v6627, %v1885
  %v6629 = vcombine.low %v2030, %v4766
  %v6630 = vcombine.low %v4765, %v4767
  %v6632 = vunpack.c.l.s4 1983009808
  %v6633 = vunpack.c.0.s8 %v6632
  %v6634 = vlaneseq
  %v6635 = vshrl.u32 %v6634, 7
  %v6636 = vsub.s32 %v6633, %v6635
  %v6637 = vrot.slane %v6629, %v6636
  %v6639 = vunpack.c.l.s4 1983009808
  %v6640 = vunpack.c.0.s8 %v6639
  %v6641 = vlaneseq
  %v6642 = vshrl.u32 %v6641, 7
  %v6643 = vsub.s32 %v6640, %v6642
  %v6644 = vrot.slane %v6630, %v6643
  %v6645 = vcombine.low %v6637, %v6644
  %v6646 = vcombine.low %v4775, %v4783
  %v6647 = vcombine.low %v4782, %v5303
  %v6649 = vunpack.c.l.s4 1983009808
  %v6650 = vunpack.c.0.s8 %v6649
  %v6651 = vlaneseq
  %v6652 = vshrl.u32 %v6651, 7
  %v6653 = vsub.s32 %v6650, %v6652
  %v6654 = vrot.slane %v6646, %v6653
  %v6656 = vunpack.c.l.s4 1983009808
  %v6657 = vunpack.c.0.s8 %v6656
  %v6658 = vlaneseq
  %v6659 = vshrl.u32 %v6658, 7
  %v6660 = vsub.s32 %v6657, %v6659
  %v6661 = vrot.slane %v6647, %v6660
  %v6662 = vcombine.low %v6654, %v6661
  %6663 = vrot.lane.b32.xlu0 %v1121, 20
  %v6664 = vpop.permute.xlu0 %6663
  %6665 = vrot.lane.b32.xlu0 %v6386, 20
  %v6666 = vpop.permute.xlu0 %6665
  %6667 = vrot.lane.b32.xlu0 %v1155, 20
  %v6668 = vpop.permute.xlu0 %6667
  %6669 = vrot.lane.b32.xlu0 %v6395, 20
  %v6670 = vpop.permute.xlu0 %6669
  %6671 = vrot.lane.b32.xlu0 %v1189, 20
  %v6672 = vpop.permute.xlu0 %6671
  %6673 = vrot.lane.b32.xlu0 %v6404, 20
  %v6674 = vpop.permute.xlu0 %6673
  %6675 = vrot.lane.b32.xlu0 %v6413, 20
  %v6676 = vpop.permute.xlu0 %6675
  %6677 = vrot.lane.b32.xlu0 %v1240, 20
  %v6678 = vpop.permute.xlu0 %6677
  %6679 = vrot.lane.b32.xlu0 %v6422, 20
  %v6680 = vpop.permute.xlu0 %6679
  %6681 = vrot.lane.b32.xlu0 %v1274, 20
  %v6682 = vpop.permute.xlu0 %6681
  %6683 = vrot.lane.b32.xlu0 %v6431, 20
  %v6684 = vpop.permute.xlu0 %6683
  %6685 = vrot.lane.b32.xlu0 %v1308, 20
  %v6686 = vpop.permute.xlu0 %6685
  %6687 = vrot.lane.b32.xlu0 %v6440, 20
  %v6688 = vpop.permute.xlu0 %6687
  %6689 = vrot.lane.b32.xlu0 %v6449, 20
  %v6690 = vpop.permute.xlu0 %6689
  %6691 = vrot.lane.b32.xlu0 %v1359, 20
  %v6692 = vpop.permute.xlu0 %6691
  %6693 = vrot.lane.b32.xlu0 %v6458, 20
  %v6694 = vpop.permute.xlu0 %6693
  %6695 = vrot.lane.b32.xlu0 %v1393, 20
  %v6696 = vpop.permute.xlu0 %6695
  %6697 = vrot.lane.b32.xlu0 %v6467, 20
  %v6698 = vpop.permute.xlu0 %6697
  %6699 = vrot.lane.b32.xlu0 %v1427, 20
  %v6700 = vpop.permute.xlu0 %6699
  %6701 = vrot.lane.b32.xlu0 %v6476, 20
  %v6702 = vpop.permute.xlu0 %6701
  %6703 = vrot.lane.b32.xlu0 %v6485, 20
  %v6704 = vpop.permute.xlu0 %6703
  %6705 = vrot.lane.b32.xlu0 %v1478, 20
  %v6706 = vpop.permute.xlu0 %6705
  %6707 = vrot.lane.b32.xlu0 %v6494, 20
  %v6708 = vpop.permute.xlu0 %6707
  %6709 = vrot.lane.b32.xlu0 %v6511, 20
  %v6710 = vpop.permute.xlu0 %6709
  %6711 = vrot.lane.b32.xlu0 %v6520, 20
  %v6712 = vpop.permute.xlu0 %6711
  %6713 = vrot.lane.b32.xlu0 %v1546, 20
  %v6714 = vpop.permute.xlu0 %6713
  %6715 = vrot.lane.b32.xlu0 %v6529, 20
  %v6716 = vpop.permute.xlu0 %6715
  %6717 = vrot.lane.b32.xlu0 %v6538, 20
  %v6718 = vpop.permute.xlu0 %6717
  %6719 = vrot.lane.b32.xlu0 %v1597, 20
  %v6720 = vpop.permute.xlu0 %6719
  %6721 = vrot.lane.b32.xlu0 %v6547, 20
  %v6722 = vpop.permute.xlu0 %6721
  %6723 = vrot.lane.b32.xlu0 %v1631, 20
  %v6724 = vpop.permute.xlu0 %6723
  %6725 = vrot.lane.b32.xlu0 %v6556, 20
  %v6726 = vpop.permute.xlu0 %6725
  %6727 = vrot.lane.b32.xlu0 %v1665, 20
  %v6728 = vpop.permute.xlu0 %6727
  %6729 = vrot.lane.b32.xlu0 %v6565, 20
  %v6730 = vpop.permute.xlu0 %6729
  %6731 = vrot.lane.b32.xlu0 %v6574, 20
  %v6732 = vpop.permute.xlu0 %6731
  %6733 = vrot.lane.b32.xlu0 %v1716, 20
  %v6734 = vpop.permute.xlu0 %6733
  %6735 = vrot.lane.b32.xlu0 %v6583, 20
  %v6736 = vpop.permute.xlu0 %6735
  %6737 = vrot.lane.b32.xlu0 %v1750, 20
  %v6738 = vpop.permute.xlu0 %6737
  %6739 = vrot.lane.b32.xlu0 %v6592, 20
  %v6740 = vpop.permute.xlu0 %6739
  %6741 = vrot.lane.b32.xlu0 %v1784, 20
  %v6742 = vpop.permute.xlu0 %6741
  %6743 = vrot.lane.b32.xlu0 %v6601, 20
  %v6744 = vpop.permute.xlu0 %6743
  %6745 = vrot.lane.b32.xlu0 %v6610, 20
  %v6746 = vpop.permute.xlu0 %6745
  %6747 = vrot.lane.b32.xlu0 %v1835, 20
  %v6748 = vpop.permute.xlu0 %6747
  %6749 = vrot.lane.b32.xlu0 %v6619, 20
  %v6750 = vpop.permute.xlu0 %6749
  %6751 = vrot.lane.b32.xlu0 %v1869, 20
  %v6752 = vpop.permute.xlu0 %6751
  %6753 = vrot.lane.b32.xlu0 %v6628, 20
  %v6754 = vpop.permute.xlu0 %6753
  %6755 = vrot.lane.b32.xlu0 %v1903, 20
  %v6756 = vpop.permute.xlu0 %6755
  %6757 = vrot.lane.b32.xlu0 %v6645, 20
  %v6758 = vpop.permute.xlu0 %6757
  %6759 = vrot.lane.b32.xlu0 %v6662, 20
  %v6760 = vpop.permute.xlu0 %6759
  %vm6810 = vcmask 195744
  %6811 = vst.msk [vmem:[#allocation2] sm:$0xff] %vm6810, %v6664
  %6812 = vst.msk [vmem:[#allocation2 + $0x8] sm:$0xff] %vm6810, %v6666
  %6813 = vst.msk [vmem:[#allocation2 + $0x10] sm:$0xff] %vm6810, %v6668
  %6814 = vst.msk [vmem:[#allocation2 + $0x18] sm:$0xff] %vm6810, %v6670
  %6815 = vst.msk [vmem:[#allocation2 + $0x20] sm:$0xff] %vm6810, %v6672
  %6816 = vst.msk [vmem:[#allocation2 + $0x28] sm:$0xff] %vm6810, %v6674
  %6817 = vst.msk [vmem:[#allocation2 + $0x30] sm:$0xff] %vm6810, %v6676
  %6818 = vst.msk [vmem:[#allocation2 + $0x38] sm:$0xff] %vm6810, %v6678
  %6819 = vst.msk [vmem:[#allocation2 + $0x40] sm:$0xff] %vm6810, %v6680
  %6820 = vst.msk [vmem:[#allocation2 + $0x48] sm:$0xff] %vm6810, %v6682
  %6821 = vst.msk [vmem:[#allocation2 + $0x50] sm:$0xff] %vm6810, %v6684
  %6822 = vst.msk [vmem:[#allocation2 + $0x58] sm:$0xff] %vm6810, %v6686
  %6823 = vst.msk [vmem:[#allocation2 + $0x60] sm:$0xff] %vm6810, %v6688
  %6824 = vst.msk [vmem:[#allocation2 + $0x68] sm:$0xff] %vm6810, %v6690
  %6825 = vst.msk [vmem:[#allocation2 + $0x70] sm:$0xff] %vm6810, %v6692
  %6826 = vst.msk [vmem:[#allocation2 + $0x78] sm:$0xff] %vm6810, %v6694
  %6827 = vst.msk [vmem:[#allocation2 + $0x80] sm:$0xff] %vm6810, %v6696
  %6828 = vst.msk [vmem:[#allocation2 + $0x88] sm:$0xff] %vm6810, %v6698
  %6829 = vst.msk [vmem:[#allocation2 + $0x90] sm:$0xff] %vm6810, %v6700
  %6830 = vst.msk [vmem:[#allocation2 + $0x98] sm:$0xff] %vm6810, %v6702
  %6831 = vst.msk [vmem:[#allocation2 + $0xa0] sm:$0xff] %vm6810, %v6704
  %6832 = vst.msk [vmem:[#allocation2 + $0xa8] sm:$0xff] %vm6810, %v6706
  %6833 = vst.msk [vmem:[#allocation2 + $0xb0] sm:$0xff] %vm6810, %v6708
  %6834 = vst.msk [vmem:[#allocation2 + $0xb8] sm:$0xff] %vm6810, %v6710
  %6835 = vst.msk [vmem:[#allocation2 + $0xc0] sm:$0xff] %vm6810, %v6712
  %6836 = vst.msk [vmem:[#allocation2 + $0xc8] sm:$0xff] %vm6810, %v6714
  %6837 = vst.msk [vmem:[#allocation2 + $0xd0] sm:$0xff] %vm6810, %v6716
  %6838 = vst.msk [vmem:[#allocation2 + $0xd8] sm:$0xff] %vm6810, %v6718
  %6839 = vst.msk [vmem:[#allocation2 + $0xe0] sm:$0xff] %vm6810, %v6720
  %6840 = vst.msk [vmem:[#allocation2 + $0xe8] sm:$0xff] %vm6810, %v6722
  %6841 = vst.msk [vmem:[#allocation2 + $0xf0] sm:$0xff] %vm6810, %v6724
  %6842 = vst.msk [vmem:[#allocation2 + $0xf8] sm:$0xff] %vm6810, %v6726
  %6843 = vst.msk [vmem:[#allocation2 + $0x100] sm:$0xff] %vm6810, %v6728
  %6844 = vst.msk [vmem:[#allocation2 + $0x108] sm:$0xff] %vm6810, %v6730
  %6845 = vst.msk [vmem:[#allocation2 + $0x110] sm:$0xff] %vm6810, %v6732
  %6846 = vst.msk [vmem:[#allocation2 + $0x118] sm:$0xff] %vm6810, %v6734
  %6847 = vst.msk [vmem:[#allocation2 + $0x120] sm:$0xff] %vm6810, %v6736
  %6848 = vst.msk [vmem:[#allocation2 + $0x128] sm:$0xff] %vm6810, %v6738
  %6849 = vst.msk [vmem:[#allocation2 + $0x130] sm:$0xff] %vm6810, %v6740
  %6850 = vst.msk [vmem:[#allocation2 + $0x138] sm:$0xff] %vm6810, %v6742
  %6851 = vst.msk [vmem:[#allocation2 + $0x140] sm:$0xff] %vm6810, %v6744
  %6852 = vst.msk [vmem:[#allocation2 + $0x148] sm:$0xff] %vm6810, %v6746
  %6853 = vst.msk [vmem:[#allocation2 + $0x150] sm:$0xff] %vm6810, %v6748
  %6854 = vst.msk [vmem:[#allocation2 + $0x158] sm:$0xff] %vm6810, %v6750
  %6855 = vst.msk [vmem:[#allocation2 + $0x160] sm:$0xff] %vm6810, %v6752
  %6856 = vst.msk [vmem:[#allocation2 + $0x168] sm:$0xff] %vm6810, %v6754
  %6857 = vst.msk [vmem:[#allocation2 + $0x170] sm:$0xff] %vm6810, %v6756
  %6858 = vst.msk [vmem:[#allocation2 + $0x178] sm:$0xff] %vm6810, %v6758
  %6859 = vst.msk [vmem:[#allocation2 + $0x180] sm:$0xff] %vm6810, %v6760
  %v6864 = vcombine.high %v57, %v57
  %v6866 = vunpack.c.l.s4 1983009808
  %v6867 = vunpack.c.0.s8 %v6866
  %v6868 = vlaneseq
  %v6869 = vshrl.u32 %v6868, 7
  %v6870 = vsub.s32 %v6867, %v6869
  %v6871 = vrot.slane %v57, %v6870
  %v6873 = vunpack.c.l.s4 1983009808
  %v6874 = vunpack.c.0.s8 %v6873
  %v6875 = vlaneseq
  %v6876 = vshrl.u32 %v6875, 7
  %v6877 = vsub.s32 %v6874, %v6876
  %v6878 = vrot.slane %v6864, %v6877
  %v6879 = vcombine.high %v6871, %v6871
  %v6880 = vcombine.high %v6878, %v6878
  %v6881 = vcombine.high %v58, %v58
  %v6883 = vunpack.c.l.s4 1983009808
  %v6884 = vunpack.c.0.s8 %v6883
  %v6885 = vlaneseq
  %v6886 = vshrl.u32 %v6885, 7
  %v6887 = vsub.s32 %v6884, %v6886
  %v6888 = vrot.slane %v58, %v6887
  %v6890 = vunpack.c.l.s4 1983009808
  %v6891 = vunpack.c.0.s8 %v6890
  %v6892 = vlaneseq
  %v6893 = vshrl.u32 %v6892, 7
  %v6894 = vsub.s32 %v6891, %v6893
  %v6895 = vrot.slane %v6881, %v6894
  %v6896 = vcombine.high %v6888, %v6888
  %v6897 = vcombine.high %v89, %v89
  %v6899 = vunpack.c.l.s4 1983009808
  %v6900 = vunpack.c.0.s8 %v6899
  %v6901 = vlaneseq
  %v6902 = vshrl.u32 %v6901, 7
  %v6903 = vsub.s32 %v6900, %v6902
  %v6904 = vrot.slane %v89, %v6903
  %v6906 = vunpack.c.l.s4 1983009808
  %v6907 = vunpack.c.0.s8 %v6906
  %v6908 = vlaneseq
  %v6909 = vshrl.u32 %v6908, 7
  %v6910 = vsub.s32 %v6907, %v6909
  %v6911 = vrot.slane %v6897, %v6910
  %v6912 = vcombine.high %v6904, %v6904
  %v6913 = vcombine.high %v6911, %v6911
  %v6914 = vcombine.high %v90, %v90
  %v6916 = vunpack.c.l.s4 1983009808
  %v6917 = vunpack.c.0.s8 %v6916
  %v6918 = vlaneseq
  %v6919 = vshrl.u32 %v6918, 7
  %v6920 = vsub.s32 %v6917, %v6919
  %v6921 = vrot.slane %v90, %v6920
  %v6923 = vunpack.c.l.s4 1983009808
  %v6924 = vunpack.c.0.s8 %v6923
  %v6925 = vlaneseq
  %v6926 = vshrl.u32 %v6925, 7
  %v6927 = vsub.s32 %v6924, %v6926
  %v6928 = vrot.slane %v6914, %v6927
  %v6929 = vcombine.high %v6921, %v6921
  %v6930 = vcombine.low %v1137, %v1147
  %v6931 = vcombine.low %v1154, %v1164
  %v6932 = vcombine.low %v1171, %v1181
  %v6933 = vcombine.low %v1188, %v1198
  %v6934 = vcombine.low %v1205, %v1215
  %v6935 = vcombine.low %v1222, %v1232
  %v6936 = vcombine.low %v1239, %v1249
  %v6937 = vcombine.low %v1256, %v1266
  %v6938 = vcombine.low %v1273, %v1283
  %v6939 = vcombine.low %v1290, %v1300
  %v6940 = vcombine.low %v1307, %v1317
  %v6941 = vcombine.low %v1324, %v1334
  %v6942 = vcombine.low %v1341, %v1351
  %v6943 = vcombine.low %v1358, %v1368
  %v6944 = vcombine.low %v1375, %v1385
  %v6945 = vcombine.low %v1392, %v1402
  %v6946 = vcombine.low %v1409, %v1419
  %v6947 = vcombine.low %v1426, %v1436
  %v6948 = vcombine.low %v1443, %v1453
  %v6949 = vcombine.low %v1460, %v1470
  %v6950 = vcombine.low %v1477, %v1487
  %v6951 = vcombine.low %v4725, %v4733
  %v6953 = vunpack.c.l.s4 1983009808
  %v6954 = vunpack.c.0.s8 %v6953
  %v6955 = vlaneseq
  %v6956 = vshrl.u32 %v6955, 7
  %v6957 = vsub.s32 %v6954, %v6956
  %v6958 = vrot.slane %v6951, %v6957
  %v6959 = vcombine.low %v6958, %v6503
  %v6960 = vcombine.low %v4749, %v6871
  %v6962 = vunpack.c.l.s4 1983009808
  %v6963 = vunpack.c.0.s8 %v6962
  %v6964 = vlaneseq
  %v6965 = vshrl.u32 %v6964, 7
  %v6966 = vsub.s32 %v6963, %v6965
  %v6967 = vrot.slane %v6960, %v6966
  %v6968 = vcombine.low %v6510, %v6967
  %v6969 = vcombine.low %v6879, %v6878
  %v6970 = vcombine.low %v6880, %v6888
  %v6972 = vunpack.c.l.s4 1983009808
  %v6973 = vunpack.c.0.s8 %v6972
  %v6974 = vlaneseq
  %v6975 = vshrl.u32 %v6974, 7
  %v6976 = vsub.s32 %v6973, %v6975
  %v6977 = vrot.slane %v6969, %v6976
  %v6979 = vunpack.c.l.s4 1983009808
  %v6980 = vunpack.c.0.s8 %v6979
  %v6981 = vlaneseq
  %v6982 = vshrl.u32 %v6981, 7
  %v6983 = vsub.s32 %v6980, %v6982
  %v6984 = vrot.slane %v6970, %v6983
  %v6985 = vcombine.low %v6977, %v6984
  %v6986 = vcombine.low %v6896, %v6895
  %v6988 = vunpack.c.l.s4 1983009808
  %v6989 = vunpack.c.0.s8 %v6988
  %v6990 = vlaneseq
  %v6991 = vshrl.u32 %v6990, 7
  %v6992 = vsub.s32 %v6989, %v6991
  %v6993 = vrot.slane %v6986, %v6992
  %v6994 = vcombine.low %v6993, %v1555
  %v6995 = vcombine.low %v1562, %v1572
  %v6996 = vcombine.low %v1579, %v1589
  %v6997 = vcombine.low %v1596, %v1606
  %v6998 = vcombine.low %v1613, %v1623
  %v6999 = vcombine.low %v1630, %v1640
  %v7000 = vcombine.low %v1647, %v1657
  %v7001 = vcombine.low %v1664, %v1674
  %v7002 = vcombine.low %v1681, %v1691
  %v7003 = vcombine.low %v1698, %v1708
  %v7004 = vcombine.low %v1715, %v1725
  %v7005 = vcombine.low %v1732, %v1742
  %v7006 = vcombine.low %v1749, %v1759
  %v7007 = vcombine.low %v1766, %v1776
  %v7008 = vcombine.low %v1783, %v1793
  %v7009 = vcombine.low %v1800, %v1810
  %v7010 = vcombine.low %v1817, %v1827
  %v7011 = vcombine.low %v1834, %v1844
  %v7012 = vcombine.low %v1851, %v1861
  %v7013 = vcombine.low %v1868, %v1878
  %v7014 = vcombine.low %v1885, %v1895
  %v7015 = vcombine.low %v4758, %v4766
  %v7017 = vunpack.c.l.s4 1983009808
  %v7018 = vunpack.c.0.s8 %v7017
  %v7019 = vlaneseq
  %v7020 = vshrl.u32 %v7019, 7
  %v7021 = vsub.s32 %v7018, %v7020
  %v7022 = vrot.slane %v7015, %v7021
  %v7023 = vcombine.low %v1902, %v7022
  %v7024 = vcombine.low %v6644, %v6654
  %v7025 = vcombine.low %v4782, %v6904
  %v7026 = vcombine.low %v6912, %v6911
  %v7028 = vunpack.c.l.s4 1983009808
  %v7029 = vunpack.c.0.s8 %v7028
  %v7030 = vlaneseq
  %v7031 = vshrl.u32 %v7030, 7
  %v7032 = vsub.s32 %v7029, %v7031
  %v7033 = vrot.slane %v7025, %v7032
  %v7035 = vunpack.c.l.s4 1983009808
  %v7036 = vunpack.c.0.s8 %v7035
  %v7037 = vlaneseq
  %v7038 = vshrl.u32 %v7037, 7
  %v7039 = vsub.s32 %v7036, %v7038
  %v7040 = vrot.slane %v7026, %v7039
  %v7041 = vcombine.low %v7033, %v7040
  %v7042 = vcombine.low %v6913, %v6921
  %v7043 = vcombine.low %v6929, %v6928
  %v7045 = vunpack.c.l.s4 1983009808
  %v7046 = vunpack.c.0.s8 %v7045
  %v7047 = vlaneseq
  %v7048 = vshrl.u32 %v7047, 7
  %v7049 = vsub.s32 %v7046, %v7048
  %v7050 = vrot.slane %v7042, %v7049
  %v7052 = vunpack.c.l.s4 1983009808
  %v7053 = vunpack.c.0.s8 %v7052
  %v7054 = vlaneseq
  %v7055 = vshrl.u32 %v7054, 7
  %v7056 = vsub.s32 %v7053, %v7055
  %v7057 = vrot.slane %v7043, %v7056
  %v7058 = vcombine.low %v7050, %v7057
  %7059 = vrot.lane.b32.xlu0 %v6930, 24
  %v7060 = vpop.permute.xlu0 %7059
  %7061 = vrot.lane.b32.xlu0 %v6931, 24
  %v7062 = vpop.permute.xlu0 %7061
  %7063 = vrot.lane.b32.xlu0 %v6932, 24
  %v7064 = vpop.permute.xlu0 %7063
  %7065 = vrot.lane.b32.xlu0 %v6933, 24
  %v7066 = vpop.permute.xlu0 %7065
  %7067 = vrot.lane.b32.xlu0 %v6934, 24
  %v7068 = vpop.permute.xlu0 %7067
  %7069 = vrot.lane.b32.xlu0 %v6935, 24
  %v7070 = vpop.permute.xlu0 %7069
  %7071 = vrot.lane.b32.xlu0 %v6936, 24
  %v7072 = vpop.permute.xlu0 %7071
  %7073 = vrot.lane.b32.xlu0 %v6937, 24
  %v7074 = vpop.permute.xlu0 %7073
  %7075 = vrot.lane.b32.xlu0 %v6938, 24
  %v7076 = vpop.permute.xlu0 %7075
  %7077 = vrot.lane.b32.xlu0 %v6939, 24
  %v7078 = vpop.permute.xlu0 %7077
  %7079 = vrot.lane.b32.xlu0 %v6940, 24
  %v7080 = vpop.permute.xlu0 %7079
  %7081 = vrot.lane.b32.xlu0 %v6941, 24
  %v7082 = vpop.permute.xlu0 %7081
  %7083 = vrot.lane.b32.xlu0 %v6942, 24
  %v7084 = vpop.permute.xlu0 %7083
  %7085 = vrot.lane.b32.xlu0 %v6943, 24
  %v7086 = vpop.permute.xlu0 %7085
  %7087 = vrot.lane.b32.xlu0 %v6944, 24
  %v7088 = vpop.permute.xlu0 %7087
  %7089 = vrot.lane.b32.xlu0 %v6945, 24
  %v7090 = vpop.permute.xlu0 %7089
  %7091 = vrot.lane.b32.xlu0 %v6946, 24
  %v7092 = vpop.permute.xlu0 %7091
  %7093 = vrot.lane.b32.xlu0 %v6947, 24
  %v7094 = vpop.permute.xlu0 %7093
  %7095 = vrot.lane.b32.xlu0 %v6948, 24
  %v7096 = vpop.permute.xlu0 %7095
  %7097 = vrot.lane.b32.xlu0 %v6949, 24
  %v7098 = vpop.permute.xlu0 %7097
  %7099 = vrot.lane.b32.xlu0 %v6950, 24
  %v7100 = vpop.permute.xlu0 %7099
  %7101 = vrot.lane.b32.xlu0 %v6959, 24
  %v7102 = vpop.permute.xlu0 %7101
  %7103 = vrot.lane.b32.xlu0 %v6968, 24
  %v7104 = vpop.permute.xlu0 %7103
  %7105 = vrot.lane.b32.xlu0 %v6985, 24
  %v7106 = vpop.permute.xlu0 %7105
  %7107 = vrot.lane.b32.xlu0 %v6994, 24
  %v7108 = vpop.permute.xlu0 %7107
  %7109 = vrot.lane.b32.xlu0 %v6995, 24
  %v7110 = vpop.permute.xlu0 %7109
  %7111 = vrot.lane.b32.xlu0 %v6996, 24
  %v7112 = vpop.permute.xlu0 %7111
  %7113 = vrot.lane.b32.xlu0 %v6997, 24
  %v7114 = vpop.permute.xlu0 %7113
  %7115 = vrot.lane.b32.xlu0 %v6998, 24
  %v7116 = vpop.permute.xlu0 %7115
  %7117 = vrot.lane.b32.xlu0 %v6999, 24
  %v7118 = vpop.permute.xlu0 %7117
  %7119 = vrot.lane.b32.xlu0 %v7000, 24
  %v7120 = vpop.permute.xlu0 %7119
  %7121 = vrot.lane.b32.xlu0 %v7001, 24
  %v7122 = vpop.permute.xlu0 %7121
  %7123 = vrot.lane.b32.xlu0 %v7002, 24
  %v7124 = vpop.permute.xlu0 %7123
  %7125 = vrot.lane.b32.xlu0 %v7003, 24
  %v7126 = vpop.permute.xlu0 %7125
  %7127 = vrot.lane.b32.xlu0 %v7004, 24
  %v7128 = vpop.permute.xlu0 %7127
  %7129 = vrot.lane.b32.xlu0 %v7005, 24
  %v7130 = vpop.permute.xlu0 %7129
  %7131 = vrot.lane.b32.xlu0 %v7006, 24
  %v7132 = vpop.permute.xlu0 %7131
  %7133 = vrot.lane.b32.xlu0 %v7007, 24
  %v7134 = vpop.permute.xlu0 %7133
  %7135 = vrot.lane.b32.xlu0 %v7008, 24
  %v7136 = vpop.permute.xlu0 %7135
  %7137 = vrot.lane.b32.xlu0 %v7009, 24
  %v7138 = vpop.permute.xlu0 %7137
  %7139 = vrot.lane.b32.xlu0 %v7010, 24
  %v7140 = vpop.permute.xlu0 %7139
  %7141 = vrot.lane.b32.xlu0 %v7011, 24
  %v7142 = vpop.permute.xlu0 %7141
  %7143 = vrot.lane.b32.xlu0 %v7012, 24
  %v7144 = vpop.permute.xlu0 %7143
  %7145 = vrot.lane.b32.xlu0 %v7013, 24
  %v7146 = vpop.permute.xlu0 %7145
  %7147 = vrot.lane.b32.xlu0 %v7014, 24
  %v7148 = vpop.permute.xlu0 %7147
  %7149 = vrot.lane.b32.xlu0 %v7023, 24
  %v7150 = vpop.permute.xlu0 %7149
  %7151 = vrot.lane.b32.xlu0 %v7024, 24
  %v7152 = vpop.permute.xlu0 %7151
  %7153 = vrot.lane.b32.xlu0 %v7041, 24
  %v7154 = vpop.permute.xlu0 %7153
  %7155 = vrot.lane.b32.xlu0 %v7058, 24
  %v7156 = vpop.permute.xlu0 %7155
  %vm7206 = vcmask 228544
  %7207 = vst.msk [vmem:[#allocation2] sm:$0xff] %vm7206, %v7060
  %7208 = vst.msk [vmem:[#allocation2 + $0x8] sm:$0xff] %vm7206, %v7062
  %7209 = vst.msk [vmem:[#allocation2 + $0x10] sm:$0xff] %vm7206, %v7064
  %7210 = vst.msk [vmem:[#allocation2 + $0x18] sm:$0xff] %vm7206, %v7066
  %7211 = vst.msk [vmem:[#allocation2 + $0x20] sm:$0xff] %vm7206, %v7068
  %7212 = vst.msk [vmem:[#allocation2 + $0x28] sm:$0xff] %vm7206, %v7070
  %7213 = vst.msk [vmem:[#allocation2 + $0x30] sm:$0xff] %vm7206, %v7072
  %7214 = vst.msk [vmem:[#allocation2 + $0x38] sm:$0xff] %vm7206, %v7074
  %7215 = vst.msk [vmem:[#allocation2 + $0x40] sm:$0xff] %vm7206, %v7076
  %7216 = vst.msk [vmem:[#allocation2 + $0x48] sm:$0xff] %vm7206, %v7078
  %7217 = vst.msk [vmem:[#allocation2 + $0x50] sm:$0xff] %vm7206, %v7080
  %7218 = vst.msk [vmem:[#allocation2 + $0x58] sm:$0xff] %vm7206, %v7082
  %7219 = vst.msk [vmem:[#allocation2 + $0x60] sm:$0xff] %vm7206, %v7084
  %7220 = vst.msk [vmem:[#allocation2 + $0x68] sm:$0xff] %vm7206, %v7086
  %7221 = vst.msk [vmem:[#allocation2 + $0x70] sm:$0xff] %vm7206, %v7088
  %7222 = vst.msk [vmem:[#allocation2 + $0x78] sm:$0xff] %vm7206, %v7090
  %7223 = vst.msk [vmem:[#allocation2 + $0x80] sm:$0xff] %vm7206, %v7092
  %7224 = vst.msk [vmem:[#allocation2 + $0x88] sm:$0xff] %vm7206, %v7094
  %7225 = vst.msk [vmem:[#allocation2 + $0x90] sm:$0xff] %vm7206, %v7096
  %7226 = vst.msk [vmem:[#allocation2 + $0x98] sm:$0xff] %vm7206, %v7098
  %7227 = vst.msk [vmem:[#allocation2 + $0xa0] sm:$0xff] %vm7206, %v7100
  %7228 = vst.msk [vmem:[#allocation2 + $0xa8] sm:$0xff] %vm7206, %v7102
  %7229 = vst.msk [vmem:[#allocation2 + $0xb0] sm:$0xff] %vm7206, %v7104
  %7230 = vst.msk [vmem:[#allocation2 + $0xb8] sm:$0xff] %vm7206, %v7106
  %7231 = vst.msk [vmem:[#allocation2 + $0xc0] sm:$0xff] %vm7206, %v7108
  %7232 = vst.msk [vmem:[#allocation2 + $0xc8] sm:$0xff] %vm7206, %v7110
  %7233 = vst.msk [vmem:[#allocation2 + $0xd0] sm:$0xff] %vm7206, %v7112
  %7234 = vst.msk [vmem:[#allocation2 + $0xd8] sm:$0xff] %vm7206, %v7114
  %7235 = vst.msk [vmem:[#allocation2 + $0xe0] sm:$0xff] %vm7206, %v7116
  %7236 = vst.msk [vmem:[#allocation2 + $0xe8] sm:$0xff] %vm7206, %v7118
  %7237 = vst.msk [vmem:[#allocation2 + $0xf0] sm:$0xff] %vm7206, %v7120
  %7238 = vst.msk [vmem:[#allocation2 + $0xf8] sm:$0xff] %vm7206, %v7122
  %7239 = vst.msk [vmem:[#allocation2 + $0x100] sm:$0xff] %vm7206, %v7124
  %7240 = vst.msk [vmem:[#allocation2 + $0x108] sm:$0xff] %vm7206, %v7126
  %7241 = vst.msk [vmem:[#allocation2 + $0x110] sm:$0xff] %vm7206, %v7128
  %7242 = vst.msk [vmem:[#allocation2 + $0x118] sm:$0xff] %vm7206, %v7130
  %7243 = vst.msk [vmem:[#allocation2 + $0x120] sm:$0xff] %vm7206, %v7132
  %7244 = vst.msk [vmem:[#allocation2 + $0x128] sm:$0xff] %vm7206, %v7134
  %7245 = vst.msk [vmem:[#allocation2 + $0x130] sm:$0xff] %vm7206, %v7136
  %7246 = vst.msk [vmem:[#allocation2 + $0x138] sm:$0xff] %vm7206, %v7138
  %7247 = vst.msk [vmem:[#allocation2 + $0x140] sm:$0xff] %vm7206, %v7140
  %7248 = vst.msk [vmem:[#allocation2 + $0x148] sm:$0xff] %vm7206, %v7142
  %7249 = vst.msk [vmem:[#allocation2 + $0x150] sm:$0xff] %vm7206, %v7144
  %7250 = vst.msk [vmem:[#allocation2 + $0x158] sm:$0xff] %vm7206, %v7146
  %7251 = vst.msk [vmem:[#allocation2 + $0x160] sm:$0xff] %vm7206, %v7148
  %7252 = vst.msk [vmem:[#allocation2 + $0x168] sm:$0xff] %vm7206, %v7150
  %7253 = vst.msk [vmem:[#allocation2 + $0x170] sm:$0xff] %vm7206, %v7152
  %7254 = vst.msk [vmem:[#allocation2 + $0x178] sm:$0xff] %vm7206, %v7154
  %7255 = vst.msk [vmem:[#allocation2 + $0x180] sm:$0xff] %vm7206, %v7156
  %v7256 = vcombine.high %v6895, %v6895
  %v7257 = vcombine.high %v6928, %v6928
  %v7258 = vrot.slane %v6871, 7
  %v7259 = vrot.slane %v7258, 2
  %v7260 = vrot.slane %v6879, 7
  %v7261 = vsel %vm2037, %v7259, %v7260
  %v7262 = vrot.slane %v7260, 2
  %v7263 = vrot.slane %v6878, 7
  %v7264 = vsel %vm2037, %v7262, %v7263
  %v7265 = vrot.slane %v7263, 2
  %v7266 = vrot.slane %v6880, 7
  %v7267 = vsel %vm2037, %v7265, %v7266
  %v7268 = vrot.slane %v7266, 2
  %v7269 = vrot.slane %v6888, 7
  %v7270 = vsel %vm2037, %v7268, %v7269
  %v7271 = vrot.slane %v7269, 2
  %v7272 = vrot.slane %v6896, 7
  %v7273 = vsel %vm2037, %v7271, %v7272
  %v7274 = vrot.slane %v7272, 2
  %v7275 = vrot.slane %v6895, 7
  %v7276 = vsel %vm2037, %v7274, %v7275
  %v7277 = vrot.slane %v7275, 2
  %v7278 = vrot.slane %v7256, 7
  %v7279 = vsel %vm2037, %v7277, %v7278
  %v7280 = vrot.slane %v6904, 7
  %v7281 = vrot.slane %v7280, 2
  %v7282 = vrot.slane %v6912, 7
  %v7283 = vsel %vm2037, %v7281, %v7282
  %v7284 = vrot.slane %v7282, 2
  %v7285 = vrot.slane %v6911, 7
  %v7286 = vsel %vm2037, %v7284, %v7285
  %v7287 = vrot.slane %v7285, 2
  %v7288 = vrot.slane %v6913, 7
  %v7289 = vsel %vm2037, %v7287, %v7288
  %v7290 = vrot.slane %v7288, 2
  %v7291 = vrot.slane %v6921, 7
  %v7292 = vsel %vm2037, %v7290, %v7291
  %v7293 = vrot.slane %v7291, 2
  %v7294 = vrot.slane %v6929, 7
  %v7295 = vsel %vm2037, %v7293, %v7294
  %v7296 = vrot.slane %v7294, 2
  %v7297 = vrot.slane %v6928, 7
  %v7298 = vsel %vm2037, %v7296, %v7297
  %v7299 = vrot.slane %v7297, 2
  %v7300 = vrot.slane %v7257, 7
  %v7301 = vsel %vm2037, %v7299, %v7300
  %v7302 = vcombine.low %v2720, %v2730
  %v7303 = vcombine.low %v2737, %v2747
  %v7304 = vcombine.low %v2754, %v2764
  %v7305 = vcombine.low %v2771, %v2781
  %v7306 = vcombine.low %v2788, %v2798
  %v7307 = vcombine.low %v2805, %v2815
  %v7308 = vcombine.low %v2822, %v2832
  %v7309 = vcombine.low %v2839, %v2849
  %v7310 = vcombine.low %v2856, %v2866
  %v7311 = vcombine.low %v2873, %v2883
  %v7312 = vcombine.low %v2890, %v2900
  %v7313 = vcombine.low %v2907, %v2917
  %v7314 = vcombine.low %v2924, %v2934
  %v7315 = vcombine.low %v2941, %v2951
  %v7316 = vcombine.low %v2958, %v2968
  %v7317 = vcombine.low %v2975, %v2985
  %v7318 = vcombine.low %v2992, %v3002
  %v7319 = vcombine.low %v3009, %v3019
  %v7320 = vcombine.low %v3026, %v3036
  %v7321 = vcombine.low %v3043, %v3053
  %v7322 = vcombine.low %v3060, %v3070
  %v7323 = vcombine.low %v5307, %v5310
  %v7324 = vcombine.low %v5313, %v5316
  %v7326 = vunpack.c.l.s4 1983009808
  %v7327 = vunpack.c.0.s8 %v7326
  %v7328 = vlaneseq
  %v7329 = vshrl.u32 %v7328, 7
  %v7330 = vsub.s32 %v7327, %v7329
  %v7331 = vrot.slane %v7323, %v7330
  %v7333 = vunpack.c.l.s4 1983009808
  %v7334 = vunpack.c.0.s8 %v7333
  %v7335 = vlaneseq
  %v7336 = vshrl.u32 %v7335, 7
  %v7337 = vsub.s32 %v7334, %v7336
  %v7338 = vrot.slane %v7324, %v7337
  %v7339 = vcombine.low %v7331, %v7338
  %v7340 = vcombine.low %v5319, %v5322
  %v7341 = vcombine.low %v5325, %v7261
  %v7343 = vunpack.c.l.s4 1983009808
  %v7344 = vunpack.c.0.s8 %v7343
  %v7345 = vlaneseq
  %v7346 = vshrl.u32 %v7345, 7
  %v7347 = vsub.s32 %v7344, %v7346
  %v7348 = vrot.slane %v7340, %v7347
  %v7350 = vunpack.c.l.s4 1983009808
  %v7351 = vunpack.c.0.s8 %v7350
  %v7352 = vlaneseq
  %v7353 = vshrl.u32 %v7352, 7
  %v7354 = vsub.s32 %v7351, %v7353
  %v7355 = vrot.slane %v7341, %v7354
  %v7356 = vcombine.low %v7348, %v7355
  %v7357 = vcombine.low %v7264, %v7267
  %v7358 = vcombine.low %v7270, %v7273
  %v7360 = vunpack.c.l.s4 1983009808
  %v7361 = vunpack.c.0.s8 %v7360
  %v7362 = vlaneseq
  %v7363 = vshrl.u32 %v7362, 7
  %v7364 = vsub.s32 %v7361, %v7363
  %v7365 = vrot.slane %v7357, %v7364
  %v7367 = vunpack.c.l.s4 1983009808
  %v7368 = vunpack.c.0.s8 %v7367
  %v7369 = vlaneseq
  %v7370 = vshrl.u32 %v7369, 7
  %v7371 = vsub.s32 %v7368, %v7370
  %v7372 = vrot.slane %v7358, %v7371
  %v7373 = vcombine.low %v7365, %v7372
  %v7374 = vcombine.low %v7276, %v7279
  %v7376 = vunpack.c.l.s4 1983009808
  %v7377 = vunpack.c.0.s8 %v7376
  %v7378 = vlaneseq
  %v7379 = vshrl.u32 %v7378, 7
  %v7380 = vsub.s32 %v7377, %v7379
  %v7381 = vrot.slane %v7374, %v7380
  %v7382 = vcombine.low %v7381, %v3138
  %v7383 = vcombine.low %v3145, %v3155
  %v7384 = vcombine.low %v3162, %v3172
  %v7385 = vcombine.low %v3179, %v3189
  %v7386 = vcombine.low %v3196, %v3206
  %v7387 = vcombine.low %v3213, %v3223
  %v7388 = vcombine.low %v3230, %v3240
  %v7389 = vcombine.low %v3247, %v3257
  %v7390 = vcombine.low %v3264, %v3274
  %v7391 = vcombine.low %v3281, %v3291
  %v7392 = vcombine.low %v3298, %v3308
  %v7393 = vcombine.low %v3315, %v3325
  %v7394 = vcombine.low %v3332, %v3342
  %v7395 = vcombine.low %v3349, %v3359
  %v7396 = vcombine.low %v3366, %v3376
  %v7397 = vcombine.low %v3383, %v3393
  %v7398 = vcombine.low %v3400, %v3410
  %v7399 = vcombine.low %v3417, %v3427
  %v7400 = vcombine.low %v3434, %v3444
  %v7401 = vcombine.low %v3451, %v3461
  %v7402 = vcombine.low %v3468, %v3478
  %v7403 = vcombine.low %v5329, %v5332
  %v7405 = vunpack.c.l.s4 1983009808
  %v7406 = vunpack.c.0.s8 %v7405
  %v7407 = vlaneseq
  %v7408 = vshrl.u32 %v7407, 7
  %v7409 = vsub.s32 %v7406, %v7408
  %v7410 = vrot.slane %v7403, %v7409
  %v7411 = vcombine.low %v3485, %v7410
  %v7412 = vcombine.low %v5335, %v5338
  %v7413 = vcombine.low %v5341, %v5344
  %v7415 = vunpack.c.l.s4 1983009808
  %v7416 = vunpack.c.0.s8 %v7415
  %v7417 = vlaneseq
  %v7418 = vshrl.u32 %v7417, 7
  %v7419 = vsub.s32 %v7416, %v7418
  %v7420 = vrot.slane %v7412, %v7419
  %v7422 = vunpack.c.l.s4 1983009808
  %v7423 = vunpack.c.0.s8 %v7422
  %v7424 = vlaneseq
  %v7425 = vshrl.u32 %v7424, 7
  %v7426 = vsub.s32 %v7423, %v7425
  %v7427 = vrot.slane %v7413, %v7426
  %v7428 = vcombine.low %v7420, %v7427
  %v7429 = vcombine.low %v5347, %v7283
  %v7430 = vcombine.low %v7286, %v7289
  %v7432 = vunpack.c.l.s4 1983009808
  %v7433 = vunpack.c.0.s8 %v7432
  %v7434 = vlaneseq
  %v7435 = vshrl.u32 %v7434, 7
  %v7436 = vsub.s32 %v7433, %v7435
  %v7437 = vrot.slane %v7429, %v7436
  %v7439 = vunpack.c.l.s4 1983009808
  %v7440 = vunpack.c.0.s8 %v7439
  %v7441 = vlaneseq
  %v7442 = vshrl.u32 %v7441, 7
  %v7443 = vsub.s32 %v7440, %v7442
  %v7444 = vrot.slane %v7430, %v7443
  %v7445 = vcombine.low %v7437, %v7444
  %v7446 = vcombine.low %v7292, %v7295
  %v7447 = vcombine.low %v7298, %v7301
  %v7449 = vunpack.c.l.s4 1983009808
  %v7450 = vunpack.c.0.s8 %v7449
  %v7451 = vlaneseq
  %v7452 = vshrl.u32 %v7451, 7
  %v7453 = vsub.s32 %v7450, %v7452
  %v7454 = vrot.slane %v7446, %v7453
  %v7456 = vunpack.c.l.s4 1983009808
  %v7457 = vunpack.c.0.s8 %v7456
  %v7458 = vlaneseq
  %v7459 = vshrl.u32 %v7458, 7
  %v7460 = vsub.s32 %v7457, %v7459
  %v7461 = vrot.slane %v7447, %v7460
  %v7462 = vcombine.low %v7454, %v7461
  %7463 = vrot.lane.b32.xlu0 %v7302, 28
  %v7464 = vpop.permute.xlu0 %7463
  %7465 = vrot.lane.b32.xlu0 %v7303, 28
  %v7466 = vpop.permute.xlu0 %7465
  %7467 = vrot.lane.b32.xlu0 %v7304, 28
  %v7468 = vpop.permute.xlu0 %7467
  %7469 = vrot.lane.b32.xlu0 %v7305, 28
  %v7470 = vpop.permute.xlu0 %7469
  %7471 = vrot.lane.b32.xlu0 %v7306, 28
  %v7472 = vpop.permute.xlu0 %7471
  %7473 = vrot.lane.b32.xlu0 %v7307, 28
  %v7474 = vpop.permute.xlu0 %7473
  %7475 = vrot.lane.b32.xlu0 %v7308, 28
  %v7476 = vpop.permute.xlu0 %7475
  %7477 = vrot.lane.b32.xlu0 %v7309, 28
  %v7478 = vpop.permute.xlu0 %7477
  %7479 = vrot.lane.b32.xlu0 %v7310, 28
  %v7480 = vpop.permute.xlu0 %7479
  %7481 = vrot.lane.b32.xlu0 %v7311, 28
  %v7482 = vpop.permute.xlu0 %7481
  %7483 = vrot.lane.b32.xlu0 %v7312, 28
  %v7484 = vpop.permute.xlu0 %7483
  %7485 = vrot.lane.b32.xlu0 %v7313, 28
  %v7486 = vpop.permute.xlu0 %7485
  %7487 = vrot.lane.b32.xlu0 %v7314, 28
  %v7488 = vpop.permute.xlu0 %7487
  %7489 = vrot.lane.b32.xlu0 %v7315, 28
  %v7490 = vpop.permute.xlu0 %7489
  %7491 = vrot.lane.b32.xlu0 %v7316, 28
  %v7492 = vpop.permute.xlu0 %7491
  %7493 = vrot.lane.b32.xlu0 %v7317, 28
  %v7494 = vpop.permute.xlu0 %7493
  %7495 = vrot.lane.b32.xlu0 %v7318, 28
  %v7496 = vpop.permute.xlu0 %7495
  %7497 = vrot.lane.b32.xlu0 %v7319, 28
  %v7498 = vpop.permute.xlu0 %7497
  %7499 = vrot.lane.b32.xlu0 %v7320, 28
  %v7500 = vpop.permute.xlu0 %7499
  %7501 = vrot.lane.b32.xlu0 %v7321, 28
  %v7502 = vpop.permute.xlu0 %7501
  %7503 = vrot.lane.b32.xlu0 %v7322, 28
  %v7504 = vpop.permute.xlu0 %7503
  %7505 = vrot.lane.b32.xlu0 %v7339, 28
  %v7506 = vpop.permute.xlu0 %7505
  %7507 = vrot.lane.b32.xlu0 %v7356, 28
  %v7508 = vpop.permute.xlu0 %7507
  %7509 = vrot.lane.b32.xlu0 %v7373, 28
  %v7510 = vpop.permute.xlu0 %7509
  %7511 = vrot.lane.b32.xlu0 %v7382, 28
  %v7512 = vpop.permute.xlu0 %7511
  %7513 = vrot.lane.b32.xlu0 %v7383, 28
  %v7514 = vpop.permute.xlu0 %7513
  %7515 = vrot.lane.b32.xlu0 %v7384, 28
  %v7516 = vpop.permute.xlu0 %7515
  %7517 = vrot.lane.b32.xlu0 %v7385, 28
  %v7518 = vpop.permute.xlu0 %7517
  %7519 = vrot.lane.b32.xlu0 %v7386, 28
  %v7520 = vpop.permute.xlu0 %7519
  %7521 = vrot.lane.b32.xlu0 %v7387, 28
  %v7522 = vpop.permute.xlu0 %7521
  %7523 = vrot.lane.b32.xlu0 %v7388, 28
  %v7524 = vpop.permute.xlu0 %7523
  %7525 = vrot.lane.b32.xlu0 %v7389, 28
  %v7526 = vpop.permute.xlu0 %7525
  %7527 = vrot.lane.b32.xlu0 %v7390, 28
  %v7528 = vpop.permute.xlu0 %7527
  %7529 = vrot.lane.b32.xlu0 %v7391, 28
  %v7530 = vpop.permute.xlu0 %7529
  %7531 = vrot.lane.b32.xlu0 %v7392, 28
  %v7532 = vpop.permute.xlu0 %7531
  %7533 = vrot.lane.b32.xlu0 %v7393, 28
  %v7534 = vpop.permute.xlu0 %7533
  %7535 = vrot.lane.b32.xlu0 %v7394, 28
  %v7536 = vpop.permute.xlu0 %7535
  %7537 = vrot.lane.b32.xlu0 %v7395, 28
  %v7538 = vpop.permute.xlu0 %7537
  %7539 = vrot.lane.b32.xlu0 %v7396, 28
  %v7540 = vpop.permute.xlu0 %7539
  %7541 = vrot.lane.b32.xlu0 %v7397, 28
  %v7542 = vpop.permute.xlu0 %7541
  %7543 = vrot.lane.b32.xlu0 %v7398, 28
  %v7544 = vpop.permute.xlu0 %7543
  %7545 = vrot.lane.b32.xlu0 %v7399, 28
  %v7546 = vpop.permute.xlu0 %7545
  %7547 = vrot.lane.b32.xlu0 %v7400, 28
  %v7548 = vpop.permute.xlu0 %7547
  %7549 = vrot.lane.b32.xlu0 %v7401, 28
  %v7550 = vpop.permute.xlu0 %7549
  %7551 = vrot.lane.b32.xlu0 %v7402, 28
  %v7552 = vpop.permute.xlu0 %7551
  %7553 = vrot.lane.b32.xlu0 %v7411, 28
  %v7554 = vpop.permute.xlu0 %7553
  %7555 = vrot.lane.b32.xlu0 %v7428, 28
  %v7556 = vpop.permute.xlu0 %7555
  %7557 = vrot.lane.b32.xlu0 %v7445, 28
  %v7558 = vpop.permute.xlu0 %7557
  %7559 = vrot.lane.b32.xlu0 %v7462, 28
  %v7560 = vpop.permute.xlu0 %7559
  %vm7610 = vcmask 261344
  %7611 = vst.msk [vmem:[#allocation2] sm:$0xff] %vm7610, %v7464
  %7612 = vst.msk [vmem:[#allocation2 + $0x8] sm:$0xff] %vm7610, %v7466
  %7613 = vst.msk [vmem:[#allocation2 + $0x10] sm:$0xff] %vm7610, %v7468
  %7614 = vst.msk [vmem:[#allocation2 + $0x18] sm:$0xff] %vm7610, %v7470
  %7615 = vst.msk [vmem:[#allocation2 + $0x20] sm:$0xff] %vm7610, %v7472
  %7616 = vst.msk [vmem:[#allocation2 + $0x28] sm:$0xff] %vm7610, %v7474
  %7617 = vst.msk [vmem:[#allocation2 + $0x30] sm:$0xff] %vm7610, %v7476
  %7618 = vst.msk [vmem:[#allocation2 + $0x38] sm:$0xff] %vm7610, %v7478
  %7619 = vst.msk [vmem:[#allocation2 + $0x40] sm:$0xff] %vm7610, %v7480
  %7620 = vst.msk [vmem:[#allocation2 + $0x48] sm:$0xff] %vm7610, %v7482
  %7621 = vst.msk [vmem:[#allocation2 + $0x50] sm:$0xff] %vm7610, %v7484
  %7622 = vst.msk [vmem:[#allocation2 + $0x58] sm:$0xff] %vm7610, %v7486
  %7623 = vst.msk [vmem:[#allocation2 + $0x60] sm:$0xff] %vm7610, %v7488
  %7624 = vst.msk [vmem:[#allocation2 + $0x68] sm:$0xff] %vm7610, %v7490
  %7625 = vst.msk [vmem:[#allocation2 + $0x70] sm:$0xff] %vm7610, %v7492
  %7626 = vst.msk [vmem:[#allocation2 + $0x78] sm:$0xff] %vm7610, %v7494
  %7627 = vst.msk [vmem:[#allocation2 + $0x80] sm:$0xff] %vm7610, %v7496
  %7628 = vst.msk [vmem:[#allocation2 + $0x88] sm:$0xff] %vm7610, %v7498
  %7629 = vst.msk [vmem:[#allocation2 + $0x90] sm:$0xff] %vm7610, %v7500
  %7630 = vst.msk [vmem:[#allocation2 + $0x98] sm:$0xff] %vm7610, %v7502
  %7631 = vst.msk [vmem:[#allocation2 + $0xa0] sm:$0xff] %vm7610, %v7504
  %7632 = vst.msk [vmem:[#allocation2 + $0xa8] sm:$0xff] %vm7610, %v7506
  %7633 = vst.msk [vmem:[#allocation2 + $0xb0] sm:$0xff] %vm7610, %v7508
  %7634 = vst.msk [vmem:[#allocation2 + $0xb8] sm:$0xff] %vm7610, %v7510
  %7635 = vst.msk [vmem:[#allocation2 + $0xc0] sm:$0xff] %vm7610, %v7512
  %7636 = vst.msk [vmem:[#allocation2 + $0xc8] sm:$0xff] %vm7610, %v7514
  %7637 = vst.msk [vmem:[#allocation2 + $0xd0] sm:$0xff] %vm7610, %v7516
  %7638 = vst.msk [vmem:[#allocation2 + $0xd8] sm:$0xff] %vm7610, %v7518
  %7639 = vst.msk [vmem:[#allocation2 + $0xe0] sm:$0xff] %vm7610, %v7520
  %7640 = vst.msk [vmem:[#allocation2 + $0xe8] sm:$0xff] %vm7610, %v7522
  %7641 = vst.msk [vmem:[#allocation2 + $0xf0] sm:$0xff] %vm7610, %v7524
  %7642 = vst.msk [vmem:[#allocation2 + $0xf8] sm:$0xff] %vm7610, %v7526
  %7643 = vst.msk [vmem:[#allocation2 + $0x100] sm:$0xff] %vm7610, %v7528
  %7644 = vst.msk [vmem:[#allocation2 + $0x108] sm:$0xff] %vm7610, %v7530
  %7645 = vst.msk [vmem:[#allocation2 + $0x110] sm:$0xff] %vm7610, %v7532
  %7646 = vst.msk [vmem:[#allocation2 + $0x118] sm:$0xff] %vm7610, %v7534
  %7647 = vst.msk [vmem:[#allocation2 + $0x120] sm:$0xff] %vm7610, %v7536
  %7648 = vst.msk [vmem:[#allocation2 + $0x128] sm:$0xff] %vm7610, %v7538
  %7649 = vst.msk [vmem:[#allocation2 + $0x130] sm:$0xff] %vm7610, %v7540
  %7650 = vst.msk [vmem:[#allocation2 + $0x138] sm:$0xff] %vm7610, %v7542
  %7651 = vst.msk [vmem:[#allocation2 + $0x140] sm:$0xff] %vm7610, %v7544
  %7652 = vst.msk [vmem:[#allocation2 + $0x148] sm:$0xff] %vm7610, %v7546
  %7653 = vst.msk [vmem:[#allocation2 + $0x150] sm:$0xff] %vm7610, %v7548
  %7654 = vst.msk [vmem:[#allocation2 + $0x158] sm:$0xff] %vm7610, %v7550
  %7655 = vst.msk [vmem:[#allocation2 + $0x160] sm:$0xff] %vm7610, %v7552
  %7656 = vst.msk [vmem:[#allocation2 + $0x168] sm:$0xff] %vm7610, %v7554
  %7657 = vst.msk [vmem:[#allocation2 + $0x170] sm:$0xff] %vm7610, %v7556
  %7658 = vst.msk [vmem:[#allocation2 + $0x178] sm:$0xff] %vm7610, %v7558
  %7659 = vst.msk [vmem:[#allocation2 + $0x180] sm:$0xff] %vm7610, %v7560
  %v7660 = vcombine.low %v3767, %v3777
  %v7661 = vcombine.low %v3801, %v3811
  %v7662 = vcombine.low %v3835, %v3845
  %v7663 = vcombine.low %v3852, %v3862
  %v7664 = vcombine.low %v3886, %v3896
  %v7665 = vcombine.low %v3920, %v3930
  %v7666 = vcombine.low %v3954, %v3964
  %v7667 = vcombine.low %v3971, %v3981
  %v7668 = vcombine.low %v4005, %v4015
  %v7669 = vcombine.low %v4039, %v4049
  %v7670 = vcombine.low %v4073, %v4083
  %v7671 = vcombine.low %v4090, %v4100
  %v7672 = vcombine.low %v5302, %v6879
  %v7674 = vunpack.c.l.s4 1983009808
  %v7675 = vunpack.c.0.s8 %v7674
  %v7676 = vlaneseq
  %v7677 = vshrl.u32 %v7676, 7
  %v7678 = vsub.s32 %v7675, %v7677
  %v7679 = vrot.slane %v7672, %v7678
  %v7680 = vcombine.low %v4944, %v7679
  %v7681 = vcombine.low %v6878, %v6880
  %v7682 = vcombine.low %v6888, %v6896
  %v7684 = vunpack.c.l.s4 1983009808
  %v7685 = vunpack.c.0.s8 %v7684
  %v7686 = vlaneseq
  %v7687 = vshrl.u32 %v7686, 7
  %v7688 = vsub.s32 %v7685, %v7687
  %v7689 = vrot.slane %v7681, %v7688
  %v7691 = vunpack.c.l.s4 1983009808
  %v7692 = vunpack.c.0.s8 %v7691
  %v7693 = vlaneseq
  %v7694 = vshrl.u32 %v7693, 7
  %v7695 = vsub.s32 %v7692, %v7694
  %v7696 = vrot.slane %v7682, %v7695
  %v7697 = vcombine.low %v7689, %v7696
  %v7698 = vcombine.low %v6895, %v7256
  %v7700 = vunpack.c.l.s4 1983009808
  %v7701 = vunpack.c.0.s8 %v7700
  %v7702 = vlaneseq
  %v7703 = vshrl.u32 %v7702, 7
  %v7704 = vsub.s32 %v7701, %v7703
  %v7705 = vrot.slane %v7698, %v7704
  %v7706 = vcombine.low %v7705, %v4168
  %v7707 = vcombine.low %v4192, %v4202
  %v7708 = vcombine.low %v4209, %v4219
  %v7709 = vcombine.low %v4243, %v4253
  %v7710 = vcombine.low %v4277, %v4287
  %v7711 = vcombine.low %v4311, %v4321
  %v7712 = vcombine.low %v4328, %v4338
  %v7713 = vcombine.low %v4362, %v4372
  %v7714 = vcombine.low %v4396, %v4406
  %v7715 = vcombine.low %v4430, %v4440
  %v7716 = vcombine.low %v4447, %v4457
  %v7717 = vcombine.low %v4481, %v4491
  %v7718 = vcombine.low %v4515, %v5086
  %v7719 = vcombine.low %v5303, %v6912
  %v7720 = vcombine.low %v6911, %v6913
  %v7722 = vunpack.c.l.s4 1983009808
  %v7723 = vunpack.c.0.s8 %v7722
  %v7724 = vlaneseq
  %v7725 = vshrl.u32 %v7724, 7
  %v7726 = vsub.s32 %v7723, %v7725
  %v7727 = vrot.slane %v7719, %v7726
  %v7729 = vunpack.c.l.s4 1983009808
  %v7730 = vunpack.c.0.s8 %v7729
  %v7731 = vlaneseq
  %v7732 = vshrl.u32 %v7731, 7
  %v7733 = vsub.s32 %v7730, %v7732
  %v7734 = vrot.slane %v7720, %v7733
  %v7735 = vcombine.low %v7727, %v7734
  %v7736 = vcombine.low %v6921, %v6929
  %v7737 = vcombine.low %v6928, %v7257
  %v7739 = vunpack.c.l.s4 1983009808
  %v7740 = vunpack.c.0.s8 %v7739
  %v7741 = vlaneseq
  %v7742 = vshrl.u32 %v7741, 7
  %v7743 = vsub.s32 %v7740, %v7742
  %v7744 = vrot.slane %v7736, %v7743
  %v7746 = vunpack.c.l.s4 1983009808
  %v7747 = vunpack.c.0.s8 %v7746
  %v7748 = vlaneseq
  %v7749 = vshrl.u32 %v7748, 7
  %v7750 = vsub.s32 %v7747, %v7749
  %v7751 = vrot.slane %v7737, %v7750
  %v7752 = vcombine.low %v7744, %v7751
  %7753 = vrot.lane.b32.xlu0 %v4802, 32
  %v7754 = vpop.permute.xlu0 %7753
  %7755 = vrot.lane.b32.xlu0 %v7660, 32
  %v7756 = vpop.permute.xlu0 %7755
  %7757 = vrot.lane.b32.xlu0 %v4812, 32
  %v7758 = vpop.permute.xlu0 %7757
  %7759 = vrot.lane.b32.xlu0 %v7661, 32
  %v7760 = vpop.permute.xlu0 %7759
  %7761 = vrot.lane.b32.xlu0 %v4822, 32
  %v7762 = vpop.permute.xlu0 %7761
  %7763 = vrot.lane.b32.xlu0 %v7662, 32
  %v7764 = vpop.permute.xlu0 %7763
  %7765 = vrot.lane.b32.xlu0 %v7663, 32
  %v7766 = vpop.permute.xlu0 %7765
  %7767 = vrot.lane.b32.xlu0 %v4841, 32
  %v7768 = vpop.permute.xlu0 %7767
  %7769 = vrot.lane.b32.xlu0 %v7664, 32
  %v7770 = vpop.permute.xlu0 %7769
  %7771 = vrot.lane.b32.xlu0 %v4851, 32
  %v7772 = vpop.permute.xlu0 %7771
  %7773 = vrot.lane.b32.xlu0 %v7665, 32
  %v7774 = vpop.permute.xlu0 %7773
  %7775 = vrot.lane.b32.xlu0 %v4861, 32
  %v7776 = vpop.permute.xlu0 %7775
  %7777 = vrot.lane.b32.xlu0 %v7666, 32
  %v7778 = vpop.permute.xlu0 %7777
  %7779 = vrot.lane.b32.xlu0 %v7667, 32
  %v7780 = vpop.permute.xlu0 %7779
  %7781 = vrot.lane.b32.xlu0 %v4880, 32
  %v7782 = vpop.permute.xlu0 %7781
  %7783 = vrot.lane.b32.xlu0 %v7668, 32
  %v7784 = vpop.permute.xlu0 %7783
  %7785 = vrot.lane.b32.xlu0 %v4890, 32
  %v7786 = vpop.permute.xlu0 %7785
  %7787 = vrot.lane.b32.xlu0 %v7669, 32
  %v7788 = vpop.permute.xlu0 %7787
  %7789 = vrot.lane.b32.xlu0 %v4900, 32
  %v7790 = vpop.permute.xlu0 %7789
  %7791 = vrot.lane.b32.xlu0 %v7670, 32
  %v7792 = vpop.permute.xlu0 %7791
  %7793 = vrot.lane.b32.xlu0 %v7671, 32
  %v7794 = vpop.permute.xlu0 %7793
  %7795 = vrot.lane.b32.xlu0 %v4935, 32
  %v7796 = vpop.permute.xlu0 %7795
  %7797 = vrot.lane.b32.xlu0 %v7680, 32
  %v7798 = vpop.permute.xlu0 %7797
  %7799 = vrot.lane.b32.xlu0 %v7697, 32
  %v7800 = vpop.permute.xlu0 %7799
  %7801 = vrot.lane.b32.xlu0 %v7706, 32
  %v7802 = vpop.permute.xlu0 %7801
  %7803 = vrot.lane.b32.xlu0 %v4963, 32
  %v7804 = vpop.permute.xlu0 %7803
  %7805 = vrot.lane.b32.xlu0 %v7707, 32
  %v7806 = vpop.permute.xlu0 %7805
  %7807 = vrot.lane.b32.xlu0 %v7708, 32
  %v7808 = vpop.permute.xlu0 %7807
  %7809 = vrot.lane.b32.xlu0 %v4982, 32
  %v7810 = vpop.permute.xlu0 %7809
  %7811 = vrot.lane.b32.xlu0 %v7709, 32
  %v7812 = vpop.permute.xlu0 %7811
  %7813 = vrot.lane.b32.xlu0 %v4992, 32
  %v7814 = vpop.permute.xlu0 %7813
  %7815 = vrot.lane.b32.xlu0 %v7710, 32
  %v7816 = vpop.permute.xlu0 %7815
  %7817 = vrot.lane.b32.xlu0 %v5002, 32
  %v7818 = vpop.permute.xlu0 %7817
  %7819 = vrot.lane.b32.xlu0 %v7711, 32
  %v7820 = vpop.permute.xlu0 %7819
  %7821 = vrot.lane.b32.xlu0 %v7712, 32
  %v7822 = vpop.permute.xlu0 %7821
  %7823 = vrot.lane.b32.xlu0 %v5021, 32
  %v7824 = vpop.permute.xlu0 %7823
  %7825 = vrot.lane.b32.xlu0 %v7713, 32
  %v7826 = vpop.permute.xlu0 %7825
  %7827 = vrot.lane.b32.xlu0 %v5031, 32
  %v7828 = vpop.permute.xlu0 %7827
  %7829 = vrot.lane.b32.xlu0 %v7714, 32
  %v7830 = vpop.permute.xlu0 %7829
  %7831 = vrot.lane.b32.xlu0 %v5041, 32
  %v7832 = vpop.permute.xlu0 %7831
  %7833 = vrot.lane.b32.xlu0 %v7715, 32
  %v7834 = vpop.permute.xlu0 %7833
  %7835 = vrot.lane.b32.xlu0 %v7716, 32
  %v7836 = vpop.permute.xlu0 %7835
  %7837 = vrot.lane.b32.xlu0 %v5060, 32
  %v7838 = vpop.permute.xlu0 %7837
  %7839 = vrot.lane.b32.xlu0 %v7717, 32
  %v7840 = vpop.permute.xlu0 %7839
  %7841 = vrot.lane.b32.xlu0 %v5070, 32
  %v7842 = vpop.permute.xlu0 %7841
  %7843 = vrot.lane.b32.xlu0 %v7718, 32
  %v7844 = vpop.permute.xlu0 %7843
  %7845 = vrot.lane.b32.xlu0 %v5104, 32
  %v7846 = vpop.permute.xlu0 %7845
  %7847 = vrot.lane.b32.xlu0 %v7735, 32
  %v7848 = vpop.permute.xlu0 %7847
  %7849 = vrot.lane.b32.xlu0 %v7752, 32
  %v7850 = vpop.permute.xlu0 %7849
  %vm7900 = vcmask 294144
  %7901 = vst.msk [vmem:[#allocation2] sm:$0xff] %vm7900, %v7754
  %7902 = vst.msk [vmem:[#allocation2 + $0x8] sm:$0xff] %vm7900, %v7756
  %7903 = vst.msk [vmem:[#allocation2 + $0x10] sm:$0xff] %vm7900, %v7758
  %7904 = vst.msk [vmem:[#allocation2 + $0x18] sm:$0xff] %vm7900, %v7760
  %7905 = vst.msk [vmem:[#allocation2 + $0x20] sm:$0xff] %vm7900, %v7762
  %7906 = vst.msk [vmem:[#allocation2 + $0x28] sm:$0xff] %vm7900, %v7764
  %7907 = vst.msk [vmem:[#allocation2 + $0x30] sm:$0xff] %vm7900, %v7766
  %7908 = vst.msk [vmem:[#allocation2 + $0x38] sm:$0xff] %vm7900, %v7768
  %7909 = vst.msk [vmem:[#allocation2 + $0x40] sm:$0xff] %vm7900, %v7770
  %7910 = vst.msk [vmem:[#allocation2 + $0x48] sm:$0xff] %vm7900, %v7772
  %7911 = vst.msk [vmem:[#allocation2 + $0x50] sm:$0xff] %vm7900, %v7774
  %7912 = vst.msk [vmem:[#allocation2 + $0x58] sm:$0xff] %vm7900, %v7776
  %7913 = vst.msk [vmem:[#allocation2 + $0x60] sm:$0xff] %vm7900, %v7778
  %7914 = vst.msk [vmem:[#allocation2 + $0x68] sm:$0xff] %vm7900, %v7780
  %7915 = vst.msk [vmem:[#allocation2 + $0x70] sm:$0xff] %vm7900, %v7782
  %7916 = vst.msk [vmem:[#allocation2 + $0x78] sm:$0xff] %vm7900, %v7784
  %7917 = vst.msk [vmem:[#allocation2 + $0x80] sm:$0xff] %vm7900, %v7786
  %7918 = vst.msk [vmem:[#allocation2 + $0x88] sm:$0xff] %vm7900, %v7788
  %7919 = vst.msk [vmem:[#allocation2 + $0x90] sm:$0xff] %vm7900, %v7790
  %7920 = vst.msk [vmem:[#allocation2 + $0x98] sm:$0xff] %vm7900, %v7792
  %7921 = vst.msk [vmem:[#allocation2 + $0xa0] sm:$0xff] %vm7900, %v7794
  %7922 = vst.msk [vmem:[#allocation2 + $0xa8] sm:$0xff] %vm7900, %v7796
  %7923 = vst.msk [vmem:[#allocation2 + $0xb0] sm:$0xff] %vm7900, %v7798
  %7924 = vst.msk [vmem:[#allocation2 + $0xb8] sm:$0xff] %vm7900, %v7800
  %7925 = vst.msk [vmem:[#allocation2 + $0xc0] sm:$0xff] %vm7900, %v7802
  %7926 = vst.msk [vmem:[#allocation2 + $0xc8] sm:$0xff] %vm7900, %v7804
  %7927 = vst.msk [vmem:[#allocation2 + $0xd0] sm:$0xff] %vm7900, %v7806
  %7928 = vst.msk [vmem:[#allocation2 + $0xd8] sm:$0xff] %vm7900, %v7808
  %7929 = vst.msk [vmem:[#allocation2 + $0xe0] sm:$0xff] %vm7900, %v7810
  %7930 = vst.msk [vmem:[#allocation2 + $0xe8] sm:$0xff] %vm7900, %v7812
  %7931 = vst.msk [vmem:[#allocation2 + $0xf0] sm:$0xff] %vm7900, %v7814
  %7932 = vst.msk [vmem:[#allocation2 + $0xf8] sm:$0xff] %vm7900, %v7816
  %7933 = vst.msk [vmem:[#allocation2 + $0x100] sm:$0xff] %vm7900, %v7818
  %7934 = vst.msk [vmem:[#allocation2 + $0x108] sm:$0xff] %vm7900, %v7820
  %7935 = vst.msk [vmem:[#allocation2 + $0x110] sm:$0xff] %vm7900, %v7822
  %7936 = vst.msk [vmem:[#allocation2 + $0x118] sm:$0xff] %vm7900, %v7824
  %7937 = vst.msk [vmem:[#allocation2 + $0x120] sm:$0xff] %vm7900, %v7826
  %7938 = vst.msk [vmem:[#allocation2 + $0x128] sm:$0xff] %vm7900, %v7828
  %7939 = vst.msk [vmem:[#allocation2 + $0x130] sm:$0xff] %vm7900, %v7830
  %7940 = vst.msk [vmem:[#allocation2 + $0x138] sm:$0xff] %vm7900, %v7832
  %7941 = vst.msk [vmem:[#allocation2 + $0x140] sm:$0xff] %vm7900, %v7834
  %7942 = vst.msk [vmem:[#allocation2 + $0x148] sm:$0xff] %vm7900, %v7836
  %7943 = vst.msk [vmem:[#allocation2 + $0x150] sm:$0xff] %vm7900, %v7838
  %7944 = vst.msk [vmem:[#allocation2 + $0x158] sm:$0xff] %vm7900, %v7840
  %7945 = vst.msk [vmem:[#allocation2 + $0x160] sm:$0xff] %vm7900, %v7842
  %7946 = vst.msk [vmem:[#allocation2 + $0x168] sm:$0xff] %vm7900, %v7844
  %7947 = vst.msk [vmem:[#allocation2 + $0x170] sm:$0xff] %vm7900, %v7846
  %7948 = vst.msk [vmem:[#allocation2 + $0x178] sm:$0xff] %vm7900, %v7848
  %7949 = vst.msk [vmem:[#allocation2 + $0x180] sm:$0xff] %vm7900, %v7850
  %v7950 = vld [vmem:[#allocation2] sm:$0xff]
  %v7951 = vld [vmem:[#allocation2 + $0x8] sm:$0xff]
  %v7952 = vld [vmem:[#allocation2 + $0x10] sm:$0xff]
  %v7953 = vld [vmem:[#allocation2 + $0x18] sm:$0xff]
  %v7954 = vld [vmem:[#allocation2 + $0x20] sm:$0xff]
  %v7955 = vld [vmem:[#allocation2 + $0x28] sm:$0xff]
  %v7956 = vld [vmem:[#allocation2 + $0x30] sm:$0xff]
  %v7957 = vld [vmem:[#allocation2 + $0x38] sm:$0xff]
  %v7958 = vld [vmem:[#allocation2 + $0x40] sm:$0xff]
  %v7959 = vld [vmem:[#allocation2 + $0x48] sm:$0xff]
  %v7960 = vld [vmem:[#allocation2 + $0x50] sm:$0xff]
  %v7961 = vld [vmem:[#allocation2 + $0x58] sm:$0xff]
  %v7962 = vld [vmem:[#allocation2 + $0x60] sm:$0xff]
  %v7963 = vld [vmem:[#allocation2 + $0x68] sm:$0xff]
  %v7964 = vld [vmem:[#allocation2 + $0x70] sm:$0xff]
  %v7965 = vld [vmem:[#allocation2 + $0x78] sm:$0xff]
  %v7966 = vld [vmem:[#allocation2 + $0x80] sm:$0xff]
  %v7967 = vld [vmem:[#allocation2 + $0x88] sm:$0xff]
  %v7968 = vld [vmem:[#allocation2 + $0x90] sm:$0xff]
  %v7969 = vld [vmem:[#allocation2 + $0x98] sm:$0xff]
  %v7970 = vld [vmem:[#allocation2 + $0xa0] sm:$0xff]
  %v7971 = vld [vmem:[#allocation2 + $0xa8] sm:$0xff]
  %v7972 = vld [vmem:[#allocation2 + $0xb0] sm:$0xff]
  %v7973 = vld [vmem:[#allocation2 + $0xb8] sm:$0xff]
  %v7974 = vld [vmem:[#allocation2 + $0xc0] sm:$0xff]
  %v7975 = vld [vmem:[#allocation2 + $0xc8] sm:$0xff]
  %v7976 = vld [vmem:[#allocation2 + $0xd0] sm:$0xff]
  %v7977 = vld [vmem:[#allocation2 + $0xd8] sm:$0xff]
  %v7978 = vld [vmem:[#allocation2 + $0xe0] sm:$0xff]
  %v7979 = vld [vmem:[#allocation2 + $0xe8] sm:$0xff]
  %v7980 = vld [vmem:[#allocation2 + $0xf0] sm:$0xff]
  %v7981 = vld [vmem:[#allocation2 + $0xf8] sm:$0xff]
  %v7982 = vld [vmem:[#allocation2 + $0x100] sm:$0xff]
  %v7983 = vld [vmem:[#allocation2 + $0x108] sm:$0xff]
  %v7984 = vld [vmem:[#allocation2 + $0x110] sm:$0xff]
  %v7985 = vld [vmem:[#allocation2 + $0x118] sm:$0xff]
  %v7986 = vld [vmem:[#allocation2 + $0x120] sm:$0xff]
  %v7987 = vld [vmem:[#allocation2 + $0x128] sm:$0xff]
  %v7988 = vld [vmem:[#allocation2 + $0x130] sm:$0xff]
  %v7989 = vld [vmem:[#allocation2 + $0x138] sm:$0xff]
  %v7990 = vld [vmem:[#allocation2 + $0x140] sm:$0xff]
  %v7991 = vld [vmem:[#allocation2 + $0x148] sm:$0xff]
  %v7992 = vld [vmem:[#allocation2 + $0x150] sm:$0xff]
  %v7993 = vld [vmem:[#allocation2 + $0x158] sm:$0xff]
  %v7994 = vld [vmem:[#allocation2 + $0x160] sm:$0xff]
  %v7995 = vld [vmem:[#allocation2 + $0x168] sm:$0xff]
  %v7996 = vld [vmem:[#allocation2 + $0x170] sm:$0xff]
  %v7997 = vld [vmem:[#allocation2 + $0x178] sm:$0xff]
  %v7998 = vld [vmem:[#allocation2 + $0x180] sm:$0xff]
  %v7999 = vpack.c.bf16 %v7951, %v7950
  %v8000 = vpack.c.bf16 %v7953, %v7952
  %v8001 = vpack.c.bf16 %v7955, %v7954
  %v8002 = vpack.c.bf16 %v7957, %v7956
  %v8003 = vpack.c.bf16 %v7959, %v7958
  %v8004 = vpack.c.bf16 %v7961, %v7960
  %v8005 = vpack.c.bf16 %v7963, %v7962
  %v8006 = vpack.c.bf16 %v7965, %v7964
  %v8007 = vpack.c.bf16 %v7967, %v7966
  %v8008 = vpack.c.bf16 %v7969, %v7968
  %v8009 = vpack.c.bf16 %v7971, %v7970
  %v8010 = vpack.c.bf16 %v7973, %v7972
  %v8011 = vpack.c.bf16 %v7975, %v7974
  %v8012 = vpack.c.bf16 %v7977, %v7976
  %v8013 = vpack.c.bf16 %v7979, %v7978
  %v8014 = vpack.c.bf16 %v7981, %v7980
  %v8015 = vpack.c.bf16 %v7983, %v7982
  %v8016 = vpack.c.bf16 %v7985, %v7984
  %v8017 = vpack.c.bf16 %v7987, %v7986
  %v8018 = vpack.c.bf16 %v7989, %v7988
  %v8019 = vpack.c.bf16 %v7991, %v7990
  %v8020 = vpack.c.bf16 %v7993, %v7992
  %v8021 = vpack.c.bf16 %v7995, %v7994
  %v8022 = vpack.c.bf16 %v7997, %v7996
  %v8023 = vpack.c.bf16 %v7998, %v7998
  %v8024 = vld [vmem:[%s1] sm:$0xf]
  %v8025 = vld [vmem:[%s1 + $0x4] sm:$0xf]
  %v8026 = vld [vmem:[%s1 + $0x8] sm:$0xf]
  %v8027 = vld [vmem:[%s1 + $0xc] sm:$0xf]
  %v8028 = vld [vmem:[%s1 + $0x10] sm:$0x3]
  %v8034 = vunpack.c.l.b16 %v8024
  %v8035 = vunpack.c.l.b16 %v8025
  %v8036 = vunpack.c.l.b16 %v8026
  %v8037 = vunpack.c.l.b16 %v8027
  %v8038 = vunpack.c.l.b16 %v8028
  %v8039 = vpack.c.b16 %v8035, %v8034
  %v8040 = vpack.c.b16 %v8037, %v8036
  %v8041 = vpack.c.b16 %v8038, %v8038
  %vm8044 = vcmask 293888
  %v8046 = vsel %vm8044, %v7999, 0
  %v8049 = vsel %vm8044, %v8000, 0
  %v8052 = vsel %vm8044, %v8001, 0
  %v8055 = vsel %vm8044, %v8002, 0
  %v8058 = vsel %vm8044, %v8003, 0
  %v8061 = vsel %vm8044, %v8004, 0
  %v8064 = vsel %vm8044, %v8005, 0
  %v8067 = vsel %vm8044, %v8006, 0
  %v8070 = vsel %vm8044, %v8007, 0
  %v8073 = vsel %vm8044, %v8008, 0
  %v8076 = vsel %vm8044, %v8009, 0
  %v8079 = vsel %vm8044, %v8010, 0
  %v8082 = vsel %vm8044, %v8011, 0
  %v8085 = vsel %vm8044, %v8012, 0
  %v8088 = vsel %vm8044, %v8013, 0
  %v8091 = vsel %vm8044, %v8014, 0
  %v8094 = vsel %vm8044, %v8015, 0
  %v8097 = vsel %vm8044, %v8016, 0
  %v8100 = vsel %vm8044, %v8017, 0
  %v8103 = vsel %vm8044, %v8018, 0
  %v8106 = vsel %vm8044, %v8019, 0
  %v8109 = vsel %vm8044, %v8020, 0
  %v8112 = vsel %vm8044, %v8021, 0
  %v8115 = vsel %vm8044, %v8022, 0
  %v8118 = vsel %vm8044, %v8023, 0
  %vm8120 = vcmask 1041408
  %v8122 = vsel %vm8120, %v8041, 0
  %8124 = vmatprep.subr.bf16.mxu0 0
  %8125 = vmatpush1.bf16.msra.mxu0 %v8039
  %8126 = vmatprep.subr.bf16.mxu0 0
  %8127 = vmatpush1.bf16.msra.mxu0 %v8040
  %8128 = vmatprep.subr.bf16.mxu0 0
  %8129 = vmatpush1.bf16.msra.mxu0 %v8122
  %8130 = vmatprep.subr.bf16.mxu0 0
  %8131 = vmatpush1.bf16.msra.mxu0 0
  %8132 = vmatprep.subr.bf16.mxu0 0
  %8133 = vmatpush1.bf16.msra.mxu0 0
  %8134 = vmatprep.subr.bf16.mxu0 0
  %8135 = vmatpush1.bf16.msra.mxu0 0
  %8136 = vmatprep.subr.bf16.mxu0 0
  %8137 = vmatpush1.bf16.msra.mxu0 0
  %8138 = vmatprep.subr.bf16.mxu0 0
  %8139 = vmatpush1.bf16.msra.mxu0 0
  %8140 = vmatprep.subr.bf16.mxu0 0
  %8141 = vmatpush1.bf16.msra.mxu0 0
  %8142 = vmatprep.subr.bf16.mxu0 0
  %8143 = vmatpush1.bf16.msra.mxu0 0
  %8144 = vmatprep.subr.bf16.mxu0 0
  %8145 = vmatpush1.bf16.msra.mxu0 0
  %8146 = vmatprep.subr.bf16.mxu0 0
  %8147 = vmatpush1.bf16.msra.mxu0 0
  %8148 = vmatprep.subr.bf16.mxu0 0
  %8149 = vmatpush1.bf16.msra.mxu0 0
  %8150 = vmatprep.subr.bf16.mxu0 0
  %8151 = vmatpush1.bf16.msra.mxu0 0
  %8152 = vmatprep.subr.bf16.mxu0 0
  %8153 = vmatpush1.bf16.msra.mxu0 0
  %8154 = vmatprep.subr.bf16.mxu0 0
  %8155 = vmatpush1.bf16.msra.mxu0 0
  %8156 = vmatprep.mubr.bf16.mxu0 0
  %8157 = vmatmul.mubr.bf16.gmra.mrb[0].mxu0 %v8046
  %v8158 = vpop.f32.mrb[0].mxu0
  %v8159 = vadd.f32 0.0, %v8158
  %v8160 = vpop.f32.mrb[0].mxu0
  %v8161 = vpop.f32.mrb[0].mxu0
  %v8162 = vadd.f32 0.0, %v8161
  %v8163 = vpop.f32.mrb[0].mxu0
  %8164 = vmatprep.mubr.bf16.mxu0 0
  %8165 = vmatmul.mubr.bf16.gmra.mrb[0].mxu0 %v8049
  %v8166 = vpop.f32.mrb[0].mxu0
  %v8167 = vadd.f32 0.0, %v8166
  %v8168 = vpop.f32.mrb[0].mxu0
  %v8169 = vpop.f32.mrb[0].mxu0
  %v8170 = vadd.f32 0.0, %v8169
  %v8171 = vpop.f32.mrb[0].mxu0
  %8172 = vmatprep.mubr.bf16.mxu0 0
  %8173 = vmatmul.mubr.bf16.gmra.mrb[0].mxu0 %v8052
  %v8174 = vpop.f32.mrb[0].mxu0
  %v8175 = vadd.f32 0.0, %v8174
  %v8176 = vpop.f32.mrb[0].mxu0
  %v8177 = vpop.f32.mrb[0].mxu0
  %v8178 = vadd.f32 0.0, %v8177
  %v8179 = vpop.f32.mrb[0].mxu0
  %8180 = vmatprep.mubr.bf16.mxu0 0
  %8181 = vmatmul.mubr.bf16.gmra.mrb[0].mxu0 %v8055
  %v8182 = vpop.f32.mrb[0].mxu0
  %v8183 = vadd.f32 0.0, %v8182
  %v8184 = vpop.f32.mrb[0].mxu0
  %v8185 = vpop.f32.mrb[0].mxu0
  %v8186 = vadd.f32 0.0, %v8185
  %v8187 = vpop.f32.mrb[0].mxu0
  %8188 = vmatprep.mubr.bf16.mxu0 0
  %8189 = vmatmul.mubr.bf16.gmra.mrb[0].mxu0 %v8058
  %v8190 = vpop.f32.mrb[0].mxu0
  %v8191 = vadd.f32 0.0, %v8190
  %v8192 = vpop.f32.mrb[0].mxu0
  %v8193 = vpop.f32.mrb[0].mxu0
  %v8194 = vadd.f32 0.0, %v8193
  %v8195 = vpop.f32.mrb[0].mxu0
  %8196 = vmatprep.mubr.bf16.mxu0 0
  %8197 = vmatmul.mubr.bf16.gmra.mrb[0].mxu0 %v8061
  %v8198 = vpop.f32.mrb[0].mxu0
  %v8199 = vadd.f32 0.0, %v8198
  %v8200 = vpop.f32.mrb[0].mxu0
  %v8201 = vpop.f32.mrb[0].mxu0
  %v8202 = vadd.f32 0.0, %v8201
  %v8203 = vpop.f32.mrb[0].mxu0
  %8204 = vmatprep.mubr.bf16.mxu0 0
  %8205 = vmatmul.mubr.bf16.gmra.mrb[0].mxu0 %v8064
  %v8206 = vpop.f32.mrb[0].mxu0
  %v8207 = vadd.f32 0.0, %v8206
  %v8208 = vpop.f32.mrb[0].mxu0
  %v8209 = vpop.f32.mrb[0].mxu0
  %v8210 = vadd.f32 0.0, %v8209
  %v8211 = vpop.f32.mrb[0].mxu0
  %8212 = vmatprep.mubr.bf16.mxu0 0
  %8213 = vmatmul.mubr.bf16.gmra.mrb[0].mxu0 %v8067
  %v8214 = vpop.f32.mrb[0].mxu0
  %v8215 = vadd.f32 0.0, %v8214
  %v8216 = vpop.f32.mrb[0].mxu0
  %v8217 = vpop.f32.mrb[0].mxu0
  %v8218 = vadd.f32 0.0, %v8217
  %v8219 = vpop.f32.mrb[0].mxu0
  %8220 = vmatprep.mubr.bf16.mxu0 0
  %8221 = vmatmul.mubr.bf16.gmra.mrb[0].mxu0 %v8070
  %v8222 = vpop.f32.mrb[0].mxu0
  %v8223 = vadd.f32 0.0, %v8222
  %v8224 = vpop.f32.mrb[0].mxu0
  %v8225 = vpop.f32.mrb[0].mxu0
  %v8226 = vadd.f32 0.0, %v8225
  %v8227 = vpop.f32.mrb[0].mxu0
  %8228 = vmatprep.mubr.bf16.mxu0 0
  %8229 = vmatmul.mubr.bf16.gmra.mrb[0].mxu0 %v8073
  %v8230 = vpop.f32.mrb[0].mxu0
  %v8231 = vadd.f32 0.0, %v8230
  %v8232 = vpop.f32.mrb[0].mxu0
  %v8233 = vpop.f32.mrb[0].mxu0
  %v8234 = vadd.f32 0.0, %v8233
  %v8235 = vpop.f32.mrb[0].mxu0
  %8236 = vmatprep.mubr.bf16.mxu0 0
  %8237 = vmatmul.mubr.bf16.gmra.mrb[0].mxu0 %v8076
  %v8238 = vpop.f32.mrb[0].mxu0
  %v8239 = vadd.f32 0.0, %v8238
  %v8240 = vpop.f32.mrb[0].mxu0
  %v8241 = vpop.f32.mrb[0].mxu0
  %v8242 = vadd.f32 0.0, %v8241
  %v8243 = vpop.f32.mrb[0].mxu0
  %8244 = vmatprep.mubr.bf16.mxu0 0
  %8245 = vmatmul.mubr.bf16.gmra.mrb[0].mxu0 %v8079
  %v8246 = vpop.f32.mrb[0].mxu0
  %v8247 = vadd.f32 0.0, %v8246
  %v8248 = vpop.f32.mrb[0].mxu0
  %v8249 = vpop.f32.mrb[0].mxu0
  %v8250 = vadd.f32 0.0, %v8249
  %v8251 = vpop.f32.mrb[0].mxu0
  %8252 = vmatprep.mubr.bf16.mxu0 0
  %8253 = vmatmul.mubr.bf16.gmra.mrb[0].mxu0 %v8082
  %v8254 = vpop.f32.mrb[0].mxu0
  %v8255 = vadd.f32 0.0, %v8254
  %v8256 = vpop.f32.mrb[0].mxu0
  %v8257 = vpop.f32.mrb[0].mxu0
  %v8258 = vadd.f32 0.0, %v8257
  %v8259 = vpop.f32.mrb[0].mxu0
  %8260 = vmatprep.mubr.bf16.mxu0 0
  %8261 = vmatmul.mubr.bf16.gmra.mrb[0].mxu0 %v8085
  %v8262 = vpop.f32.mrb[0].mxu0
  %v8263 = vadd.f32 0.0, %v8262
  %v8264 = vpop.f32.mrb[0].mxu0
  %v8265 = vpop.f32.mrb[0].mxu0
  %v8266 = vadd.f32 0.0, %v8265
  %v8267 = vpop.f32.mrb[0].mxu0
  %8268 = vmatprep.mubr.bf16.mxu0 0
  %8269 = vmatmul.mubr.bf16.gmra.mrb[0].mxu0 %v8088
  %v8270 = vpop.f32.mrb[0].mxu0
  %v8271 = vadd.f32 0.0, %v8270
  %v8272 = vpop.f32.mrb[0].mxu0
  %v8273 = vpop.f32.mrb[0].mxu0
  %v8274 = vadd.f32 0.0, %v8273
  %v8275 = vpop.f32.mrb[0].mxu0
  %8276 = vmatprep.mubr.bf16.mxu0 0
  %8277 = vmatmul.mubr.bf16.gmra.mrb[0].mxu0 %v8091
  %v8278 = vpop.f32.mrb[0].mxu0
  %v8279 = vadd.f32 0.0, %v8278
  %v8280 = vpop.f32.mrb[0].mxu0
  %v8281 = vpop.f32.mrb[0].mxu0
  %v8282 = vadd.f32 0.0, %v8281
  %v8283 = vpop.f32.mrb[0].mxu0
  %8284 = vmatprep.mubr.bf16.mxu0 0
  %8285 = vmatmul.mubr.bf16.gmra.mrb[0].mxu0 %v8094
  %v8286 = vpop.f32.mrb[0].mxu0
  %v8287 = vadd.f32 0.0, %v8286
  %v8288 = vpop.f32.mrb[0].mxu0
  %v8289 = vpop.f32.mrb[0].mxu0
  %v8290 = vadd.f32 0.0, %v8289
  %v8291 = vpop.f32.mrb[0].mxu0
  %8292 = vmatprep.mubr.bf16.mxu0 0
  %8293 = vmatmul.mubr.bf16.gmra.mrb[0].mxu0 %v8097
  %v8294 = vpop.f32.mrb[0].mxu0
  %v8295 = vadd.f32 0.0, %v8294
  %v8296 = vpop.f32.mrb[0].mxu0
  %v8297 = vpop.f32.mrb[0].mxu0
  %v8298 = vadd.f32 0.0, %v8297
  %v8299 = vpop.f32.mrb[0].mxu0
  %8300 = vmatprep.mubr.bf16.mxu0 0
  %8301 = vmatmul.mubr.bf16.gmra.mrb[0].mxu0 %v8100
  %v8302 = vpop.f32.mrb[0].mxu0
  %v8303 = vadd.f32 0.0, %v8302
  %v8304 = vpop.f32.mrb[0].mxu0
  %v8305 = vpop.f32.mrb[0].mxu0
  %v8306 = vadd.f32 0.0, %v8305
  %v8307 = vpop.f32.mrb[0].mxu0
  %8308 = vmatprep.mubr.bf16.mxu0 0
  %8309 = vmatmul.mubr.bf16.gmra.mrb[0].mxu0 %v8103
  %v8310 = vpop.f32.mrb[0].mxu0
  %v8311 = vadd.f32 0.0, %v8310
  %v8312 = vpop.f32.mrb[0].mxu0
  %v8313 = vpop.f32.mrb[0].mxu0
  %v8314 = vadd.f32 0.0, %v8313
  %v8315 = vpop.f32.mrb[0].mxu0
  %8316 = vmatprep.mubr.bf16.mxu0 0
  %8317 = vmatmul.mubr.bf16.gmra.mrb[0].mxu0 %v8106
  %v8318 = vpop.f32.mrb[0].mxu0
  %v8319 = vadd.f32 0.0, %v8318
  %v8320 = vpop.f32.mrb[0].mxu0
  %v8321 = vpop.f32.mrb[0].mxu0
  %v8322 = vadd.f32 0.0, %v8321
  %v8323 = vpop.f32.mrb[0].mxu0
  %8324 = vmatprep.mubr.bf16.mxu0 0
  %8325 = vmatmul.mubr.bf16.gmra.mrb[0].mxu0 %v8109
  %v8326 = vpop.f32.mrb[0].mxu0
  %v8327 = vadd.f32 0.0, %v8326
  %v8328 = vpop.f32.mrb[0].mxu0
  %v8329 = vpop.f32.mrb[0].mxu0
  %v8330 = vadd.f32 0.0, %v8329
  %v8331 = vpop.f32.mrb[0].mxu0
  %8332 = vmatprep.mubr.bf16.mxu0 0
  %8333 = vmatmul.mubr.bf16.gmra.mrb[0].mxu0 %v8112
  %v8334 = vpop.f32.mrb[0].mxu0
  %v8335 = vadd.f32 0.0, %v8334
  %v8336 = vpop.f32.mrb[0].mxu0
  %v8337 = vpop.f32.mrb[0].mxu0
  %v8338 = vadd.f32 0.0, %v8337
  %v8339 = vpop.f32.mrb[0].mxu0
  %8340 = vmatprep.mubr.bf16.mxu0 0
  %8341 = vmatmul.mubr.bf16.gmra.mrb[0].mxu0 %v8115
  %v8342 = vpop.f32.mrb[0].mxu0
  %v8343 = vadd.f32 0.0, %v8342
  %v8344 = vpop.f32.mrb[0].mxu0
  %v8345 = vpop.f32.mrb[0].mxu0
  %v8346 = vadd.f32 0.0, %v8345
  %v8347 = vpop.f32.mrb[0].mxu0
  %8348 = vmatprep.mubr.bf16.mxu0 0
  %8349 = vmatmul.mubr.bf16.gmra.mrb[0].mxu0 %v8118
  %v8350 = vpop.f32.mrb[0].mxu0
  %v8351 = vadd.f32 0.0, %v8350
  %v8352 = vpop.f32.mrb[0].mxu0
  %v8353 = vpop.f32.mrb[0].mxu0
  %v8354 = vpop.f32.mrb[0].mxu0
  %8355 = vdwg.mxu0
  %v8356 = vmax.f32 %v8159, 0.0
  %v8357 = vmax.f32 %v8162, 0.0
  %v8358 = vmax.f32 %v8167, 0.0
  %v8359 = vmax.f32 %v8170, 0.0
  %v8360 = vmax.f32 %v8175, 0.0
  %v8361 = vmax.f32 %v8178, 0.0
  %v8362 = vmax.f32 %v8183, 0.0
  %v8363 = vmax.f32 %v8186, 0.0
  %v8364 = vmax.f32 %v8191, 0.0
  %v8365 = vmax.f32 %v8194, 0.0
  %v8366 = vmax.f32 %v8199, 0.0
  %v8367 = vmax.f32 %v8202, 0.0
  %v8368 = vmax.f32 %v8207, 0.0
  %v8369 = vmax.f32 %v8210, 0.0
  %v8370 = vmax.f32 %v8215, 0.0
  %v8371 = vmax.f32 %v8218, 0.0
  %v8372 = vmax.f32 %v8223, 0.0
  %v8373 = vmax.f32 %v8226, 0.0
  %v8374 = vmax.f32 %v8231, 0.0
  %v8375 = vmax.f32 %v8234, 0.0
  %v8376 = vmax.f32 %v8239, 0.0
  %v8377 = vmax.f32 %v8242, 0.0
  %v8378 = vmax.f32 %v8247, 0.0
  %v8379 = vmax.f32 %v8250, 0.0
  %v8380 = vmax.f32 %v8255, 0.0
  %v8381 = vmax.f32 %v8258, 0.0
  %v8382 = vmax.f32 %v8263, 0.0
  %v8383 = vmax.f32 %v8266, 0.0
  %v8384 = vmax.f32 %v8271, 0.0
  %v8385 = vmax.f32 %v8274, 0.0
  %v8386 = vmax.f32 %v8279, 0.0
  %v8387 = vmax.f32 %v8282, 0.0
  %v8388 = vmax.f32 %v8287, 0.0
  %v8389 = vmax.f32 %v8290, 0.0
  %v8390 = vmax.f32 %v8295, 0.0
  %v8391 = vmax.f32 %v8298, 0.0
  %v8392 = vmax.f32 %v8303, 0.0
  %v8393 = vmax.f32 %v8306, 0.0
  %v8394 = vmax.f32 %v8311, 0.0
  %v8395 = vmax.f32 %v8314, 0.0
  %v8396 = vmax.f32 %v8319, 0.0
  %v8397 = vmax.f32 %v8322, 0.0
  %v8398 = vmax.f32 %v8327, 0.0
  %v8399 = vmax.f32 %v8330, 0.0
  %v8400 = vmax.f32 %v8335, 0.0
  %v8401 = vmax.f32 %v8338, 0.0
  %v8402 = vmax.f32 %v8343, 0.0
  %v8403 = vmax.f32 %v8346, 0.0
  %v8404 = vmax.f32 %v8351, 0.0
  %vm8405 = vcmask 64512
  %v8406 = vsel %vm8405, %v8356, 0.0
  %v8407 = vsel %vm8405, %v8357, 0.0
  %v8408 = vadd.f32 %v8406, %v8407
  %v8409 = vsel %vm8405, %v8358, 0.0
  %v8410 = vadd.f32 %v8408, %v8409
  %v8411 = vsel %vm8405, %v8359, 0.0
  %v8412 = vadd.f32 %v8410, %v8411
  %v8413 = vsel %vm8405, %v8360, 0.0
  %v8414 = vadd.f32 %v8412, %v8413
  %v8415 = vsel %vm8405, %v8361, 0.0
  %v8416 = vadd.f32 %v8414, %v8415
  %v8417 = vsel %vm8405, %v8362, 0.0
  %v8418 = vadd.f32 %v8416, %v8417
  %v8419 = vsel %vm8405, %v8363, 0.0
  %v8420 = vadd.f32 %v8418, %v8419
  %v8421 = vsel %vm8405, %v8364, 0.0
  %v8422 = vadd.f32 %v8420, %v8421
  %v8423 = vsel %vm8405, %v8365, 0.0
  %v8424 = vadd.f32 %v8422, %v8423
  %v8425 = vsel %vm8405, %v8366, 0.0
  %v8426 = vadd.f32 %v8424, %v8425
  %v8427 = vsel %vm8405, %v8367, 0.0
  %v8428 = vadd.f32 %v8426, %v8427
  %v8429 = vsel %vm8405, %v8368, 0.0
  %v8430 = vadd.f32 %v8428, %v8429
  %v8431 = vsel %vm8405, %v8369, 0.0
  %v8432 = vadd.f32 %v8430, %v8431
  %v8433 = vsel %vm8405, %v8370, 0.0
  %v8434 = vadd.f32 %v8432, %v8433
  %v8435 = vsel %vm8405, %v8371, 0.0
  %v8436 = vadd.f32 %v8434, %v8435
  %v8437 = vsel %vm8405, %v8372, 0.0
  %v8438 = vadd.f32 %v8436, %v8437
  %v8439 = vsel %vm8405, %v8373, 0.0
  %v8440 = vadd.f32 %v8438, %v8439
  %v8441 = vsel %vm8405, %v8374, 0.0
  %v8442 = vadd.f32 %v8440, %v8441
  %v8443 = vsel %vm8405, %v8375, 0.0
  %v8444 = vadd.f32 %v8442, %v8443
  %v8445 = vsel %vm8405, %v8376, 0.0
  %v8446 = vadd.f32 %v8444, %v8445
  %v8447 = vsel %vm8405, %v8377, 0.0
  %v8448 = vadd.f32 %v8446, %v8447
  %v8449 = vsel %vm8405, %v8378, 0.0
  %v8450 = vadd.f32 %v8448, %v8449
  %v8451 = vsel %vm8405, %v8379, 0.0
  %v8452 = vadd.f32 %v8450, %v8451
  %v8453 = vsel %vm8405, %v8380, 0.0
  %v8454 = vadd.f32 %v8452, %v8453
  %v8455 = vsel %vm8405, %v8381, 0.0
  %v8456 = vadd.f32 %v8454, %v8455
  %v8457 = vsel %vm8405, %v8382, 0.0
  %v8458 = vadd.f32 %v8456, %v8457
  %v8459 = vsel %vm8405, %v8383, 0.0
  %v8460 = vadd.f32 %v8458, %v8459
  %v8461 = vsel %vm8405, %v8384, 0.0
  %v8462 = vadd.f32 %v8460, %v8461
  %v8463 = vsel %vm8405, %v8385, 0.0
  %v8464 = vadd.f32 %v8462, %v8463
  %v8465 = vsel %vm8405, %v8386, 0.0
  %v8466 = vadd.f32 %v8464, %v8465
  %v8467 = vsel %vm8405, %v8387, 0.0
  %v8468 = vadd.f32 %v8466, %v8467
  %v8469 = vsel %vm8405, %v8388, 0.0
  %v8470 = vadd.f32 %v8468, %v8469
  %v8471 = vsel %vm8405, %v8389, 0.0
  %v8472 = vadd.f32 %v8470, %v8471
  %v8473 = vsel %vm8405, %v8390, 0.0
  %v8474 = vadd.f32 %v8472, %v8473
  %v8475 = vsel %vm8405, %v8391, 0.0
  %v8476 = vadd.f32 %v8474, %v8475
  %v8477 = vsel %vm8405, %v8392, 0.0
  %v8478 = vadd.f32 %v8476, %v8477
  %v8479 = vsel %vm8405, %v8393, 0.0
  %v8480 = vadd.f32 %v8478, %v8479
  %v8481 = vsel %vm8405, %v8394, 0.0
  %v8482 = vadd.f32 %v8480, %v8481
  %v8483 = vsel %vm8405, %v8395, 0.0
  %v8484 = vadd.f32 %v8482, %v8483
  %v8485 = vsel %vm8405, %v8396, 0.0
  %v8486 = vadd.f32 %v8484, %v8485
  %v8487 = vsel %vm8405, %v8397, 0.0
  %v8488 = vadd.f32 %v8486, %v8487
  %v8489 = vsel %vm8405, %v8398, 0.0
  %v8490 = vadd.f32 %v8488, %v8489
  %v8491 = vsel %vm8405, %v8399, 0.0
  %v8492 = vadd.f32 %v8490, %v8491
  %v8493 = vsel %vm8405, %v8400, 0.0
  %v8494 = vadd.f32 %v8492, %v8493
  %v8495 = vsel %vm8405, %v8401, 0.0
  %v8496 = vadd.f32 %v8494, %v8495
  %v8497 = vsel %vm8405, %v8402, 0.0
  %v8498 = vadd.f32 %v8496, %v8497
  %v8499 = vsel %vm8405, %v8403, 0.0
  %v8500 = vadd.f32 %v8498, %v8499
  %v8501 = vsel %vm8405, %v8404, 0.0
  %v8502 = vadd.f32 %v8500, %v8501
  %v8503 = vrot.slane %v8502, 4
  %v8504 = vadd.f32 %v8502, %v8503
  %v8505 = vrot.slane %v8504, 2
  %v8506 = vadd.f32 %v8504, %v8505
  %v8507 = vrot.slane %v8506, 1
  %v8508 = vadd.f32 %v8506, %v8507
  %v8509 = vmul.f32 %v8508, 0.0025510204
  %v8510 = vsub.f32 %v8356, %v8509
  %v8511 = vsub.f32 %v8357, %v8509
  %v8512 = vsub.f32 %v8358, %v8509
  %v8513 = vsub.f32 %v8359, %v8509
  %v8514 = vsub.f32 %v8360, %v8509
  %v8515 = vsub.f32 %v8361, %v8509
  %v8516 = vsub.f32 %v8362, %v8509
  %v8517 = vsub.f32 %v8363, %v8509
  %v8518 = vsub.f32 %v8364, %v8509
  %v8519 = vsub.f32 %v8365, %v8509
  %v8520 = vsub.f32 %v8366, %v8509
  %v8521 = vsub.f32 %v8367, %v8509
  %v8522 = vsub.f32 %v8368, %v8509
  %v8523 = vsub.f32 %v8369, %v8509
  %v8524 = vsub.f32 %v8370, %v8509
  %v8525 = vsub.f32 %v8371, %v8509
  %v8526 = vsub.f32 %v8372, %v8509
  %v8527 = vsub.f32 %v8373, %v8509
  %v8528 = vsub.f32 %v8374, %v8509
  %v8529 = vsub.f32 %v8375, %v8509
  %v8530 = vsub.f32 %v8376, %v8509
  %v8531 = vsub.f32 %v8377, %v8509
  %v8532 = vsub.f32 %v8378, %v8509
  %v8533 = vsub.f32 %v8379, %v8509
  %v8534 = vsub.f32 %v8380, %v8509
  %v8535 = vsub.f32 %v8381, %v8509
  %v8536 = vsub.f32 %v8382, %v8509
  %v8537 = vsub.f32 %v8383, %v8509
  %v8538 = vsub.f32 %v8384, %v8509
  %v8539 = vsub.f32 %v8385, %v8509
  %v8540 = vsub.f32 %v8386, %v8509
  %v8541 = vsub.f32 %v8387, %v8509
  %v8542 = vsub.f32 %v8388, %v8509
  %v8543 = vsub.f32 %v8389, %v8509
  %v8544 = vsub.f32 %v8390, %v8509
  %v8545 = vsub.f32 %v8391, %v8509
  %v8546 = vsub.f32 %v8392, %v8509
  %v8547 = vsub.f32 %v8393, %v8509
  %v8548 = vsub.f32 %v8394, %v8509
  %v8549 = vsub.f32 %v8395, %v8509
  %v8550 = vsub.f32 %v8396, %v8509
  %v8551 = vsub.f32 %v8397, %v8509
  %v8552 = vsub.f32 %v8398, %v8509
  %v8553 = vsub.f32 %v8399, %v8509
  %v8554 = vsub.f32 %v8400, %v8509
  %v8555 = vsub.f32 %v8401, %v8509
  %v8556 = vsub.f32 %v8402, %v8509
  %v8557 = vsub.f32 %v8403, %v8509
  %v8558 = vsub.f32 %v8404, %v8509
  %v8559 = vmul.f32 %v8510, %v8510
  %v8560 = vmul.f32 %v8511, %v8511
  %v8561 = vmul.f32 %v8512, %v8512
  %v8562 = vmul.f32 %v8513, %v8513
  %v8563 = vmul.f32 %v8514, %v8514
  %v8564 = vmul.f32 %v8515, %v8515
  %v8565 = vmul.f32 %v8516, %v8516
  %v8566 = vmul.f32 %v8517, %v8517
  %v8567 = vmul.f32 %v8518, %v8518
  %v8568 = vmul.f32 %v8519, %v8519
  %v8569 = vmul.f32 %v8520, %v8520
  %v8570 = vmul.f32 %v8521, %v8521
  %v8571 = vmul.f32 %v8522, %v8522
  %v8572 = vmul.f32 %v8523, %v8523
  %v8573 = vmul.f32 %v8524, %v8524
  %v8574 = vmul.f32 %v8525, %v8525
  %v8575 = vmul.f32 %v8526, %v8526
  %v8576 = vmul.f32 %v8527, %v8527
  %v8577 = vmul.f32 %v8528, %v8528
  %v8578 = vmul.f32 %v8529, %v8529
  %v8579 = vmul.f32 %v8530, %v8530
  %v8580 = vmul.f32 %v8531, %v8531
  %v8581 = vmul.f32 %v8532, %v8532
  %v8582 = vmul.f32 %v8533, %v8533
  %v8583 = vmul.f32 %v8534, %v8534
  %v8584 = vmul.f32 %v8535, %v8535
  %v8585 = vmul.f32 %v8536, %v8536
  %v8586 = vmul.f32 %v8537, %v8537
  %v8587 = vmul.f32 %v8538, %v8538
  %v8588 = vmul.f32 %v8539, %v8539
  %v8589 = vmul.f32 %v8540, %v8540
  %v8590 = vmul.f32 %v8541, %v8541
  %v8591 = vmul.f32 %v8542, %v8542
  %v8592 = vmul.f32 %v8543, %v8543
  %v8593 = vmul.f32 %v8544, %v8544
  %v8594 = vmul.f32 %v8545, %v8545
  %v8595 = vmul.f32 %v8546, %v8546
  %v8596 = vmul.f32 %v8547, %v8547
  %v8597 = vmul.f32 %v8548, %v8548
  %v8598 = vmul.f32 %v8549, %v8549
  %v8599 = vmul.f32 %v8550, %v8550
  %v8600 = vmul.f32 %v8551, %v8551
  %v8601 = vmul.f32 %v8552, %v8552
  %v8602 = vmul.f32 %v8553, %v8553
  %v8603 = vmul.f32 %v8554, %v8554
  %v8604 = vmul.f32 %v8555, %v8555
  %v8605 = vmul.f32 %v8556, %v8556
  %v8606 = vmul.f32 %v8557, %v8557
  %v8607 = vmul.f32 %v8558, %v8558
  %v8608 = vsel %vm8405, %v8559, 0.0
  %v8609 = vsel %vm8405, %v8560, 0.0
  %v8610 = vadd.f32 %v8608, %v8609
  %v8611 = vsel %vm8405, %v8561, 0.0
  %v8612 = vadd.f32 %v8610, %v8611
  %v8613 = vsel %vm8405, %v8562, 0.0
  %v8614 = vadd.f32 %v8612, %v8613
  %v8615 = vsel %vm8405, %v8563, 0.0
  %v8616 = vadd.f32 %v8614, %v8615
  %v8617 = vsel %vm8405, %v8564, 0.0
  %v8618 = vadd.f32 %v8616, %v8617
  %v8619 = vsel %vm8405, %v8565, 0.0
  %v8620 = vadd.f32 %v8618, %v8619
  %v8621 = vsel %vm8405, %v8566, 0.0
  %v8622 = vadd.f32 %v8620, %v8621
  %v8623 = vsel %vm8405, %v8567, 0.0
  %v8624 = vadd.f32 %v8622, %v8623
  %v8625 = vsel %vm8405, %v8568, 0.0
  %v8626 = vadd.f32 %v8624, %v8625
  %v8627 = vsel %vm8405, %v8569, 0.0
  %v8628 = vadd.f32 %v8626, %v8627
  %v8629 = vsel %vm8405, %v8570, 0.0
  %v8630 = vadd.f32 %v8628, %v8629
  %v8631 = vsel %vm8405, %v8571, 0.0
  %v8632 = vadd.f32 %v8630, %v8631
  %v8633 = vsel %vm8405, %v8572, 0.0
  %v8634 = vadd.f32 %v8632, %v8633
  %v8635 = vsel %vm8405, %v8573, 0.0
  %v8636 = vadd.f32 %v8634, %v8635
  %v8637 = vsel %vm8405, %v8574, 0.0
  %v8638 = vadd.f32 %v8636, %v8637
  %v8639 = vsel %vm8405, %v8575, 0.0
  %v8640 = vadd.f32 %v8638, %v8639
  %v8641 = vsel %vm8405, %v8576, 0.0
  %v8642 = vadd.f32 %v8640, %v8641
  %v8643 = vsel %vm8405, %v8577, 0.0
  %v8644 = vadd.f32 %v8642, %v8643
  %v8645 = vsel %vm8405, %v8578, 0.0
  %v8646 = vadd.f32 %v8644, %v8645
  %v8647 = vsel %vm8405, %v8579, 0.0
  %v8648 = vadd.f32 %v8646, %v8647
  %v8649 = vsel %vm8405, %v8580, 0.0
  %v8650 = vadd.f32 %v8648, %v8649
  %v8651 = vsel %vm8405, %v8581, 0.0
  %v8652 = vadd.f32 %v8650, %v8651
  %v8653 = vsel %vm8405, %v8582, 0.0
  %v8654 = vadd.f32 %v8652, %v8653
  %v8655 = vsel %vm8405, %v8583, 0.0
  %v8656 = vadd.f32 %v8654, %v8655
  %v8657 = vsel %vm8405, %v8584, 0.0
  %v8658 = vadd.f32 %v8656, %v8657
  %v8659 = vsel %vm8405, %v8585, 0.0
  %v8660 = vadd.f32 %v8658, %v8659
  %v8661 = vsel %vm8405, %v8586, 0.0
  %v8662 = vadd.f32 %v8660, %v8661
  %v8663 = vsel %vm8405, %v8587, 0.0
  %v8664 = vadd.f32 %v8662, %v8663
  %v8665 = vsel %vm8405, %v8588, 0.0
  %v8666 = vadd.f32 %v8664, %v8665
  %v8667 = vsel %vm8405, %v8589, 0.0
  %v8668 = vadd.f32 %v8666, %v8667
  %v8669 = vsel %vm8405, %v8590, 0.0
  %v8670 = vadd.f32 %v8668, %v8669
  %v8671 = vsel %vm8405, %v8591, 0.0
  %v8672 = vadd.f32 %v8670, %v8671
  %v8673 = vsel %vm8405, %v8592, 0.0
  %v8674 = vadd.f32 %v8672, %v8673
  %v8675 = vsel %vm8405, %v8593, 0.0
  %v8676 = vadd.f32 %v8674, %v8675
  %v8677 = vsel %vm8405, %v8594, 0.0
  %v8678 = vadd.f32 %v8676, %v8677
  %v8679 = vsel %vm8405, %v8595, 0.0
  %v8680 = vadd.f32 %v8678, %v8679
  %v8681 = vsel %vm8405, %v8596, 0.0
  %v8682 = vadd.f32 %v8680, %v8681
  %v8683 = vsel %vm8405, %v8597, 0.0
  %v8684 = vadd.f32 %v8682, %v8683
  %v8685 = vsel %vm8405, %v8598, 0.0
  %v8686 = vadd.f32 %v8684, %v8685
  %v8687 = vsel %vm8405, %v8599, 0.0
  %v8688 = vadd.f32 %v8686, %v8687
  %v8689 = vsel %vm8405, %v8600, 0.0
  %v8690 = vadd.f32 %v8688, %v8689
  %v8691 = vsel %vm8405, %v8601, 0.0
  %v8692 = vadd.f32 %v8690, %v8691
  %v8693 = vsel %vm8405, %v8602, 0.0
  %v8694 = vadd.f32 %v8692, %v8693
  %v8695 = vsel %vm8405, %v8603, 0.0
  %v8696 = vadd.f32 %v8694, %v8695
  %v8697 = vsel %vm8405, %v8604, 0.0
  %v8698 = vadd.f32 %v8696, %v8697
  %v8699 = vsel %vm8405, %v8605, 0.0
  %v8700 = vadd.f32 %v8698, %v8699
  %v8701 = vsel %vm8405, %v8606, 0.0
  %v8702 = vadd.f32 %v8700, %v8701
  %v8703 = vsel %vm8405, %v8607, 0.0
  %v8704 = vadd.f32 %v8702, %v8703
  %v8705 = vrot.slane %v8704, 4
  %v8706 = vadd.f32 %v8704, %v8705
  %v8707 = vrot.slane %v8706, 2
  %v8708 = vadd.f32 %v8706, %v8707
  %v8709 = vrot.slane %v8708, 1
  %v8710 = vadd.f32 %v8708, %v8709
  %v8711 = vmul.f32 %v8710, 0.0025510204
  %v8712 = vadd.f32 %v8711, 1e-05
  %v8713 = vrsqrt.pop %v8712
  %v8714 = vld [vmem:[%s2] sm:$0x1]
  %v8715 = vmul.f32 %v8713, %v8714
  %v8716 = vlaneseq
  %v8717 = vshrl.u32 %v8716, 7
  %v8718 = vsub.s32 0, %v8717
  %v8719 = vrot.slane %v8715, %v8718
  %v8720 = vmul.f32 %v8510, %v8719
  %v8721 = vmul.f32 %v8511, %v8719
  %v8722 = vmul.f32 %v8512, %v8719
  %v8723 = vmul.f32 %v8513, %v8719
  %v8724 = vmul.f32 %v8514, %v8719
  %v8725 = vmul.f32 %v8515, %v8719
  %v8726 = vmul.f32 %v8516, %v8719
  %v8727 = vmul.f32 %v8517, %v8719
  %v8728 = vmul.f32 %v8518, %v8719
  %v8729 = vmul.f32 %v8519, %v8719
  %v8730 = vmul.f32 %v8520, %v8719
  %v8731 = vmul.f32 %v8521, %v8719
  %v8732 = vmul.f32 %v8522, %v8719
  %v8733 = vmul.f32 %v8523, %v8719
  %v8734 = vmul.f32 %v8524, %v8719
  %v8735 = vmul.f32 %v8525, %v8719
  %v8736 = vmul.f32 %v8526, %v8719
  %v8737 = vmul.f32 %v8527, %v8719
  %v8738 = vmul.f32 %v8528, %v8719
  %v8739 = vmul.f32 %v8529, %v8719
  %v8740 = vmul.f32 %v8530, %v8719
  %v8741 = vmul.f32 %v8531, %v8719
  %v8742 = vmul.f32 %v8532, %v8719
  %v8743 = vmul.f32 %v8534, %v8719
  %v8744 = vmul.f32 %v8535, %v8719
  %v8745 = vmul.f32 %v8536, %v8719
  %v8746 = vmul.f32 %v8537, %v8719
  %v8747 = vmul.f32 %v8538, %v8719
  %v8748 = vmul.f32 %v8539, %v8719
  %v8749 = vmul.f32 %v8540, %v8719
  %v8750 = vmul.f32 %v8541, %v8719
  %v8751 = vmul.f32 %v8542, %v8719
  %v8752 = vmul.f32 %v8543, %v8719
  %v8753 = vmul.f32 %v8544, %v8719
  %v8754 = vmul.f32 %v8545, %v8719
  %v8755 = vmul.f32 %v8546, %v8719
  %v8756 = vmul.f32 %v8547, %v8719
  %v8757 = vmul.f32 %v8548, %v8719
  %v8758 = vmul.f32 %v8549, %v8719
  %v8759 = vmul.f32 %v8550, %v8719
  %v8760 = vmul.f32 %v8551, %v8719
  %v8761 = vmul.f32 %v8552, %v8719
  %v8762 = vmul.f32 %v8553, %v8719
  %v8763 = vmul.f32 %v8554, %v8719
  %v8764 = vmul.f32 %v8555, %v8719
  %v8765 = vmul.f32 %v8556, %v8719
  %v8766 = vmul.f32 %v8557, %v8719
  %v8767 = vld [vmem:[%s3] sm:$0x1]
  %v8769 = vlaneseq
  %v8770 = vshrl.u32 %v8769, 7
  %v8771 = vsub.s32 0, %v8770
  %v8772 = vrot.slane %v8767, %v8771
  %v8774 = vadd.f32 %v8720, %v8772
  %v8775 = vadd.f32 %v8721, %v8772
  %v8776 = vadd.f32 %v8722, %v8772
  %v8777 = vadd.f32 %v8723, %v8772
  %v8778 = vadd.f32 %v8724, %v8772
  %v8779 = vadd.f32 %v8725, %v8772
  %v8780 = vadd.f32 %v8726, %v8772
  %v8781 = vadd.f32 %v8727, %v8772
  %v8782 = vadd.f32 %v8728, %v8772
  %v8783 = vadd.f32 %v8729, %v8772
  %v8784 = vadd.f32 %v8730, %v8772
  %v8785 = vadd.f32 %v8731, %v8772
  %v8786 = vadd.f32 %v8732, %v8772
  %v8787 = vadd.f32 %v8733, %v8772
  %v8788 = vadd.f32 %v8734, %v8772
  %v8789 = vadd.f32 %v8735, %v8772
  %v8790 = vadd.f32 %v8736, %v8772
  %v8791 = vadd.f32 %v8737, %v8772
  %v8792 = vadd.f32 %v8738, %v8772
  %v8793 = vadd.f32 %v8739, %v8772
  %v8794 = vadd.f32 %v8740, %v8772
  %v8795 = vadd.f32 %v8741, %v8772
  %v8796 = vadd.f32 %v8742, %v8772
  %v8797 = vadd.f32 %v8743, %v8772
  %v8798 = vadd.f32 %v8744, %v8772
  %v8799 = vadd.f32 %v8745, %v8772
  %v8800 = vadd.f32 %v8746, %v8772
  %v8801 = vadd.f32 %v8747, %v8772
  %v8802 = vadd.f32 %v8748, %v8772
  %v8803 = vadd.f32 %v8749, %v8772
  %v8804 = vadd.f32 %v8750, %v8772
  %v8805 = vadd.f32 %v8751, %v8772
  %v8806 = vadd.f32 %v8752, %v8772
  %v8807 = vadd.f32 %v8753, %v8772
  %v8808 = vadd.f32 %v8754, %v8772
  %v8809 = vadd.f32 %v8755, %v8772
  %v8810 = vadd.f32 %v8756, %v8772
  %v8811 = vadd.f32 %v8757, %v8772
  %v8812 = vadd.f32 %v8758, %v8772
  %v8813 = vadd.f32 %v8759, %v8772
  %v8814 = vadd.f32 %v8760, %v8772
  %v8815 = vadd.f32 %v8761, %v8772
  %v8816 = vadd.f32 %v8762, %v8772
  %v8817 = vadd.f32 %v8763, %v8772
  %v8818 = vadd.f32 %v8764, %v8772
  %v8819 = vadd.f32 %v8765, %v8772
  %v8820 = vadd.f32 %v8766, %v8772
  %v8868 = vcombine.high %v8774, %v8774
  %v8870 = vunpack.c.l.s4 1983009808
  %v8871 = vunpack.c.0.s8 %v8870
  %v8872 = vlaneseq
  %v8873 = vshrl.u32 %v8872, 7
  %v8874 = vsub.s32 %v8871, %v8873
  %v8875 = vrot.slane %v8774, %v8874
  %v8877 = vunpack.c.l.s4 1983009808
  %v8878 = vunpack.c.0.s8 %v8877
  %v8879 = vlaneseq
  %v8880 = vshrl.u32 %v8879, 7
  %v8881 = vsub.s32 %v8878, %v8880
  %v8882 = vrot.slane %v8868, %v8881
  %v8883 = vcombine.high %v8875, %v8875
  %v8884 = vcombine.high %v8882, %v8882
  %v8885 = vcombine.high %v8775, %v8775
  %v8887 = vunpack.c.l.s4 1983009808
  %v8888 = vunpack.c.0.s8 %v8887
  %v8889 = vlaneseq
  %v8890 = vshrl.u32 %v8889, 7
  %v8891 = vsub.s32 %v8888, %v8890
  %v8892 = vrot.slane %v8775, %v8891
  %v8894 = vunpack.c.l.s4 1983009808
  %v8895 = vunpack.c.0.s8 %v8894
  %v8896 = vlaneseq
  %v8897 = vshrl.u32 %v8896, 7
  %v8898 = vsub.s32 %v8895, %v8897
  %v8899 = vrot.slane %v8885, %v8898
  %v8900 = vcombine.high %v8892, %v8892
  %v8901 = vcombine.high %v8899, %v8899
  %v8902 = vcombine.high %v8776, %v8776
  %v8904 = vunpack.c.l.s4 1983009808
  %v8905 = vunpack.c.0.s8 %v8904
  %v8906 = vlaneseq
  %v8907 = vshrl.u32 %v8906, 7
  %v8908 = vsub.s32 %v8905, %v8907
  %v8909 = vrot.slane %v8776, %v8908
  %v8911 = vunpack.c.l.s4 1983009808
  %v8912 = vunpack.c.0.s8 %v8911
  %v8913 = vlaneseq
  %v8914 = vshrl.u32 %v8913, 7
  %v8915 = vsub.s32 %v8912, %v8914
  %v8916 = vrot.slane %v8902, %v8915
  %v8917 = vcombine.high %v8909, %v8909
  %v8918 = vcombine.high %v8916, %v8916
  %v8919 = vcombine.high %v8777, %v8777
  %v8921 = vunpack.c.l.s4 1983009808
  %v8922 = vunpack.c.0.s8 %v8921
  %v8923 = vlaneseq
  %v8924 = vshrl.u32 %v8923, 7
  %v8925 = vsub.s32 %v8922, %v8924
  %v8926 = vrot.slane %v8777, %v8925
  %v8928 = vunpack.c.l.s4 1983009808
  %v8929 = vunpack.c.0.s8 %v8928
  %v8930 = vlaneseq
  %v8931 = vshrl.u32 %v8930, 7
  %v8932 = vsub.s32 %v8929, %v8931
  %v8933 = vrot.slane %v8919, %v8932
  %v8934 = vcombine.high %v8926, %v8926
  %v8935 = vcombine.high %v8933, %v8933
  %v8936 = vcombine.high %v8778, %v8778
  %v8938 = vunpack.c.l.s4 1983009808
  %v8939 = vunpack.c.0.s8 %v8938
  %v8940 = vlaneseq
  %v8941 = vshrl.u32 %v8940, 7
  %v8942 = vsub.s32 %v8939, %v8941
  %v8943 = vrot.slane %v8778, %v8942
  %v8945 = vunpack.c.l.s4 1983009808
  %v8946 = vunpack.c.0.s8 %v8945
  %v8947 = vlaneseq
  %v8948 = vshrl.u32 %v8947, 7
  %v8949 = vsub.s32 %v8946, %v8948
  %v8950 = vrot.slane %v8936, %v8949
  %v8951 = vcombine.high %v8943, %v8943
  %v8952 = vcombine.high %v8950, %v8950
  %v8953 = vcombine.high %v8779, %v8779
  %v8955 = vunpack.c.l.s4 1983009808
  %v8956 = vunpack.c.0.s8 %v8955
  %v8957 = vlaneseq
  %v8958 = vshrl.u32 %v8957, 7
  %v8959 = vsub.s32 %v8956, %v8958
  %v8960 = vrot.slane %v8779, %v8959
  %v8962 = vunpack.c.l.s4 1983009808
  %v8963 = vunpack.c.0.s8 %v8962
  %v8964 = vlaneseq
  %v8965 = vshrl.u32 %v8964, 7
  %v8966 = vsub.s32 %v8963, %v8965
  %v8967 = vrot.slane %v8953, %v8966
  %v8968 = vcombine.high %v8960, %v8960
  %v8969 = vcombine.high %v8967, %v8967
  %v8970 = vcombine.high %v8780, %v8780
  %v8972 = vunpack.c.l.s4 1983009808
  %v8973 = vunpack.c.0.s8 %v8972
  %v8974 = vlaneseq
  %v8975 = vshrl.u32 %v8974, 7
  %v8976 = vsub.s32 %v8973, %v8975
  %v8977 = vrot.slane %v8780, %v8976
  %v8979 = vunpack.c.l.s4 1983009808
  %v8980 = vunpack.c.0.s8 %v8979
  %v8981 = vlaneseq
  %v8982 = vshrl.u32 %v8981, 7
  %v8983 = vsub.s32 %v8980, %v8982
  %v8984 = vrot.slane %v8970, %v8983
  %v8985 = vcombine.high %v8977, %v8977
  %v8986 = vcombine.high %v8984, %v8984
  %v8987 = vcombine.high %v8781, %v8781
  %v8989 = vunpack.c.l.s4 1983009808
  %v8990 = vunpack.c.0.s8 %v8989
  %v8991 = vlaneseq
  %v8992 = vshrl.u32 %v8991, 7
  %v8993 = vsub.s32 %v8990, %v8992
  %v8994 = vrot.slane %v8781, %v8993
  %v8996 = vunpack.c.l.s4 1983009808
  %v8997 = vunpack.c.0.s8 %v8996
  %v8998 = vlaneseq
  %v8999 = vshrl.u32 %v8998, 7
  %v9000 = vsub.s32 %v8997, %v8999
  %v9001 = vrot.slane %v8987, %v9000
  %v9002 = vcombine.high %v8994, %v8994
  %v9003 = vcombine.high %v9001, %v9001
  %v9004 = vcombine.high %v8782, %v8782
  %v9006 = vunpack.c.l.s4 1983009808
  %v9007 = vunpack.c.0.s8 %v9006
  %v9008 = vlaneseq
  %v9009 = vshrl.u32 %v9008, 7
  %v9010 = vsub.s32 %v9007, %v9009
  %v9011 = vrot.slane %v8782, %v9010
  %v9013 = vunpack.c.l.s4 1983009808
  %v9014 = vunpack.c.0.s8 %v9013
  %v9015 = vlaneseq
  %v9016 = vshrl.u32 %v9015, 7
  %v9017 = vsub.s32 %v9014, %v9016
  %v9018 = vrot.slane %v9004, %v9017
  %v9019 = vcombine.high %v9011, %v9011
  %v9020 = vcombine.high %v9018, %v9018
  %v9021 = vcombine.high %v8783, %v8783
  %v9023 = vunpack.c.l.s4 1983009808
  %v9024 = vunpack.c.0.s8 %v9023
  %v9025 = vlaneseq
  %v9026 = vshrl.u32 %v9025, 7
  %v9027 = vsub.s32 %v9024, %v9026
  %v9028 = vrot.slane %v8783, %v9027
  %v9030 = vunpack.c.l.s4 1983009808
  %v9031 = vunpack.c.0.s8 %v9030
  %v9032 = vlaneseq
  %v9033 = vshrl.u32 %v9032, 7
  %v9034 = vsub.s32 %v9031, %v9033
  %v9035 = vrot.slane %v9021, %v9034
  %v9036 = vcombine.high %v9028, %v9028
  %v9037 = vcombine.high %v9035, %v9035
  %v9038 = vcombine.high %v8784, %v8784
  %v9040 = vunpack.c.l.s4 1983009808
  %v9041 = vunpack.c.0.s8 %v9040
  %v9042 = vlaneseq
  %v9043 = vshrl.u32 %v9042, 7
  %v9044 = vsub.s32 %v9041, %v9043
  %v9045 = vrot.slane %v8784, %v9044
  %v9047 = vunpack.c.l.s4 1983009808
  %v9048 = vunpack.c.0.s8 %v9047
  %v9049 = vlaneseq
  %v9050 = vshrl.u32 %v9049, 7
  %v9051 = vsub.s32 %v9048, %v9050
  %v9052 = vrot.slane %v9038, %v9051
  %v9053 = vcombine.high %v9045, %v9045
  %v9054 = vcombine.high %v9052, %v9052
  %v9055 = vcombine.high %v8785, %v8785
  %v9057 = vunpack.c.l.s4 1983009808
  %v9058 = vunpack.c.0.s8 %v9057
  %v9059 = vlaneseq
  %v9060 = vshrl.u32 %v9059, 7
  %v9061 = vsub.s32 %v9058, %v9060
  %v9062 = vrot.slane %v8785, %v9061
  %v9064 = vunpack.c.l.s4 1983009808
  %v9065 = vunpack.c.0.s8 %v9064
  %v9066 = vlaneseq
  %v9067 = vshrl.u32 %v9066, 7
  %v9068 = vsub.s32 %v9065, %v9067
  %v9069 = vrot.slane %v9055, %v9068
  %v9070 = vcombine.high %v9062, %v9062
  %v9071 = vcombine.high %v9069, %v9069
  %v9072 = vcombine.high %v8786, %v8786
  %v9074 = vunpack.c.l.s4 1983009808
  %v9075 = vunpack.c.0.s8 %v9074
  %v9076 = vlaneseq
  %v9077 = vshrl.u32 %v9076, 7
  %v9078 = vsub.s32 %v9075, %v9077
  %v9079 = vrot.slane %v8786, %v9078
  %v9081 = vunpack.c.l.s4 1983009808
  %v9082 = vunpack.c.0.s8 %v9081
  %v9083 = vlaneseq
  %v9084 = vshrl.u32 %v9083, 7
  %v9085 = vsub.s32 %v9082, %v9084
  %v9086 = vrot.slane %v9072, %v9085
  %v9087 = vcombine.high %v9079, %v9079
  %v9088 = vcombine.high %v9086, %v9086
  %v9089 = vcombine.high %v8787, %v8787
  %v9091 = vunpack.c.l.s4 1983009808
  %v9092 = vunpack.c.0.s8 %v9091
  %v9093 = vlaneseq
  %v9094 = vshrl.u32 %v9093, 7
  %v9095 = vsub.s32 %v9092, %v9094
  %v9096 = vrot.slane %v8787, %v9095
  %v9098 = vunpack.c.l.s4 1983009808
  %v9099 = vunpack.c.0.s8 %v9098
  %v9100 = vlaneseq
  %v9101 = vshrl.u32 %v9100, 7
  %v9102 = vsub.s32 %v9099, %v9101
  %v9103 = vrot.slane %v9089, %v9102
  %v9104 = vcombine.high %v9096, %v9096
  %v9105 = vcombine.high %v9103, %v9103
  %v9106 = vcombine.high %v8788, %v8788
  %v9108 = vunpack.c.l.s4 1983009808
  %v9109 = vunpack.c.0.s8 %v9108
  %v9110 = vlaneseq
  %v9111 = vshrl.u32 %v9110, 7
  %v9112 = vsub.s32 %v9109, %v9111
  %v9113 = vrot.slane %v8788, %v9112
  %v9115 = vunpack.c.l.s4 1983009808
  %v9116 = vunpack.c.0.s8 %v9115
  %v9117 = vlaneseq
  %v9118 = vshrl.u32 %v9117, 7
  %v9119 = vsub.s32 %v9116, %v9118
  %v9120 = vrot.slane %v9106, %v9119
  %v9121 = vcombine.high %v9113, %v9113
  %v9122 = vcombine.high %v9120, %v9120
  %v9123 = vcombine.high %v8789, %v8789
  %v9125 = vunpack.c.l.s4 1983009808
  %v9126 = vunpack.c.0.s8 %v9125
  %v9127 = vlaneseq
  %v9128 = vshrl.u32 %v9127, 7
  %v9129 = vsub.s32 %v9126, %v9128
  %v9130 = vrot.slane %v8789, %v9129
  %v9132 = vunpack.c.l.s4 1983009808
  %v9133 = vunpack.c.0.s8 %v9132
  %v9134 = vlaneseq
  %v9135 = vshrl.u32 %v9134, 7
  %v9136 = vsub.s32 %v9133, %v9135
  %v9137 = vrot.slane %v9123, %v9136
  %v9138 = vcombine.high %v9130, %v9130
  %v9139 = vcombine.high %v9137, %v9137
  %v9140 = vcombine.high %v8790, %v8790
  %v9142 = vunpack.c.l.s4 1983009808
  %v9143 = vunpack.c.0.s8 %v9142
  %v9144 = vlaneseq
  %v9145 = vshrl.u32 %v9144, 7
  %v9146 = vsub.s32 %v9143, %v9145
  %v9147 = vrot.slane %v8790, %v9146
  %v9149 = vunpack.c.l.s4 1983009808
  %v9150 = vunpack.c.0.s8 %v9149
  %v9151 = vlaneseq
  %v9152 = vshrl.u32 %v9151, 7
  %v9153 = vsub.s32 %v9150, %v9152
  %v9154 = vrot.slane %v9140, %v9153
  %v9155 = vcombine.high %v9147, %v9147
  %v9156 = vcombine.high %v9154, %v9154
  %v9157 = vcombine.high %v8791, %v8791
  %v9159 = vunpack.c.l.s4 1983009808
  %v9160 = vunpack.c.0.s8 %v9159
  %v9161 = vlaneseq
  %v9162 = vshrl.u32 %v9161, 7
  %v9163 = vsub.s32 %v9160, %v9162
  %v9164 = vrot.slane %v8791, %v9163
  %v9166 = vunpack.c.l.s4 1983009808
  %v9167 = vunpack.c.0.s8 %v9166
  %v9168 = vlaneseq
  %v9169 = vshrl.u32 %v9168, 7
  %v9170 = vsub.s32 %v9167, %v9169
  %v9171 = vrot.slane %v9157, %v9170
  %v9172 = vcombine.high %v9164, %v9164
  %v9173 = vcombine.high %v9171, %v9171
  %v9174 = vcombine.high %v8792, %v8792
  %v9176 = vunpack.c.l.s4 1983009808
  %v9177 = vunpack.c.0.s8 %v9176
  %v9178 = vlaneseq
  %v9179 = vshrl.u32 %v9178, 7
  %v9180 = vsub.s32 %v9177, %v9179
  %v9181 = vrot.slane %v8792, %v9180
  %v9183 = vunpack.c.l.s4 1983009808
  %v9184 = vunpack.c.0.s8 %v9183
  %v9185 = vlaneseq
  %v9186 = vshrl.u32 %v9185, 7
  %v9187 = vsub.s32 %v9184, %v9186
  %v9188 = vrot.slane %v9174, %v9187
  %v9189 = vcombine.high %v9181, %v9181
  %v9190 = vcombine.high %v9188, %v9188
  %v9191 = vcombine.high %v8793, %v8793
  %v9193 = vunpack.c.l.s4 1983009808
  %v9194 = vunpack.c.0.s8 %v9193
  %v9195 = vlaneseq
  %v9196 = vshrl.u32 %v9195, 7
  %v9197 = vsub.s32 %v9194, %v9196
  %v9198 = vrot.slane %v8793, %v9197
  %v9200 = vunpack.c.l.s4 1983009808
  %v9201 = vunpack.c.0.s8 %v9200
  %v9202 = vlaneseq
  %v9203 = vshrl.u32 %v9202, 7
  %v9204 = vsub.s32 %v9201, %v9203
  %v9205 = vrot.slane %v9191, %v9204
  %v9206 = vcombine.high %v9198, %v9198
  %v9207 = vcombine.high %v9205, %v9205
  %v9208 = vcombine.high %v8794, %v8794
  %v9210 = vunpack.c.l.s4 1983009808
  %v9211 = vunpack.c.0.s8 %v9210
  %v9212 = vlaneseq
  %v9213 = vshrl.u32 %v9212, 7
  %v9214 = vsub.s32 %v9211, %v9213
  %v9215 = vrot.slane %v8794, %v9214
  %v9217 = vunpack.c.l.s4 1983009808
  %v9218 = vunpack.c.0.s8 %v9217
  %v9219 = vlaneseq
  %v9220 = vshrl.u32 %v9219, 7
  %v9221 = vsub.s32 %v9218, %v9220
  %v9222 = vrot.slane %v9208, %v9221
  %v9223 = vcombine.high %v9215, %v9215
  %v9224 = vcombine.high %v9222, %v9222
  %v9225 = vcombine.high %v8795, %v8795
  %v9227 = vunpack.c.l.s4 1983009808
  %v9228 = vunpack.c.0.s8 %v9227
  %v9229 = vlaneseq
  %v9230 = vshrl.u32 %v9229, 7
  %v9231 = vsub.s32 %v9228, %v9230
  %v9232 = vrot.slane %v8795, %v9231
  %v9234 = vunpack.c.l.s4 1983009808
  %v9235 = vunpack.c.0.s8 %v9234
  %v9236 = vlaneseq
  %v9237 = vshrl.u32 %v9236, 7
  %v9238 = vsub.s32 %v9235, %v9237
  %v9239 = vrot.slane %v9225, %v9238
  %v9240 = vcombine.high %v9232, %v9232
  %v9241 = vcombine.high %v9239, %v9239
  %v9242 = vcombine.high %v8796, %v8796
  %v9244 = vunpack.c.l.s4 1983009808
  %v9245 = vunpack.c.0.s8 %v9244
  %v9246 = vlaneseq
  %v9247 = vshrl.u32 %v9246, 7
  %v9248 = vsub.s32 %v9245, %v9247
  %v9249 = vrot.slane %v8796, %v9248
  %v9251 = vunpack.c.l.s4 1983009808
  %v9252 = vunpack.c.0.s8 %v9251
  %v9253 = vlaneseq
  %v9254 = vshrl.u32 %v9253, 7
  %v9255 = vsub.s32 %v9252, %v9254
  %v9256 = vrot.slane %v9242, %v9255
  %v9257 = vcombine.high %v9249, %v9249
  %v9258 = vcombine.high %v8797, %v8797
  %v9260 = vunpack.c.l.s4 1983009808
  %v9261 = vunpack.c.0.s8 %v9260
  %v9262 = vlaneseq
  %v9263 = vshrl.u32 %v9262, 7
  %v9264 = vsub.s32 %v9261, %v9263
  %v9265 = vrot.slane %v9258, %v9264
  %v9266 = vcombine.high %v9265, %v9265
  %v9267 = vcombine.high %v8798, %v8798
  %v9269 = vunpack.c.l.s4 1983009808
  %v9270 = vunpack.c.0.s8 %v9269
  %v9271 = vlaneseq
  %v9272 = vshrl.u32 %v9271, 7
  %v9273 = vsub.s32 %v9270, %v9272
  %v9274 = vrot.slane %v8798, %v9273
  %v9276 = vunpack.c.l.s4 1983009808
  %v9277 = vunpack.c.0.s8 %v9276
  %v9278 = vlaneseq
  %v9279 = vshrl.u32 %v9278, 7
  %v9280 = vsub.s32 %v9277, %v9279
  %v9281 = vrot.slane %v9267, %v9280
  %v9282 = vcombine.high %v9274, %v9274
  %v9283 = vcombine.high %v9281, %v9281
  %v9284 = vcombine.high %v8799, %v8799
  %v9286 = vunpack.c.l.s4 1983009808
  %v9287 = vunpack.c.0.s8 %v9286
  %v9288 = vlaneseq
  %v9289 = vshrl.u32 %v9288, 7
  %v9290 = vsub.s32 %v9287, %v9289
  %v9291 = vrot.slane %v8799, %v9290
  %v9293 = vunpack.c.l.s4 1983009808
  %v9294 = vunpack.c.0.s8 %v9293
  %v9295 = vlaneseq
  %v9296 = vshrl.u32 %v9295, 7
  %v9297 = vsub.s32 %v9294, %v9296
  %v9298 = vrot.slane %v9284, %v9297
  %v9299 = vcombine.high %v9291, %v9291
  %v9300 = vcombine.high %v9298, %v9298
  %v9301 = vcombine.high %v8800, %v8800
  %v9303 = vunpack.c.l.s4 1983009808
  %v9304 = vunpack.c.0.s8 %v9303
  %v9305 = vlaneseq
  %v9306 = vshrl.u32 %v9305, 7
  %v9307 = vsub.s32 %v9304, %v9306
  %v9308 = vrot.slane %v8800, %v9307
  %v9310 = vunpack.c.l.s4 1983009808
  %v9311 = vunpack.c.0.s8 %v9310
  %v9312 = vlaneseq
  %v9313 = vshrl.u32 %v9312, 7
  %v9314 = vsub.s32 %v9311, %v9313
  %v9315 = vrot.slane %v9301, %v9314
  %v9316 = vcombine.high %v9308, %v9308
  %v9317 = vcombine.high %v9315, %v9315
  %v9318 = vcombine.high %v8801, %v8801
  %v9320 = vunpack.c.l.s4 1983009808
  %v9321 = vunpack.c.0.s8 %v9320
  %v9322 = vlaneseq
  %v9323 = vshrl.u32 %v9322, 7
  %v9324 = vsub.s32 %v9321, %v9323
  %v9325 = vrot.slane %v8801, %v9324
  %v9327 = vunpack.c.l.s4 1983009808
  %v9328 = vunpack.c.0.s8 %v9327
  %v9329 = vlaneseq
  %v9330 = vshrl.u32 %v9329, 7
  %v9331 = vsub.s32 %v9328, %v9330
  %v9332 = vrot.slane %v9318, %v9331
  %v9333 = vcombine.high %v9325, %v9325
  %v9334 = vcombine.high %v9332, %v9332
  %v9335 = vcombine.high %v8802, %v8802
  %v9337 = vunpack.c.l.s4 1983009808
  %v9338 = vunpack.c.0.s8 %v9337
  %v9339 = vlaneseq
  %v9340 = vshrl.u32 %v9339, 7
  %v9341 = vsub.s32 %v9338, %v9340
  %v9342 = vrot.slane %v8802, %v9341
  %v9344 = vunpack.c.l.s4 1983009808
  %v9345 = vunpack.c.0.s8 %v9344
  %v9346 = vlaneseq
  %v9347 = vshrl.u32 %v9346, 7
  %v9348 = vsub.s32 %v9345, %v9347
  %v9349 = vrot.slane %v9335, %v9348
  %v9350 = vcombine.high %v9342, %v9342
  %v9351 = vcombine.high %v9349, %v9349
  %v9352 = vcombine.high %v8803, %v8803
  %v9354 = vunpack.c.l.s4 1983009808
  %v9355 = vunpack.c.0.s8 %v9354
  %v9356 = vlaneseq
  %v9357 = vshrl.u32 %v9356, 7
  %v9358 = vsub.s32 %v9355, %v9357
  %v9359 = vrot.slane %v8803, %v9358
  %v9361 = vunpack.c.l.s4 1983009808
  %v9362 = vunpack.c.0.s8 %v9361
  %v9363 = vlaneseq
  %v9364 = vshrl.u32 %v9363, 7
  %v9365 = vsub.s32 %v9362, %v9364
  %v9366 = vrot.slane %v9352, %v9365
  %v9367 = vcombine.high %v9359, %v9359
  %v9368 = vcombine.high %v9366, %v9366
  %v9369 = vcombine.high %v8804, %v8804
  %v9371 = vunpack.c.l.s4 1983009808
  %v9372 = vunpack.c.0.s8 %v9371
  %v9373 = vlaneseq
  %v9374 = vshrl.u32 %v9373, 7
  %v9375 = vsub.s32 %v9372, %v9374
  %v9376 = vrot.slane %v8804, %v9375
  %v9378 = vunpack.c.l.s4 1983009808
  %v9379 = vunpack.c.0.s8 %v9378
  %v9380 = vlaneseq
  %v9381 = vshrl.u32 %v9380, 7
  %v9382 = vsub.s32 %v9379, %v9381
  %v9383 = vrot.slane %v9369, %v9382
  %v9384 = vcombine.high %v9376, %v9376
  %v9385 = vcombine.high %v9383, %v9383
  %v9386 = vcombine.high %v8805, %v8805
  %v9388 = vunpack.c.l.s4 1983009808
  %v9389 = vunpack.c.0.s8 %v9388
  %v9390 = vlaneseq
  %v9391 = vshrl.u32 %v9390, 7
  %v9392 = vsub.s32 %v9389, %v9391
  %v9393 = vrot.slane %v8805, %v9392
  %v9395 = vunpack.c.l.s4 1983009808
  %v9396 = vunpack.c.0.s8 %v9395
  %v9397 = vlaneseq
  %v9398 = vshrl.u32 %v9397, 7
  %v9399 = vsub.s32 %v9396, %v9398
  %v9400 = vrot.slane %v9386, %v9399
  %v9401 = vcombine.high %v9393, %v9393
  %v9402 = vcombine.high %v9400, %v9400
  %v9403 = vcombine.high %v8806, %v8806
  %v9405 = vunpack.c.l.s4 1983009808
  %v9406 = vunpack.c.0.s8 %v9405
  %v9407 = vlaneseq
  %v9408 = vshrl.u32 %v9407, 7
  %v9409 = vsub.s32 %v9406, %v9408
  %v9410 = vrot.slane %v8806, %v9409
  %v9412 = vunpack.c.l.s4 1983009808
  %v9413 = vunpack.c.0.s8 %v9412
  %v9414 = vlaneseq
  %v9415 = vshrl.u32 %v9414, 7
  %v9416 = vsub.s32 %v9413, %v9415
  %v9417 = vrot.slane %v9403, %v9416
  %v9418 = vcombine.high %v9410, %v9410
  %v9419 = vcombine.high %v9417, %v9417
  %v9420 = vcombine.high %v8807, %v8807
  %v9422 = vunpack.c.l.s4 1983009808
  %v9423 = vunpack.c.0.s8 %v9422
  %v9424 = vlaneseq
  %v9425 = vshrl.u32 %v9424, 7
  %v9426 = vsub.s32 %v9423, %v9425
  %v9427 = vrot.slane %v8807, %v9426
  %v9429 = vunpack.c.l.s4 1983009808
  %v9430 = vunpack.c.0.s8 %v9429
  %v9431 = vlaneseq
  %v9432 = vshrl.u32 %v9431, 7
  %v9433 = vsub.s32 %v9430, %v9432
  %v9434 = vrot.slane %v9420, %v9433
  %v9435 = vcombine.high %v9427, %v9427
  %v9436 = vcombine.high %v9434, %v9434
  %v9437 = vcombine.high %v8808, %v8808
  %v9439 = vunpack.c.l.s4 1983009808
  %v9440 = vunpack.c.0.s8 %v9439
  %v9441 = vlaneseq
  %v9442 = vshrl.u32 %v9441, 7
  %v9443 = vsub.s32 %v9440, %v9442
  %v9444 = vrot.slane %v8808, %v9443
  %v9446 = vunpack.c.l.s4 1983009808
  %v9447 = vunpack.c.0.s8 %v9446
  %v9448 = vlaneseq
  %v9449 = vshrl.u32 %v9448, 7
  %v9450 = vsub.s32 %v9447, %v9449
  %v9451 = vrot.slane %v9437, %v9450
  %v9452 = vcombine.high %v9444, %v9444
  %v9453 = vcombine.high %v9451, %v9451
  %v9454 = vcombine.high %v8809, %v8809
  %v9456 = vunpack.c.l.s4 1983009808
  %v9457 = vunpack.c.0.s8 %v9456
  %v9458 = vlaneseq
  %v9459 = vshrl.u32 %v9458, 7
  %v9460 = vsub.s32 %v9457, %v9459
  %v9461 = vrot.slane %v8809, %v9460
  %v9463 = vunpack.c.l.s4 1983009808
  %v9464 = vunpack.c.0.s8 %v9463
  %v9465 = vlaneseq
  %v9466 = vshrl.u32 %v9465, 7
  %v9467 = vsub.s32 %v9464, %v9466
  %v9468 = vrot.slane %v9454, %v9467
  %v9469 = vcombine.high %v9461, %v9461
  %v9470 = vcombine.high %v9468, %v9468
  %v9471 = vcombine.high %v8810, %v8810
  %v9473 = vunpack.c.l.s4 1983009808
  %v9474 = vunpack.c.0.s8 %v9473
  %v9475 = vlaneseq
  %v9476 = vshrl.u32 %v9475, 7
  %v9477 = vsub.s32 %v9474, %v9476
  %v9478 = vrot.slane %v8810, %v9477
  %v9480 = vunpack.c.l.s4 1983009808
  %v9481 = vunpack.c.0.s8 %v9480
  %v9482 = vlaneseq
  %v9483 = vshrl.u32 %v9482, 7
  %v9484 = vsub.s32 %v9481, %v9483
  %v9485 = vrot.slane %v9471, %v9484
  %v9486 = vcombine.high %v9478, %v9478
  %v9487 = vcombine.high %v9485, %v9485
  %v9488 = vcombine.high %v8811, %v8811
  %v9490 = vunpack.c.l.s4 1983009808
  %v9491 = vunpack.c.0.s8 %v9490
  %v9492 = vlaneseq
  %v9493 = vshrl.u32 %v9492, 7
  %v9494 = vsub.s32 %v9491, %v9493
  %v9495 = vrot.slane %v8811, %v9494
  %v9497 = vunpack.c.l.s4 1983009808
  %v9498 = vunpack.c.0.s8 %v9497
  %v9499 = vlaneseq
  %v9500 = vshrl.u32 %v9499, 7
  %v9501 = vsub.s32 %v9498, %v9500
  %v9502 = vrot.slane %v9488, %v9501
  %v9503 = vcombine.high %v9495, %v9495
  %v9504 = vcombine.high %v9502, %v9502
  %v9505 = vcombine.high %v8812, %v8812
  %v9507 = vunpack.c.l.s4 1983009808
  %v9508 = vunpack.c.0.s8 %v9507
  %v9509 = vlaneseq
  %v9510 = vshrl.u32 %v9509, 7
  %v9511 = vsub.s32 %v9508, %v9510
  %v9512 = vrot.slane %v8812, %v9511
  %v9514 = vunpack.c.l.s4 1983009808
  %v9515 = vunpack.c.0.s8 %v9514
  %v9516 = vlaneseq
  %v9517 = vshrl.u32 %v9516, 7
  %v9518 = vsub.s32 %v9515, %v9517
  %v9519 = vrot.slane %v9505, %v9518
  %v9520 = vcombine.high %v9512, %v9512
  %v9521 = vcombine.high %v9519, %v9519
  %v9522 = vcombine.high %v8813, %v8813
  %v9524 = vunpack.c.l.s4 1983009808
  %v9525 = vunpack.c.0.s8 %v9524
  %v9526 = vlaneseq
  %v9527 = vshrl.u32 %v9526, 7
  %v9528 = vsub.s32 %v9525, %v9527
  %v9529 = vrot.slane %v8813, %v9528
  %v9531 = vunpack.c.l.s4 1983009808
  %v9532 = vunpack.c.0.s8 %v9531
  %v9533 = vlaneseq
  %v9534 = vshrl.u32 %v9533, 7
  %v9535 = vsub.s32 %v9532, %v9534
  %v9536 = vrot.slane %v9522, %v9535
  %v9537 = vcombine.high %v9529, %v9529
  %v9538 = vcombine.high %v9536, %v9536
  %v9539 = vcombine.high %v8814, %v8814
  %v9541 = vunpack.c.l.s4 1983009808
  %v9542 = vunpack.c.0.s8 %v9541
  %v9543 = vlaneseq
  %v9544 = vshrl.u32 %v9543, 7
  %v9545 = vsub.s32 %v9542, %v9544
  %v9546 = vrot.slane %v8814, %v9545
  %v9548 = vunpack.c.l.s4 1983009808
  %v9549 = vunpack.c.0.s8 %v9548
  %v9550 = vlaneseq
  %v9551 = vshrl.u32 %v9550, 7
  %v9552 = vsub.s32 %v9549, %v9551
  %v9553 = vrot.slane %v9539, %v9552
  %v9554 = vcombine.high %v9546, %v9546
  %v9555 = vcombine.high %v9553, %v9553
  %v9556 = vcombine.high %v8815, %v8815
  %v9558 = vunpack.c.l.s4 1983009808
  %v9559 = vunpack.c.0.s8 %v9558
  %v9560 = vlaneseq
  %v9561 = vshrl.u32 %v9560, 7
  %v9562 = vsub.s32 %v9559, %v9561
  %v9563 = vrot.slane %v8815, %v9562
  %v9565 = vunpack.c.l.s4 1983009808
  %v9566 = vunpack.c.0.s8 %v9565
  %v9567 = vlaneseq
  %v9568 = vshrl.u32 %v9567, 7
  %v9569 = vsub.s32 %v9566, %v9568
  %v9570 = vrot.slane %v9556, %v9569
  %v9571 = vcombine.high %v9563, %v9563
  %v9572 = vcombine.high %v9570, %v9570
  %v9573 = vcombine.high %v8816, %v8816
  %v9575 = vunpack.c.l.s4 1983009808
  %v9576 = vunpack.c.0.s8 %v9575
  %v9577 = vlaneseq
  %v9578 = vshrl.u32 %v9577, 7
  %v9579 = vsub.s32 %v9576, %v9578
  %v9580 = vrot.slane %v8816, %v9579
  %v9582 = vunpack.c.l.s4 1983009808
  %v9583 = vunpack.c.0.s8 %v9582
  %v9584 = vlaneseq
  %v9585 = vshrl.u32 %v9584, 7
  %v9586 = vsub.s32 %v9583, %v9585
  %v9587 = vrot.slane %v9573, %v9586
  %v9588 = vcombine.high %v9580, %v9580
  %v9589 = vcombine.high %v9587, %v9587
  %v9590 = vcombine.high %v8817, %v8817
  %v9592 = vunpack.c.l.s4 1983009808
  %v9593 = vunpack.c.0.s8 %v9592
  %v9594 = vlaneseq
  %v9595 = vshrl.u32 %v9594, 7
  %v9596 = vsub.s32 %v9593, %v9595
  %v9597 = vrot.slane %v8817, %v9596
  %v9599 = vunpack.c.l.s4 1983009808
  %v9600 = vunpack.c.0.s8 %v9599
  %v9601 = vlaneseq
  %v9602 = vshrl.u32 %v9601, 7
  %v9603 = vsub.s32 %v9600, %v9602
  %v9604 = vrot.slane %v9590, %v9603
  %v9605 = vcombine.high %v9597, %v9597
  %v9606 = vcombine.high %v9604, %v9604
  %v9607 = vcombine.high %v8818, %v8818
  %v9609 = vunpack.c.l.s4 1983009808
  %v9610 = vunpack.c.0.s8 %v9609
  %v9611 = vlaneseq
  %v9612 = vshrl.u32 %v9611, 7
  %v9613 = vsub.s32 %v9610, %v9612
  %v9614 = vrot.slane %v8818, %v9613
  %v9616 = vunpack.c.l.s4 1983009808
  %v9617 = vunpack.c.0.s8 %v9616
  %v9618 = vlaneseq
  %v9619 = vshrl.u32 %v9618, 7
  %v9620 = vsub.s32 %v9617, %v9619
  %v9621 = vrot.slane %v9607, %v9620
  %v9622 = vcombine.high %v9614, %v9614
  %v9623 = vcombine.high %v9621, %v9621
  %v9624 = vcombine.high %v8819, %v8819
  %v9626 = vunpack.c.l.s4 1983009808
  %v9627 = vunpack.c.0.s8 %v9626
  %v9628 = vlaneseq
  %v9629 = vshrl.u32 %v9628, 7
  %v9630 = vsub.s32 %v9627, %v9629
  %v9631 = vrot.slane %v8819, %v9630
  %v9633 = vunpack.c.l.s4 1983009808
  %v9634 = vunpack.c.0.s8 %v9633
  %v9635 = vlaneseq
  %v9636 = vshrl.u32 %v9635, 7
  %v9637 = vsub.s32 %v9634, %v9636
  %v9638 = vrot.slane %v9624, %v9637
  %v9639 = vcombine.high %v9631, %v9631
  %v9640 = vcombine.high %v9638, %v9638
  %v9642 = vunpack.c.l.s4 1983009808
  %v9643 = vunpack.c.0.s8 %v9642
  %v9644 = vlaneseq
  %v9645 = vshrl.u32 %v9644, 7
  %v9646 = vsub.s32 %v9643, %v9645
  %v9647 = vrot.slane %v8820, %v9646
  %v9648 = vlaneseq
  %v9649 = vshrl.u32 %v9648, 7
  %v9650 = vsub.s32 0, %v9649
  %v9651 = vrot.slane %v8875, %v9650
  %v9652 = vlaneseq
  %v9653 = vshrl.u32 %v9652, 7
  %v9654 = vsub.s32 0, %v9653
  %v9655 = vrot.slane %v8883, %v9654
  %v9656 = vlaneseq
  %v9657 = vshrl.u32 %v9656, 7
  %v9658 = vsub.s32 0, %v9657
  %v9659 = vrot.slane %v8882, %v9658
  %v9660 = vlaneseq
  %v9661 = vshrl.u32 %v9660, 7
  %v9662 = vsub.s32 0, %v9661
  %v9663 = vrot.slane %v8884, %v9662
  %v9664 = vlaneseq
  %v9665 = vshrl.u32 %v9664, 7
  %v9666 = vsub.s32 0, %v9665
  %v9667 = vrot.slane %v8892, %v9666
  %v9668 = vlaneseq
  %v9669 = vshrl.u32 %v9668, 7
  %v9670 = vsub.s32 0, %v9669
  %v9671 = vrot.slane %v8900, %v9670
  %v9672 = vlaneseq
  %v9673 = vshrl.u32 %v9672, 7
  %v9674 = vsub.s32 0, %v9673
  %v9675 = vrot.slane %v8933, %v9674
  %v9676 = vlaneseq
  %v9677 = vshrl.u32 %v9676, 7
  %v9678 = vsub.s32 0, %v9677
  %v9679 = vrot.slane %v8935, %v9678
  %v9680 = vlaneseq
  %v9681 = vshrl.u32 %v9680, 7
  %v9682 = vsub.s32 0, %v9681
  %v9683 = vrot.slane %v8943, %v9682
  %v9684 = vlaneseq
  %v9685 = vshrl.u32 %v9684, 7
  %v9686 = vsub.s32 0, %v9685
  %v9687 = vrot.slane %v8951, %v9686
  %v9688 = vlaneseq
  %v9689 = vshrl.u32 %v9688, 7
  %v9690 = vsub.s32 0, %v9689
  %v9691 = vrot.slane %v8950, %v9690
  %v9692 = vlaneseq
  %v9693 = vshrl.u32 %v9692, 7
  %v9694 = vsub.s32 0, %v9693
  %v9695 = vrot.slane %v8952, %v9694
  %v9696 = vlaneseq
  %v9697 = vshrl.u32 %v9696, 7
  %v9698 = vsub.s32 0, %v9697
  %v9699 = vrot.slane %v8994, %v9698
  %v9700 = vlaneseq
  %v9701 = vshrl.u32 %v9700, 7
  %v9702 = vsub.s32 0, %v9701
  %v9703 = vrot.slane %v9002, %v9702
  %v9704 = vlaneseq
  %v9705 = vshrl.u32 %v9704, 7
  %v9706 = vsub.s32 0, %v9705
  %v9707 = vrot.slane %v9001, %v9706
  %v9708 = vlaneseq
  %v9709 = vshrl.u32 %v9708, 7
  %v9710 = vsub.s32 0, %v9709
  %v9711 = vrot.slane %v9003, %v9710
  %v9712 = vlaneseq
  %v9713 = vshrl.u32 %v9712, 7
  %v9714 = vsub.s32 0, %v9713
  %v9715 = vrot.slane %v9011, %v9714
  %v9716 = vlaneseq
  %v9717 = vshrl.u32 %v9716, 7
  %v9718 = vsub.s32 0, %v9717
  %v9719 = vrot.slane %v9019, %v9718
  %v9720 = vlaneseq
  %v9721 = vshrl.u32 %v9720, 7
  %v9722 = vsub.s32 0, %v9721
  %v9723 = vrot.slane %v9052, %v9722
  %v9724 = vlaneseq
  %v9725 = vshrl.u32 %v9724, 7
  %v9726 = vsub.s32 0, %v9725
  %v9727 = vrot.slane %v9054, %v9726
  %v9728 = vlaneseq
  %v9729 = vshrl.u32 %v9728, 7
  %v9730 = vsub.s32 0, %v9729
  %v9731 = vrot.slane %v9062, %v9730
  %v9732 = vlaneseq
  %v9733 = vshrl.u32 %v9732, 7
  %v9734 = vsub.s32 0, %v9733
  %v9735 = vrot.slane %v9070, %v9734
  %v9736 = vlaneseq
  %v9737 = vshrl.u32 %v9736, 7
  %v9738 = vsub.s32 0, %v9737
  %v9739 = vrot.slane %v9069, %v9738
  %v9740 = vlaneseq
  %v9741 = vshrl.u32 %v9740, 7
  %v9742 = vsub.s32 0, %v9741
  %v9743 = vrot.slane %v9071, %v9742
  %v9744 = vlaneseq
  %v9745 = vshrl.u32 %v9744, 7
  %v9746 = vsub.s32 0, %v9745
  %v9747 = vrot.slane %v9113, %v9746
  %v9748 = vlaneseq
  %v9749 = vshrl.u32 %v9748, 7
  %v9750 = vsub.s32 0, %v9749
  %v9751 = vrot.slane %v9121, %v9750
  %v9752 = vlaneseq
  %v9753 = vshrl.u32 %v9752, 7
  %v9754 = vsub.s32 0, %v9753
  %v9755 = vrot.slane %v9120, %v9754
  %v9756 = vlaneseq
  %v9757 = vshrl.u32 %v9756, 7
  %v9758 = vsub.s32 0, %v9757
  %v9759 = vrot.slane %v9122, %v9758
  %v9760 = vlaneseq
  %v9761 = vshrl.u32 %v9760, 7
  %v9762 = vsub.s32 0, %v9761
  %v9763 = vrot.slane %v9130, %v9762
  %v9764 = vlaneseq
  %v9765 = vshrl.u32 %v9764, 7
  %v9766 = vsub.s32 0, %v9765
  %v9767 = vrot.slane %v9138, %v9766
  %v9768 = vlaneseq
  %v9769 = vshrl.u32 %v9768, 7
  %v9770 = vsub.s32 0, %v9769
  %v9771 = vrot.slane %v9171, %v9770
  %v9772 = vlaneseq
  %v9773 = vshrl.u32 %v9772, 7
  %v9774 = vsub.s32 0, %v9773
  %v9775 = vrot.slane %v9173, %v9774
  %v9776 = vlaneseq
  %v9777 = vshrl.u32 %v9776, 7
  %v9778 = vsub.s32 0, %v9777
  %v9779 = vrot.slane %v9181, %v9778
  %v9780 = vlaneseq
  %v9781 = vshrl.u32 %v9780, 7
  %v9782 = vsub.s32 0, %v9781
  %v9783 = vrot.slane %v9189, %v9782
  %v9784 = vlaneseq
  %v9785 = vshrl.u32 %v9784, 7
  %v9786 = vsub.s32 0, %v9785
  %v9787 = vrot.slane %v9188, %v9786
  %v9788 = vlaneseq
  %v9789 = vshrl.u32 %v9788, 7
  %v9790 = vsub.s32 0, %v9789
  %v9791 = vrot.slane %v9190, %v9790
  %v9792 = vlaneseq
  %v9793 = vshrl.u32 %v9792, 7
  %v9794 = vsub.s32 0, %v9793
  %v9795 = vrot.slane %v9265, %v9794
  %v9796 = vlaneseq
  %v9797 = vshrl.u32 %v9796, 7
  %v9798 = vsub.s32 0, %v9797
  %v9799 = vrot.slane %v9266, %v9798
  %v9800 = vlaneseq
  %v9801 = vshrl.u32 %v9800, 7
  %v9802 = vsub.s32 0, %v9801
  %v9803 = vrot.slane %v9274, %v9802
  %v9804 = vlaneseq
  %v9805 = vshrl.u32 %v9804, 7
  %v9806 = vsub.s32 0, %v9805
  %v9807 = vrot.slane %v9282, %v9806
  %v9808 = vlaneseq
  %v9809 = vshrl.u32 %v9808, 7
  %v9810 = vsub.s32 0, %v9809
  %v9811 = vrot.slane %v9281, %v9810
  %v9812 = vlaneseq
  %v9813 = vshrl.u32 %v9812, 7
  %v9814 = vsub.s32 0, %v9813
  %v9815 = vrot.slane %v9283, %v9814
  %v9816 = vlaneseq
  %v9817 = vshrl.u32 %v9816, 7
  %v9818 = vsub.s32 0, %v9817
  %v9819 = vrot.slane %v9325, %v9818
  %v9820 = vlaneseq
  %v9821 = vshrl.u32 %v9820, 7
  %v9822 = vsub.s32 0, %v9821
  %v9823 = vrot.slane %v9333, %v9822
  %v9824 = vlaneseq
  %v9825 = vshrl.u32 %v9824, 7
  %v9826 = vsub.s32 0, %v9825
  %v9827 = vrot.slane %v9332, %v9826
  %v9828 = vlaneseq
  %v9829 = vshrl.u32 %v9828, 7
  %v9830 = vsub.s32 0, %v9829
  %v9831 = vrot.slane %v9334, %v9830
  %v9832 = vlaneseq
  %v9833 = vshrl.u32 %v9832, 7
  %v9834 = vsub.s32 0, %v9833
  %v9835 = vrot.slane %v9342, %v9834
  %v9836 = vlaneseq
  %v9837 = vshrl.u32 %v9836, 7
  %v9838 = vsub.s32 0, %v9837
  %v9839 = vrot.slane %v9350, %v9838
  %v9840 = vlaneseq
  %v9841 = vshrl.u32 %v9840, 7
  %v9842 = vsub.s32 0, %v9841
  %v9843 = vrot.slane %v9383, %v9842
  %v9844 = vlaneseq
  %v9845 = vshrl.u32 %v9844, 7
  %v9846 = vsub.s32 0, %v9845
  %v9847 = vrot.slane %v9385, %v9846
  %v9848 = vlaneseq
  %v9849 = vshrl.u32 %v9848, 7
  %v9850 = vsub.s32 0, %v9849
  %v9851 = vrot.slane %v9393, %v9850
  %v9852 = vlaneseq
  %v9853 = vshrl.u32 %v9852, 7
  %v9854 = vsub.s32 0, %v9853
  %v9855 = vrot.slane %v9401, %v9854
  %v9856 = vlaneseq
  %v9857 = vshrl.u32 %v9856, 7
  %v9858 = vsub.s32 0, %v9857
  %v9859 = vrot.slane %v9400, %v9858
  %v9860 = vlaneseq
  %v9861 = vshrl.u32 %v9860, 7
  %v9862 = vsub.s32 0, %v9861
  %v9863 = vrot.slane %v9402, %v9862
  %v9864 = vlaneseq
  %v9865 = vshrl.u32 %v9864, 7
  %v9866 = vsub.s32 0, %v9865
  %v9867 = vrot.slane %v9444, %v9866
  %v9868 = vlaneseq
  %v9869 = vshrl.u32 %v9868, 7
  %v9870 = vsub.s32 0, %v9869
  %v9871 = vrot.slane %v9452, %v9870
  %v9872 = vlaneseq
  %v9873 = vshrl.u32 %v9872, 7
  %v9874 = vsub.s32 0, %v9873
  %v9875 = vrot.slane %v9451, %v9874
  %v9876 = vlaneseq
  %v9877 = vshrl.u32 %v9876, 7
  %v9878 = vsub.s32 0, %v9877
  %v9879 = vrot.slane %v9453, %v9878
  %v9880 = vlaneseq
  %v9881 = vshrl.u32 %v9880, 7
  %v9882 = vsub.s32 0, %v9881
  %v9883 = vrot.slane %v9461, %v9882
  %v9884 = vlaneseq
  %v9885 = vshrl.u32 %v9884, 7
  %v9886 = vsub.s32 0, %v9885
  %v9887 = vrot.slane %v9469, %v9886
  %v9888 = vlaneseq
  %v9889 = vshrl.u32 %v9888, 7
  %v9890 = vsub.s32 0, %v9889
  %v9891 = vrot.slane %v9502, %v9890
  %v9892 = vlaneseq
  %v9893 = vshrl.u32 %v9892, 7
  %v9894 = vsub.s32 0, %v9893
  %v9895 = vrot.slane %v9504, %v9894
  %v9896 = vlaneseq
  %v9897 = vshrl.u32 %v9896, 7
  %v9898 = vsub.s32 0, %v9897
  %v9899 = vrot.slane %v9512, %v9898
  %v9900 = vlaneseq
  %v9901 = vshrl.u32 %v9900, 7
  %v9902 = vsub.s32 0, %v9901
  %v9903 = vrot.slane %v9520, %v9902
  %v9904 = vlaneseq
  %v9905 = vshrl.u32 %v9904, 7
  %v9906 = vsub.s32 0, %v9905
  %v9907 = vrot.slane %v9519, %v9906
  %v9908 = vlaneseq
  %v9909 = vshrl.u32 %v9908, 7
  %v9910 = vsub.s32 0, %v9909
  %v9911 = vrot.slane %v9521, %v9910
  %v9912 = vlaneseq
  %v9913 = vshrl.u32 %v9912, 7
  %v9914 = vsub.s32 0, %v9913
  %v9915 = vrot.slane %v9563, %v9914
  %v9916 = vlaneseq
  %v9917 = vshrl.u32 %v9916, 7
  %v9918 = vsub.s32 0, %v9917
  %v9919 = vrot.slane %v9571, %v9918
  %v9920 = vlaneseq
  %v9921 = vshrl.u32 %v9920, 7
  %v9922 = vsub.s32 0, %v9921
  %v9923 = vrot.slane %v9570, %v9922
  %v9924 = vlaneseq
  %v9925 = vshrl.u32 %v9924, 7
  %v9926 = vsub.s32 0, %v9925
  %v9927 = vrot.slane %v9572, %v9926
  %v9928 = vlaneseq
  %v9929 = vshrl.u32 %v9928, 7
  %v9930 = vsub.s32 0, %v9929
  %v9931 = vrot.slane %v9580, %v9930
  %v9932 = vlaneseq
  %v9933 = vshrl.u32 %v9932, 7
  %v9934 = vsub.s32 0, %v9933
  %v9935 = vrot.slane %v9588, %v9934
  %vm9936 = vcmask 1041409
  %v9937 = vsel %vm9936, %v9655, %v9651
  %v9938 = vsel %vm2032, %v9659, %v9937
  %vm9939 = vcmask 1043459
  %v9940 = vsel %vm9939, %v9663, %v9938
  %v9941 = vsel %vm2034, %v9667, %v9940
  %vm9942 = vcmask 1045509
  %v9943 = vsel %vm9942, %v9671, %v9941
  %v9944 = vsel %vm2036, %v9675, %v9943
  %vm9945 = vcmask 1047559
  %v9946 = vsel %vm9945, %v9679, %v9944
  %v9947 = vsel %vm9936, %v9687, %v9683
  %v9948 = vsel %vm2032, %v9691, %v9947
  %v9949 = vsel %vm9939, %v9695, %v9948
  %v9950 = vsel %vm2034, %v9699, %v9949
  %v9951 = vsel %vm9942, %v9703, %v9950
  %v9952 = vsel %vm2036, %v9707, %v9951
  %v9953 = vsel %vm9945, %v9711, %v9952
  %v9954 = vsel %vm9936, %v9719, %v9715
  %v9955 = vsel %vm2032, %v9723, %v9954
  %v9956 = vsel %vm9939, %v9727, %v9955
  %v9957 = vsel %vm2034, %v9731, %v9956
  %v9958 = vsel %vm9942, %v9735, %v9957
  %v9959 = vsel %vm2036, %v9739, %v9958
  %v9960 = vsel %vm9945, %v9743, %v9959
  %v9961 = vsel %vm9936, %v9751, %v9747
  %v9962 = vsel %vm2032, %v9755, %v9961
  %v9963 = vsel %vm9939, %v9759, %v9962
  %v9964 = vsel %vm2034, %v9763, %v9963
  %v9965 = vsel %vm9942, %v9767, %v9964
  %v9966 = vsel %vm2036, %v9771, %v9965
  %v9967 = vsel %vm9945, %v9775, %v9966
  %v9968 = vsel %vm9936, %v9783, %v9779
  %v9969 = vsel %vm2032, %v9787, %v9968
  %v9970 = vsel %vm9939, %v9791, %v9969
  %v9971 = vsel %vm2034, %v9795, %v9970
  %v9972 = vsel %vm9942, %v9799, %v9971
  %v9973 = vsel %vm2036, %v9803, %v9972
  %v9974 = vsel %vm9945, %v9807, %v9973
  %v9975 = vsel %vm9936, %v9815, %v9811
  %v9976 = vsel %vm2032, %v9819, %v9975
  %v9977 = vsel %vm9939, %v9823, %v9976
  %v9978 = vsel %vm2034, %v9827, %v9977
  %v9979 = vsel %vm9942, %v9831, %v9978
  %v9980 = vsel %vm2036, %v9835, %v9979
  %v9981 = vsel %vm9945, %v9839, %v9980
  %v9982 = vsel %vm9936, %v9847, %v9843
  %v9983 = vsel %vm2032, %v9851, %v9982
  %v9984 = vsel %vm9939, %v9855, %v9983
  %v9985 = vsel %vm2034, %v9859, %v9984
  %v9986 = vsel %vm9942, %v9863, %v9985
  %v9987 = vsel %vm2036, %v9867, %v9986
  %v9988 = vsel %vm9945, %v9871, %v9987
  %v9989 = vsel %vm9936, %v9879, %v9875
  %v9990 = vsel %vm2032, %v9883, %v9989
  %v9991 = vsel %vm9939, %v9887, %v9990
  %v9992 = vsel %vm2034, %v9891, %v9991
  %v9993 = vsel %vm9942, %v9895, %v9992
  %v9994 = vsel %vm2036, %v9899, %v9993
  %v9995 = vsel %vm9945, %v9903, %v9994
  %v9996 = vsel %vm9936, %v9911, %v9907
  %v9997 = vsel %vm2032, %v9915, %v9996
  %v9998 = vsel %vm9939, %v9919, %v9997
  %v9999 = vsel %vm2034, %v9923, %v9998
  %v10000 = vsel %vm9942, %v9927, %v9999
  %v10001 = vsel %vm2036, %v9931, %v10000
  %v10002 = vsel %vm9945, %v9935, %v10001
  %10012 = vst.msk [vmem:[#allocation2] sm:$0xff] %vm8405, %v9946
  %10013 = vst.msk [vmem:[#allocation2 + $0x8] sm:$0xff] %vm8405, %v9953
  %10014 = vst.msk [vmem:[#allocation2 + $0x10] sm:$0xff] %vm8405, %v9960
  %10015 = vst.msk [vmem:[#allocation2 + $0x18] sm:$0xff] %vm8405, %v9967
  %10016 = vst.msk [vmem:[#allocation2 + $0x20] sm:$0xff] %vm8405, %v9974
  %10017 = vst.msk [vmem:[#allocation2 + $0x28] sm:$0xff] %vm8405, %v9981
  %10018 = vst.msk [vmem:[#allocation2 + $0x30] sm:$0xff] %vm8405, %v9988
  %10019 = vst.msk [vmem:[#allocation2 + $0x38] sm:$0xff] %vm8405, %v9995
  %10020 = vst.msk [vmem:[#allocation2 + $0x40] sm:$0xff] %vm8405, %v10002
  %v10021 = vrot.slane %v8875, 7
  %v10022 = vrot.slane %v10021, 2
  %v10023 = vrot.slane %v8883, 7
  %v10024 = vsel %vm2037, %v10022, %v10023
  %v10025 = vrot.slane %v10023, 2
  %v10026 = vrot.slane %v8882, 7
  %v10027 = vsel %vm2037, %v10025, %v10026
  %v10028 = vrot.slane %v10026, 2
  %v10029 = vrot.slane %v8884, 7
  %v10030 = vsel %vm2037, %v10028, %v10029
  %v10031 = vrot.slane %v10029, 2
  %v10032 = vrot.slane %v8892, 7
  %v10033 = vsel %vm2037, %v10031, %v10032
  %v10034 = vrot.slane %v10032, 2
  %v10035 = vrot.slane %v8900, 7
  %v10036 = vsel %vm2037, %v10034, %v10035
  %v10037 = vrot.slane %v10035, 2
  %v10038 = vrot.slane %v8899, 7
  %v10039 = vsel %vm2037, %v10037, %v10038
  %v10040 = vrot.slane %v8933, 7
  %v10041 = vrot.slane %v10040, 2
  %v10042 = vrot.slane %v8935, 7
  %v10043 = vsel %vm2037, %v10041, %v10042
  %v10044 = vrot.slane %v10042, 2
  %v10045 = vrot.slane %v8943, 7
  %v10046 = vsel %vm2037, %v10044, %v10045
  %v10047 = vrot.slane %v10045, 2
  %v10048 = vrot.slane %v8951, 7
  %v10049 = vsel %vm2037, %v10047, %v10048
  %v10050 = vrot.slane %v10048, 2
  %v10051 = vrot.slane %v8950, 7
  %v10052 = vsel %vm2037, %v10050, %v10051
  %v10053 = vrot.slane %v10051, 2
  %v10054 = vrot.slane %v8952, 7
  %v10055 = vsel %vm2037, %v10053, %v10054
  %v10056 = vrot.slane %v10054, 2
  %v10057 = vrot.slane %v8960, 7
  %v10058 = vsel %vm2037, %v10056, %v10057
  %v10059 = vrot.slane %v8994, 7
  %v10060 = vrot.slane %v10059, 2
  %v10061 = vrot.slane %v9002, 7
  %v10062 = vsel %vm2037, %v10060, %v10061
  %v10063 = vrot.slane %v10061, 2
  %v10064 = vrot.slane %v9001, 7
  %v10065 = vsel %vm2037, %v10063, %v10064
  %v10066 = vrot.slane %v10064, 2
  %v10067 = vrot.slane %v9003, 7
  %v10068 = vsel %vm2037, %v10066, %v10067
  %v10069 = vrot.slane %v10067, 2
  %v10070 = vrot.slane %v9011, 7
  %v10071 = vsel %vm2037, %v10069, %v10070
  %v10072 = vrot.slane %v10070, 2
  %v10073 = vrot.slane %v9019, 7
  %v10074 = vsel %vm2037, %v10072, %v10073
  %v10075 = vrot.slane %v10073, 2
  %v10076 = vrot.slane %v9018, 7
  %v10077 = vsel %vm2037, %v10075, %v10076
  %v10078 = vrot.slane %v9052, 7
  %v10079 = vrot.slane %v10078, 2
  %v10080 = vrot.slane %v9054, 7
  %v10081 = vsel %vm2037, %v10079, %v10080
  %v10082 = vrot.slane %v10080, 2
  %v10083 = vrot.slane %v9062, 7
  %v10084 = vsel %vm2037, %v10082, %v10083
  %v10085 = vrot.slane %v10083, 2
  %v10086 = vrot.slane %v9070, 7
  %v10087 = vsel %vm2037, %v10085, %v10086
  %v10088 = vrot.slane %v10086, 2
  %v10089 = vrot.slane %v9069, 7
  %v10090 = vsel %vm2037, %v10088, %v10089
  %v10091 = vrot.slane %v10089, 2
  %v10092 = vrot.slane %v9071, 7
  %v10093 = vsel %vm2037, %v10091, %v10092
  %v10094 = vrot.slane %v10092, 2
  %v10095 = vrot.slane %v9079, 7
  %v10096 = vsel %vm2037, %v10094, %v10095
  %v10097 = vrot.slane %v9113, 7
  %v10098 = vrot.slane %v10097, 2
  %v10099 = vrot.slane %v9121, 7
  %v10100 = vsel %vm2037, %v10098, %v10099
  %v10101 = vrot.slane %v10099, 2
  %v10102 = vrot.slane %v9120, 7
  %v10103 = vsel %vm2037, %v10101, %v10102
  %v10104 = vrot.slane %v10102, 2
  %v10105 = vrot.slane %v9122, 7
  %v10106 = vsel %vm2037, %v10104, %v10105
  %v10107 = vrot.slane %v10105, 2
  %v10108 = vrot.slane %v9130, 7
  %v10109 = vsel %vm2037, %v10107, %v10108
  %v10110 = vrot.slane %v10108, 2
  %v10111 = vrot.slane %v9138, 7
  %v10112 = vsel %vm2037, %v10110, %v10111
  %v10113 = vrot.slane %v10111, 2
  %v10114 = vrot.slane %v9137, 7
  %v10115 = vsel %vm2037, %v10113, %v10114
  %v10116 = vrot.slane %v9171, 7
  %v10117 = vrot.slane %v10116, 2
  %v10118 = vrot.slane %v9173, 7
  %v10119 = vsel %vm2037, %v10117, %v10118
  %v10120 = vrot.slane %v10118, 2
  %v10121 = vrot.slane %v9181, 7
  %v10122 = vsel %vm2037, %v10120, %v10121
  %v10123 = vrot.slane %v10121, 2
  %v10124 = vrot.slane %v9189, 7
  %v10125 = vsel %vm2037, %v10123, %v10124
  %v10126 = vrot.slane %v10124, 2
  %v10127 = vrot.slane %v9188, 7
  %v10128 = vsel %vm2037, %v10126, %v10127
  %v10129 = vrot.slane %v10127, 2
  %v10130 = vrot.slane %v9190, 7
  %v10131 = vsel %vm2037, %v10129, %v10130
  %v10132 = vrot.slane %v10130, 2
  %v10133 = vrot.slane %v9198, 7
  %v10134 = vsel %vm2037, %v10132, %v10133
  %v10135 = vrot.slane %v9265, 7
  %v10136 = vrot.slane %v10135, 2
  %v10137 = vrot.slane %v9266, 7
  %v10138 = vsel %vm2037, %v10136, %v10137
  %v10139 = vrot.slane %v10137, 2
  %v10140 = vrot.slane %v9274, 7
  %v10141 = vsel %vm2037, %v10139, %v10140
  %v10142 = vrot.slane %v10140, 2
  %v10143 = vrot.slane %v9282, 7
  %v10144 = vsel %vm2037, %v10142, %v10143
  %v10145 = vrot.slane %v10143, 2
  %v10146 = vrot.slane %v9281, 7
  %v10147 = vsel %vm2037, %v10145, %v10146
  %v10148 = vrot.slane %v10146, 2
  %v10149 = vrot.slane %v9283, 7
  %v10150 = vsel %vm2037, %v10148, %v10149
  %v10151 = vrot.slane %v10149, 2
  %v10152 = vrot.slane %v9291, 7
  %v10153 = vsel %vm2037, %v10151, %v10152
  %v10154 = vrot.slane %v9325, 7
  %v10155 = vrot.slane %v10154, 2
  %v10156 = vrot.slane %v9333, 7
  %v10157 = vsel %vm2037, %v10155, %v10156
  %v10158 = vrot.slane %v10156, 2
  %v10159 = vrot.slane %v9332, 7
  %v10160 = vsel %vm2037, %v10158, %v10159
  %v10161 = vrot.slane %v10159, 2
  %v10162 = vrot.slane %v9334, 7
  %v10163 = vsel %vm2037, %v10161, %v10162
  %v10164 = vrot.slane %v10162, 2
  %v10165 = vrot.slane %v9342, 7
  %v10166 = vsel %vm2037, %v10164, %v10165
  %v10167 = vrot.slane %v10165, 2
  %v10168 = vrot.slane %v9350, 7
  %v10169 = vsel %vm2037, %v10167, %v10168
  %v10170 = vrot.slane %v10168, 2
  %v10171 = vrot.slane %v9349, 7
  %v10172 = vsel %vm2037, %v10170, %v10171
  %v10173 = vrot.slane %v9383, 7
  %v10174 = vrot.slane %v10173, 2
  %v10175 = vrot.slane %v9385, 7
  %v10176 = vsel %vm2037, %v10174, %v10175
  %v10177 = vrot.slane %v10175, 2
  %v10178 = vrot.slane %v9393, 7
  %v10179 = vsel %vm2037, %v10177, %v10178
  %v10180 = vrot.slane %v10178, 2
  %v10181 = vrot.slane %v9401, 7
  %v10182 = vsel %vm2037, %v10180, %v10181
  %v10183 = vrot.slane %v10181, 2
  %v10184 = vrot.slane %v9400, 7
  %v10185 = vsel %vm2037, %v10183, %v10184
  %v10186 = vrot.slane %v10184, 2
  %v10187 = vrot.slane %v9402, 7
  %v10188 = vsel %vm2037, %v10186, %v10187
  %v10189 = vrot.slane %v10187, 2
  %v10190 = vrot.slane %v9410, 7
  %v10191 = vsel %vm2037, %v10189, %v10190
  %v10192 = vrot.slane %v9444, 7
  %v10193 = vrot.slane %v10192, 2
  %v10194 = vrot.slane %v9452, 7
  %v10195 = vsel %vm2037, %v10193, %v10194
  %v10196 = vrot.slane %v10194, 2
  %v10197 = vrot.slane %v9451, 7
  %v10198 = vsel %vm2037, %v10196, %v10197
  %v10199 = vrot.slane %v10197, 2
  %v10200 = vrot.slane %v9453, 7
  %v10201 = vsel %vm2037, %v10199, %v10200
  %v10202 = vrot.slane %v10200, 2
  %v10203 = vrot.slane %v9461, 7
  %v10204 = vsel %vm2037, %v10202, %v10203
  %v10205 = vrot.slane %v10203, 2
  %v10206 = vrot.slane %v9469, 7
  %v10207 = vsel %vm2037, %v10205, %v10206
  %v10208 = vrot.slane %v10206, 2
  %v10209 = vrot.slane %v9468, 7
  %v10210 = vsel %vm2037, %v10208, %v10209
  %v10211 = vrot.slane %v9502, 7
  %v10212 = vrot.slane %v10211, 2
  %v10213 = vrot.slane %v9504, 7
  %v10214 = vsel %vm2037, %v10212, %v10213
  %v10215 = vrot.slane %v10213, 2
  %v10216 = vrot.slane %v9512, 7
  %v10217 = vsel %vm2037, %v10215, %v10216
  %v10218 = vrot.slane %v10216, 2
  %v10219 = vrot.slane %v9520, 7
  %v10220 = vsel %vm2037, %v10218, %v10219
  %v10221 = vrot.slane %v10219, 2
  %v10222 = vrot.slane %v9519, 7
  %v10223 = vsel %vm2037, %v10221, %v10222
  %v10224 = vrot.slane %v10222, 2
  %v10225 = vrot.slane %v9521, 7
  %v10226 = vsel %vm2037, %v10224, %v10225
  %v10227 = vrot.slane %v10225, 2
  %v10228 = vrot.slane %v9529, 7
  %v10229 = vsel %vm2037, %v10227, %v10228
  %v10230 = vrot.slane %v9563, 7
  %v10231 = vrot.slane %v10230, 2
  %v10232 = vrot.slane %v9571, 7
  %v10233 = vsel %vm2037, %v10231, %v10232
  %v10234 = vrot.slane %v10232, 2
  %v10235 = vrot.slane %v9570, 7
  %v10236 = vsel %vm2037, %v10234, %v10235
  %v10237 = vrot.slane %v10235, 2
  %v10238 = vrot.slane %v9572, 7
  %v10239 = vsel %vm2037, %v10237, %v10238
  %v10240 = vrot.slane %v10238, 2
  %v10241 = vrot.slane %v9580, 7
  %v10242 = vsel %vm2037, %v10240, %v10241
  %v10243 = vrot.slane %v10241, 2
  %v10244 = vrot.slane %v9588, 7
  %v10245 = vsel %vm2037, %v10243, %v10244
  %v10246 = vrot.slane %v10244, 2
  %v10247 = vrot.slane %v9587, 7
  %v10248 = vsel %vm2037, %v10246, %v10247
  %v10249 = vlaneseq
  %v10250 = vshrl.u32 %v10249, 7
  %v10251 = vsub.s32 0, %v10250
  %v10252 = vrot.slane %v10024, %v10251
  %v10253 = vlaneseq
  %v10254 = vshrl.u32 %v10253, 7
  %v10255 = vsub.s32 0, %v10254
  %v10256 = vrot.slane %v10027, %v10255
  %v10257 = vlaneseq
  %v10258 = vshrl.u32 %v10257, 7
  %v10259 = vsub.s32 0, %v10258
  %v10260 = vrot.slane %v10030, %v10259
  %v10261 = vlaneseq
  %v10262 = vshrl.u32 %v10261, 7
  %v10263 = vsub.s32 0, %v10262
  %v10264 = vrot.slane %v10033, %v10263
  %v10265 = vlaneseq
  %v10266 = vshrl.u32 %v10265, 7
  %v10267 = vsub.s32 0, %v10266
  %v10268 = vrot.slane %v10036, %v10267
  %v10269 = vlaneseq
  %v10270 = vshrl.u32 %v10269, 7
  %v10271 = vsub.s32 0, %v10270
  %v10272 = vrot.slane %v10039, %v10271
  %v10273 = vlaneseq
  %v10274 = vshrl.u32 %v10273, 7
  %v10275 = vsub.s32 0, %v10274
  %v10276 = vrot.slane %v10043, %v10275
  %v10277 = vlaneseq
  %v10278 = vshrl.u32 %v10277, 7
  %v10279 = vsub.s32 0, %v10278
  %v10280 = vrot.slane %v10046, %v10279
  %v10281 = vlaneseq
  %v10282 = vshrl.u32 %v10281, 7
  %v10283 = vsub.s32 0, %v10282
  %v10284 = vrot.slane %v10049, %v10283
  %v10285 = vlaneseq
  %v10286 = vshrl.u32 %v10285, 7
  %v10287 = vsub.s32 0, %v10286
  %v10288 = vrot.slane %v10052, %v10287
  %v10289 = vlaneseq
  %v10290 = vshrl.u32 %v10289, 7
  %v10291 = vsub.s32 0, %v10290
  %v10292 = vrot.slane %v10055, %v10291
  %v10293 = vlaneseq
  %v10294 = vshrl.u32 %v10293, 7
  %v10295 = vsub.s32 0, %v10294
  %v10296 = vrot.slane %v10058, %v10295
  %v10297 = vlaneseq
  %v10298 = vshrl.u32 %v10297, 7
  %v10299 = vsub.s32 0, %v10298
  %v10300 = vrot.slane %v10062, %v10299
  %v10301 = vlaneseq
  %v10302 = vshrl.u32 %v10301, 7
  %v10303 = vsub.s32 0, %v10302
  %v10304 = vrot.slane %v10065, %v10303
  %v10305 = vlaneseq
  %v10306 = vshrl.u32 %v10305, 7
  %v10307 = vsub.s32 0, %v10306
  %v10308 = vrot.slane %v10068, %v10307
  %v10309 = vlaneseq
  %v10310 = vshrl.u32 %v10309, 7
  %v10311 = vsub.s32 0, %v10310
  %v10312 = vrot.slane %v10071, %v10311
  %v10313 = vlaneseq
  %v10314 = vshrl.u32 %v10313, 7
  %v10315 = vsub.s32 0, %v10314
  %v10316 = vrot.slane %v10074, %v10315
  %v10317 = vlaneseq
  %v10318 = vshrl.u32 %v10317, 7
  %v10319 = vsub.s32 0, %v10318
  %v10320 = vrot.slane %v10077, %v10319
  %v10321 = vlaneseq
  %v10322 = vshrl.u32 %v10321, 7
  %v10323 = vsub.s32 0, %v10322
  %v10324 = vrot.slane %v10081, %v10323
  %v10325 = vlaneseq
  %v10326 = vshrl.u32 %v10325, 7
  %v10327 = vsub.s32 0, %v10326
  %v10328 = vrot.slane %v10084, %v10327
  %v10329 = vlaneseq
  %v10330 = vshrl.u32 %v10329, 7
  %v10331 = vsub.s32 0, %v10330
  %v10332 = vrot.slane %v10087, %v10331
  %v10333 = vlaneseq
  %v10334 = vshrl.u32 %v10333, 7
  %v10335 = vsub.s32 0, %v10334
  %v10336 = vrot.slane %v10090, %v10335
  %v10337 = vlaneseq
  %v10338 = vshrl.u32 %v10337, 7
  %v10339 = vsub.s32 0, %v10338
  %v10340 = vrot.slane %v10093, %v10339
  %v10341 = vlaneseq
  %v10342 = vshrl.u32 %v10341, 7
  %v10343 = vsub.s32 0, %v10342
  %v10344 = vrot.slane %v10096, %v10343
  %v10345 = vlaneseq
  %v10346 = vshrl.u32 %v10345, 7
  %v10347 = vsub.s32 0, %v10346
  %v10348 = vrot.slane %v10100, %v10347
  %v10349 = vlaneseq
  %v10350 = vshrl.u32 %v10349, 7
  %v10351 = vsub.s32 0, %v10350
  %v10352 = vrot.slane %v10103, %v10351
  %v10353 = vlaneseq
  %v10354 = vshrl.u32 %v10353, 7
  %v10355 = vsub.s32 0, %v10354
  %v10356 = vrot.slane %v10106, %v10355
  %v10357 = vlaneseq
  %v10358 = vshrl.u32 %v10357, 7
  %v10359 = vsub.s32 0, %v10358
  %v10360 = vrot.slane %v10109, %v10359
  %v10361 = vlaneseq
  %v10362 = vshrl.u32 %v10361, 7
  %v10363 = vsub.s32 0, %v10362
  %v10364 = vrot.slane %v10112, %v10363
  %v10365 = vlaneseq
  %v10366 = vshrl.u32 %v10365, 7
  %v10367 = vsub.s32 0, %v10366
  %v10368 = vrot.slane %v10115, %v10367
  %v10369 = vlaneseq
  %v10370 = vshrl.u32 %v10369, 7
  %v10371 = vsub.s32 0, %v10370
  %v10372 = vrot.slane %v10119, %v10371
  %v10373 = vlaneseq
  %v10374 = vshrl.u32 %v10373, 7
  %v10375 = vsub.s32 0, %v10374
  %v10376 = vrot.slane %v10122, %v10375
  %v10377 = vlaneseq
  %v10378 = vshrl.u32 %v10377, 7
  %v10379 = vsub.s32 0, %v10378
  %v10380 = vrot.slane %v10125, %v10379
  %v10381 = vlaneseq
  %v10382 = vshrl.u32 %v10381, 7
  %v10383 = vsub.s32 0, %v10382
  %v10384 = vrot.slane %v10128, %v10383
  %v10385 = vlaneseq
  %v10386 = vshrl.u32 %v10385, 7
  %v10387 = vsub.s32 0, %v10386
  %v10388 = vrot.slane %v10131, %v10387
  %v10389 = vlaneseq
  %v10390 = vshrl.u32 %v10389, 7
  %v10391 = vsub.s32 0, %v10390
  %v10392 = vrot.slane %v10134, %v10391
  %v10393 = vlaneseq
  %v10394 = vshrl.u32 %v10393, 7
  %v10395 = vsub.s32 0, %v10394
  %v10396 = vrot.slane %v10138, %v10395
  %v10397 = vlaneseq
  %v10398 = vshrl.u32 %v10397, 7
  %v10399 = vsub.s32 0, %v10398
  %v10400 = vrot.slane %v10141, %v10399
  %v10401 = vlaneseq
  %v10402 = vshrl.u32 %v10401, 7
  %v10403 = vsub.s32 0, %v10402
  %v10404 = vrot.slane %v10144, %v10403
  %v10405 = vlaneseq
  %v10406 = vshrl.u32 %v10405, 7
  %v10407 = vsub.s32 0, %v10406
  %v10408 = vrot.slane %v10147, %v10407
  %v10409 = vlaneseq
  %v10410 = vshrl.u32 %v10409, 7
  %v10411 = vsub.s32 0, %v10410
  %v10412 = vrot.slane %v10150, %v10411
  %v10413 = vlaneseq
  %v10414 = vshrl.u32 %v10413, 7
  %v10415 = vsub.s32 0, %v10414
  %v10416 = vrot.slane %v10153, %v10415
  %v10417 = vlaneseq
  %v10418 = vshrl.u32 %v10417, 7
  %v10419 = vsub.s32 0, %v10418
  %v10420 = vrot.slane %v10157, %v10419
  %v10421 = vlaneseq
  %v10422 = vshrl.u32 %v10421, 7
  %v10423 = vsub.s32 0, %v10422
  %v10424 = vrot.slane %v10160, %v10423
  %v10425 = vlaneseq
  %v10426 = vshrl.u32 %v10425, 7
  %v10427 = vsub.s32 0, %v10426
  %v10428 = vrot.slane %v10163, %v10427
  %v10429 = vlaneseq
  %v10430 = vshrl.u32 %v10429, 7
  %v10431 = vsub.s32 0, %v10430
  %v10432 = vrot.slane %v10166, %v10431
  %v10433 = vlaneseq
  %v10434 = vshrl.u32 %v10433, 7
  %v10435 = vsub.s32 0, %v10434
  %v10436 = vrot.slane %v10169, %v10435
  %v10437 = vlaneseq
  %v10438 = vshrl.u32 %v10437, 7
  %v10439 = vsub.s32 0, %v10438
  %v10440 = vrot.slane %v10172, %v10439
  %v10441 = vlaneseq
  %v10442 = vshrl.u32 %v10441, 7
  %v10443 = vsub.s32 0, %v10442
  %v10444 = vrot.slane %v10176, %v10443
  %v10445 = vlaneseq
  %v10446 = vshrl.u32 %v10445, 7
  %v10447 = vsub.s32 0, %v10446
  %v10448 = vrot.slane %v10179, %v10447
  %v10449 = vlaneseq
  %v10450 = vshrl.u32 %v10449, 7
  %v10451 = vsub.s32 0, %v10450
  %v10452 = vrot.slane %v10182, %v10451
  %v10453 = vlaneseq
  %v10454 = vshrl.u32 %v10453, 7
  %v10455 = vsub.s32 0, %v10454
  %v10456 = vrot.slane %v10185, %v10455
  %v10457 = vlaneseq
  %v10458 = vshrl.u32 %v10457, 7
  %v10459 = vsub.s32 0, %v10458
  %v10460 = vrot.slane %v10188, %v10459
  %v10461 = vlaneseq
  %v10462 = vshrl.u32 %v10461, 7
  %v10463 = vsub.s32 0, %v10462
  %v10464 = vrot.slane %v10191, %v10463
  %v10465 = vlaneseq
  %v10466 = vshrl.u32 %v10465, 7
  %v10467 = vsub.s32 0, %v10466
  %v10468 = vrot.slane %v10195, %v10467
  %v10469 = vlaneseq
  %v10470 = vshrl.u32 %v10469, 7
  %v10471 = vsub.s32 0, %v10470
  %v10472 = vrot.slane %v10198, %v10471
  %v10473 = vlaneseq
  %v10474 = vshrl.u32 %v10473, 7
  %v10475 = vsub.s32 0, %v10474
  %v10476 = vrot.slane %v10201, %v10475
  %v10477 = vlaneseq
  %v10478 = vshrl.u32 %v10477, 7
  %v10479 = vsub.s32 0, %v10478
  %v10480 = vrot.slane %v10204, %v10479
  %v10481 = vlaneseq
  %v10482 = vshrl.u32 %v10481, 7
  %v10483 = vsub.s32 0, %v10482
  %v10484 = vrot.slane %v10207, %v10483
  %v10485 = vlaneseq
  %v10486 = vshrl.u32 %v10485, 7
  %v10487 = vsub.s32 0, %v10486
  %v10488 = vrot.slane %v10210, %v10487
  %v10489 = vlaneseq
  %v10490 = vshrl.u32 %v10489, 7
  %v10491 = vsub.s32 0, %v10490
  %v10492 = vrot.slane %v10214, %v10491
  %v10493 = vlaneseq
  %v10494 = vshrl.u32 %v10493, 7
  %v10495 = vsub.s32 0, %v10494
  %v10496 = vrot.slane %v10217, %v10495
  %v10497 = vlaneseq
  %v10498 = vshrl.u32 %v10497, 7
  %v10499 = vsub.s32 0, %v10498
  %v10500 = vrot.slane %v10220, %v10499
  %v10501 = vlaneseq
  %v10502 = vshrl.u32 %v10501, 7
  %v10503 = vsub.s32 0, %v10502
  %v10504 = vrot.slane %v10223, %v10503
  %v10505 = vlaneseq
  %v10506 = vshrl.u32 %v10505, 7
  %v10507 = vsub.s32 0, %v10506
  %v10508 = vrot.slane %v10226, %v10507
  %v10509 = vlaneseq
  %v10510 = vshrl.u32 %v10509, 7
  %v10511 = vsub.s32 0, %v10510
  %v10512 = vrot.slane %v10229, %v10511
  %v10513 = vlaneseq
  %v10514 = vshrl.u32 %v10513, 7
  %v10515 = vsub.s32 0, %v10514
  %v10516 = vrot.slane %v10233, %v10515
  %v10517 = vlaneseq
  %v10518 = vshrl.u32 %v10517, 7
  %v10519 = vsub.s32 0, %v10518
  %v10520 = vrot.slane %v10236, %v10519
  %v10521 = vlaneseq
  %v10522 = vshrl.u32 %v10521, 7
  %v10523 = vsub.s32 0, %v10522
  %v10524 = vrot.slane %v10239, %v10523
  %v10525 = vlaneseq
  %v10526 = vshrl.u32 %v10525, 7
  %v10527 = vsub.s32 0, %v10526
  %v10528 = vrot.slane %v10242, %v10527
  %v10529 = vlaneseq
  %v10530 = vshrl.u32 %v10529, 7
  %v10531 = vsub.s32 0, %v10530
  %v10532 = vrot.slane %v10245, %v10531
  %v10533 = vlaneseq
  %v10534 = vshrl.u32 %v10533, 7
  %v10535 = vsub.s32 0, %v10534
  %v10536 = vrot.slane %v10248, %v10535
  %v10537 = vsel %vm9936, %v10256, %v10252
  %v10538 = vsel %vm2032, %v10260, %v10537
  %v10539 = vsel %vm9939, %v10264, %v10538
  %v10540 = vsel %vm2034, %v10268, %v10539
  %v10541 = vsel %vm9942, %v10272, %v10540
  %v10542 = vsel %vm2036, %v10276, %v10541
  %v10543 = vsel %vm9945, %v10280, %v10542
  %v10544 = vsel %vm9936, %v10288, %v10284
  %v10545 = vsel %vm2032, %v10292, %v10544
  %v10546 = vsel %vm9939, %v10296, %v10545
  %v10547 = vsel %vm2034, %v10300, %v10546
  %v10548 = vsel %vm9942, %v10304, %v10547
  %v10549 = vsel %vm2036, %v10308, %v10548
  %v10550 = vsel %vm9945, %v10312, %v10549
  %v10551 = vsel %vm9936, %v10320, %v10316
  %v10552 = vsel %vm2032, %v10324, %v10551
  %v10553 = vsel %vm9939, %v10328, %v10552
  %v10554 = vsel %vm2034, %v10332, %v10553
  %v10555 = vsel %vm9942, %v10336, %v10554
  %v10556 = vsel %vm2036, %v10340, %v10555
  %v10557 = vsel %vm9945, %v10344, %v10556
  %v10558 = vsel %vm9936, %v10352, %v10348
  %v10559 = vsel %vm2032, %v10356, %v10558
  %v10560 = vsel %vm9939, %v10360, %v10559
  %v10561 = vsel %vm2034, %v10364, %v10560
  %v10562 = vsel %vm9942, %v10368, %v10561
  %v10563 = vsel %vm2036, %v10372, %v10562
  %v10564 = vsel %vm9945, %v10376, %v10563
  %v10565 = vsel %vm9936, %v10384, %v10380
  %v10566 = vsel %vm2032, %v10388, %v10565
  %v10567 = vsel %vm9939, %v10392, %v10566
  %v10568 = vsel %vm2034, %v10396, %v10567
  %v10569 = vsel %vm9942, %v10400, %v10568
  %v10570 = vsel %vm2036, %v10404, %v10569
  %v10571 = vsel %vm9945, %v10408, %v10570
  %v10572 = vsel %vm9936, %v10416, %v10412
  %v10573 = vsel %vm2032, %v10420, %v10572
  %v10574 = vsel %vm9939, %v10424, %v10573
  %v10575 = vsel %vm2034, %v10428, %v10574
  %v10576 = vsel %vm9942, %v10432, %v10575
  %v10577 = vsel %vm2036, %v10436, %v10576
  %v10578 = vsel %vm9945, %v10440, %v10577
  %v10579 = vsel %vm9936, %v10448, %v10444
  %v10580 = vsel %vm2032, %v10452, %v10579
  %v10581 = vsel %vm9939, %v10456, %v10580
  %v10582 = vsel %vm2034, %v10460, %v10581
  %v10583 = vsel %vm9942, %v10464, %v10582
  %v10584 = vsel %vm2036, %v10468, %v10583
  %v10585 = vsel %vm9945, %v10472, %v10584
  %v10586 = vsel %vm9936, %v10480, %v10476
  %v10587 = vsel %vm2032, %v10484, %v10586
  %v10588 = vsel %vm9939, %v10488, %v10587
  %v10589 = vsel %vm2034, %v10492, %v10588
  %v10590 = vsel %vm9942, %v10496, %v10589
  %v10591 = vsel %vm2036, %v10500, %v10590
  %v10592 = vsel %vm9945, %v10504, %v10591
  %v10593 = vsel %vm9936, %v10512, %v10508
  %v10594 = vsel %vm2032, %v10516, %v10593
  %v10595 = vsel %vm9939, %v10520, %v10594
  %v10596 = vsel %vm2034, %v10524, %v10595
  %v10597 = vsel %vm9942, %v10528, %v10596
  %v10598 = vsel %vm2036, %v10532, %v10597
  %v10599 = vsel %vm9945, %v10536, %v10598
  %10600 = vrot.lane.b32.xlu0 %v10543, 8
  %v10601 = vpop.permute.xlu0 %10600
  %10602 = vrot.lane.b32.xlu0 %v10550, 8
  %v10603 = vpop.permute.xlu0 %10602
  %10604 = vrot.lane.b32.xlu0 %v10557, 8
  %v10605 = vpop.permute.xlu0 %10604
  %10606 = vrot.lane.b32.xlu0 %v10564, 8
  %v10607 = vpop.permute.xlu0 %10606
  %10608 = vrot.lane.b32.xlu0 %v10571, 8
  %v10609 = vpop.permute.xlu0 %10608
  %10610 = vrot.lane.b32.xlu0 %v10578, 8
  %v10611 = vpop.permute.xlu0 %10610
  %10612 = vrot.lane.b32.xlu0 %v10585, 8
  %v10613 = vpop.permute.xlu0 %10612
  %10614 = vrot.lane.b32.xlu0 %v10592, 8
  %v10615 = vpop.permute.xlu0 %10614
  %10616 = vrot.lane.b32.xlu0 %v10599, 8
  %v10617 = vpop.permute.xlu0 %10616
  %vm10627 = vcmask 130112
  %10628 = vst.msk [vmem:[#allocation2] sm:$0xff] %vm10627, %v10601
  %10629 = vst.msk [vmem:[#allocation2 + $0x8] sm:$0xff] %vm10627, %v10603
  %10630 = vst.msk [vmem:[#allocation2 + $0x10] sm:$0xff] %vm10627, %v10605
  %10631 = vst.msk [vmem:[#allocation2 + $0x18] sm:$0xff] %vm10627, %v10607
  %10632 = vst.msk [vmem:[#allocation2 + $0x20] sm:$0xff] %vm10627, %v10609
  %10633 = vst.msk [vmem:[#allocation2 + $0x28] sm:$0xff] %vm10627, %v10611
  %10634 = vst.msk [vmem:[#allocation2 + $0x30] sm:$0xff] %vm10627, %v10613
  %10635 = vst.msk [vmem:[#allocation2 + $0x38] sm:$0xff] %vm10627, %v10615
  %10636 = vst.msk [vmem:[#allocation2 + $0x40] sm:$0xff] %vm10627, %v10617
  %v10637 = vlaneseq
  %v10638 = vshrl.u32 %v10637, 7
  %v10639 = vsub.s32 0, %v10638
  %v10640 = vrot.slane %v8899, %v10639
  %v10641 = vlaneseq
  %v10642 = vshrl.u32 %v10641, 7
  %v10643 = vsub.s32 0, %v10642
  %v10644 = vrot.slane %v8960, %v10643
  %v10645 = vlaneseq
  %v10646 = vshrl.u32 %v10645, 7
  %v10647 = vsub.s32 0, %v10646
  %v10648 = vrot.slane %v9018, %v10647
  %v10649 = vlaneseq
  %v10650 = vshrl.u32 %v10649, 7
  %v10651 = vsub.s32 0, %v10650
  %v10652 = vrot.slane %v9079, %v10651
  %v10653 = vlaneseq
  %v10654 = vshrl.u32 %v10653, 7
  %v10655 = vsub.s32 0, %v10654
  %v10656 = vrot.slane %v9137, %v10655
  %v10657 = vlaneseq
  %v10658 = vshrl.u32 %v10657, 7
  %v10659 = vsub.s32 0, %v10658
  %v10660 = vrot.slane %v9198, %v10659
  %v10661 = vlaneseq
  %v10662 = vshrl.u32 %v10661, 7
  %v10663 = vsub.s32 0, %v10662
  %v10664 = vrot.slane %v9291, %v10663
  %v10665 = vlaneseq
  %v10666 = vshrl.u32 %v10665, 7
  %v10667 = vsub.s32 0, %v10666
  %v10668 = vrot.slane %v9349, %v10667
  %v10669 = vlaneseq
  %v10670 = vshrl.u32 %v10669, 7
  %v10671 = vsub.s32 0, %v10670
  %v10672 = vrot.slane %v9410, %v10671
  %v10673 = vlaneseq
  %v10674 = vshrl.u32 %v10673, 7
  %v10675 = vsub.s32 0, %v10674
  %v10676 = vrot.slane %v9468, %v10675
  %v10677 = vlaneseq
  %v10678 = vshrl.u32 %v10677, 7
  %v10679 = vsub.s32 0, %v10678
  %v10680 = vrot.slane %v9529, %v10679
  %v10681 = vlaneseq
  %v10682 = vshrl.u32 %v10681, 7
  %v10683 = vsub.s32 0, %v10682
  %v10684 = vrot.slane %v9587, %v10683
  %v10685 = vsel %vm9936, %v9659, %v9655
  %v10686 = vsel %vm2032, %v9663, %v10685
  %v10687 = vsel %vm9939, %v9667, %v10686
  %v10688 = vsel %vm2034, %v9671, %v10687
  %v10689 = vsel %vm9942, %v10640, %v10688
  %v10690 = vsel %vm2036, %v9679, %v10689
  %v10691 = vsel %vm9945, %v9683, %v10690
  %v10692 = vsel %vm9936, %v9691, %v9687
  %v10693 = vsel %vm2032, %v9695, %v10692
  %v10694 = vsel %vm9939, %v10644, %v10693
  %v10695 = vsel %vm2034, %v9703, %v10694
  %v10696 = vsel %vm9942, %v9707, %v10695
  %v10697 = vsel %vm2036, %v9711, %v10696
  %v10698 = vsel %vm9945, %v9715, %v10697
  %v10699 = vsel %vm9936, %v10648, %v9719
  %v10700 = vsel %vm2032, %v9727, %v10699
  %v10701 = vsel %vm9939, %v9731, %v10700
  %v10702 = vsel %vm2034, %v9735, %v10701
  %v10703 = vsel %vm9942, %v9739, %v10702
  %v10704 = vsel %vm2036, %v9743, %v10703
  %v10705 = vsel %vm9945, %v10652, %v10704
  %v10706 = vsel %vm9936, %v9755, %v9751
  %v10707 = vsel %vm2032, %v9759, %v10706
  %v10708 = vsel %vm9939, %v9763, %v10707
  %v10709 = vsel %vm2034, %v9767, %v10708
  %v10710 = vsel %vm9942, %v10656, %v10709
  %v10711 = vsel %vm2036, %v9775, %v10710
  %v10712 = vsel %vm9945, %v9779, %v10711
  %v10713 = vsel %vm9936, %v9787, %v9783
  %v10714 = vsel %vm2032, %v9791, %v10713
  %v10715 = vsel %vm9939, %v10660, %v10714
  %v10716 = vsel %vm2034, %v9799, %v10715
  %v10717 = vsel %vm9942, %v9803, %v10716
  %v10718 = vsel %vm2036, %v9807, %v10717
  %v10719 = vsel %vm9945, %v9811, %v10718
  %v10720 = vsel %vm9936, %v10664, %v9815
  %v10721 = vsel %vm2032, %v9823, %v10720
  %v10722 = vsel %vm9939, %v9827, %v10721
  %v10723 = vsel %vm2034, %v9831, %v10722
  %v10724 = vsel %vm9942, %v9835, %v10723
  %v10725 = vsel %vm2036, %v9839, %v10724
  %v10726 = vsel %vm9945, %v10668, %v10725
  %v10727 = vsel %vm9936, %v9851, %v9847
  %v10728 = vsel %vm2032, %v9855, %v10727
  %v10729 = vsel %vm9939, %v9859, %v10728
  %v10730 = vsel %vm2034, %v9863, %v10729
  %v10731 = vsel %vm9942, %v10672, %v10730
  %v10732 = vsel %vm2036, %v9871, %v10731
  %v10733 = vsel %vm9945, %v9875, %v10732
  %v10734 = vsel %vm9936, %v9883, %v9879
  %v10735 = vsel %vm2032, %v9887, %v10734
  %v10736 = vsel %vm9939, %v10676, %v10735
  %v10737 = vsel %vm2034, %v9895, %v10736
  %v10738 = vsel %vm9942, %v9899, %v10737
  %v10739 = vsel %vm2036, %v9903, %v10738
  %v10740 = vsel %vm9945, %v9907, %v10739
  %v10741 = vsel %vm9936, %v10680, %v9911
  %v10742 = vsel %vm2032, %v9919, %v10741
  %v10743 = vsel %vm9939, %v9923, %v10742
  %v10744 = vsel %vm2034, %v9927, %v10743
  %v10745 = vsel %vm9942, %v9931, %v10744
  %v10746 = vsel %vm2036, %v9935, %v10745
  %v10747 = vsel %vm9945, %v10684, %v10746
  %10748 = vrot.lane.b32.xlu0 %v10691, 16
  %v10749 = vpop.permute.xlu0 %10748
  %10750 = vrot.lane.b32.xlu0 %v10698, 16
  %v10751 = vpop.permute.xlu0 %10750
  %10752 = vrot.lane.b32.xlu0 %v10705, 16
  %v10753 = vpop.permute.xlu0 %10752
  %10754 = vrot.lane.b32.xlu0 %v10712, 16
  %v10755 = vpop.permute.xlu0 %10754
  %10756 = vrot.lane.b32.xlu0 %v10719, 16
  %v10757 = vpop.permute.xlu0 %10756
  %10758 = vrot.lane.b32.xlu0 %v10726, 16
  %v10759 = vpop.permute.xlu0 %10758
  %10760 = vrot.lane.b32.xlu0 %v10733, 16
  %v10761 = vpop.permute.xlu0 %10760
  %10762 = vrot.lane.b32.xlu0 %v10740, 16
  %v10763 = vpop.permute.xlu0 %10762
  %10764 = vrot.lane.b32.xlu0 %v10747, 16
  %v10765 = vpop.permute.xlu0 %10764
  %vm10775 = vcmask 195712
  %10776 = vst.msk [vmem:[#allocation2] sm:$0xff] %vm10775, %v10749
  %10777 = vst.msk [vmem:[#allocation2 + $0x8] sm:$0xff] %vm10775, %v10751
  %10778 = vst.msk [vmem:[#allocation2 + $0x10] sm:$0xff] %vm10775, %v10753
  %10779 = vst.msk [vmem:[#allocation2 + $0x18] sm:$0xff] %vm10775, %v10755
  %10780 = vst.msk [vmem:[#allocation2 + $0x20] sm:$0xff] %vm10775, %v10757
  %10781 = vst.msk [vmem:[#allocation2 + $0x28] sm:$0xff] %vm10775, %v10759
  %10782 = vst.msk [vmem:[#allocation2 + $0x30] sm:$0xff] %vm10775, %v10761
  %10783 = vst.msk [vmem:[#allocation2 + $0x38] sm:$0xff] %vm10775, %v10763
  %10784 = vst.msk [vmem:[#allocation2 + $0x40] sm:$0xff] %vm10775, %v10765
  %v10785 = vlaneseq
  %v10786 = vshrl.u32 %v10785, 7
  %v10787 = vsub.s32 0, %v10786
  %v10788 = vrot.slane %v8901, %v10787
  %v10789 = vlaneseq
  %v10790 = vshrl.u32 %v10789, 7
  %v10791 = vsub.s32 0, %v10790
  %v10792 = vrot.slane %v8909, %v10791
  %v10793 = vlaneseq
  %v10794 = vshrl.u32 %v10793, 7
  %v10795 = vsub.s32 0, %v10794
  %v10796 = vrot.slane %v8917, %v10795
  %v10797 = vlaneseq
  %v10798 = vshrl.u32 %v10797, 7
  %v10799 = vsub.s32 0, %v10798
  %v10800 = vrot.slane %v8916, %v10799
  %v10801 = vlaneseq
  %v10802 = vshrl.u32 %v10801, 7
  %v10803 = vsub.s32 0, %v10802
  %v10804 = vrot.slane %v8918, %v10803
  %v10805 = vlaneseq
  %v10806 = vshrl.u32 %v10805, 7
  %v10807 = vsub.s32 0, %v10806
  %v10808 = vrot.slane %v8926, %v10807
  %v10809 = vlaneseq
  %v10810 = vshrl.u32 %v10809, 7
  %v10811 = vsub.s32 0, %v10810
  %v10812 = vrot.slane %v8968, %v10811
  %v10813 = vlaneseq
  %v10814 = vshrl.u32 %v10813, 7
  %v10815 = vsub.s32 0, %v10814
  %v10816 = vrot.slane %v8967, %v10815
  %v10817 = vlaneseq
  %v10818 = vshrl.u32 %v10817, 7
  %v10819 = vsub.s32 0, %v10818
  %v10820 = vrot.slane %v8969, %v10819
  %v10821 = vlaneseq
  %v10822 = vshrl.u32 %v10821, 7
  %v10823 = vsub.s32 0, %v10822
  %v10824 = vrot.slane %v8977, %v10823
  %v10825 = vlaneseq
  %v10826 = vshrl.u32 %v10825, 7
  %v10827 = vsub.s32 0, %v10826
  %v10828 = vrot.slane %v8985, %v10827
  %v10829 = vlaneseq
  %v10830 = vshrl.u32 %v10829, 7
  %v10831 = vsub.s32 0, %v10830
  %v10832 = vrot.slane %v8984, %v10831
  %v10833 = vlaneseq
  %v10834 = vshrl.u32 %v10833, 7
  %v10835 = vsub.s32 0, %v10834
  %v10836 = vrot.slane %v9020, %v10835
  %v10837 = vlaneseq
  %v10838 = vshrl.u32 %v10837, 7
  %v10839 = vsub.s32 0, %v10838
  %v10840 = vrot.slane %v9028, %v10839
  %v10841 = vlaneseq
  %v10842 = vshrl.u32 %v10841, 7
  %v10843 = vsub.s32 0, %v10842
  %v10844 = vrot.slane %v9036, %v10843
  %v10845 = vlaneseq
  %v10846 = vshrl.u32 %v10845, 7
  %v10847 = vsub.s32 0, %v10846
  %v10848 = vrot.slane %v9035, %v10847
  %v10849 = vlaneseq
  %v10850 = vshrl.u32 %v10849, 7
  %v10851 = vsub.s32 0, %v10850
  %v10852 = vrot.slane %v9037, %v10851
  %v10853 = vlaneseq
  %v10854 = vshrl.u32 %v10853, 7
  %v10855 = vsub.s32 0, %v10854
  %v10856 = vrot.slane %v9045, %v10855
  %v10857 = vlaneseq
  %v10858 = vshrl.u32 %v10857, 7
  %v10859 = vsub.s32 0, %v10858
  %v10860 = vrot.slane %v9087, %v10859
  %v10861 = vlaneseq
  %v10862 = vshrl.u32 %v10861, 7
  %v10863 = vsub.s32 0, %v10862
  %v10864 = vrot.slane %v9086, %v10863
  %v10865 = vlaneseq
  %v10866 = vshrl.u32 %v10865, 7
  %v10867 = vsub.s32 0, %v10866
  %v10868 = vrot.slane %v9088, %v10867
  %v10869 = vlaneseq
  %v10870 = vshrl.u32 %v10869, 7
  %v10871 = vsub.s32 0, %v10870
  %v10872 = vrot.slane %v9096, %v10871
  %v10873 = vlaneseq
  %v10874 = vshrl.u32 %v10873, 7
  %v10875 = vsub.s32 0, %v10874
  %v10876 = vrot.slane %v9104, %v10875
  %v10877 = vlaneseq
  %v10878 = vshrl.u32 %v10877, 7
  %v10879 = vsub.s32 0, %v10878
  %v10880 = vrot.slane %v9103, %v10879
  %v10881 = vlaneseq
  %v10882 = vshrl.u32 %v10881, 7
  %v10883 = vsub.s32 0, %v10882
  %v10884 = vrot.slane %v9139, %v10883
  %v10885 = vlaneseq
  %v10886 = vshrl.u32 %v10885, 7
  %v10887 = vsub.s32 0, %v10886
  %v10888 = vrot.slane %v9147, %v10887
  %v10889 = vlaneseq
  %v10890 = vshrl.u32 %v10889, 7
  %v10891 = vsub.s32 0, %v10890
  %v10892 = vrot.slane %v9155, %v10891
  %v10893 = vlaneseq
  %v10894 = vshrl.u32 %v10893, 7
  %v10895 = vsub.s32 0, %v10894
  %v10896 = vrot.slane %v9154, %v10895
  %v10897 = vlaneseq
  %v10898 = vshrl.u32 %v10897, 7
  %v10899 = vsub.s32 0, %v10898
  %v10900 = vrot.slane %v9156, %v10899
  %v10901 = vlaneseq
  %v10902 = vshrl.u32 %v10901, 7
  %v10903 = vsub.s32 0, %v10902
  %v10904 = vrot.slane %v9164, %v10903
  %v10905 = vlaneseq
  %v10906 = vshrl.u32 %v10905, 7
  %v10907 = vsub.s32 0, %v10906
  %v10908 = vrot.slane %v9206, %v10907
  %v10909 = vlaneseq
  %v10910 = vshrl.u32 %v10909, 7
  %v10911 = vsub.s32 0, %v10910
  %v10912 = vrot.slane %v9205, %v10911
  %v10913 = vlaneseq
  %v10914 = vshrl.u32 %v10913, 7
  %v10915 = vsub.s32 0, %v10914
  %v10916 = vrot.slane %v9207, %v10915
  %v10917 = vlaneseq
  %v10918 = vshrl.u32 %v10917, 7
  %v10919 = vsub.s32 0, %v10918
  %v10920 = vrot.slane %v9215, %v10919
  %v10921 = vlaneseq
  %v10922 = vshrl.u32 %v10921, 7
  %v10923 = vsub.s32 0, %v10922
  %v10924 = vrot.slane %v9223, %v10923
  %v10925 = vlaneseq
  %v10926 = vshrl.u32 %v10925, 7
  %v10927 = vsub.s32 0, %v10926
  %v10928 = vrot.slane %v9222, %v10927
  %v10929 = vlaneseq
  %v10930 = vshrl.u32 %v10929, 7
  %v10931 = vsub.s32 0, %v10930
  %v10932 = vrot.slane %v9299, %v10931
  %v10933 = vlaneseq
  %v10934 = vshrl.u32 %v10933, 7
  %v10935 = vsub.s32 0, %v10934
  %v10936 = vrot.slane %v9298, %v10935
  %v10937 = vlaneseq
  %v10938 = vshrl.u32 %v10937, 7
  %v10939 = vsub.s32 0, %v10938
  %v10940 = vrot.slane %v9300, %v10939
  %v10941 = vlaneseq
  %v10942 = vshrl.u32 %v10941, 7
  %v10943 = vsub.s32 0, %v10942
  %v10944 = vrot.slane %v9308, %v10943
  %v10945 = vlaneseq
  %v10946 = vshrl.u32 %v10945, 7
  %v10947 = vsub.s32 0, %v10946
  %v10948 = vrot.slane %v9316, %v10947
  %v10949 = vlaneseq
  %v10950 = vshrl.u32 %v10949, 7
  %v10951 = vsub.s32 0, %v10950
  %v10952 = vrot.slane %v9315, %v10951
  %v10953 = vlaneseq
  %v10954 = vshrl.u32 %v10953, 7
  %v10955 = vsub.s32 0, %v10954
  %v10956 = vrot.slane %v9351, %v10955
  %v10957 = vlaneseq
  %v10958 = vshrl.u32 %v10957, 7
  %v10959 = vsub.s32 0, %v10958
  %v10960 = vrot.slane %v9359, %v10959
  %v10961 = vlaneseq
  %v10962 = vshrl.u32 %v10961, 7
  %v10963 = vsub.s32 0, %v10962
  %v10964 = vrot.slane %v9367, %v10963
  %v10965 = vlaneseq
  %v10966 = vshrl.u32 %v10965, 7
  %v10967 = vsub.s32 0, %v10966
  %v10968 = vrot.slane %v9366, %v10967
  %v10969 = vlaneseq
  %v10970 = vshrl.u32 %v10969, 7
  %v10971 = vsub.s32 0, %v10970
  %v10972 = vrot.slane %v9368, %v10971
  %v10973 = vlaneseq
  %v10974 = vshrl.u32 %v10973, 7
  %v10975 = vsub.s32 0, %v10974
  %v10976 = vrot.slane %v9376, %v10975
  %v10977 = vlaneseq
  %v10978 = vshrl.u32 %v10977, 7
  %v10979 = vsub.s32 0, %v10978
  %v10980 = vrot.slane %v9418, %v10979
  %v10981 = vlaneseq
  %v10982 = vshrl.u32 %v10981, 7
  %v10983 = vsub.s32 0, %v10982
  %v10984 = vrot.slane %v9417, %v10983
  %v10985 = vlaneseq
  %v10986 = vshrl.u32 %v10985, 7
  %v10987 = vsub.s32 0, %v10986
  %v10988 = vrot.slane %v9419, %v10987
  %v10989 = vlaneseq
  %v10990 = vshrl.u32 %v10989, 7
  %v10991 = vsub.s32 0, %v10990
  %v10992 = vrot.slane %v9427, %v10991
  %v10993 = vlaneseq
  %v10994 = vshrl.u32 %v10993, 7
  %v10995 = vsub.s32 0, %v10994
  %v10996 = vrot.slane %v9435, %v10995
  %v10997 = vlaneseq
  %v10998 = vshrl.u32 %v10997, 7
  %v10999 = vsub.s32 0, %v10998
  %v11000 = vrot.slane %v9434, %v10999
  %v11001 = vlaneseq
  %v11002 = vshrl.u32 %v11001, 7
  %v11003 = vsub.s32 0, %v11002
  %v11004 = vrot.slane %v9470, %v11003
  %v11005 = vlaneseq
  %v11006 = vshrl.u32 %v11005, 7
  %v11007 = vsub.s32 0, %v11006
  %v11008 = vrot.slane %v9478, %v11007
  %v11009 = vlaneseq
  %v11010 = vshrl.u32 %v11009, 7
  %v11011 = vsub.s32 0, %v11010
  %v11012 = vrot.slane %v9486, %v11011
  %v11013 = vlaneseq
  %v11014 = vshrl.u32 %v11013, 7
  %v11015 = vsub.s32 0, %v11014
  %v11016 = vrot.slane %v9485, %v11015
  %v11017 = vlaneseq
  %v11018 = vshrl.u32 %v11017, 7
  %v11019 = vsub.s32 0, %v11018
  %v11020 = vrot.slane %v9487, %v11019
  %v11021 = vlaneseq
  %v11022 = vshrl.u32 %v11021, 7
  %v11023 = vsub.s32 0, %v11022
  %v11024 = vrot.slane %v9495, %v11023
  %v11025 = vlaneseq
  %v11026 = vshrl.u32 %v11025, 7
  %v11027 = vsub.s32 0, %v11026
  %v11028 = vrot.slane %v9537, %v11027
  %v11029 = vlaneseq
  %v11030 = vshrl.u32 %v11029, 7
  %v11031 = vsub.s32 0, %v11030
  %v11032 = vrot.slane %v9536, %v11031
  %v11033 = vlaneseq
  %v11034 = vshrl.u32 %v11033, 7
  %v11035 = vsub.s32 0, %v11034
  %v11036 = vrot.slane %v9538, %v11035
  %v11037 = vlaneseq
  %v11038 = vshrl.u32 %v11037, 7
  %v11039 = vsub.s32 0, %v11038
  %v11040 = vrot.slane %v9546, %v11039
  %v11041 = vlaneseq
  %v11042 = vshrl.u32 %v11041, 7
  %v11043 = vsub.s32 0, %v11042
  %v11044 = vrot.slane %v9554, %v11043
  %v11045 = vlaneseq
  %v11046 = vshrl.u32 %v11045, 7
  %v11047 = vsub.s32 0, %v11046
  %v11048 = vrot.slane %v9553, %v11047
  %v11049 = vlaneseq
  %v11050 = vshrl.u32 %v11049, 7
  %v11051 = vsub.s32 0, %v11050
  %v11052 = vrot.slane %v9589, %v11051
  %v11053 = vlaneseq
  %v11054 = vshrl.u32 %v11053, 7
  %v11055 = vsub.s32 0, %v11054
  %v11056 = vrot.slane %v9597, %v11055
  %v11057 = vlaneseq
  %v11058 = vshrl.u32 %v11057, 7
  %v11059 = vsub.s32 0, %v11058
  %v11060 = vrot.slane %v9605, %v11059
  %v11061 = vlaneseq
  %v11062 = vshrl.u32 %v11061, 7
  %v11063 = vsub.s32 0, %v11062
  %v11064 = vrot.slane %v9604, %v11063
  %v11065 = vlaneseq
  %v11066 = vshrl.u32 %v11065, 7
  %v11067 = vsub.s32 0, %v11066
  %v11068 = vrot.slane %v9606, %v11067
  %v11069 = vlaneseq
  %v11070 = vshrl.u32 %v11069, 7
  %v11071 = vsub.s32 0, %v11070
  %v11072 = vrot.slane %v9614, %v11071
  %v11073 = vsel %vm9936, %v10792, %v10788
  %v11074 = vsel %vm2032, %v10796, %v11073
  %v11075 = vsel %vm9939, %v10800, %v11074
  %v11076 = vsel %vm2034, %v10804, %v11075
  %v11077 = vsel %vm9942, %v10808, %v11076
  %v11078 = vsel %vm2036, %v10812, %v11077
  %v11079 = vsel %vm9945, %v10816, %v11078
  %v11080 = vsel %vm9936, %v10824, %v10820
  %v11081 = vsel %vm2032, %v10828, %v11080
  %v11082 = vsel %vm9939, %v10832, %v11081
  %v11083 = vsel %vm2034, %v10836, %v11082
  %v11084 = vsel %vm9942, %v10840, %v11083
  %v11085 = vsel %vm2036, %v10844, %v11084
  %v11086 = vsel %vm9945, %v10848, %v11085
  %v11087 = vsel %vm9936, %v10856, %v10852
  %v11088 = vsel %vm2032, %v10860, %v11087
  %v11089 = vsel %vm9939, %v10864, %v11088
  %v11090 = vsel %vm2034, %v10868, %v11089
  %v11091 = vsel %vm9942, %v10872, %v11090
  %v11092 = vsel %vm2036, %v10876, %v11091
  %v11093 = vsel %vm9945, %v10880, %v11092
  %v11094 = vsel %vm9936, %v10888, %v10884
  %v11095 = vsel %vm2032, %v10892, %v11094
  %v11096 = vsel %vm9939, %v10896, %v11095
  %v11097 = vsel %vm2034, %v10900, %v11096
  %v11098 = vsel %vm9942, %v10904, %v11097
  %v11099 = vsel %vm2036, %v10908, %v11098
  %v11100 = vsel %vm9945, %v10912, %v11099
  %v11101 = vsel %vm9936, %v10920, %v10916
  %v11102 = vsel %vm2032, %v10924, %v11101
  %v11103 = vsel %vm9939, %v10928, %v11102
  %v11104 = vsel %vm2034, %v10932, %v11103
  %v11105 = vsel %vm9942, %v10936, %v11104
  %v11106 = vsel %vm2036, %v10940, %v11105
  %v11107 = vsel %vm9945, %v10944, %v11106
  %v11108 = vsel %vm9936, %v10952, %v10948
  %v11109 = vsel %vm2032, %v10956, %v11108
  %v11110 = vsel %vm9939, %v10960, %v11109
  %v11111 = vsel %vm2034, %v10964, %v11110
  %v11112 = vsel %vm9942, %v10968, %v11111
  %v11113 = vsel %vm2036, %v10972, %v11112
  %v11114 = vsel %vm9945, %v10976, %v11113
  %v11115 = vsel %vm9936, %v10984, %v10980
  %v11116 = vsel %vm2032, %v10988, %v11115
  %v11117 = vsel %vm9939, %v10992, %v11116
  %v11118 = vsel %vm2034, %v10996, %v11117
  %v11119 = vsel %vm9942, %v11000, %v11118
  %v11120 = vsel %vm2036, %v11004, %v11119
  %v11121 = vsel %vm9945, %v11008, %v11120
  %v11122 = vsel %vm9936, %v11016, %v11012
  %v11123 = vsel %vm2032, %v11020, %v11122
  %v11124 = vsel %vm9939, %v11024, %v11123
  %v11125 = vsel %vm2034, %v11028, %v11124
  %v11126 = vsel %vm9942, %v11032, %v11125
  %v11127 = vsel %vm2036, %v11036, %v11126
  %v11128 = vsel %vm9945, %v11040, %v11127
  %v11129 = vsel %vm9936, %v11048, %v11044
  %v11130 = vsel %vm2032, %v11052, %v11129
  %v11131 = vsel %vm9939, %v11056, %v11130
  %v11132 = vsel %vm2034, %v11060, %v11131
  %v11133 = vsel %vm9942, %v11064, %v11132
  %v11134 = vsel %vm2036, %v11068, %v11133
  %v11135 = vsel %vm9945, %v11072, %v11134
  %11136 = vrot.lane.b32.xlu0 %v11079, 24
  %v11137 = vpop.permute.xlu0 %11136
  %11138 = vrot.lane.b32.xlu0 %v11086, 24
  %v11139 = vpop.permute.xlu0 %11138
  %11140 = vrot.lane.b32.xlu0 %v11093, 24
  %v11141 = vpop.permute.xlu0 %11140
  %11142 = vrot.lane.b32.xlu0 %v11100, 24
  %v11143 = vpop.permute.xlu0 %11142
  %11144 = vrot.lane.b32.xlu0 %v11107, 24
  %v11145 = vpop.permute.xlu0 %11144
  %11146 = vrot.lane.b32.xlu0 %v11114, 24
  %v11147 = vpop.permute.xlu0 %11146
  %11148 = vrot.lane.b32.xlu0 %v11121, 24
  %v11149 = vpop.permute.xlu0 %11148
  %11150 = vrot.lane.b32.xlu0 %v11128, 24
  %v11151 = vpop.permute.xlu0 %11150
  %11152 = vrot.lane.b32.xlu0 %v11135, 24
  %v11153 = vpop.permute.xlu0 %11152
  %vm11163 = vcmask 261312
  %11164 = vst.msk [vmem:[#allocation2] sm:$0xff] %vm11163, %v11137
  %11165 = vst.msk [vmem:[#allocation2 + $0x8] sm:$0xff] %vm11163, %v11139
  %11166 = vst.msk [vmem:[#allocation2 + $0x10] sm:$0xff] %vm11163, %v11141
  %11167 = vst.msk [vmem:[#allocation2 + $0x18] sm:$0xff] %vm11163, %v11143
  %11168 = vst.msk [vmem:[#allocation2 + $0x20] sm:$0xff] %vm11163, %v11145
  %11169 = vst.msk [vmem:[#allocation2 + $0x28] sm:$0xff] %vm11163, %v11147
  %11170 = vst.msk [vmem:[#allocation2 + $0x30] sm:$0xff] %vm11163, %v11149
  %11171 = vst.msk [vmem:[#allocation2 + $0x38] sm:$0xff] %vm11163, %v11151
  %11172 = vst.msk [vmem:[#allocation2 + $0x40] sm:$0xff] %vm11163, %v11153
  %v11173 = vrot.slane %v8901, 7
  %v11174 = vrot.slane %v11173, 2
  %v11175 = vrot.slane %v8909, 7
  %v11176 = vsel %vm2037, %v11174, %v11175
  %v11177 = vrot.slane %v11175, 2
  %v11178 = vrot.slane %v8917, 7
  %v11179 = vsel %vm2037, %v11177, %v11178
  %v11180 = vrot.slane %v11178, 2
  %v11181 = vrot.slane %v8916, 7
  %v11182 = vsel %vm2037, %v11180, %v11181
  %v11183 = vrot.slane %v11181, 2
  %v11184 = vrot.slane %v8918, 7
  %v11185 = vsel %vm2037, %v11183, %v11184
  %v11186 = vrot.slane %v11184, 2
  %v11187 = vrot.slane %v8926, 7
  %v11188 = vsel %vm2037, %v11186, %v11187
  %v11189 = vrot.slane %v11187, 2
  %v11190 = vrot.slane %v8934, 7
  %v11191 = vsel %vm2037, %v11189, %v11190
  %v11192 = vrot.slane %v8968, 7
  %v11193 = vrot.slane %v11192, 2
  %v11194 = vrot.slane %v8967, 7
  %v11195 = vsel %vm2037, %v11193, %v11194
  %v11196 = vrot.slane %v11194, 2
  %v11197 = vrot.slane %v8969, 7
  %v11198 = vsel %vm2037, %v11196, %v11197
  %v11199 = vrot.slane %v11197, 2
  %v11200 = vrot.slane %v8977, 7
  %v11201 = vsel %vm2037, %v11199, %v11200
  %v11202 = vrot.slane %v11200, 2
  %v11203 = vrot.slane %v8985, 7
  %v11204 = vsel %vm2037, %v11202, %v11203
  %v11205 = vrot.slane %v11203, 2
  %v11206 = vrot.slane %v8984, 7
  %v11207 = vsel %vm2037, %v11205, %v11206
  %v11208 = vrot.slane %v11206, 2
  %v11209 = vrot.slane %v8986, 7
  %v11210 = vsel %vm2037, %v11208, %v11209
  %v11211 = vrot.slane %v9020, 7
  %v11212 = vrot.slane %v11211, 2
  %v11213 = vrot.slane %v9028, 7
  %v11214 = vsel %vm2037, %v11212, %v11213
  %v11215 = vrot.slane %v11213, 2
  %v11216 = vrot.slane %v9036, 7
  %v11217 = vsel %vm2037, %v11215, %v11216
  %v11218 = vrot.slane %v11216, 2
  %v11219 = vrot.slane %v9035, 7
  %v11220 = vsel %vm2037, %v11218, %v11219
  %v11221 = vrot.slane %v11219, 2
  %v11222 = vrot.slane %v9037, 7
  %v11223 = vsel %vm2037, %v11221, %v11222
  %v11224 = vrot.slane %v11222, 2
  %v11225 = vrot.slane %v9045, 7
  %v11226 = vsel %vm2037, %v11224, %v11225
  %v11227 = vrot.slane %v11225, 2
  %v11228 = vrot.slane %v9053, 7
  %v11229 = vsel %vm2037, %v11227, %v11228
  %v11230 = vrot.slane %v9087, 7
  %v11231 = vrot.slane %v11230, 2
  %v11232 = vrot.slane %v9086, 7
  %v11233 = vsel %vm2037, %v11231, %v11232
  %v11234 = vrot.slane %v11232, 2
  %v11235 = vrot.slane %v9088, 7
  %v11236 = vsel %vm2037, %v11234, %v11235
  %v11237 = vrot.slane %v11235, 2
  %v11238 = vrot.slane %v9096, 7
  %v11239 = vsel %vm2037, %v11237, %v11238
  %v11240 = vrot.slane %v11238, 2
  %v11241 = vrot.slane %v9104, 7
  %v11242 = vsel %vm2037, %v11240, %v11241
  %v11243 = vrot.slane %v11241, 2
  %v11244 = vrot.slane %v9103, 7
  %v11245 = vsel %vm2037, %v11243, %v11244
  %v11246 = vrot.slane %v11244, 2
  %v11247 = vrot.slane %v9105, 7
  %v11248 = vsel %vm2037, %v11246, %v11247
  %v11249 = vrot.slane %v9139, 7
  %v11250 = vrot.slane %v11249, 2
  %v11251 = vrot.slane %v9147, 7
  %v11252 = vsel %vm2037, %v11250, %v11251
  %v11253 = vrot.slane %v11251, 2
  %v11254 = vrot.slane %v9155, 7
  %v11255 = vsel %vm2037, %v11253, %v11254
  %v11256 = vrot.slane %v11254, 2
  %v11257 = vrot.slane %v9154, 7
  %v11258 = vsel %vm2037, %v11256, %v11257
  %v11259 = vrot.slane %v11257, 2
  %v11260 = vrot.slane %v9156, 7
  %v11261 = vsel %vm2037, %v11259, %v11260
  %v11262 = vrot.slane %v11260, 2
  %v11263 = vrot.slane %v9164, 7
  %v11264 = vsel %vm2037, %v11262, %v11263
  %v11265 = vrot.slane %v11263, 2
  %v11266 = vrot.slane %v9172, 7
  %v11267 = vsel %vm2037, %v11265, %v11266
  %v11268 = vrot.slane %v9206, 7
  %v11269 = vrot.slane %v11268, 2
  %v11270 = vrot.slane %v9205, 7
  %v11271 = vsel %vm2037, %v11269, %v11270
  %v11272 = vrot.slane %v11270, 2
  %v11273 = vrot.slane %v9207, 7
  %v11274 = vsel %vm2037, %v11272, %v11273
  %v11275 = vrot.slane %v11273, 2
  %v11276 = vrot.slane %v9215, 7
  %v11277 = vsel %vm2037, %v11275, %v11276
  %v11278 = vrot.slane %v11276, 2
  %v11279 = vrot.slane %v9223, 7
  %v11280 = vsel %vm2037, %v11278, %v11279
  %v11281 = vrot.slane %v11279, 2
  %v11282 = vrot.slane %v9222, 7
  %v11283 = vsel %vm2037, %v11281, %v11282
  %v11284 = vrot.slane %v11282, 2
  %v11285 = vrot.slane %v9224, 7
  %v11286 = vsel %vm2037, %v11284, %v11285
  %v11287 = vrot.slane %v9299, 7
  %v11288 = vrot.slane %v11287, 2
  %v11289 = vrot.slane %v9298, 7
  %v11290 = vsel %vm2037, %v11288, %v11289
  %v11291 = vrot.slane %v11289, 2
  %v11292 = vrot.slane %v9300, 7
  %v11293 = vsel %vm2037, %v11291, %v11292
  %v11294 = vrot.slane %v11292, 2
  %v11295 = vrot.slane %v9308, 7
  %v11296 = vsel %vm2037, %v11294, %v11295
  %v11297 = vrot.slane %v11295, 2
  %v11298 = vrot.slane %v9316, 7
  %v11299 = vsel %vm2037, %v11297, %v11298
  %v11300 = vrot.slane %v11298, 2
  %v11301 = vrot.slane %v9315, 7
  %v11302 = vsel %vm2037, %v11300, %v11301
  %v11303 = vrot.slane %v11301, 2
  %v11304 = vrot.slane %v9317, 7
  %v11305 = vsel %vm2037, %v11303, %v11304
  %v11306 = vrot.slane %v9351, 7
  %v11307 = vrot.slane %v11306, 2
  %v11308 = vrot.slane %v9359, 7
  %v11309 = vsel %vm2037, %v11307, %v11308
  %v11310 = vrot.slane %v11308, 2
  %v11311 = vrot.slane %v9367, 7
  %v11312 = vsel %vm2037, %v11310, %v11311
  %v11313 = vrot.slane %v11311, 2
  %v11314 = vrot.slane %v9366, 7
  %v11315 = vsel %vm2037, %v11313, %v11314
  %v11316 = vrot.slane %v11314, 2
  %v11317 = vrot.slane %v9368, 7
  %v11318 = vsel %vm2037, %v11316, %v11317
  %v11319 = vrot.slane %v11317, 2
  %v11320 = vrot.slane %v9376, 7
  %v11321 = vsel %vm2037, %v11319, %v11320
  %v11322 = vrot.slane %v11320, 2
  %v11323 = vrot.slane %v9384, 7
  %v11324 = vsel %vm2037, %v11322, %v11323
  %v11325 = vrot.slane %v9418, 7
  %v11326 = vrot.slane %v11325, 2
  %v11327 = vrot.slane %v9417, 7
  %v11328 = vsel %vm2037, %v11326, %v11327
  %v11329 = vrot.slane %v11327, 2
  %v11330 = vrot.slane %v9419, 7
  %v11331 = vsel %vm2037, %v11329, %v11330
  %v11332 = vrot.slane %v11330, 2
  %v11333 = vrot.slane %v9427, 7
  %v11334 = vsel %vm2037, %v11332, %v11333
  %v11335 = vrot.slane %v11333, 2
  %v11336 = vrot.slane %v9435, 7
  %v11337 = vsel %vm2037, %v11335, %v11336
  %v11338 = vrot.slane %v11336, 2
  %v11339 = vrot.slane %v9434, 7
  %v11340 = vsel %vm2037, %v11338, %v11339
  %v11341 = vrot.slane %v11339, 2
  %v11342 = vrot.slane %v9436, 7
  %v11343 = vsel %vm2037, %v11341, %v11342
  %v11344 = vrot.slane %v9470, 7
  %v11345 = vrot.slane %v11344, 2
  %v11346 = vrot.slane %v9478, 7
  %v11347 = vsel %vm2037, %v11345, %v11346
  %v11348 = vrot.slane %v11346, 2
  %v11349 = vrot.slane %v9486, 7
  %v11350 = vsel %vm2037, %v11348, %v11349
  %v11351 = vrot.slane %v11349, 2
  %v11352 = vrot.slane %v9485, 7
  %v11353 = vsel %vm2037, %v11351, %v11352
  %v11354 = vrot.slane %v11352, 2
  %v11355 = vrot.slane %v9487, 7
  %v11356 = vsel %vm2037, %v11354, %v11355
  %v11357 = vrot.slane %v11355, 2
  %v11358 = vrot.slane %v9495, 7
  %v11359 = vsel %vm2037, %v11357, %v11358
  %v11360 = vrot.slane %v11358, 2
  %v11361 = vrot.slane %v9503, 7
  %v11362 = vsel %vm2037, %v11360, %v11361
  %v11363 = vrot.slane %v9537, 7
  %v11364 = vrot.slane %v11363, 2
  %v11365 = vrot.slane %v9536, 7
  %v11366 = vsel %vm2037, %v11364, %v11365
  %v11367 = vrot.slane %v11365, 2
  %v11368 = vrot.slane %v9538, 7
  %v11369 = vsel %vm2037, %v11367, %v11368
  %v11370 = vrot.slane %v11368, 2
  %v11371 = vrot.slane %v9546, 7
  %v11372 = vsel %vm2037, %v11370, %v11371
  %v11373 = vrot.slane %v11371, 2
  %v11374 = vrot.slane %v9554, 7
  %v11375 = vsel %vm2037, %v11373, %v11374
  %v11376 = vrot.slane %v11374, 2
  %v11377 = vrot.slane %v9553, 7
  %v11378 = vsel %vm2037, %v11376, %v11377
  %v11379 = vrot.slane %v11377, 2
  %v11380 = vrot.slane %v9555, 7
  %v11381 = vsel %vm2037, %v11379, %v11380
  %v11382 = vrot.slane %v9589, 7
  %v11383 = vrot.slane %v11382, 2
  %v11384 = vrot.slane %v9597, 7
  %v11385 = vsel %vm2037, %v11383, %v11384
  %v11386 = vrot.slane %v11384, 2
  %v11387 = vrot.slane %v9605, 7
  %v11388 = vsel %vm2037, %v11386, %v11387
  %v11389 = vrot.slane %v11387, 2
  %v11390 = vrot.slane %v9604, 7
  %v11391 = vsel %vm2037, %v11389, %v11390
  %v11392 = vrot.slane %v11390, 2
  %v11393 = vrot.slane %v9606, 7
  %v11394 = vsel %vm2037, %v11392, %v11393
  %v11395 = vrot.slane %v11393, 2
  %v11396 = vrot.slane %v9614, 7
  %v11397 = vsel %vm2037, %v11395, %v11396
  %v11398 = vrot.slane %v11396, 2
  %v11399 = vrot.slane %v9622, 7
  %v11400 = vsel %vm2037, %v11398, %v11399
  %v11401 = vlaneseq
  %v11402 = vshrl.u32 %v11401, 7
  %v11403 = vsub.s32 0, %v11402
  %v11404 = vrot.slane %v11176, %v11403
  %v11405 = vlaneseq
  %v11406 = vshrl.u32 %v11405, 7
  %v11407 = vsub.s32 0, %v11406
  %v11408 = vrot.slane %v11179, %v11407
  %v11409 = vlaneseq
  %v11410 = vshrl.u32 %v11409, 7
  %v11411 = vsub.s32 0, %v11410
  %v11412 = vrot.slane %v11182, %v11411
  %v11413 = vlaneseq
  %v11414 = vshrl.u32 %v11413, 7
  %v11415 = vsub.s32 0, %v11414
  %v11416 = vrot.slane %v11185, %v11415
  %v11417 = vlaneseq
  %v11418 = vshrl.u32 %v11417, 7
  %v11419 = vsub.s32 0, %v11418
  %v11420 = vrot.slane %v11188, %v11419
  %v11421 = vlaneseq
  %v11422 = vshrl.u32 %v11421, 7
  %v11423 = vsub.s32 0, %v11422
  %v11424 = vrot.slane %v11191, %v11423
  %v11425 = vlaneseq
  %v11426 = vshrl.u32 %v11425, 7
  %v11427 = vsub.s32 0, %v11426
  %v11428 = vrot.slane %v11195, %v11427
  %v11429 = vlaneseq
  %v11430 = vshrl.u32 %v11429, 7
  %v11431 = vsub.s32 0, %v11430
  %v11432 = vrot.slane %v11198, %v11431
  %v11433 = vlaneseq
  %v11434 = vshrl.u32 %v11433, 7
  %v11435 = vsub.s32 0, %v11434
  %v11436 = vrot.slane %v11201, %v11435
  %v11437 = vlaneseq
  %v11438 = vshrl.u32 %v11437, 7
  %v11439 = vsub.s32 0, %v11438
  %v11440 = vrot.slane %v11204, %v11439
  %v11441 = vlaneseq
  %v11442 = vshrl.u32 %v11441, 7
  %v11443 = vsub.s32 0, %v11442
  %v11444 = vrot.slane %v11207, %v11443
  %v11445 = vlaneseq
  %v11446 = vshrl.u32 %v11445, 7
  %v11447 = vsub.s32 0, %v11446
  %v11448 = vrot.slane %v11210, %v11447
  %v11449 = vlaneseq
  %v11450 = vshrl.u32 %v11449, 7
  %v11451 = vsub.s32 0, %v11450
  %v11452 = vrot.slane %v11214, %v11451
  %v11453 = vlaneseq
  %v11454 = vshrl.u32 %v11453, 7
  %v11455 = vsub.s32 0, %v11454
  %v11456 = vrot.slane %v11217, %v11455
  %v11457 = vlaneseq
  %v11458 = vshrl.u32 %v11457, 7
  %v11459 = vsub.s32 0, %v11458
  %v11460 = vrot.slane %v11220, %v11459
  %v11461 = vlaneseq
  %v11462 = vshrl.u32 %v11461, 7
  %v11463 = vsub.s32 0, %v11462
  %v11464 = vrot.slane %v11223, %v11463
  %v11465 = vlaneseq
  %v11466 = vshrl.u32 %v11465, 7
  %v11467 = vsub.s32 0, %v11466
  %v11468 = vrot.slane %v11226, %v11467
  %v11469 = vlaneseq
  %v11470 = vshrl.u32 %v11469, 7
  %v11471 = vsub.s32 0, %v11470
  %v11472 = vrot.slane %v11229, %v11471
  %v11473 = vlaneseq
  %v11474 = vshrl.u32 %v11473, 7
  %v11475 = vsub.s32 0, %v11474
  %v11476 = vrot.slane %v11233, %v11475
  %v11477 = vlaneseq
  %v11478 = vshrl.u32 %v11477, 7
  %v11479 = vsub.s32 0, %v11478
  %v11480 = vrot.slane %v11236, %v11479
  %v11481 = vlaneseq
  %v11482 = vshrl.u32 %v11481, 7
  %v11483 = vsub.s32 0, %v11482
  %v11484 = vrot.slane %v11239, %v11483
  %v11485 = vlaneseq
  %v11486 = vshrl.u32 %v11485, 7
  %v11487 = vsub.s32 0, %v11486
  %v11488 = vrot.slane %v11242, %v11487
  %v11489 = vlaneseq
  %v11490 = vshrl.u32 %v11489, 7
  %v11491 = vsub.s32 0, %v11490
  %v11492 = vrot.slane %v11245, %v11491
  %v11493 = vlaneseq
  %v11494 = vshrl.u32 %v11493, 7
  %v11495 = vsub.s32 0, %v11494
  %v11496 = vrot.slane %v11248, %v11495
  %v11497 = vlaneseq
  %v11498 = vshrl.u32 %v11497, 7
  %v11499 = vsub.s32 0, %v11498
  %v11500 = vrot.slane %v11252, %v11499
  %v11501 = vlaneseq
  %v11502 = vshrl.u32 %v11501, 7
  %v11503 = vsub.s32 0, %v11502
  %v11504 = vrot.slane %v11255, %v11503
  %v11505 = vlaneseq
  %v11506 = vshrl.u32 %v11505, 7
  %v11507 = vsub.s32 0, %v11506
  %v11508 = vrot.slane %v11258, %v11507
  %v11509 = vlaneseq
  %v11510 = vshrl.u32 %v11509, 7
  %v11511 = vsub.s32 0, %v11510
  %v11512 = vrot.slane %v11261, %v11511
  %v11513 = vlaneseq
  %v11514 = vshrl.u32 %v11513, 7
  %v11515 = vsub.s32 0, %v11514
  %v11516 = vrot.slane %v11264, %v11515
  %v11517 = vlaneseq
  %v11518 = vshrl.u32 %v11517, 7
  %v11519 = vsub.s32 0, %v11518
  %v11520 = vrot.slane %v11267, %v11519
  %v11521 = vlaneseq
  %v11522 = vshrl.u32 %v11521, 7
  %v11523 = vsub.s32 0, %v11522
  %v11524 = vrot.slane %v11271, %v11523
  %v11525 = vlaneseq
  %v11526 = vshrl.u32 %v11525, 7
  %v11527 = vsub.s32 0, %v11526
  %v11528 = vrot.slane %v11274, %v11527
  %v11529 = vlaneseq
  %v11530 = vshrl.u32 %v11529, 7
  %v11531 = vsub.s32 0, %v11530
  %v11532 = vrot.slane %v11277, %v11531
  %v11533 = vlaneseq
  %v11534 = vshrl.u32 %v11533, 7
  %v11535 = vsub.s32 0, %v11534
  %v11536 = vrot.slane %v11280, %v11535
  %v11537 = vlaneseq
  %v11538 = vshrl.u32 %v11537, 7
  %v11539 = vsub.s32 0, %v11538
  %v11540 = vrot.slane %v11283, %v11539
  %v11541 = vlaneseq
  %v11542 = vshrl.u32 %v11541, 7
  %v11543 = vsub.s32 0, %v11542
  %v11544 = vrot.slane %v11286, %v11543
  %v11545 = vlaneseq
  %v11546 = vshrl.u32 %v11545, 7
  %v11547 = vsub.s32 0, %v11546
  %v11548 = vrot.slane %v11290, %v11547
  %v11549 = vlaneseq
  %v11550 = vshrl.u32 %v11549, 7
  %v11551 = vsub.s32 0, %v11550
  %v11552 = vrot.slane %v11293, %v11551
  %v11553 = vlaneseq
  %v11554 = vshrl.u32 %v11553, 7
  %v11555 = vsub.s32 0, %v11554
  %v11556 = vrot.slane %v11296, %v11555
  %v11557 = vlaneseq
  %v11558 = vshrl.u32 %v11557, 7
  %v11559 = vsub.s32 0, %v11558
  %v11560 = vrot.slane %v11299, %v11559
  %v11561 = vlaneseq
  %v11562 = vshrl.u32 %v11561, 7
  %v11563 = vsub.s32 0, %v11562
  %v11564 = vrot.slane %v11302, %v11563
  %v11565 = vlaneseq
  %v11566 = vshrl.u32 %v11565, 7
  %v11567 = vsub.s32 0, %v11566
  %v11568 = vrot.slane %v11305, %v11567
  %v11569 = vlaneseq
  %v11570 = vshrl.u32 %v11569, 7
  %v11571 = vsub.s32 0, %v11570
  %v11572 = vrot.slane %v11309, %v11571
  %v11573 = vlaneseq
  %v11574 = vshrl.u32 %v11573, 7
  %v11575 = vsub.s32 0, %v11574
  %v11576 = vrot.slane %v11312, %v11575
  %v11577 = vlaneseq
  %v11578 = vshrl.u32 %v11577, 7
  %v11579 = vsub.s32 0, %v11578
  %v11580 = vrot.slane %v11315, %v11579
  %v11581 = vlaneseq
  %v11582 = vshrl.u32 %v11581, 7
  %v11583 = vsub.s32 0, %v11582
  %v11584 = vrot.slane %v11318, %v11583
  %v11585 = vlaneseq
  %v11586 = vshrl.u32 %v11585, 7
  %v11587 = vsub.s32 0, %v11586
  %v11588 = vrot.slane %v11321, %v11587
  %v11589 = vlaneseq
  %v11590 = vshrl.u32 %v11589, 7
  %v11591 = vsub.s32 0, %v11590
  %v11592 = vrot.slane %v11324, %v11591
  %v11593 = vlaneseq
  %v11594 = vshrl.u32 %v11593, 7
  %v11595 = vsub.s32 0, %v11594
  %v11596 = vrot.slane %v11328, %v11595
  %v11597 = vlaneseq
  %v11598 = vshrl.u32 %v11597, 7
  %v11599 = vsub.s32 0, %v11598
  %v11600 = vrot.slane %v11331, %v11599
  %v11601 = vlaneseq
  %v11602 = vshrl.u32 %v11601, 7
  %v11603 = vsub.s32 0, %v11602
  %v11604 = vrot.slane %v11334, %v11603
  %v11605 = vlaneseq
  %v11606 = vshrl.u32 %v11605, 7
  %v11607 = vsub.s32 0, %v11606
  %v11608 = vrot.slane %v11337, %v11607
  %v11609 = vlaneseq
  %v11610 = vshrl.u32 %v11609, 7
  %v11611 = vsub.s32 0, %v11610
  %v11612 = vrot.slane %v11340, %v11611
  %v11613 = vlaneseq
  %v11614 = vshrl.u32 %v11613, 7
  %v11615 = vsub.s32 0, %v11614
  %v11616 = vrot.slane %v11343, %v11615
  %v11617 = vlaneseq
  %v11618 = vshrl.u32 %v11617, 7
  %v11619 = vsub.s32 0, %v11618
  %v11620 = vrot.slane %v11347, %v11619
  %v11621 = vlaneseq
  %v11622 = vshrl.u32 %v11621, 7
  %v11623 = vsub.s32 0, %v11622
  %v11624 = vrot.slane %v11350, %v11623
  %v11625 = vlaneseq
  %v11626 = vshrl.u32 %v11625, 7
  %v11627 = vsub.s32 0, %v11626
  %v11628 = vrot.slane %v11353, %v11627
  %v11629 = vlaneseq
  %v11630 = vshrl.u32 %v11629, 7
  %v11631 = vsub.s32 0, %v11630
  %v11632 = vrot.slane %v11356, %v11631
  %v11633 = vlaneseq
  %v11634 = vshrl.u32 %v11633, 7
  %v11635 = vsub.s32 0, %v11634
  %v11636 = vrot.slane %v11359, %v11635
  %v11637 = vlaneseq
  %v11638 = vshrl.u32 %v11637, 7
  %v11639 = vsub.s32 0, %v11638
  %v11640 = vrot.slane %v11362, %v11639
  %v11641 = vlaneseq
  %v11642 = vshrl.u32 %v11641, 7
  %v11643 = vsub.s32 0, %v11642
  %v11644 = vrot.slane %v11366, %v11643
  %v11645 = vlaneseq
  %v11646 = vshrl.u32 %v11645, 7
  %v11647 = vsub.s32 0, %v11646
  %v11648 = vrot.slane %v11369, %v11647
  %v11649 = vlaneseq
  %v11650 = vshrl.u32 %v11649, 7
  %v11651 = vsub.s32 0, %v11650
  %v11652 = vrot.slane %v11372, %v11651
  %v11653 = vlaneseq
  %v11654 = vshrl.u32 %v11653, 7
  %v11655 = vsub.s32 0, %v11654
  %v11656 = vrot.slane %v11375, %v11655
  %v11657 = vlaneseq
  %v11658 = vshrl.u32 %v11657, 7
  %v11659 = vsub.s32 0, %v11658
  %v11660 = vrot.slane %v11378, %v11659
  %v11661 = vlaneseq
  %v11662 = vshrl.u32 %v11661, 7
  %v11663 = vsub.s32 0, %v11662
  %v11664 = vrot.slane %v11381, %v11663
  %v11665 = vlaneseq
  %v11666 = vshrl.u32 %v11665, 7
  %v11667 = vsub.s32 0, %v11666
  %v11668 = vrot.slane %v11385, %v11667
  %v11669 = vlaneseq
  %v11670 = vshrl.u32 %v11669, 7
  %v11671 = vsub.s32 0, %v11670
  %v11672 = vrot.slane %v11388, %v11671
  %v11673 = vlaneseq
  %v11674 = vshrl.u32 %v11673, 7
  %v11675 = vsub.s32 0, %v11674
  %v11676 = vrot.slane %v11391, %v11675
  %v11677 = vlaneseq
  %v11678 = vshrl.u32 %v11677, 7
  %v11679 = vsub.s32 0, %v11678
  %v11680 = vrot.slane %v11394, %v11679
  %v11681 = vlaneseq
  %v11682 = vshrl.u32 %v11681, 7
  %v11683 = vsub.s32 0, %v11682
  %v11684 = vrot.slane %v11397, %v11683
  %v11685 = vlaneseq
  %v11686 = vshrl.u32 %v11685, 7
  %v11687 = vsub.s32 0, %v11686
  %v11688 = vrot.slane %v11400, %v11687
  %v11689 = vsel %vm9936, %v11408, %v11404
  %v11690 = vsel %vm2032, %v11412, %v11689
  %v11691 = vsel %vm9939, %v11416, %v11690
  %v11692 = vsel %vm2034, %v11420, %v11691
  %v11693 = vsel %vm9942, %v11424, %v11692
  %v11694 = vsel %vm2036, %v11428, %v11693
  %v11695 = vsel %vm9945, %v11432, %v11694
  %v11696 = vsel %vm9936, %v11440, %v11436
  %v11697 = vsel %vm2032, %v11444, %v11696
  %v11698 = vsel %vm9939, %v11448, %v11697
  %v11699 = vsel %vm2034, %v11452, %v11698
  %v11700 = vsel %vm9942, %v11456, %v11699
  %v11701 = vsel %vm2036, %v11460, %v11700
  %v11702 = vsel %vm9945, %v11464, %v11701
  %v11703 = vsel %vm9936, %v11472, %v11468
  %v11704 = vsel %vm2032, %v11476, %v11703
  %v11705 = vsel %vm9939, %v11480, %v11704
  %v11706 = vsel %vm2034, %v11484, %v11705
  %v11707 = vsel %vm9942, %v11488, %v11706
  %v11708 = vsel %vm2036, %v11492, %v11707
  %v11709 = vsel %vm9945, %v11496, %v11708
  %v11710 = vsel %vm9936, %v11504, %v11500
  %v11711 = vsel %vm2032, %v11508, %v11710
  %v11712 = vsel %vm9939, %v11512, %v11711
  %v11713 = vsel %vm2034, %v11516, %v11712
  %v11714 = vsel %vm9942, %v11520, %v11713
  %v11715 = vsel %vm2036, %v11524, %v11714
  %v11716 = vsel %vm9945, %v11528, %v11715
  %v11717 = vsel %vm9936, %v11536, %v11532
  %v11718 = vsel %vm2032, %v11540, %v11717
  %v11719 = vsel %vm9939, %v11544, %v11718
  %v11720 = vsel %vm2034, %v11548, %v11719
  %v11721 = vsel %vm9942, %v11552, %v11720
  %v11722 = vsel %vm2036, %v11556, %v11721
  %v11723 = vsel %vm9945, %v11560, %v11722
  %v11724 = vsel %vm9936, %v11568, %v11564
  %v11725 = vsel %vm2032, %v11572, %v11724
  %v11726 = vsel %vm9939, %v11576, %v11725
  %v11727 = vsel %vm2034, %v11580, %v11726
  %v11728 = vsel %vm9942, %v11584, %v11727
  %v11729 = vsel %vm2036, %v11588, %v11728
  %v11730 = vsel %vm9945, %v11592, %v11729
  %v11731 = vsel %vm9936, %v11600, %v11596
  %v11732 = vsel %vm2032, %v11604, %v11731
  %v11733 = vsel %vm9939, %v11608, %v11732
  %v11734 = vsel %vm2034, %v11612, %v11733
  %v11735 = vsel %vm9942, %v11616, %v11734
  %v11736 = vsel %vm2036, %v11620, %v11735
  %v11737 = vsel %vm9945, %v11624, %v11736
  %v11738 = vsel %vm9936, %v11632, %v11628
  %v11739 = vsel %vm2032, %v11636, %v11738
  %v11740 = vsel %vm9939, %v11640, %v11739
  %v11741 = vsel %vm2034, %v11644, %v11740
  %v11742 = vsel %vm9942, %v11648, %v11741
  %v11743 = vsel %vm2036, %v11652, %v11742
  %v11744 = vsel %vm9945, %v11656, %v11743
  %v11745 = vsel %vm9936, %v11664, %v11660
  %v11746 = vsel %vm2032, %v11668, %v11745
  %v11747 = vsel %vm9939, %v11672, %v11746
  %v11748 = vsel %vm2034, %v11676, %v11747
  %v11749 = vsel %vm9942, %v11680, %v11748
  %v11750 = vsel %vm2036, %v11684, %v11749
  %v11751 = vsel %vm9945, %v11688, %v11750
  %11752 = vrot.lane.b32.xlu0 %v11695, 32
  %v11753 = vpop.permute.xlu0 %11752
  %11754 = vrot.lane.b32.xlu0 %v11702, 32
  %v11755 = vpop.permute.xlu0 %11754
  %11756 = vrot.lane.b32.xlu0 %v11709, 32
  %v11757 = vpop.permute.xlu0 %11756
  %11758 = vrot.lane.b32.xlu0 %v11716, 32
  %v11759 = vpop.permute.xlu0 %11758
  %11760 = vrot.lane.b32.xlu0 %v11723, 32
  %v11761 = vpop.permute.xlu0 %11760
  %11762 = vrot.lane.b32.xlu0 %v11730, 32
  %v11763 = vpop.permute.xlu0 %11762
  %11764 = vrot.lane.b32.xlu0 %v11737, 32
  %v11765 = vpop.permute.xlu0 %11764
  %11766 = vrot.lane.b32.xlu0 %v11744, 32
  %v11767 = vpop.permute.xlu0 %11766
  %11768 = vrot.lane.b32.xlu0 %v11751, 32
  %v11769 = vpop.permute.xlu0 %11768
  %vm11779 = vcmask 326912
  %11780 = vst.msk [vmem:[#allocation2] sm:$0xff] %vm11779, %v11753
  %11781 = vst.msk [vmem:[#allocation2 + $0x8] sm:$0xff] %vm11779, %v11755
  %11782 = vst.msk [vmem:[#allocation2 + $0x10] sm:$0xff] %vm11779, %v11757
  %11783 = vst.msk [vmem:[#allocation2 + $0x18] sm:$0xff] %vm11779, %v11759
  %11784 = vst.msk [vmem:[#allocation2 + $0x20] sm:$0xff] %vm11779, %v11761
  %11785 = vst.msk [vmem:[#allocation2 + $0x28] sm:$0xff] %vm11779, %v11763
  %11786 = vst.msk [vmem:[#allocation2 + $0x30] sm:$0xff] %vm11779, %v11765
  %11787 = vst.msk [vmem:[#allocation2 + $0x38] sm:$0xff] %vm11779, %v11767
  %11788 = vst.msk [vmem:[#allocation2 + $0x40] sm:$0xff] %vm11779, %v11769
  %v11789 = vlaneseq
  %v11790 = vshrl.u32 %v11789, 7
  %v11791 = vsub.s32 0, %v11790
  %v11792 = vrot.slane %v8934, %v11791
  %v11793 = vlaneseq
  %v11794 = vshrl.u32 %v11793, 7
  %v11795 = vsub.s32 0, %v11794
  %v11796 = vrot.slane %v8986, %v11795
  %v11797 = vlaneseq
  %v11798 = vshrl.u32 %v11797, 7
  %v11799 = vsub.s32 0, %v11798
  %v11800 = vrot.slane %v9053, %v11799
  %v11801 = vlaneseq
  %v11802 = vshrl.u32 %v11801, 7
  %v11803 = vsub.s32 0, %v11802
  %v11804 = vrot.slane %v9105, %v11803
  %v11805 = vlaneseq
  %v11806 = vshrl.u32 %v11805, 7
  %v11807 = vsub.s32 0, %v11806
  %v11808 = vrot.slane %v9172, %v11807
  %v11809 = vlaneseq
  %v11810 = vshrl.u32 %v11809, 7
  %v11811 = vsub.s32 0, %v11810
  %v11812 = vrot.slane %v9224, %v11811
  %v11813 = vlaneseq
  %v11814 = vshrl.u32 %v11813, 7
  %v11815 = vsub.s32 0, %v11814
  %v11816 = vrot.slane %v9317, %v11815
  %v11817 = vlaneseq
  %v11818 = vshrl.u32 %v11817, 7
  %v11819 = vsub.s32 0, %v11818
  %v11820 = vrot.slane %v9384, %v11819
  %v11821 = vlaneseq
  %v11822 = vshrl.u32 %v11821, 7
  %v11823 = vsub.s32 0, %v11822
  %v11824 = vrot.slane %v9436, %v11823
  %v11825 = vlaneseq
  %v11826 = vshrl.u32 %v11825, 7
  %v11827 = vsub.s32 0, %v11826
  %v11828 = vrot.slane %v9503, %v11827
  %v11829 = vlaneseq
  %v11830 = vshrl.u32 %v11829, 7
  %v11831 = vsub.s32 0, %v11830
  %v11832 = vrot.slane %v9555, %v11831
  %v11833 = vlaneseq
  %v11834 = vshrl.u32 %v11833, 7
  %v11835 = vsub.s32 0, %v11834
  %v11836 = vrot.slane %v9622, %v11835
  %v11837 = vsel %vm9936, %v10796, %v10792
  %v11838 = vsel %vm2032, %v10800, %v11837
  %v11839 = vsel %vm9939, %v10804, %v11838
  %v11840 = vsel %vm2034, %v10808, %v11839
  %v11841 = vsel %vm9942, %v11792, %v11840
  %v11842 = vsel %vm2036, %v10816, %v11841
  %v11843 = vsel %vm9945, %v10820, %v11842
  %v11844 = vsel %vm9936, %v10828, %v10824
  %v11845 = vsel %vm2032, %v10832, %v11844
  %v11846 = vsel %vm9939, %v11796, %v11845
  %v11847 = vsel %vm2034, %v10840, %v11846
  %v11848 = vsel %vm9942, %v10844, %v11847
  %v11849 = vsel %vm2036, %v10848, %v11848
  %v11850 = vsel %vm9945, %v10852, %v11849
  %v11851 = vsel %vm9936, %v11800, %v10856
  %v11852 = vsel %vm2032, %v10864, %v11851
  %v11853 = vsel %vm9939, %v10868, %v11852
  %v11854 = vsel %vm2034, %v10872, %v11853
  %v11855 = vsel %vm9942, %v10876, %v11854
  %v11856 = vsel %vm2036, %v10880, %v11855
  %v11857 = vsel %vm9945, %v11804, %v11856
  %v11858 = vsel %vm9936, %v10892, %v10888
  %v11859 = vsel %vm2032, %v10896, %v11858
  %v11860 = vsel %vm9939, %v10900, %v11859
  %v11861 = vsel %vm2034, %v10904, %v11860
  %v11862 = vsel %vm9942, %v11808, %v11861
  %v11863 = vsel %vm2036, %v10912, %v11862
  %v11864 = vsel %vm9945, %v10916, %v11863
  %v11865 = vsel %vm9936, %v10924, %v10920
  %v11866 = vsel %vm2032, %v10928, %v11865
  %v11867 = vsel %vm9939, %v11812, %v11866
  %v11868 = vsel %vm2034, %v10936, %v11867
  %v11869 = vsel %vm9942, %v10940, %v11868
  %v11870 = vsel %vm2036, %v10944, %v11869
  %v11871 = vsel %vm9945, %v10948, %v11870
  %v11872 = vsel %vm9936, %v11816, %v10952
  %v11873 = vsel %vm2032, %v10960, %v11872
  %v11874 = vsel %vm9939, %v10964, %v11873
  %v11875 = vsel %vm2034, %v10968, %v11874
  %v11876 = vsel %vm9942, %v10972, %v11875
  %v11877 = vsel %vm2036, %v10976, %v11876
  %v11878 = vsel %vm9945, %v11820, %v11877
  %v11879 = vsel %vm9936, %v10988, %v10984
  %v11880 = vsel %vm2032, %v10992, %v11879
  %v11881 = vsel %vm9939, %v10996, %v11880
  %v11882 = vsel %vm2034, %v11000, %v11881
  %v11883 = vsel %vm9942, %v11824, %v11882
  %v11884 = vsel %vm2036, %v11008, %v11883
  %v11885 = vsel %vm9945, %v11012, %v11884
  %v11886 = vsel %vm9936, %v11020, %v11016
  %v11887 = vsel %vm2032, %v11024, %v11886
  %v11888 = vsel %vm9939, %v11828, %v11887
  %v11889 = vsel %vm2034, %v11032, %v11888
  %v11890 = vsel %vm9942, %v11036, %v11889
  %v11891 = vsel %vm2036, %v11040, %v11890
  %v11892 = vsel %vm9945, %v11044, %v11891
  %v11893 = vsel %vm9936, %v11832, %v11048
  %v11894 = vsel %vm2032, %v11056, %v11893
  %v11895 = vsel %vm9939, %v11060, %v11894
  %v11896 = vsel %vm2034, %v11064, %v11895
  %v11897 = vsel %vm9942, %v11068, %v11896
  %v11898 = vsel %vm2036, %v11072, %v11897
  %v11899 = vsel %vm9945, %v11836, %v11898
  %11900 = vrot.lane.b32.xlu0 %v11843, 40
  %v11901 = vpop.permute.xlu0 %11900
  %11902 = vrot.lane.b32.xlu0 %v11850, 40
  %v11903 = vpop.permute.xlu0 %11902
  %11904 = vrot.lane.b32.xlu0 %v11857, 40
  %v11905 = vpop.permute.xlu0 %11904
  %11906 = vrot.lane.b32.xlu0 %v11864, 40
  %v11907 = vpop.permute.xlu0 %11906
  %11908 = vrot.lane.b32.xlu0 %v11871, 40
  %v11909 = vpop.permute.xlu0 %11908
  %11910 = vrot.lane.b32.xlu0 %v11878, 40
  %v11911 = vpop.permute.xlu0 %11910
  %11912 = vrot.lane.b32.xlu0 %v11885, 40
  %v11913 = vpop.permute.xlu0 %11912
  %11914 = vrot.lane.b32.xlu0 %v11892, 40
  %v11915 = vpop.permute.xlu0 %11914
  %11916 = vrot.lane.b32.xlu0 %v11899, 40
  %v11917 = vpop.permute.xlu0 %11916
  %vm11927 = vcmask 392512
  %11928 = vst.msk [vmem:[#allocation2] sm:$0xff] %vm11927, %v11901
  %11929 = vst.msk [vmem:[#allocation2 + $0x8] sm:$0xff] %vm11927, %v11903
  %11930 = vst.msk [vmem:[#allocation2 + $0x10] sm:$0xff] %vm11927, %v11905
  %11931 = vst.msk [vmem:[#allocation2 + $0x18] sm:$0xff] %vm11927, %v11907
  %11932 = vst.msk [vmem:[#allocation2 + $0x20] sm:$0xff] %vm11927, %v11909
  %11933 = vst.msk [vmem:[#allocation2 + $0x28] sm:$0xff] %vm11927, %v11911
  %11934 = vst.msk [vmem:[#allocation2 + $0x30] sm:$0xff] %vm11927, %v11913
  %11935 = vst.msk [vmem:[#allocation2 + $0x38] sm:$0xff] %vm11927, %v11915
  %11936 = vst.msk [vmem:[#allocation2 + $0x40] sm:$0xff] %vm11927, %v11917
  %v11937 = vlaneseq
  %v11938 = vshrl.u32 %v11937, 7
  %v11939 = vsub.s32 0, %v11938
  %v11940 = vrot.slane %v9232, %v11939
  %v11941 = vlaneseq
  %v11942 = vshrl.u32 %v11941, 7
  %v11943 = vsub.s32 0, %v11942
  %v11944 = vrot.slane %v9240, %v11943
  %v11945 = vlaneseq
  %v11946 = vshrl.u32 %v11945, 7
  %v11947 = vsub.s32 0, %v11946
  %v11948 = vrot.slane %v9239, %v11947
  %v11949 = vlaneseq
  %v11950 = vshrl.u32 %v11949, 7
  %v11951 = vsub.s32 0, %v11950
  %v11952 = vrot.slane %v9241, %v11951
  %v11953 = vlaneseq
  %v11954 = vshrl.u32 %v11953, 7
  %v11955 = vsub.s32 0, %v11954
  %v11956 = vrot.slane %v9249, %v11955
  %v11957 = vlaneseq
  %v11958 = vshrl.u32 %v11957, 7
  %v11959 = vsub.s32 0, %v11958
  %v11960 = vrot.slane %v9257, %v11959
  %v11961 = vlaneseq
  %v11962 = vshrl.u32 %v11961, 7
  %v11963 = vsub.s32 0, %v11962
  %v11964 = vrot.slane %v9621, %v11963
  %v11965 = vlaneseq
  %v11966 = vshrl.u32 %v11965, 7
  %v11967 = vsub.s32 0, %v11966
  %v11968 = vrot.slane %v9623, %v11967
  %v11969 = vlaneseq
  %v11970 = vshrl.u32 %v11969, 7
  %v11971 = vsub.s32 0, %v11970
  %v11972 = vrot.slane %v9631, %v11971
  %v11973 = vlaneseq
  %v11974 = vshrl.u32 %v11973, 7
  %v11975 = vsub.s32 0, %v11974
  %v11976 = vrot.slane %v9639, %v11975
  %v11977 = vlaneseq
  %v11978 = vshrl.u32 %v11977, 7
  %v11979 = vsub.s32 0, %v11978
  %v11980 = vrot.slane %v9638, %v11979
  %v11981 = vlaneseq
  %v11982 = vshrl.u32 %v11981, 7
  %v11983 = vsub.s32 0, %v11982
  %v11984 = vrot.slane %v9640, %v11983
  %v11985 = vsel %vm9936, %v9679, %v9675
  %v11986 = vsel %vm2032, %v9683, %v11985
  %v11987 = vsel %vm9939, %v9687, %v11986
  %v11988 = vsel %vm2034, %v9691, %v11987
  %v11989 = vsel %vm9942, %v9695, %v11988
  %v11990 = vsel %vm2036, %v9699, %v11989
  %v11991 = vsel %vm9945, %v9703, %v11990
  %v11992 = vsel %vm9936, %v9711, %v9707
  %v11993 = vsel %vm2032, %v9715, %v11992
  %v11994 = vsel %vm9939, %v9719, %v11993
  %v11995 = vsel %vm2034, %v9723, %v11994
  %v11996 = vsel %vm9942, %v9727, %v11995
  %v11997 = vsel %vm2036, %v9731, %v11996
  %v11998 = vsel %vm9945, %v9735, %v11997
  %v11999 = vsel %vm9936, %v9743, %v9739
  %v12000 = vsel %vm2032, %v9747, %v11999
  %v12001 = vsel %vm9939, %v9751, %v12000
  %v12002 = vsel %vm2034, %v9755, %v12001
  %v12003 = vsel %vm9942, %v9759, %v12002
  %v12004 = vsel %vm2036, %v9763, %v12003
  %v12005 = vsel %vm9945, %v9767, %v12004
  %v12006 = vsel %vm9936, %v9775, %v9771
  %v12007 = vsel %vm2032, %v9779, %v12006
  %v12008 = vsel %vm9939, %v9783, %v12007
  %v12009 = vsel %vm2034, %v9787, %v12008
  %v12010 = vsel %vm9942, %v9791, %v12009
  %v12011 = vsel %vm2036, %v11940, %v12010
  %v12012 = vsel %vm9945, %v11944, %v12011
  %v12013 = vsel %vm9936, %v11952, %v11948
  %v12014 = vsel %vm2032, %v11956, %v12013
  %v12015 = vsel %vm9939, %v11960, %v12014
  %v12016 = vsel %vm2034, %v9819, %v12015
  %v12017 = vsel %vm9942, %v9823, %v12016
  %v12018 = vsel %vm2036, %v9827, %v12017
  %v12019 = vsel %vm9945, %v9831, %v12018
  %v12020 = vsel %vm9936, %v9839, %v9835
  %v12021 = vsel %vm2032, %v9843, %v12020
  %v12022 = vsel %vm9939, %v9847, %v12021
  %v12023 = vsel %vm2034, %v9851, %v12022
  %v12024 = vsel %vm9942, %v9855, %v12023
  %v12025 = vsel %vm2036, %v9859, %v12024
  %v12026 = vsel %vm9945, %v9863, %v12025
  %v12027 = vsel %vm9936, %v9871, %v9867
  %v12028 = vsel %vm2032, %v9875, %v12027
  %v12029 = vsel %vm9939, %v9879, %v12028
  %v12030 = vsel %vm2034, %v9883, %v12029
  %v12031 = vsel %vm9942, %v9887, %v12030
  %v12032 = vsel %vm2036, %v9891, %v12031
  %v12033 = vsel %vm9945, %v9895, %v12032
  %v12034 = vsel %vm9936, %v9903, %v9899
  %v12035 = vsel %vm2032, %v9907, %v12034
  %v12036 = vsel %vm9939, %v9911, %v12035
  %v12037 = vsel %vm2034, %v9915, %v12036
  %v12038 = vsel %vm9942, %v9919, %v12037
  %v12039 = vsel %vm2036, %v9923, %v12038
  %v12040 = vsel %vm9945, %v9927, %v12039
  %v12041 = vsel %vm9936, %v9935, %v9931
  %v12042 = vsel %vm2032, %v11964, %v12041
  %v12043 = vsel %vm9939, %v11968, %v12042
  %v12044 = vsel %vm2034, %v11972, %v12043
  %v12045 = vsel %vm9942, %v11976, %v12044
  %v12046 = vsel %vm2036, %v11980, %v12045
  %v12047 = vsel %vm9945, %v11984, %v12046
  %12048 = vrot.lane.b32.xlu0 %v11991, 48
  %v12049 = vpop.permute.xlu0 %12048
  %12050 = vrot.lane.b32.xlu0 %v11998, 48
  %v12051 = vpop.permute.xlu0 %12050
  %12052 = vrot.lane.b32.xlu0 %v12005, 48
  %v12053 = vpop.permute.xlu0 %12052
  %12054 = vrot.lane.b32.xlu0 %v12012, 48
  %v12055 = vpop.permute.xlu0 %12054
  %12056 = vrot.lane.b32.xlu0 %v12019, 48
  %v12057 = vpop.permute.xlu0 %12056
  %12058 = vrot.lane.b32.xlu0 %v12026, 48
  %v12059 = vpop.permute.xlu0 %12058
  %12060 = vrot.lane.b32.xlu0 %v12033, 48
  %v12061 = vpop.permute.xlu0 %12060
  %12062 = vrot.lane.b32.xlu0 %v12040, 48
  %v12063 = vpop.permute.xlu0 %12062
  %12064 = vrot.lane.b32.xlu0 %v12047, 48
  %v12065 = vpop.permute.xlu0 %12064
  %vm12075 = vcmask 458112
  %12076 = vst.msk [vmem:[#allocation2] sm:$0xff] %vm12075, %v12049
  %12077 = vst.msk [vmem:[#allocation2 + $0x8] sm:$0xff] %vm12075, %v12051
  %12078 = vst.msk [vmem:[#allocation2 + $0x10] sm:$0xff] %vm12075, %v12053
  %12079 = vst.msk [vmem:[#allocation2 + $0x18] sm:$0xff] %vm12075, %v12055
  %12080 = vst.msk [vmem:[#allocation2 + $0x20] sm:$0xff] %vm12075, %v12057
  %12081 = vst.msk [vmem:[#allocation2 + $0x28] sm:$0xff] %vm12075, %v12059
  %12082 = vst.msk [vmem:[#allocation2 + $0x30] sm:$0xff] %vm12075, %v12061
  %12083 = vst.msk [vmem:[#allocation2 + $0x38] sm:$0xff] %vm12075, %v12063
  %12084 = vst.msk [vmem:[#allocation2 + $0x40] sm:$0xff] %vm12075, %v12065
  %v12085 = vrot.slane %v9232, 7
  %v12086 = vrot.slane %v12085, 2
  %v12087 = vrot.slane %v9240, 7
  %v12088 = vsel %vm2037, %v12086, %v12087
  %v12089 = vrot.slane %v12087, 2
  %v12090 = vrot.slane %v9239, 7
  %v12091 = vsel %vm2037, %v12089, %v12090
  %v12092 = vrot.slane %v12090, 2
  %v12093 = vrot.slane %v9241, 7
  %v12094 = vsel %vm2037, %v12092, %v12093
  %v12095 = vrot.slane %v12093, 2
  %v12096 = vrot.slane %v9249, 7
  %v12097 = vsel %vm2037, %v12095, %v12096
  %v12098 = vrot.slane %v12096, 2
  %v12099 = vrot.slane %v9257, 7
  %v12100 = vsel %vm2037, %v12098, %v12099
  %v12101 = vrot.slane %v12099, 2
  %v12102 = vrot.slane %v9256, 7
  %v12103 = vsel %vm2037, %v12101, %v12102
  %v12104 = vrot.slane %v9621, 7
  %v12105 = vrot.slane %v12104, 2
  %v12106 = vrot.slane %v9623, 7
  %v12107 = vsel %vm2037, %v12105, %v12106
  %v12108 = vrot.slane %v12106, 2
  %v12109 = vrot.slane %v9631, 7
  %v12110 = vsel %vm2037, %v12108, %v12109
  %v12111 = vrot.slane %v12109, 2
  %v12112 = vrot.slane %v9639, 7
  %v12113 = vsel %vm2037, %v12111, %v12112
  %v12114 = vrot.slane %v12112, 2
  %v12115 = vrot.slane %v9638, 7
  %v12116 = vsel %vm2037, %v12114, %v12115
  %v12117 = vrot.slane %v12115, 2
  %v12118 = vrot.slane %v9640, 7
  %v12119 = vsel %vm2037, %v12117, %v12118
  %v12120 = vrot.slane %v12118, 2
  %v12121 = vrot.slane %v9647, 7
  %v12122 = vsel %vm2037, %v12120, %v12121
  %v12123 = vlaneseq
  %v12124 = vshrl.u32 %v12123, 7
  %v12125 = vsub.s32 0, %v12124
  %v12126 = vrot.slane %v12088, %v12125
  %v12127 = vlaneseq
  %v12128 = vshrl.u32 %v12127, 7
  %v12129 = vsub.s32 0, %v12128
  %v12130 = vrot.slane %v12091, %v12129
  %v12131 = vlaneseq
  %v12132 = vshrl.u32 %v12131, 7
  %v12133 = vsub.s32 0, %v12132
  %v12134 = vrot.slane %v12094, %v12133
  %v12135 = vlaneseq
  %v12136 = vshrl.u32 %v12135, 7
  %v12137 = vsub.s32 0, %v12136
  %v12138 = vrot.slane %v12097, %v12137
  %v12139 = vlaneseq
  %v12140 = vshrl.u32 %v12139, 7
  %v12141 = vsub.s32 0, %v12140
  %v12142 = vrot.slane %v12100, %v12141
  %v12143 = vlaneseq
  %v12144 = vshrl.u32 %v12143, 7
  %v12145 = vsub.s32 0, %v12144
  %v12146 = vrot.slane %v12103, %v12145
  %v12147 = vlaneseq
  %v12148 = vshrl.u32 %v12147, 7
  %v12149 = vsub.s32 0, %v12148
  %v12150 = vrot.slane %v12107, %v12149
  %v12151 = vlaneseq
  %v12152 = vshrl.u32 %v12151, 7
  %v12153 = vsub.s32 0, %v12152
  %v12154 = vrot.slane %v12110, %v12153
  %v12155 = vlaneseq
  %v12156 = vshrl.u32 %v12155, 7
  %v12157 = vsub.s32 0, %v12156
  %v12158 = vrot.slane %v12113, %v12157
  %v12159 = vlaneseq
  %v12160 = vshrl.u32 %v12159, 7
  %v12161 = vsub.s32 0, %v12160
  %v12162 = vrot.slane %v12116, %v12161
  %v12163 = vlaneseq
  %v12164 = vshrl.u32 %v12163, 7
  %v12165 = vsub.s32 0, %v12164
  %v12166 = vrot.slane %v12119, %v12165
  %v12167 = vlaneseq
  %v12168 = vshrl.u32 %v12167, 7
  %v12169 = vsub.s32 0, %v12168
  %v12170 = vrot.slane %v12122, %v12169
  %v12171 = vsel %vm9936, %v10280, %v10276
  %v12172 = vsel %vm2032, %v10284, %v12171
  %v12173 = vsel %vm9939, %v10288, %v12172
  %v12174 = vsel %vm2034, %v10292, %v12173
  %v12175 = vsel %vm9942, %v10296, %v12174
  %v12176 = vsel %vm2036, %v10300, %v12175
  %v12177 = vsel %vm9945, %v10304, %v12176
  %v12178 = vsel %vm9936, %v10312, %v10308
  %v12179 = vsel %vm2032, %v10316, %v12178
  %v12180 = vsel %vm9939, %v10320, %v12179
  %v12181 = vsel %vm2034, %v10324, %v12180
  %v12182 = vsel %vm9942, %v10328, %v12181
  %v12183 = vsel %vm2036, %v10332, %v12182
  %v12184 = vsel %vm9945, %v10336, %v12183
  %v12185 = vsel %vm9936, %v10344, %v10340
  %v12186 = vsel %vm2032, %v10348, %v12185
  %v12187 = vsel %vm9939, %v10352, %v12186
  %v12188 = vsel %vm2034, %v10356, %v12187
  %v12189 = vsel %vm9942, %v10360, %v12188
  %v12190 = vsel %vm2036, %v10364, %v12189
  %v12191 = vsel %vm9945, %v10368, %v12190
  %v12192 = vsel %vm9936, %v10376, %v10372
  %v12193 = vsel %vm2032, %v10380, %v12192
  %v12194 = vsel %vm9939, %v10384, %v12193
  %v12195 = vsel %vm2034, %v10388, %v12194
  %v12196 = vsel %vm9942, %v10392, %v12195
  %v12197 = vsel %vm2036, %v12126, %v12196
  %v12198 = vsel %vm9945, %v12130, %v12197
  %v12199 = vsel %vm9936, %v12138, %v12134
  %v12200 = vsel %vm2032, %v12142, %v12199
  %v12201 = vsel %vm9939, %v12146, %v12200
  %v12202 = vsel %vm2034, %v10420, %v12201
  %v12203 = vsel %vm9942, %v10424, %v12202
  %v12204 = vsel %vm2036, %v10428, %v12203
  %v12205 = vsel %vm9945, %v10432, %v12204
  %v12206 = vsel %vm9936, %v10440, %v10436
  %v12207 = vsel %vm2032, %v10444, %v12206
  %v12208 = vsel %vm9939, %v10448, %v12207
  %v12209 = vsel %vm2034, %v10452, %v12208
  %v12210 = vsel %vm9942, %v10456, %v12209
  %v12211 = vsel %vm2036, %v10460, %v12210
  %v12212 = vsel %vm9945, %v10464, %v12211
  %v12213 = vsel %vm9936, %v10472, %v10468
  %v12214 = vsel %vm2032, %v10476, %v12213
  %v12215 = vsel %vm9939, %v10480, %v12214
  %v12216 = vsel %vm2034, %v10484, %v12215
  %v12217 = vsel %vm9942, %v10488, %v12216
  %v12218 = vsel %vm2036, %v10492, %v12217
  %v12219 = vsel %vm9945, %v10496, %v12218
  %v12220 = vsel %vm9936, %v10504, %v10500
  %v12221 = vsel %vm2032, %v10508, %v12220
  %v12222 = vsel %vm9939, %v10512, %v12221
  %v12223 = vsel %vm2034, %v10516, %v12222
  %v12224 = vsel %vm9942, %v10520, %v12223
  %v12225 = vsel %vm2036, %v10524, %v12224
  %v12226 = vsel %vm9945, %v10528, %v12225
  %v12227 = vsel %vm9936, %v10536, %v10532
  %v12228 = vsel %vm2032, %v12150, %v12227
  %v12229 = vsel %vm9939, %v12154, %v12228
  %v12230 = vsel %vm2034, %v12158, %v12229
  %v12231 = vsel %vm9942, %v12162, %v12230
  %v12232 = vsel %vm2036, %v12166, %v12231
  %v12233 = vsel %vm9945, %v12170, %v12232
  %12234 = vrot.lane.b32.xlu0 %v12177, 56
  %v12235 = vpop.permute.xlu0 %12234
  %12236 = vrot.lane.b32.xlu0 %v12184, 56
  %v12237 = vpop.permute.xlu0 %12236
  %12238 = vrot.lane.b32.xlu0 %v12191, 56
  %v12239 = vpop.permute.xlu0 %12238
  %12240 = vrot.lane.b32.xlu0 %v12198, 56
  %v12241 = vpop.permute.xlu0 %12240
  %12242 = vrot.lane.b32.xlu0 %v12205, 56
  %v12243 = vpop.permute.xlu0 %12242
  %12244 = vrot.lane.b32.xlu0 %v12212, 56
  %v12245 = vpop.permute.xlu0 %12244
  %12246 = vrot.lane.b32.xlu0 %v12219, 56
  %v12247 = vpop.permute.xlu0 %12246
  %12248 = vrot.lane.b32.xlu0 %v12226, 56
  %v12249 = vpop.permute.xlu0 %12248
  %12250 = vrot.lane.b32.xlu0 %v12233, 56
  %v12251 = vpop.permute.xlu0 %12250
  %vm12261 = vcmask 523712
  %12262 = vst.msk [vmem:[#allocation2] sm:$0xff] %vm12261, %v12235
  %12263 = vst.msk [vmem:[#allocation2 + $0x8] sm:$0xff] %vm12261, %v12237
  %12264 = vst.msk [vmem:[#allocation2 + $0x10] sm:$0xff] %vm12261, %v12239
  %12265 = vst.msk [vmem:[#allocation2 + $0x18] sm:$0xff] %vm12261, %v12241
  %12266 = vst.msk [vmem:[#allocation2 + $0x20] sm:$0xff] %vm12261, %v12243
  %12267 = vst.msk [vmem:[#allocation2 + $0x28] sm:$0xff] %vm12261, %v12245
  %12268 = vst.msk [vmem:[#allocation2 + $0x30] sm:$0xff] %vm12261, %v12247
  %12269 = vst.msk [vmem:[#allocation2 + $0x38] sm:$0xff] %vm12261, %v12249
  %12270 = vst.msk [vmem:[#allocation2 + $0x40] sm:$0xff] %vm12261, %v12251
  %v12271 = vlaneseq
  %v12272 = vshrl.u32 %v12271, 7
  %v12273 = vsub.s32 0, %v12272
  %v12274 = vrot.slane %v9256, %v12273
  %v12275 = vlaneseq
  %v12276 = vshrl.u32 %v12275, 7
  %v12277 = vsub.s32 0, %v12276
  %v12278 = vrot.slane %v9647, %v12277
  %v12279 = vsel %vm9936, %v9683, %v9679
  %v12280 = vsel %vm2032, %v9687, %v12279
  %v12281 = vsel %vm9939, %v9691, %v12280
  %v12282 = vsel %vm2034, %v9695, %v12281
  %v12283 = vsel %vm9942, %v10644, %v12282
  %v12284 = vsel %vm2036, %v9703, %v12283
  %v12285 = vsel %vm9945, %v9707, %v12284
  %v12286 = vsel %vm9936, %v9715, %v9711
  %v12287 = vsel %vm2032, %v9719, %v12286
  %v12288 = vsel %vm9939, %v10648, %v12287
  %v12289 = vsel %vm2034, %v9727, %v12288
  %v12290 = vsel %vm9942, %v9731, %v12289
  %v12291 = vsel %vm2036, %v9735, %v12290
  %v12292 = vsel %vm9945, %v9739, %v12291
  %v12293 = vsel %vm9936, %v10652, %v9743
  %v12294 = vsel %vm2032, %v9751, %v12293
  %v12295 = vsel %vm9939, %v9755, %v12294
  %v12296 = vsel %vm2034, %v9759, %v12295
  %v12297 = vsel %vm9942, %v9763, %v12296
  %v12298 = vsel %vm2036, %v9767, %v12297
  %v12299 = vsel %vm9945, %v10656, %v12298
  %v12300 = vsel %vm9936, %v9779, %v9775
  %v12301 = vsel %vm2032, %v9783, %v12300
  %v12302 = vsel %vm9939, %v9787, %v12301
  %v12303 = vsel %vm2034, %v9791, %v12302
  %v12304 = vsel %vm9942, %v10660, %v12303
  %v12305 = vsel %vm2036, %v11944, %v12304
  %v12306 = vsel %vm9945, %v11948, %v12305
  %v12307 = vsel %vm9936, %v11956, %v11952
  %v12308 = vsel %vm2032, %v11960, %v12307
  %v12309 = vsel %vm9939, %v12274, %v12308
  %v12310 = vsel %vm2034, %v9823, %v12309
  %v12311 = vsel %vm9942, %v9827, %v12310
  %v12312 = vsel %vm2036, %v9831, %v12311
  %v12313 = vsel %vm9945, %v9835, %v12312
  %v12314 = vsel %vm9936, %v10668, %v9839
  %v12315 = vsel %vm2032, %v9847, %v12314
  %v12316 = vsel %vm9939, %v9851, %v12315
  %v12317 = vsel %vm2034, %v9855, %v12316
  %v12318 = vsel %vm9942, %v9859, %v12317
  %v12319 = vsel %vm2036, %v9863, %v12318
  %v12320 = vsel %vm9945, %v10672, %v12319
  %v12321 = vsel %vm9936, %v9875, %v9871
  %v12322 = vsel %vm2032, %v9879, %v12321
  %v12323 = vsel %vm9939, %v9883, %v12322
  %v12324 = vsel %vm2034, %v9887, %v12323
  %v12325 = vsel %vm9942, %v10676, %v12324
  %v12326 = vsel %vm2036, %v9895, %v12325
  %v12327 = vsel %vm9945, %v9899, %v12326
  %v12328 = vsel %vm9936, %v9907, %v9903
  %v12329 = vsel %vm2032, %v9911, %v12328
  %v12330 = vsel %vm9939, %v10680, %v12329
  %v12331 = vsel %vm2034, %v9919, %v12330
  %v12332 = vsel %vm9942, %v9923, %v12331
  %v12333 = vsel %vm2036, %v9927, %v12332
  %v12334 = vsel %vm9945, %v9931, %v12333
  %v12335 = vsel %vm9936, %v10684, %v9935
  %v12336 = vsel %vm2032, %v11968, %v12335
  %v12337 = vsel %vm9939, %v11972, %v12336
  %v12338 = vsel %vm2034, %v11976, %v12337
  %v12339 = vsel %vm9942, %v11980, %v12338
  %v12340 = vsel %vm2036, %v11984, %v12339
  %v12341 = vsel %vm9945, %v12278, %v12340
  %12342 = vrot.lane.b32.xlu0 %v12285, 64
  %v12343 = vpop.permute.xlu0 %12342
  %12344 = vrot.lane.b32.xlu0 %v12292, 64
  %v12345 = vpop.permute.xlu0 %12344
  %12346 = vrot.lane.b32.xlu0 %v12299, 64
  %v12347 = vpop.permute.xlu0 %12346
  %12348 = vrot.lane.b32.xlu0 %v12306, 64
  %v12349 = vpop.permute.xlu0 %12348
  %12350 = vrot.lane.b32.xlu0 %v12313, 64
  %v12351 = vpop.permute.xlu0 %12350
  %12352 = vrot.lane.b32.xlu0 %v12320, 64
  %v12353 = vpop.permute.xlu0 %12352
  %12354 = vrot.lane.b32.xlu0 %v12327, 64
  %v12355 = vpop.permute.xlu0 %12354
  %12356 = vrot.lane.b32.xlu0 %v12334, 64
  %v12357 = vpop.permute.xlu0 %12356
  %12358 = vrot.lane.b32.xlu0 %v12341, 64
  %v12359 = vpop.permute.xlu0 %12358
  %vm12369 = vcmask 589312
  %12370 = vst.msk [vmem:[#allocation2] sm:$0xff] %vm12369, %v12343
  %12371 = vst.msk [vmem:[#allocation2 + $0x8] sm:$0xff] %vm12369, %v12345
  %12372 = vst.msk [vmem:[#allocation2 + $0x10] sm:$0xff] %vm12369, %v12347
  %12373 = vst.msk [vmem:[#allocation2 + $0x18] sm:$0xff] %vm12369, %v12349
  %12374 = vst.msk [vmem:[#allocation2 + $0x20] sm:$0xff] %vm12369, %v12351
  %12375 = vst.msk [vmem:[#allocation2 + $0x28] sm:$0xff] %vm12369, %v12353
  %12376 = vst.msk [vmem:[#allocation2 + $0x30] sm:$0xff] %vm12369, %v12355
  %12377 = vst.msk [vmem:[#allocation2 + $0x38] sm:$0xff] %vm12369, %v12357
  %12378 = vst.msk [vmem:[#allocation2 + $0x40] sm:$0xff] %vm12369, %v12359
  %v12379 = vld [vmem:[#allocation2] sm:$0xff]
  %v12380 = vld [vmem:[#allocation2 + $0x8] sm:$0xff]
  %v12381 = vld [vmem:[#allocation2 + $0x10] sm:$0xff]
  %v12382 = vld [vmem:[#allocation2 + $0x18] sm:$0xff]
  %v12383 = vld [vmem:[#allocation2 + $0x20] sm:$0xff]
  %v12384 = vld [vmem:[#allocation2 + $0x28] sm:$0xff]
  %v12385 = vld [vmem:[#allocation2 + $0x30] sm:$0xff]
  %v12386 = vld [vmem:[#allocation2 + $0x38] sm:$0xff]
  %v12387 = vld [vmem:[#allocation2 + $0x40] sm:$0xff]
  %v12388 = vpack.c.bf16 %v12380, %v12379
  %v12389 = vpack.c.bf16 %v12382, %v12381
  %v12390 = vpack.c.bf16 %v12384, %v12383
  %v12391 = vpack.c.bf16 %v12386, %v12385
  %v12392 = vpack.c.bf16 %v12387, %v12387
  %v12393 = vld [vmem:[%s4] sm:$0xf]
  %v12394 = vld [vmem:[%s4 + $0x4] sm:$0xf]
  %v12395 = vld [vmem:[%s4 + $0x8] sm:$0xf]
  %v12396 = vld [vmem:[%s4 + $0xc] sm:$0xf]
  %v12397 = vld [vmem:[%s4 + $0x10] sm:$0xf]
  %v12398 = vld [vmem:[%s4 + $0x14] sm:$0xf]
  %v12399 = vld [vmem:[%s4 + $0x18] sm:$0xf]
  %v12400 = vld [vmem:[%s4 + $0x1c] sm:$0xf]
  %v12401 = vld [vmem:[%s4 + $0x20] sm:$0xf]
  %v12411 = vunpack.c.l.b16 %v12393
  %v12412 = vunpack.c.l.b16 %v12394
  %v12413 = vunpack.c.l.b16 %v12395
  %v12414 = vunpack.c.l.b16 %v12396
  %v12415 = vunpack.c.l.b16 %v12397
  %v12416 = vunpack.c.l.b16 %v12398
  %v12417 = vunpack.c.l.b16 %v12399
  %v12418 = vunpack.c.l.b16 %v12400
  %v12419 = vunpack.c.l.b16 %v12401
  %v12420 = vpack.c.b16 %v12412, %v12411
  %v12421 = vpack.c.b16 %v12414, %v12413
  %v12422 = vpack.c.b16 %v12416, %v12415
  %v12423 = vpack.c.b16 %v12418, %v12417
  %v12424 = vpack.c.b16 %v12419, %v12419
  %vm12429 = vcmask 588800
  %v12431 = vsel %vm12429, %v12388, 0
  %v12434 = vsel %vm12429, %v12389, 0
  %v12437 = vsel %vm12429, %v12390, 0
  %v12440 = vsel %vm12429, %v12391, 0
  %v12443 = vsel %vm12429, %v12392, 0
  %vm12445 = vcmask 1043456
  %v12447 = vsel %vm12445, %v12424, 0
  %12449 = vmatprep.subr.bf16.mxu0 0
  %12450 = vmatpush1.bf16.msra.mxu0 %v12420
  %12451 = vmatprep.subr.bf16.mxu0 0
  %12452 = vmatpush1.bf16.msra.mxu0 %v12421
  %12453 = vmatprep.subr.bf16.mxu0 0
  %12454 = vmatpush1.bf16.msra.mxu0 %v12422
  %12455 = vmatprep.subr.bf16.mxu0 0
  %12456 = vmatpush1.bf16.msra.mxu0 %v12423
  %12457 = vmatprep.subr.bf16.mxu0 0
  %12458 = vmatpush1.bf16.msra.mxu0 %v12447
  %12459 = vmatprep.subr.bf16.mxu0 0
  %12460 = vmatpush1.bf16.msra.mxu0 0
  %12461 = vmatprep.subr.bf16.mxu0 0
  %12462 = vmatpush1.bf16.msra.mxu0 0
  %12463 = vmatprep.subr.bf16.mxu0 0
  %12464 = vmatpush1.bf16.msra.mxu0 0
  %12465 = vmatprep.subr.bf16.mxu0 0
  %12466 = vmatpush1.bf16.msra.mxu0 0
  %12467 = vmatprep.subr.bf16.mxu0 0
  %12468 = vmatpush1.bf16.msra.mxu0 0
  %12469 = vmatprep.subr.bf16.mxu0 0
  %12470 = vmatpush1.bf16.msra.mxu0 0
  %12471 = vmatprep.subr.bf16.mxu0 0
  %12472 = vmatpush1.bf16.msra.mxu0 0
  %12473 = vmatprep.subr.bf16.mxu0 0
  %12474 = vmatpush1.bf16.msra.mxu0 0
  %12475 = vmatprep.subr.bf16.mxu0 0
  %12476 = vmatpush1.bf16.msra.mxu0 0
  %12477 = vmatprep.subr.bf16.mxu0 0
  %12478 = vmatpush1.bf16.msra.mxu0 0
  %12479 = vmatprep.subr.bf16.mxu0 0
  %12480 = vmatpush1.bf16.msra.mxu0 0
  %12481 = vmatprep.mubr.bf16.mxu0 0
  %12482 = vmatmul.mubr.bf16.gmra.mrb[0].mxu0 %v12431
  %v12483 = vpop.f32.mrb[0].mxu0
  %v12484 = vadd.f32 0.0, %v12483
  %v12485 = vpop.f32.mrb[0].mxu0
  %v12486 = vpop.f32.mrb[0].mxu0
  %v12487 = vadd.f32 0.0, %v12486
  %v12488 = vpop.f32.mrb[0].mxu0
  %12489 = vmatprep.mubr.bf16.mxu0 0
  %12490 = vmatmul.mubr.bf16.gmra.mrb[0].mxu0 %v12434
  %v12491 = vpop.f32.mrb[0].mxu0
  %v12492 = vadd.f32 0.0, %v12491
  %v12493 = vpop.f32.mrb[0].mxu0
  %v12494 = vpop.f32.mrb[0].mxu0
  %v12495 = vadd.f32 0.0, %v12494
  %v12496 = vpop.f32.mrb[0].mxu0
  %12497 = vmatprep.mubr.bf16.mxu0 0
  %12498 = vmatmul.mubr.bf16.gmra.mrb[0].mxu0 %v12437
  %v12499 = vpop.f32.mrb[0].mxu0
  %v12500 = vadd.f32 0.0, %v12499
  %v12501 = vpop.f32.mrb[0].mxu0
  %v12502 = vpop.f32.mrb[0].mxu0
  %v12503 = vadd.f32 0.0, %v12502
  %v12504 = vpop.f32.mrb[0].mxu0
  %12505 = vmatprep.mubr.bf16.mxu0 0
  %12506 = vmatmul.mubr.bf16.gmra.mrb[0].mxu0 %v12440
  %v12507 = vpop.f32.mrb[0].mxu0
  %v12508 = vadd.f32 0.0, %v12507
  %v12509 = vpop.f32.mrb[0].mxu0
  %v12510 = vpop.f32.mrb[0].mxu0
  %v12511 = vadd.f32 0.0, %v12510
  %v12512 = vpop.f32.mrb[0].mxu0
  %12513 = vmatprep.mubr.bf16.mxu0 0
  %12514 = vmatmul.mubr.bf16.gmra.mrb[0].mxu0 %v12443
  %v12515 = vpop.f32.mrb[0].mxu0
  %v12516 = vadd.f32 0.0, %v12515
  %v12517 = vpop.f32.mrb[0].mxu0
  %v12518 = vpop.f32.mrb[0].mxu0
  %v12519 = vpop.f32.mrb[0].mxu0
  %12520 = vdwg.mxu0
  %v12521 = vmax.f32 %v12484, 0.0
  %v12522 = vmax.f32 %v12487, 0.0
  %v12523 = vmax.f32 %v12492, 0.0
  %v12524 = vmax.f32 %v12495, 0.0
  %v12525 = vmax.f32 %v12500, 0.0
  %v12526 = vmax.f32 %v12503, 0.0
  %v12527 = vmax.f32 %v12508, 0.0
  %v12528 = vmax.f32 %v12511, 0.0
  %v12529 = vmax.f32 %v12516, 0.0
  %vm12530 = vcmask 130048
  %v12531 = vsel %vm12530, %v12521, 0.0
  %v12532 = vsel %vm12530, %v12522, 0.0
  %v12533 = vadd.f32 %v12531, %v12532
  %v12534 = vsel %vm12530, %v12523, 0.0
  %v12535 = vadd.f32 %v12533, %v12534
  %v12536 = vsel %vm12530, %v12524, 0.0
  %v12537 = vadd.f32 %v12535, %v12536
  %v12538 = vsel %vm12530, %v12525, 0.0
  %v12539 = vadd.f32 %v12537, %v12538
  %v12540 = vsel %vm12530, %v12526, 0.0
  %v12541 = vadd.f32 %v12539, %v12540
  %v12542 = vsel %vm12530, %v12527, 0.0
  %v12543 = vadd.f32 %v12541, %v12542
  %v12544 = vsel %vm12530, %v12528, 0.0
  %v12545 = vadd.f32 %v12543, %v12544
  %v12546 = vsel %vm12530, %v12529, 0.0
  %v12547 = vadd.f32 %v12545, %v12546
  %v12548 = vrot.slane %v12547, 4
  %v12549 = vadd.f32 %v12547, %v12548
  %v12550 = vrot.slane %v12549, 2
  %v12551 = vadd.f32 %v12549, %v12550
  %v12552 = vrot.slane %v12551, 1
  %v12553 = vadd.f32 %v12551, %v12552
  %v12554 = vmul.f32 %v12553, 0.013888889
  %v12555 = vsub.f32 %v12521, %v12554
  %v12556 = vsub.f32 %v12522, %v12554
  %v12557 = vsub.f32 %v12523, %v12554
  %v12558 = vsub.f32 %v12524, %v12554
  %v12559 = vsub.f32 %v12525, %v12554
  %v12560 = vsub.f32 %v12526, %v12554
  %v12561 = vsub.f32 %v12527, %v12554
  %v12562 = vsub.f32 %v12528, %v12554
  %v12563 = vsub.f32 %v12529, %v12554
  %v12564 = vmul.f32 %v12555, %v12555
  %v12565 = vmul.f32 %v12556, %v12556
  %v12566 = vmul.f32 %v12557, %v12557
  %v12567 = vmul.f32 %v12558, %v12558
  %v12568 = vmul.f32 %v12559, %v12559
  %v12569 = vmul.f32 %v12560, %v12560
  %v12570 = vmul.f32 %v12561, %v12561
  %v12571 = vmul.f32 %v12562, %v12562
  %v12572 = vmul.f32 %v12563, %v12563
  %v12573 = vsel %vm12530, %v12564, 0.0
  %v12574 = vsel %vm12530, %v12565, 0.0
  %v12575 = vadd.f32 %v12573, %v12574
  %v12576 = vsel %vm12530, %v12566, 0.0
  %v12577 = vadd.f32 %v12575, %v12576
  %v12578 = vsel %vm12530, %v12567, 0.0
  %v12579 = vadd.f32 %v12577, %v12578
  %v12580 = vsel %vm12530, %v12568, 0.0
  %v12581 = vadd.f32 %v12579, %v12580
  %v12582 = vsel %vm12530, %v12569, 0.0
  %v12583 = vadd.f32 %v12581, %v12582
  %v12584 = vsel %vm12530, %v12570, 0.0
  %v12585 = vadd.f32 %v12583, %v12584
  %v12586 = vsel %vm12530, %v12571, 0.0
  %v12587 = vadd.f32 %v12585, %v12586
  %v12588 = vsel %vm12530, %v12572, 0.0
  %v12589 = vadd.f32 %v12587, %v12588
  %v12590 = vrot.slane %v12589, 4
  %v12591 = vadd.f32 %v12589, %v12590
  %v12592 = vrot.slane %v12591, 2
  %v12593 = vadd.f32 %v12591, %v12592
  %v12594 = vrot.slane %v12593, 1
  %v12595 = vadd.f32 %v12593, %v12594
  %v12596 = vmul.f32 %v12595, 0.013888889
  %v12597 = vadd.f32 %v12596, 1e-05
  %v12598 = vrsqrt.pop %v12597
  %v12599 = vld [vmem:[%s5] sm:$0x1]
  %v12600 = vmul.f32 %v12598, %v12599
  %v12601 = vlaneseq
  %v12602 = vshrl.u32 %v12601, 7
  %v12603 = vsub.s32 0, %v12602
  %v12604 = vrot.slane %v12600, %v12603
  %v12605 = vmul.f32 %v12555, %v12604
  %v12606 = vmul.f32 %v12556, %v12604
  %v12607 = vmul.f32 %v12557, %v12604
  %v12608 = vmul.f32 %v12558, %v12604
  %v12609 = vmul.f32 %v12559, %v12604
  %v12610 = vmul.f32 %v12560, %v12604
  %v12611 = vmul.f32 %v12561, %v12604
  %v12612 = vmul.f32 %v12562, %v12604
  %v12613 = vmul.f32 %v12563, %v12604
  %v12614 = vld [vmem:[%s6] sm:$0x1]
  %v12616 = vlaneseq
  %v12617 = vshrl.u32 %v12616, 7
  %v12618 = vsub.s32 0, %v12617
  %v12619 = vrot.slane %v12614, %v12618
  %v12621 = vadd.f32 %v12605, %v12619
  %v12622 = vadd.f32 %v12606, %v12619
  %v12623 = vadd.f32 %v12607, %v12619
  %v12624 = vadd.f32 %v12608, %v12619
  %v12625 = vadd.f32 %v12609, %v12619
  %v12626 = vadd.f32 %v12610, %v12619
  %v12627 = vadd.f32 %v12611, %v12619
  %v12628 = vadd.f32 %v12612, %v12619
  %v12629 = vadd.f32 %v12613, %v12619
  %12630 = vst.msk [vmem:[%s7] sm:$0xff] %vm12530, %v12621
  %12631 = vst.msk [vmem:[%s7 + $0x8] sm:$0xff] %vm12530, %v12622
  %12632 = vst.msk [vmem:[%s7 + $0x10] sm:$0xff] %vm12530, %v12623
  %12633 = vst.msk [vmem:[%s7 + $0x18] sm:$0xff] %vm12530, %v12624
  %12634 = vst.msk [vmem:[%s7 + $0x20] sm:$0xff] %vm12530, %v12625
  %12635 = vst.msk [vmem:[%s7 + $0x28] sm:$0xff] %vm12530, %v12626
  %12636 = vst.msk [vmem:[%s7 + $0x30] sm:$0xff] %vm12530, %v12627
  %12637 = vst.msk [vmem:[%s7 + $0x38] sm:$0xff] %vm12530, %v12628
  %12638 = vst.msk [vmem:[%s7 + $0x40] sm:$0xff] %vm12530, %v12629
  // Predicated region
  $region30: #{init_model_forward.1} parent=0 // pred_check
    _
  $region31: #{init_model_forward.1} parent=0 // pred_check_branch
    %12640 = sbr.rel (0) target = $region33
  $region32: #{init_model_forward.1} parent=0 // pred_region
    _
  $region33: #{init_model_forward.1} parent=0 // pred_fallthru
    _
  // Predicated region
  $region34: #{init_model_forward.1} parent=0 // pred_check
    _
  $region35: #{init_model_forward.1} parent=0 // pred_check_branch
    %12642 = sbr.rel (0) target = $region37
  $region36: #{init_model_forward.1} parent=0 // pred_region
    _
  $region37: #{init_model_forward.1} parent=0 // pred_fallthru
    _

</llo_original>
